<compile_context>
chip_gen: v6e
topology: v6e:2x2x1
jax: 0.10.0
libtpu: 0.0.40
codegen_flags: <defaults>
</compile_context>

<pallas_src>
import functools
import numpy as np
import jax
import jax.numpy as jnp
from jax import lax
from jax.experimental import pallas as pl
from jax.experimental.pallas import tpu as pltpu


# ----------------------------- config -------------------------------------- #
class Config:
    NUM_OBJ_CLASSES = 10
    ATTN_CLASSES = 3
    SPATIAL_CLASSES = 6
    CONTACT_CLASSES = 17
    FEAT_DIM = 96            # orig 2376
    HID = 64                 # orig 512  (subj_fc / obj_fc / vr_fc out)
    EMB_DIM = 32             # orig 200  (glove)
    D_MODEL = 3 * HID + 2 * EMB_DIM   # 256  (orig 1936 = 3*512 + 2*200)
    UNION_C = 32             # orig 1024
    VR_C = 32                # orig 256
    CONV_HID = 16            # orig 128
    NHEAD = 8
    FF = 256                 # orig 2048
    BOX_HID = 128            # GetBoxes hidden (orig 1024)
    PE_MAX = 400


# ------------------ Pallas kernel: full-block GEMM + bias + act -------------- #
def _linear_kernel(x_ref, w_ref, b_ref, o_ref, *, activation):
    out = jnp.dot(x_ref[...], w_ref[...], preferred_element_type=jnp.float32) + b_ref[...]
    if activation == "relu":
        out = jnp.maximum(out, 0.0)
    o_ref[...] = out


def prep_linear(w, b):
    """Pre-cast weight to bf16 once; bias -> (1, N) f32.  No padding (full-array blocks)."""
    return {"w": w.astype(jnp.bfloat16), "b": b.reshape(1, -1).astype(jnp.float32)}


def linear(x, p, activation="none"):
    M = x.shape[0]
    N = p["w"].shape[1]
    return pl.pallas_call(
        functools.partial(_linear_kernel, activation=activation),
        out_shape=jax.ShapeDtypeStruct((M, N), jnp.float32),
    )(x.astype(jnp.bfloat16), p["w"], p["b"])


# ------------- Pallas kernel: fused transformer encoder STACK ---------------- #
# One pallas_call per stack.  grid=(L,) over layers; activations live in a VMEM scratch
# for the whole stack; per layer: fused QKV GEMM -> per-head (N,N) softmax attention ->
# fused out-proj GEMM -> residual+LN1 -> FFN(relu) -> residual+LN2.
def _encoder_stack_kernel(x_ref, bias_ref,
                          wqkv_ref, bqkv_ref, wo_ref, bo_ref,
                          ln1g_ref, ln1b_ref,
                          ff1w_ref, ff1b_ref, ff2w_ref, ff2b_ref,
                          ln2g_ref, ln2b_ref,
                          o_ref, xs_ref, *, nhead, eps=1e-5):
    l = pl.program_id(0)

    @pl.when(l == 0)
    def _():
        xs_ref[...] = x_ref[...]

    x = xs_ref[...]                                   # (N, D) f32, resident across layers
    N, D = x.shape
    hd = D // nhead
    xb = x.astype(jnp.bfloat16)
    bias = bias_ref[...]                              # (N, N) additive attention bias

    # fused QKV projection (softmax scale folded into Wq / bq at prep time)
    qkv = jnp.dot(xb, wqkv_ref[...], preferred_element_type=jnp.float32) + bqkv_ref[...]

    heads = []
    for h in range(nhead):                            # tiny (N,N) score/softmax/PV per head
        q = qkv[:, h * hd:(h + 1) * hd].astype(jnp.bfloat16)
        k = qkv[:, D + h * hd:D + (h + 1) * hd].astype(jnp.bfloat16)
        v = qkv[:, 2 * D + h * hd:2 * D + (h + 1) * hd].astype(jnp.bfloat16)
        s = lax.dot_general(q, k, (((1,), (1,)), ((), ())),
                            preferred_element_type=jnp.float32) + bias
        m = jnp.max(s, axis=-1, keepdims=True)
        e = jnp.exp(s - m)
        p = e / jnp.maximum(jnp.sum(e, axis=-1, keepdims=True), 1e-30)
        heads.append(jnp.dot(p.astype(jnp.bfloat16), v,
                             preferred_element_type=jnp.float32))
    attn = jnp.concatenate(heads, axis=-1)            # (N, D)
    attn = jnp.dot(attn.astype(jnp.bfloat16), wo_ref[...],
                   preferred_element_type=jnp.float32) + bo_ref[...]

    def _ln(v_, g, b):
        mu = jnp.mean(v_, axis=-1, keepdims=True)
        vc = v_ - mu
        var = jnp.mean(vc * vc, axis=-1, keepdims=True)
        return vc * lax.rsqrt(var + eps) * g + b

    h1 = _ln(x + attn, ln1g_ref[...], ln1b_ref[...])

    f = jnp.dot(h1.astype(jnp.bfloat16), ff1w_ref[...],
                preferred_element_type=jnp.float32) + ff1b_ref[...]
    f = jnp.maximum(f, 0.0)
    f = jnp.dot(f.astype(jnp.bfloat16), ff2w_ref[...],
                preferred_element_type=jnp.float32) + ff2b_ref[...]

    new_x = _ln(h1 + f, ln2g_ref[...], ln2b_ref[...])
    xs_ref[...] = new_x

    @pl.when(l == pl.num_programs(0) - 1)
    def _():
        o_ref[...] = new_x


def prep_encoder_stack(raw_layers, nhead):
    """Stack layer params with leading L axis; fold 1/sqrt(hd) into Wq/bq; bf16 weights."""
    D = raw_layers[0]["out_w"].shape[0]
    hd = D // nhead
    scale = jnp.float32(1.0 / np.sqrt(hd))
    acc = {k: [] for k in ("wqkv", "bqkv", "wo", "bo", "ln1g", "ln1b",
                           "ff1w", "ff1b", "ff2w", "ff2b", "ln2g", "ln2b")}
    for raw in raw_layers:
        inw, inb = raw["in_w"], raw["in_b"]
        inw = jnp.concatenate([inw[:, :D] * scale, inw[:, D:]], axis=1)
        inb = jnp.concatenate([inb[:D] * scale, inb[D:]], axis=0)
        acc["wqkv"].append(inw.astype(jnp.bfloat16))
        acc["bqkv"].append(inb.reshape(1, 3 * D).astype(jnp.float32))
        acc["wo"].append(raw["out_w"].astype(jnp.bfloat16))
        acc["bo"].append(raw["out_b"].reshape(1, D).astype(jnp.float32))
        acc["ln1g"].append(raw["ln1_g"].reshape(1, D).astype(jnp.float32))
        acc["ln1b"].append(raw["ln1_b"].reshape(1, D).astype(jnp.float32))
        acc["ff1w"].append(raw["ff1_w"].astype(jnp.bfloat16))
        acc["ff1b"].append(raw["ff1_b"].reshape(1, -1).astype(jnp.float32))
        acc["ff2w"].append(raw["ff2_w"].astype(jnp.bfloat16))
        acc["ff2b"].append(raw["ff2_b"].reshape(1, D).astype(jnp.float32))
        acc["ln2g"].append(raw["ln2_g"].reshape(1, D).astype(jnp.float32))
        acc["ln2b"].append(raw["ln2_b"].reshape(1, D).astype(jnp.float32))
    return {k: jnp.stack(v) for k, v in acc.items()}


def encoder_stack(x, bias, sp, nhead):
    N, D = x.shape
    L = sp["wqkv"].shape[0]
    FF = sp["ff1w"].shape[2]

    def full2(shape):
        return pl.BlockSpec(shape, lambda l: (0, 0))

    def per_l(s1, s2):
        return pl.BlockSpec((None, s1, s2), lambda l: (l, 0, 0))

    return pl.pallas_call(
        functools.partial(_encoder_stack_kernel, nhead=nhead),
        out_shape=jax.ShapeDtypeStruct((N, D), jnp.float32),
        grid_spec=pltpu.PrefetchScalarGridSpec(
            num_scalar_prefetch=0,
            grid=(L,),
            in_specs=[
                full2((N, D)),          # x (consumed only at l == 0)
                full2((N, N)),          # additive attention bias (frames/classes/causal)
                per_l(D, 3 * D),        # wqkv
                per_l(1, 3 * D),        # bqkv
                per_l(D, D),            # wo
                per_l(1, D),            # bo
                per_l(1, D),            # ln1 gamma
                per_l(1, D),            # ln1 beta
                per_l(D, FF),           # ff1 w
                per_l(1, FF),           # ff1 b
                per_l(FF, D),           # ff2 w
                per_l(1, D),            # ff2 b
                per_l(1, D),            # ln2 gamma
                per_l(1, D),            # ln2 beta
            ],
            out_specs=pl.BlockSpec((N, D), lambda l: (0, 0)),
            scratch_shapes=[pltpu.VMEM((N, D), jnp.float32)],
        ),
        compiler_params=pltpu.CompilerParams(dimension_semantics=("arbitrary",)),
    )(x, bias, sp["wqkv"], sp["bqkv"], sp["wo"], sp["bo"],
      sp["ln1g"], sp["ln1b"], sp["ff1w"], sp["ff1b"],
      sp["ff2w"], sp["ff2b"], sp["ln2g"], sp["ln2b"])


# ------------- Pallas kernel: union 1x1 conv + spatial-conv add --------------- #
# Works directly in the NCHW-flat (C, 49) layout so the following vr_fc GEMM consumes
# the original nn.Linear weight ordering with no transposes.
def _union_vr_kernel(u_ref, c_ref, w_ref, b_ref, o_ref):
    w = w_ref[...]                              # (VR_C, UNION_C) bf16
    b = b_ref[...]                              # (VR_C, 1) f32
    for r in range(u_ref.shape[0]):             # static unroll over relations
        u = u_ref[r].astype(jnp.bfloat16)       # (UNION_C, 49)
        o_ref[r] = jnp.dot(w, u, preferred_element_type=jnp.float32) + b + c_ref[r]


def union_plus_conv(u_rc, c_rc, up):
    R = u_rc.shape[0]
    CO, HW = up["w"].shape[0], u_rc.shape[2]
    return pl.pallas_call(
        _union_vr_kernel,
        out_shape=jax.ShapeDtypeStruct((R, CO, HW), jnp.float32),
    )(u_rc, c_rc, up["w"], up["b"])


# ------------- Pallas kernel: fused relation heads + GetBoxes MLP ------------- #
def _heads_kernel(x_ref, wr_ref, br_ref, w1_ref, b1_ref, w2_ref, b2_ref,
                  w3_ref, b3_ref, rel_ref, box_ref):
    xb = x_ref[...].astype(jnp.bfloat16)
    rel_ref[...] = jnp.dot(xb, wr_ref[...], preferred_element_type=jnp.float32) + br_ref[...]
    # TODO(synk): GetBoxes definition not in the reference file; plausible relu-MLP head used.
    h = jnp.maximum(jnp.dot(xb, w1_ref[...], preferred_element_type=jnp.float32) + b1_ref[...], 0.0)
    h = jnp.maximum(jnp.dot(h.astype(jnp.bfloat16), w2_ref[...],
                            preferred_element_type=jnp.float32) + b2_ref[...], 0.0)
    box_ref[...] = jnp.dot(h.astype(jnp.bfloat16), w3_ref[...],
                           preferred_element_type=jnp.float32) + b3_ref[...]


def heads_and_boxes(x, hp):
    R = x.shape[0]
    n_rel = hp["rel"]["w"].shape[1]
    return pl.pallas_call(
        _heads_kernel,
        out_shape=(jax.ShapeDtypeStruct((R, n_rel), jnp.float32),
                   jax.ShapeDtypeStruct((R, 4), jnp.float32)),
    )(x, hp["rel"]["w"], hp["rel"]["b"], hp["box1"]["w"], hp["box1"]["b"],
      hp["box2"]["w"], hp["box2"]["b"], hp["box3"]["w"], hp["box3"]["b"])


# ----------------------- conv path & misc helpers --------------------------- #
def batch_norm_eval(x_nchw, bn, eps=1e-5):
    # TODO(synk): BatchNorm in eval semantics (running stats); train-mode batch stats not modeled.
    rs = lambda a: a.reshape(1, -1, 1, 1)
    return (x_nchw - rs(bn["m"])) * lax.rsqrt(rs(bn["v"]) + eps) * rs(bn["g"]) + rs(bn["b"])


def spatial_conv_path(x, cp):
    # TODO(synk): tiny 27x27 spatial-mask convs kept on lax.conv_general_dilated per perf review
    # (an im2col + Pallas GEMM path is dispatch-bound, not MXU-bound, at these sizes).
    dn = ("NCHW", "OIHW", "NCHW")
    y = lax.conv_general_dilated(x, cp["conv1_w"], (2, 2), ((3, 3), (3, 3)),
                                 dimension_numbers=dn)
    y = jnp.maximum(y + cp["conv1_b"].reshape(1, -1, 1, 1), 0.0)
    y = batch_norm_eval(y, cp["bn1"])
    y = lax.reduce_window(y, -jnp.inf, lax.max, (1, 1, 3, 3), (1, 1, 2, 2),
                          ((0, 0), (0, 0), (1, 1), (1, 1)))
    y = lax.conv_general_dilated(y, cp["conv2_w"], (1, 1), ((1, 1), (1, 1)),
                                 dimension_numbers=dn)
    y = jnp.maximum(y + cp["conv2_b"].reshape(1, -1, 1, 1), 0.0)
    y = batch_norm_eval(y, cp["bn2"])
    return y


def sinusoidal_pe(max_len, d_model):
    # TODO(synk): PositionalEncoding internals not in reference; standard additive sinusoidal
    # table indexed by pos_index assumed.
    pos = np.arange(max_len, dtype=np.float32)[:, None]
    div = np.exp(np.arange(0, d_model, 2, dtype=np.float32) * (-np.log(10000.0) / d_model))
    pe = np.zeros((max_len, d_model), np.float32)
    pe[:, 0::2] = np.sin(pos * div)
    pe[:, 1::2] = np.cos(pos * div)
    return jnp.asarray(pe)


# ----------------------------- parameters ----------------------------------- #
def init_params(key, cfg):
    keys = iter(jax.random.split(key, 256))

    def nxt():
        return next(keys)

    def dense(k_in, k_out):
        return {"w": jax.random.normal(nxt(), (k_in, k_out), jnp.float32) * 0.02,
                "b": jax.random.normal(nxt(), (k_out,), jnp.float32) * 0.02}

    def enc_layer(d, ff):
        return {
            "in_w": jax.random.normal(nxt(), (d, 3 * d), jnp.float32) * 0.02,
            "in_b": jnp.zeros((3 * d,), jnp.float32),
            "out_w": jax.random.normal(nxt(), (d, d), jnp.float32) * 0.02,
            "out_b": jnp.zeros((d,), jnp.float32),
            "ln1_g": jnp.ones((d,), jnp.float32), "ln1_b": jnp.zeros((d,), jnp.float32),
            "ln2_g": jnp.ones((d,), jnp.float32), "ln2_b": jnp.zeros((d,), jnp.float32),
            "ff1_w": jax.random.normal(nxt(), (d, ff), jnp.float32) * 0.02,
            "ff1_b": jnp.zeros((ff,), jnp.float32),
            "ff2_w": jax.random.normal(nxt(), (ff, d), jnp.float32) * 0.02,
            "ff2_b": jnp.zeros((d,), jnp.float32),
        }

    def bn(c):
        return {"g": jnp.ones((c,), jnp.float32), "b": jnp.zeros((c,), jnp.float32),
                "m": jnp.zeros((c,), jnp.float32), "v": jnp.ones((c,), jnp.float32)}

    p = {}
    p["subj_fc"] = dense(cfg.FEAT_DIM, cfg.HID)
    p["obj_fc"] = dense(cfg.FEAT_DIM, cfg.HID)
    p["vr_fc"] = dense(cfg.VR_C * 7 * 7, cfg.HID)
    p["union_w"] = jax.random.normal(nxt(), (cfg.VR_C, cfg.UNION_C, 1, 1), jnp.float32) * 0.02
    p["union_b"] = jnp.zeros((cfg.VR_C,), jnp.float32)
    p["conv1_w"] = jax.random.normal(nxt(), (cfg.CONV_HID, 2, 7, 7), jnp.float32) * 0.02
    p["conv1_b"] = jnp.zeros((cfg.CONV_HID,), jnp.float32)
    p["bn1"] = bn(cfg.CONV_HID)
    p["conv2_w"] = jax.random.normal(nxt(), (cfg.VR_C, cfg.CONV_HID, 3, 3), jnp.float32) * 0.02
    p["conv2_b"] = jnp.zeros((cfg.VR_C,), jnp.float32)
    p["bn2"] = bn(cfg.VR_C)
    # TODO(synk): GloVe obj_edge_vectors replaced by deterministic random embeddings.
    emb = jax.random.normal(nxt(), (cfg.NUM_OBJ_CLASSES, cfg.EMB_DIM), jnp.float32)
    p["obj_embed"] = emb
    p["obj_embed2"] = emb           # both initialized from the same embed_vecs in the reference
    p["local"] = [enc_layer(cfg.D_MODEL, cfg.FF)]
    p["global"] = [enc_layer(cfg.D_MODEL, cfg.FF) for _ in range(3)]
    p["a_rel"] = dense(cfg.D_MODEL, cfg.ATTN_CLASSES)
    p["s_rel"] = dense(cfg.D_MODEL, cfg.SPATIAL_CLASSES)
    p["c_rel"] = dense(cfg.D_MODEL, cfg.CONTACT_CLASSES)
    p["box1"] = dense(cfg.D_MODEL, cfg.BOX_HID)
    p["box2"] = dense(cfg.BOX_HID, cfg.BOX_HID)
    p["box3"] = dense(cfg.BOX_HID, 4)
    p["pe"] = sinusoidal_pe(cfg.PE_MAX, cfg.D_MODEL)
    return p


def prepare_params(params, cfg):
    """One-time fusion + bf16 pre-cast of all Pallas weights."""
    prep = {}
    # fused subj/obj projection over detected boxes: feats @ [W_subj | W_obj]
    w_so = jnp.concatenate([params["subj_fc"]["w"], params["obj_fc"]["w"]], axis=1)
    b_so = jnp.concatenate([params["subj_fc"]["b"], params["obj_fc"]["b"]], axis=0)
    prep["subj_obj_fc"] = prep_linear(w_so, b_so)
    prep["vr_fc"] = prep_linear(params["vr_fc"]["w"], params["vr_fc"]["b"])
    prep["union"] = {"w": params["union_w"].reshape(cfg.VR_C, cfg.UNION_C).astype(jnp.bfloat16),
                     "b": params["union_b"].reshape(cfg.VR_C, 1).astype(jnp.float32)}
    prep["conv"] = {"conv1_w": params["conv1_w"], "conv1_b": params["conv1_b"],
                    "bn1": params["bn1"],
                    "conv2_w": params["conv2_w"], "conv2_b": params["conv2_b"],
                    "bn2": params["bn2"]}
    # fused relation heads [a_rel | s_rel | c_rel] + GetBoxes MLP in one kernel
    wr = jnp.concatenate([params["a_rel"]["w"], params["s_rel"]["w"], params["c_rel"]["w"]], axis=1)
    br = jnp.concatenate([params["a_rel"]["b"], params["s_rel"]["b"], params["c_rel"]["b"]], axis=0)
    prep["heads"] = {"rel": prep_linear(wr, br),
                     "box1": prep_linear(params["box1"]["w"], params["box1"]["b"]),
                     "box2": prep_linear(params["box2"]["w"], params["box2"]["b"]),
                     "box3": prep_linear(params["box3"]["w"], params["box3"]["b"])}
    prep["local"] = prep_encoder_stack(params["local"], cfg.NHEAD)
    prep["global"] = prep_encoder_stack(params["global"], cfg.NHEAD)
    prep["obj_embed"] = params["obj_embed"]
    prep["obj_embed2"] = params["obj_embed2"]
    prep["pe"] = params["pe"]
    return prep


# ------------------------------ forward ------------------------------------- #
def make_forward(cfg):
    A, SC, CC = cfg.ATTN_CLASSES, cfg.SPATIAL_CLASSES, cfg.CONTACT_CLASSES

    def fwd(prep, feats, union_feat, spatial_masks, subj_idx, obj_idx,
            subj_class, obj_class, pos_row, local_bias, global_bias):
        # ---- fused subj/obj projection over all detected boxes, gather pair rows ----
        box_rep = linear(feats, prep["subj_obj_fc"])                    # (n_box, 2*HID)
        subj_rep = box_rep[subj_idx, :cfg.HID]
        obj_rep = box_rep[obj_idx, cfg.HID:]

        # ---- vr = union 1x1 conv + spatial-mask conv, kept in NCHW-flat layout ----
        c = spatial_conv_path(spatial_masks, prep["conv"])              # (R, VR_C, 7, 7)
        R = union_feat.shape[0]
        u_rc = union_feat.reshape(R, cfg.UNION_C, 49).astype(jnp.bfloat16)
        c_rc = c.reshape(R, cfg.VR_C, 49)
        vr_map = union_plus_conv(u_rc, c_rc, prep["union"])             # (R, VR_C, 49)
        vr = linear(vr_map.reshape(R, cfg.VR_C * 49), prep["vr_fc"])    # (R, HID)

        x_sem = jnp.concatenate([prep["obj_embed"][subj_class],
                                 prep["obj_embed2"][obj_class]], axis=1)
        rel = jnp.concatenate([subj_rep, obj_rep, vr, x_sem], axis=1)   # (R, D_MODEL)

        # ---- local (per-frame) transformer: flat rows + frame-block attention bias ----
        rel = encoder_stack(rel, local_bias, prep["local"], cfg.NHEAD)

        # ---- global (per-object-class) transformer: class-block causal bias + PE ----
        rel = rel + prep["pe"][pos_row]                                 # sgdet positional enc.
        global_out = encoder_stack(rel, global_bias, prep["global"], cfg.NHEAD)
        # every relation row belongs to exactly one class sequence, so the flat output IS
        # the scattered global_output of the reference implementation.

        # ---- fused heads: [a_rel | s_rel | c_rel] + GetBoxes MLP ----
        rel_logits, boxes_dsg = heads_and_boxes(global_out, prep["heads"])
        att = rel_logits[:, :A]
        spa = jax.nn.sigmoid(rel_logits[:, A:A + SC])
        con = jax.nn.sigmoid(rel_logits[:, A + SC:A + SC + CC])

        return {
            "subj_rep_actual": subj_rep,
            "obj_rep_actual": obj_rep,
            "attention_distribution": att,
            "spatial_distribution": spa,
            "contacting_distribution": con,
            "subject_boxes_dsg": boxes_dsg,
            "global_output": global_out,
        }

    return jax.jit(fwd)


# ------------------------------- main ---------------------------------------- #
if __name__ == "__main__":
    cfg = Config()
    key = jax.random.PRNGKey(0)
    pkey, dkey = jax.random.split(key)
    params = init_params(pkey, cfg)
    prep = prepare_params(params, cfg)
    fwd = make_forward(cfg)

    # Synthetic scene: 3 frames, 10 detected boxes, 7 person-object pairs.
    # TODO(synk): ObjectClassifierTransformer is an external module not included in the
    # reference source; entry is assumed to already carry its outputs.
    k1, k2, k3, k4 = jax.random.split(dkey, 4)
    n_box, n_rel = 10, 7
    frame_of_box = np.array([0, 0, 0, 1, 1, 1, 1, 2, 2, 2], np.float32)
    boxes = np.concatenate(
        [frame_of_box[:, None],
         np.asarray(jax.random.uniform(k1, (n_box, 4)), np.float32)], axis=1)
    pred_labels = np.array([1, 3, 5, 1, 3, 4, 5, 1, 4, 6], np.int32)
    pair_idx = np.array([[0, 1], [0, 2], [3, 4], [3, 5], [3, 6], [7, 8], [7, 9]], np.int32)

    feats = jax.random.normal(k2, (n_box, cfg.FEAT_DIM), jnp.float32)
    union_feat = jax.random.normal(k3, (n_rel, cfg.UNION_C, 7, 7), jnp.float32)
    spatial_masks = (jax.random.uniform(k4, (n_rel, 2, 27, 27)) > 0.5).astype(jnp.float32)

    # -------- host-side grouping (data-dependent shapes stay in numpy) --------
    subj_idx = pair_idx[:, 0]
    obj_idx = pair_idx[:, 1]
    subj_class = pred_labels[subj_idx]
    obj_class = pred_labels[obj_idx]
    im_indices = boxes[obj_idx, 0]

    NEG = np.float32(-1e30)
    R = n_rel
    # local transformer: each relation attends only to relations of the same frame
    # (exactly the pad_sequence + key-padding-mask structure of the reference).
    local_bias = np.where(im_indices[:, None] == im_indices[None, :], 0.0, NEG).astype(np.float32)
    # global transformer: same object class AND causal in packed (ascending-index) order.
    same_cls = obj_class[:, None] == obj_class[None, :]
    causal = np.arange(R)[:, None] >= np.arange(R)[None, :]
    global_bias = np.where(same_cls & causal, 0.0, NEG).astype(np.float32)
    # positional index per relation (sgdet mode), built exactly as the reference pos_index.
    pos_row = np.zeros(R, np.int32)
    for l in np.unique(obj_class):
        k = np.where(obj_class == l)[0]
        _, counts = np.unique(pair_idx[k, 0], return_counts=True)
        p = np.concatenate([np.full(c, j, np.int32) for j, c in enumerate(counts)])
        pos_row[k] = p

    out = fwd(prep, feats, union_feat, spatial_masks,
              jnp.asarray(subj_idx), jnp.asarray(obj_idx),
              jnp.asarray(subj_class), jnp.asarray(obj_class),
              jnp.asarray(pos_row),
              jnp.asarray(local_bias), jnp.asarray(global_bias))

    entry_out = dict(out)
    entry_out["subject_boxes_rcnn"] = jnp.asarray(boxes[pair_idx[:, 0], 1:])

    for name in ("attention_distribution", "spatial_distribution",
                 "contacting_distribution", "global_output",
                 "subject_boxes_dsg", "subject_boxes_rcnn"):
        jax.block_until_ready(entry_out[name])
    print("KERNEL_OK")
</pallas_src>

<mosaic_0001>
module attributes {stable_mosaic.version = 11 : i64} {
  func.func @_linear_kernel(%arg0: memref<10x96xbf16, #tpu.memory_space<vmem>>, %arg1: memref<96x128xbf16, #tpu.memory_space<vmem>>, %arg2: memref<1x128xf32, #tpu.memory_space<vmem>>, %arg3: memref<10x128xf32, #tpu.memory_space<vmem>>) attributes {dimension_semantics = [], scalar_prefetch = 0 : i64, scratch_operands = 0 : i64, tpu.core_type = #tpu.core_type<tc>} {
    %c0 = arith.constant 0 : index
    %c0_0 = arith.constant 0 : index
    %0 = vector.load %arg0[%c0, %c0_0] : memref<10x96xbf16, #tpu.memory_space<vmem>>, vector<10x96xbf16>
    %c0_1 = arith.constant 0 : index
    %c0_2 = arith.constant 0 : index
    %1 = vector.load %arg1[%c0_1, %c0_2] : memref<96x128xbf16, #tpu.memory_space<vmem>>, vector<96x128xbf16>
    %cst = arith.constant dense<0.000000e+00> : vector<10x128xf32>
    %2 = tpu.matmul %0, %1, %cst {dimension_numbers = #tpu.dot_dimension_numbers<[1], [0], [0], [1], [0, 0, 1, 1], [], []>} : vector<10x96xbf16>, vector<96x128xbf16>, vector<10x128xf32> -> vector<10x128xf32>
    %c0_3 = arith.constant 0 : index
    %c0_4 = arith.constant 0 : index
    %3 = vector.load %arg2[%c0_3, %c0_4] : memref<1x128xf32, #tpu.memory_space<vmem>>, vector<1x128xf32>
    %4 = vector.broadcast %3 : vector<1x128xf32> to vector<10x128xf32>
    %5 = arith.addf %2, %4 : vector<10x128xf32>
    %c0_5 = arith.constant 0 : index
    %c0_6 = arith.constant 0 : index
    %6 = vector.load %arg3[%c0_5, %c0_6] : memref<10x128xf32, #tpu.memory_space<vmem>>, vector<10x128xf32>
    tpu.vector_store %arg3[%c0_5, %c0_6], %5 {strides = array<i32>} : memref<10x128xf32, #tpu.memory_space<vmem>>, vector<10x128xf32>,
    return
  }
}

module attributes {stable_mosaic.version = 11 : i64} {
  func.func @_union_vr_kernel(%arg0: memref<7x32x49xbf16, #tpu.memory_space<vmem>>, %arg1: memref<7x32x49xf32, #tpu.memory_space<vmem>>, %arg2: memref<32x32xbf16, #tpu.memory_space<vmem>>, %arg3: memref<32x1xf32, #tpu.memory_space<vmem>>, %arg4: memref<7x32x49xf32, #tpu.memory_space<vmem>>) attributes {dimension_semantics = [], scalar_prefetch = 0 : i64, scratch_operands = 0 : i64, tpu.core_type = #tpu.core_type<tc>} {
    %c0 = arith.constant 0 : index
    %c0_0 = arith.constant 0 : index
    %0 = vector.load %arg2[%c0, %c0_0] : memref<32x32xbf16, #tpu.memory_space<vmem>>, vector<32x32xbf16>
    %c0_1 = arith.constant 0 : index
    %c0_2 = arith.constant 0 : index
    %1 = vector.load %arg3[%c0_1, %c0_2] : memref<32x1xf32, #tpu.memory_space<vmem>>, vector<32x1xf32>
    %c0_3 = arith.constant 0 : index
    %c0_4 = arith.constant 0 : index
    %c0_5 = arith.constant 0 : index
    %2 = vector.load %arg0[%c0_3, %c0_4, %c0_5] : memref<7x32x49xbf16, #tpu.memory_space<vmem>>, vector<1x32x49xbf16>
    %3 = vector.shape_cast %2 : vector<1x32x49xbf16> to vector<32x49xbf16>
    %cst = arith.constant dense<0.000000e+00> : vector<32x49xf32>
    %4 = tpu.matmul %0, %3, %cst {dimension_numbers = #tpu.dot_dimension_numbers<[1], [0], [0], [1], [0, 0, 1, 1], [], []>} : vector<32x32xbf16>, vector<32x49xbf16>, vector<32x49xf32> -> vector<32x49xf32>
    %5 = vector.broadcast %1 : vector<32x1xf32> to vector<32x49xf32>
    %6 = arith.addf %4, %5 : vector<32x49xf32>
    %c0_6 = arith.constant 0 : index
    %c0_7 = arith.constant 0 : index
    %c0_8 = arith.constant 0 : index
    %7 = vector.load %arg1[%c0_6, %c0_7, %c0_8] : memref<7x32x49xf32, #tpu.memory_space<vmem>>, vector<1x32x49xf32>
    %8 = vector.shape_cast %7 : vector<1x32x49xf32> to vector<32x49xf32>
    %9 = arith.addf %6, %8 : vector<32x49xf32>
    %c0_9 = arith.constant 0 : index
    %c0_10 = arith.constant 0 : index
    %c0_11 = arith.constant 0 : index
    %10 = vector.load %arg4[%c0_9, %c0_10, %c0_11] : memref<7x32x49xf32, #tpu.memory_space<vmem>>, vector<1x32x49xf32>
    %11 = vector.shape_cast %10 : vector<1x32x49xf32> to vector<32x49xf32>
    %12 = vector.shape_cast %9 : vector<32x49xf32> to vector<1x32x49xf32>
    tpu.vector_store %arg4[%c0_9, %c0_10, %c0_11], %12 {strides = array<i32>} : memref<7x32x49xf32, #tpu.memory_space<vmem>>, vector<1x32x49xf32>,
    %c1 = arith.constant 1 : index
    %c0_12 = arith.constant 0 : index
    %c0_13 = arith.constant 0 : index
    %13 = vector.load %arg0[%c1, %c0_12, %c0_13] : memref<7x32x49xbf16, #tpu.memory_space<vmem>>, vector<1x32x49xbf16>
    %14 = vector.shape_cast %13 : vector<1x32x49xbf16> to vector<32x49xbf16>
    %cst_14 = arith.constant dense<0.000000e+00> : vector<32x49xf32>
    %15 = tpu.matmul %0, %14, %cst_14 {dimension_numbers = #tpu.dot_dimension_numbers<[1], [0], [0], [1], [0, 0, 1, 1], [], []>} : vector<32x32xbf16>, vector<32x49xbf16>, vector<32x49xf32> -> vector<32x49xf32>
    %16 = vector.broadcast %1 : vector<32x1xf32> to vector<32x49xf32>
    %17 = arith.addf %15, %16 : vector<32x49xf32>
    %c1_15 = arith.constant 1 : index
    %c0_16 = arith.constant 0 : index
    %c0_17 = arith.constant 0 : index
    %18 = vector.load %arg1[%c1_15, %c0_16, %c0_17] : memref<7x32x49xf32, #tpu.memory_space<vmem>>, vector<1x32x49xf32>
    %19 = vector.shape_cast %18 : vector<1x32x49xf32> to vector<32x49xf32>
    %20 = arith.addf %17, %19 : vector<32x49xf32>
    %c1_18 = arith.constant 1 : index
    %c0_19 = arith.constant 0 : index
    %c0_20 = arith.constant 0 : index
    %21 = vector.load %arg4[%c1_18, %c0_19, %c0_20] : memref<7x32x49xf32, #tpu.memory_space<vmem>>, vector<1x32x49xf32>
    %22 = vector.shape_cast %21 : vector<1x32x49xf32> to vector<32x49xf32>
    %23 = vector.shape_cast %20 : vector<32x49xf32> to vector<1x32x49xf32>
    tpu.vector_store %arg4[%c1_18, %c0_19, %c0_20], %23 {strides = array<i32>} : memref<7x32x49xf32, #tpu.memory_space<vmem>>, vector<1x32x49xf32>,
    %c2 = arith.constant 2 : index
    %c0_21 = arith.constant 0 : index
    %c0_22 = arith.constant 0 : index
    %24 = vector.load %arg0[%c2, %c0_21, %c0_22] : memref<7x32x49xbf16, #tpu.memory_space<vmem>>, vector<1x32x49xbf16>
    %25 = vector.shape_cast %24 : vector<1x32x49xbf16> to vector<32x49xbf16>
    %cst_23 = arith.constant dense<0.000000e+00> : vector<32x49xf32>
    %26 = tpu.matmul %0, %25, %cst_23 {dimension_numbers = #tpu.dot_dimension_numbers<[1], [0], [0], [1], [0, 0, 1, 1], [], []>} : vector<32x32xbf16>, vector<32x49xbf16>, vector<32x49xf32> -> vector<32x49xf32>
    %27 = vector.broadcast %1 : vector<32x1xf32> to vector<32x49xf32>
    %28 = arith.addf %26, %27 : vector<32x49xf32>
    %c2_24 = arith.constant 2 : index
    %c0_25 = arith.constant 0 : index
    %c0_26 = arith.constant 0 : index
    %29 = vector.load %arg1[%c2_24, %c0_25, %c0_26] : memref<7x32x49xf32, #tpu.memory_space<vmem>>, vector<1x32x49xf32>
    %30 = vector.shape_cast %29 : vector<1x32x49xf32> to vector<32x49xf32>
    %31 = arith.addf %28, %30 : vector<32x49xf32>
    %c2_27 = arith.constant 2 : index
    %c0_28 = arith.constant 0 : index
    %c0_29 = arith.constant 0 : index
    %32 = vector.load %arg4[%c2_27, %c0_28, %c0_29] : memref<7x32x49xf32, #tpu.memory_space<vmem>>, vector<1x32x49xf32>
    %33 = vector.shape_cast %32 : vector<1x32x49xf32> to vector<32x49xf32>
    %34 = vector.shape_cast %31 : vector<32x49xf32> to vector<1x32x49xf32>
    tpu.vector_store %arg4[%c2_27, %c0_28, %c0_29], %34 {strides = array<i32>} : memref<7x32x49xf32, #tpu.memory_space<vmem>>, vector<1x32x49xf32>,
    %c3 = arith.constant 3 : index
    %c0_30 = arith.constant 0 : index
    %c0_31 = arith.constant 0 : index
    %35 = vector.load %arg0[%c3, %c0_30, %c0_31] : memref<7x32x49xbf16, #tpu.memory_space<vmem>>, vector<1x32x49xbf16>
    %36 = vector.shape_cast %35 : vector<1x32x49xbf16> to vector<32x49xbf16>
    %cst_32 = arith.constant dense<0.000000e+00> : vector<32x49xf32>
    %37 = tpu.matmul %0, %36, %cst_32 {dimension_numbers = #tpu.dot_dimension_numbers<[1], [0], [0], [1], [0, 0, 1, 1], [], []>} : vector<32x32xbf16>, vector<32x49xbf16>, vector<32x49xf32> -> vector<32x49xf32>
    %38 = vector.broadcast %1 : vector<32x1xf32> to vector<32x49xf32>
    %39 = arith.addf %37, %38 : vector<32x49xf32>
    %c3_33 = arith.constant 3 : index
    %c0_34 = arith.constant 0 : index
    %c0_35 = arith.constant 0 : index
    %40 = vector.load %arg1[%c3_33, %c0_34, %c0_35] : memref<7x32x49xf32, #tpu.memory_space<vmem>>, vector<1x32x49xf32>
    %41 = vector.shape_cast %40 : vector<1x32x49xf32> to vector<32x49xf32>
    %42 = arith.addf %39, %41 : vector<32x49xf32>
    %c3_36 = arith.constant 3 : index
    %c0_37 = arith.constant 0 : index
    %c0_38 = arith.constant 0 : index
    %43 = vector.load %arg4[%c3_36, %c0_37, %c0_38] : memref<7x32x49xf32, #tpu.memory_space<vmem>>, vector<1x32x49xf32>
    %44 = vector.shape_cast %43 : vector<1x32x49xf32> to vector<32x49xf32>
    %45 = vector.shape_cast %42 : vector<32x49xf32> to vector<1x32x49xf32>
    tpu.vector_store %arg4[%c3_36, %c0_37, %c0_38], %45 {strides = array<i32>} : memref<7x32x49xf32, #tpu.memory_space<vmem>>, vector<1x32x49xf32>,
    %c4 = arith.constant 4 : index
    %c0_39 = arith.constant 0 : index
    %c0_40 = arith.constant 0 : index
    %46 = vector.load %arg0[%c4, %c0_39, %c0_40] : memref<7x32x49xbf16, #tpu.memory_space<vmem>>, vector<1x32x49xbf16>
    %47 = vector.shape_cast %46 : vector<1x32x49xbf16> to vector<32x49xbf16>
    %cst_41 = arith.constant dense<0.000000e+00> : vector<32x49xf32>
    %48 = tpu.matmul %0, %47, %cst_41 {dimension_numbers = #tpu.dot_dimension_numbers<[1], [0], [0], [1], [0, 0, 1, 1], [], []>} : vector<32x32xbf16>, vector<32x49xbf16>, vector<32x49xf32> -> vector<32x49xf32>
    %49 = vector.broadcast %1 : vector<32x1xf32> to vector<32x49xf32>
    %50 = arith.addf %48, %49 : vector<32x49xf32>
    %c4_42 = arith.constant 4 : index
    %c0_43 = arith.constant 0 : index
    %c0_44 = arith.constant 0 : index
    %51 = vector.load %arg1[%c4_42, %c0_43, %c0_44] : memref<7x32x49xf32, #tpu.memory_space<vmem>>, vector<1x32x49xf32>
    %52 = vector.shape_cast %51 : vector<1x32x49xf32> to vector<32x49xf32>
    %53 = arith.addf %50, %52 : vector<32x49xf32>
    %c4_45 = arith.constant 4 : index
    %c0_46 = arith.constant 0 : index
    %c0_47 = arith.constant 0 : index
    %54 = vector.load %arg4[%c4_45, %c0_46, %c0_47] : memref<7x32x49xf32, #tpu.memory_space<vmem>>, vector<1x32x49xf32>
    %55 = vector.shape_cast %54 : vector<1x32x49xf32> to vector<32x49xf32>
    %56 = vector.shape_cast %53 : vector<32x49xf32> to vector<1x32x49xf32>
    tpu.vector_store %arg4[%c4_45, %c0_46, %c0_47], %56 {strides = array<i32>} : memref<7x32x49xf32, #tpu.memory_space<vmem>>, vector<1x32x49xf32>,
    %c5 = arith.constant 5 : index
    %c0_48 = arith.constant 0 : index
    %c0_49 = arith.constant 0 : index
    %57 = vector.load %arg0[%c5, %c0_48, %c0_49] : memref<7x32x49xbf16, #tpu.memory_space<vmem>>, vector<1x32x49xbf16>
    %58 = vector.shape_cast %57 : vector<1x32x49xbf16> to vector<32x49xbf16>
    %cst_50 = arith.constant dense<0.000000e+00> : vector<32x49xf32>
    %59 = tpu.matmul %0, %58, %cst_50 {dimension_numbers = #tpu.dot_dimension_numbers<[1], [0], [0], [1], [0, 0, 1, 1], [], []>} : vector<32x32xbf16>, vector<32x49xbf16>, vector<32x49xf32> -> vector<32x49xf32>
    %60 = vector.broadcast %1 : vector<32x1xf32> to vector<32x49xf32>
    %61 = arith.addf %59, %60 : vector<32x49xf32>
    %c5_51 = arith.constant 5 : index
    %c0_52 = arith.constant 0 : index
    %c0_53 = arith.constant 0 : index
    %62 = vector.load %arg1[%c5_51, %c0_52, %c0_53] : memref<7x32x49xf32, #tpu.memory_space<vmem>>, vector<1x32x49xf32>
    %63 = vector.shape_cast %62 : vector<1x32x49xf32> to vector<32x49xf32>
    %64 = arith.addf %61, %63 : vector<32x49xf32>
    %c5_54 = arith.constant 5 : index
    %c0_55 = arith.constant 0 : index
    %c0_56 = arith.constant 0 : index
    %65 = vector.load %arg4[%c5_54, %c0_55, %c0_56] : memref<7x32x49xf32, #tpu.memory_space<vmem>>, vector<1x32x49xf32>
    %66 = vector.shape_cast %65 : vector<1x32x49xf32> to vector<32x49xf32>
    %67 = vector.shape_cast %64 : vector<32x49xf32> to vector<1x32x49xf32>
    tpu.vector_store %arg4[%c5_54, %c0_55, %c0_56], %67 {strides = array<i32>} : memref<7x32x49xf32, #tpu.memory_space<vmem>>, vector<1x32x49xf32>,
    %c6 = arith.constant 6 : index
    %c0_57 = arith.constant 0 : index
    %c0_58 = arith.constant 0 : index
    %68 = vector.load %arg0[%c6, %c0_57, %c0_58] : memref<7x32x49xbf16, #tpu.memory_space<vmem>>, vector<1x32x49xbf16>
    %69 = vector.shape_cast %68 : vector<1x32x49xbf16> to vector<32x49xbf16>
    %cst_59 = arith.constant dense<0.000000e+00> : vector<32x49xf32>
    %70 = tpu.matmul %0, %69, %cst_59 {dimension_numbers = #tpu.dot_dimension_numbers<[1], [0], [0], [1], [0, 0, 1, 1], [], []>} : vector<32x32xbf16>, vector<32x49xbf16>, vector<32x49xf32> -> vector<32x49xf32>
    %71 = vector.broadcast %1 : vector<32x1xf32> to vector<32x49xf32>
    %72 = arith.addf %70, %71 : vector<32x49xf32>
    %c6_60 = arith.constant 6 : index
    %c0_61 = arith.constant 0 : index
    %c0_62 = arith.constant 0 : index
    %73 = vector.load %arg1[%c6_60, %c0_61, %c0_62] : memref<7x32x49xf32, #tpu.memory_space<vmem>>, vector<1x32x49xf32>
    %74 = vector.shape_cast %73 : vector<1x32x49xf32> to vector<32x49xf32>
    %75 = arith.addf %72, %74 : vector<32x49xf32>
    %c6_63 = arith.constant 6 : index
    %c0_64 = arith.constant 0 : index
    %c0_65 = arith.constant 0 : index
    %76 = vector.load %arg4[%c6_63, %c0_64, %c0_65] : memref<7x32x49xf32, #tpu.memory_space<vmem>>, vector<1x32x49xf32>
    %77 = vector.shape_cast %76 : vector<1x32x49xf32> to vector<32x49xf32>
    %78 = vector.shape_cast %75 : vector<32x49xf32> to vector<1x32x49xf32>
    tpu.vector_store %arg4[%c6_63, %c0_64, %c0_65], %78 {strides = array<i32>} : memref<7x32x49xf32, #tpu.memory_space<vmem>>, vector<1x32x49xf32>,
    return
  }
}

module attributes {stable_mosaic.version = 11 : i64} {
  func.func @_linear_kernel(%arg0: memref<7x1568xbf16, #tpu.memory_space<vmem>>, %arg1: memref<1568x64xbf16, #tpu.memory_space<vmem>>, %arg2: memref<1x64xf32, #tpu.memory_space<vmem>>, %arg3: memref<7x64xf32, #tpu.memory_space<vmem>>) attributes {dimension_semantics = [], scalar_prefetch = 0 : i64, scratch_operands = 0 : i64, tpu.core_type = #tpu.core_type<tc>} {
    %c0 = arith.constant 0 : index
    %c0_0 = arith.constant 0 : index
    %0 = vector.load %arg0[%c0, %c0_0] : memref<7x1568xbf16, #tpu.memory_space<vmem>>, vector<7x1568xbf16>
    %c0_1 = arith.constant 0 : index
    %c0_2 = arith.constant 0 : index
    %1 = vector.load %arg1[%c0_1, %c0_2] : memref<1568x64xbf16, #tpu.memory_space<vmem>>, vector<1568x64xbf16>
    %cst = arith.constant dense<0.000000e+00> : vector<7x64xf32>
    %2 = tpu.matmul %0, %1, %cst {dimension_numbers = #tpu.dot_dimension_numbers<[1], [0], [0], [1], [0, 0, 1, 1], [], []>} : vector<7x1568xbf16>, vector<1568x64xbf16>, vector<7x64xf32> -> vector<7x64xf32>
    %c0_3 = arith.constant 0 : index
    %c0_4 = arith.constant 0 : index
    %3 = vector.load %arg2[%c0_3, %c0_4] : memref<1x64xf32, #tpu.memory_space<vmem>>, vector<1x64xf32>
    %4 = vector.broadcast %3 : vector<1x64xf32> to vector<7x64xf32>
    %5 = arith.addf %2, %4 : vector<7x64xf32>
    %c0_5 = arith.constant 0 : index
    %c0_6 = arith.constant 0 : index
    %6 = vector.load %arg3[%c0_5, %c0_6] : memref<7x64xf32, #tpu.memory_space<vmem>>, vector<7x64xf32>
    tpu.vector_store %arg3[%c0_5, %c0_6], %5 {strides = array<i32>} : memref<7x64xf32, #tpu.memory_space<vmem>>, vector<7x64xf32>,
    return
  }
}

module attributes {stable_mosaic.version = 11 : i64} {
  func.func @_encoder_stack_kernel(%arg0: i32, %arg1: memref<7x256xf32, #tpu.memory_space<vmem>>, %arg2: memref<7x7xf32, #tpu.memory_space<vmem>>, %arg3: memref<1x256x768xbf16, #tpu.memory_space<vmem>>, %arg4: memref<1x1x768xf32, #tpu.memory_space<vmem>>, %arg5: memref<1x256x256xbf16, #tpu.memory_space<vmem>>, %arg6: memref<1x1x256xf32, #tpu.memory_space<vmem>>, %arg7: memref<1x1x256xf32, #tpu.memory_space<vmem>>, %arg8: memref<1x1x256xf32, #tpu.memory_space<vmem>>, %arg9: memref<1x256x256xbf16, #tpu.memory_space<vmem>>, %arg10: memref<1x1x256xf32, #tpu.memory_space<vmem>>, %arg11: memref<1x256x256xbf16, #tpu.memory_space<vmem>>, %arg12: memref<1x1x256xf32, #tpu.memory_space<vmem>>, %arg13: memref<1x1x256xf32, #tpu.memory_space<vmem>>, %arg14: memref<1x1x256xf32, #tpu.memory_space<vmem>>, %arg15: memref<7x256xf32, #tpu.memory_space<vmem>>, %arg16: memref<7x256xf32, #tpu.memory_space<vmem>>) attributes {dimension_semantics = [#tpu.dimension_semantics<arbitrary>], iteration_bounds = array<i64: 1>, scalar_prefetch = 0 : i64, scratch_operands = 1 : i64, tpu.core_type = #tpu.core_type<tc>, window_params = [{pipeline_mode = #tpu.pipeline_mode<synchronous>, transform_indices = @transform_0, window_bounds = array<i64: 7, 256>}, {pipeline_mode = #tpu.pipeline_mode<synchronous>, transform_indices = @transform_1, window_bounds = array<i64: 7, 7>}, {transform_indices = @transform_2, window_bounds = array<i64: 1, 256, 768>}, {transform_indices = @transform_3, window_bounds = array<i64: 1, 1, 768>}, {transform_indices = @transform_4, window_bounds = array<i64: 1, 256, 256>}, {transform_indices = @transform_5, window_bounds = array<i64: 1, 1, 256>}, {transform_indices = @transform_6, window_bounds = array<i64: 1, 1, 256>}, {transform_indices = @transform_7, window_bounds = array<i64: 1, 1, 256>}, {transform_indices = @transform_8, window_bounds = array<i64: 1, 256, 256>}, {transform_indices = @transform_9, window_bounds = array<i64: 1, 1, 256>}, {transform_indices = @transform_10, window_bounds = array<i64: 1, 256, 256>}, {transform_indices = @transform_11, window_bounds = array<i64: 1, 1, 256>}, {transform_indices = @transform_12, window_bounds = array<i64: 1, 1, 256>}, {transform_indices = @transform_13, window_bounds = array<i64: 1, 1, 256>}, {pipeline_mode = #tpu.pipeline_mode<synchronous>, transform_indices = @transform_14, window_bounds = array<i64: 7, 256>}]} {
    %c0_i32 = arith.constant 0 : i32
    %0 = arith.cmpi eq, %arg0, %c0_i32 : i32
    %1 = arith.extui %0 : i1 to i32
    %c0_i32_0 = arith.constant 0 : i32
    %2 = arith.cmpi ne, %1, %c0_i32_0 : i32
    scf.if %2 {
      %c0_98 = arith.constant 0 : index
      %c0_99 = arith.constant 0 : index
      %262 = vector.load %arg1[%c0_98, %c0_99] : memref<7x256xf32, #tpu.memory_space<vmem>>, vector<7x256xf32>
      %c0_100 = arith.constant 0 : index
      %c0_101 = arith.constant 0 : index
      %263 = vector.load %arg16[%c0_100, %c0_101] : memref<7x256xf32, #tpu.memory_space<vmem>>, vector<7x256xf32>
      tpu.vector_store %arg16[%c0_100, %c0_101], %262 {strides = array<i32>} : memref<7x256xf32, #tpu.memory_space<vmem>>, vector<7x256xf32>,
    } else {
    }
    %c0 = arith.constant 0 : index
    %c0_1 = arith.constant 0 : index
    %3 = vector.load %arg16[%c0, %c0_1] : memref<7x256xf32, #tpu.memory_space<vmem>>, vector<7x256xf32>
    %4 = arith.truncf %3 : vector<7x256xf32> to vector<7x256xbf16>
    %c0_2 = arith.constant 0 : index
    %c0_3 = arith.constant 0 : index
    %5 = vector.load %arg2[%c0_2, %c0_3] : memref<7x7xf32, #tpu.memory_space<vmem>>, vector<7x7xf32>
    %c0_4 = arith.constant 0 : index
    %c0_5 = arith.constant 0 : index
    %c0_6 = arith.constant 0 : index
    %6 = vector.load %arg3[%c0_4, %c0_5, %c0_6] : memref<1x256x768xbf16, #tpu.memory_space<vmem>>, vector<1x256x768xbf16>
    %7 = vector.shape_cast %6 : vector<1x256x768xbf16> to vector<256x768xbf16>
    %cst = arith.constant dense<0.000000e+00> : vector<7x768xf32>
    %8 = tpu.matmul %4, %7, %cst {dimension_numbers = #tpu.dot_dimension_numbers<[1], [0], [0], [1], [0, 0, 1, 1], [], []>} : vector<7x256xbf16>, vector<256x768xbf16>, vector<7x768xf32> -> vector<7x768xf32>
    %c0_7 = arith.constant 0 : index
    %c0_8 = arith.constant 0 : index
    %c0_9 = arith.constant 0 : index
    %9 = vector.load %arg4[%c0_7, %c0_8, %c0_9] : memref<1x1x768xf32, #tpu.memory_space<vmem>>, vector<1x1x768xf32>
    %10 = vector.shape_cast %9 : vector<1x1x768xf32> to vector<1x768xf32>
    %11 = vector.broadcast %10 : vector<1x768xf32> to vector<7x768xf32>
    %12 = arith.addf %8, %11 : vector<7x768xf32>
    %13 = vector.extract_strided_slice %12 {offsets = [0, 0], sizes = [7, 32], strides = [1, 1]} : vector<7x768xf32> to vector<7x32xf32>
    %14 = arith.truncf %13 : vector<7x32xf32> to vector<7x32xbf16>
    %15 = vector.extract_strided_slice %12 {offsets = [0, 256], sizes = [7, 32], strides = [1, 1]} : vector<7x768xf32> to vector<7x32xf32>
    %16 = arith.truncf %15 : vector<7x32xf32> to vector<7x32xbf16>
    %17 = vector.extract_strided_slice %12 {offsets = [0, 512], sizes = [7, 32], strides = [1, 1]} : vector<7x768xf32> to vector<7x32xf32>
    %18 = arith.truncf %17 : vector<7x32xf32> to vector<7x32xbf16>
    %cst_10 = arith.constant dense<0.000000e+00> : vector<7x7xf32>
    %19 = tpu.matmul %14, %16, %cst_10 {dimension_numbers = #tpu.dot_dimension_numbers<[1], [1], [0], [0], [0, 0, 1, 0], [], []>} : vector<7x32xbf16>, vector<7x32xbf16>, vector<7x7xf32> -> vector<7x7xf32>
    %20 = arith.addf %19, %5 : vector<7x7xf32>
    %cst_11 = arith.constant dense<0xFF800000> : vector<7xf32>
    %21 = vector.multi_reduction <maximumf>, %20, %cst_11 [1] : vector<7x7xf32> to vector<7xf32>
    %22 = vector.shape_cast %21 : vector<7xf32> to vector<7x1xf32>
    %23 = vector.broadcast %22 : vector<7x1xf32> to vector<7x7xf32>
    %24 = arith.subf %20, %23 : vector<7x7xf32>
    %25 = math.exp %24 : vector<7x7xf32>
    %cst_12 = arith.constant dense<0.000000e+00> : vector<7xf32>
    %26 = vector.multi_reduction <add>, %25, %cst_12 [1] : vector<7x7xf32> to vector<7xf32>
    %27 = vector.shape_cast %26 : vector<7xf32> to vector<7x1xf32>
    %cst_13 = arith.constant 1.000000e-30 : f32
    %28 = vector.broadcast %cst_13 : f32 to vector<7x1xf32>
    %29 = arith.maximumf %27, %28 : vector<7x1xf32>
    %30 = vector.broadcast %29 : vector<7x1xf32> to vector<7x7xf32>
    %31 = arith.divf %25, %30 : vector<7x7xf32>
    %32 = arith.truncf %31 : vector<7x7xf32> to vector<7x7xbf16>
    %cst_14 = arith.constant dense<0.000000e+00> : vector<7x32xf32>
    %33 = tpu.matmul %32, %18, %cst_14 {dimension_numbers = #tpu.dot_dimension_numbers<[1], [0], [0], [1], [0, 0, 1, 1], [], []>} : vector<7x7xbf16>, vector<7x32xbf16>, vector<7x32xf32> -> vector<7x32xf32>
    %34 = vector.extract_strided_slice %12 {offsets = [0, 32], sizes = [7, 32], strides = [1, 1]} : vector<7x768xf32> to vector<7x32xf32>
    %35 = arith.truncf %34 : vector<7x32xf32> to vector<7x32xbf16>
    %36 = vector.extract_strided_slice %12 {offsets = [0, 288], sizes = [7, 32], strides = [1, 1]} : vector<7x768xf32> to vector<7x32xf32>
    %37 = arith.truncf %36 : vector<7x32xf32> to vector<7x32xbf16>
    %38 = vector.extract_strided_slice %12 {offsets = [0, 544], sizes = [7, 32], strides = [1, 1]} : vector<7x768xf32> to vector<7x32xf32>
    %39 = arith.truncf %38 : vector<7x32xf32> to vector<7x32xbf16>
    %cst_15 = arith.constant dense<0.000000e+00> : vector<7x7xf32>
    %40 = tpu.matmul %35, %37, %cst_15 {dimension_numbers = #tpu.dot_dimension_numbers<[1], [1], [0], [0], [0, 0, 1, 0], [], []>} : vector<7x32xbf16>, vector<7x32xbf16>, vector<7x7xf32> -> vector<7x7xf32>
    %41 = arith.addf %40, %5 : vector<7x7xf32>
    %cst_16 = arith.constant dense<0xFF800000> : vector<7xf32>
    %42 = vector.multi_reduction <maximumf>, %41, %cst_16 [1] : vector<7x7xf32> to vector<7xf32>
    %43 = vector.shape_cast %42 : vector<7xf32> to vector<7x1xf32>
    %44 = vector.broadcast %43 : vector<7x1xf32> to vector<7x7xf32>
    %45 = arith.subf %41, %44 : vector<7x7xf32>
    %46 = math.exp %45 : vector<7x7xf32>
    %cst_17 = arith.constant dense<0.000000e+00> : vector<7xf32>
    %47 = vector.multi_reduction <add>, %46, %cst_17 [1] : vector<7x7xf32> to vector<7xf32>
    %48 = vector.shape_cast %47 : vector<7xf32> to vector<7x1xf32>
    %cst_18 = arith.constant 1.000000e-30 : f32
    %49 = vector.broadcast %cst_18 : f32 to vector<7x1xf32>
    %50 = arith.maximumf %48, %49 : vector<7x1xf32>
    %51 = vector.broadcast %50 : vector<7x1xf32> to vector<7x7xf32>
    %52 = arith.divf %46, %51 : vector<7x7xf32>
    %53 = arith.truncf %52 : vector<7x7xf32> to vector<7x7xbf16>
    %cst_19 = arith.constant dense<0.000000e+00> : vector<7x32xf32>
    %54 = tpu.matmul %53, %39, %cst_19 {dimension_numbers = #tpu.dot_dimension_numbers<[1], [0], [0], [1], [0, 0, 1, 1], [], []>} : vector<7x7xbf16>, vector<7x32xbf16>, vector<7x32xf32> -> vector<7x32xf32>
    %55 = vector.extract_strided_slice %12 {offsets = [0, 64], sizes = [7, 32], strides = [1, 1]} : vector<7x768xf32> to vector<7x32xf32>
    %56 = arith.truncf %55 : vector<7x32xf32> to vector<7x32xbf16>
    %57 = vector.extract_strided_slice %12 {offsets = [0, 320], sizes = [7, 32], strides = [1, 1]} : vector<7x768xf32> to vector<7x32xf32>
    %58 = arith.truncf %57 : vector<7x32xf32> to vector<7x32xbf16>
    %59 = vector.extract_strided_slice %12 {offsets = [0, 576], sizes = [7, 32], strides = [1, 1]} : vector<7x768xf32> to vector<7x32xf32>
    %60 = arith.truncf %59 : vector<7x32xf32> to vector<7x32xbf16>
    %cst_20 = arith.constant dense<0.000000e+00> : vector<7x7xf32>
    %61 = tpu.matmul %56, %58, %cst_20 {dimension_numbers = #tpu.dot_dimension_numbers<[1], [1], [0], [0], [0, 0, 1, 0], [], []>} : vector<7x32xbf16>, vector<7x32xbf16>, vector<7x7xf32> -> vector<7x7xf32>
    %62 = arith.addf %61, %5 : vector<7x7xf32>
    %cst_21 = arith.constant dense<0xFF800000> : vector<7xf32>
    %63 = vector.multi_reduction <maximumf>, %62, %cst_21 [1] : vector<7x7xf32> to vector<7xf32>
    %64 = vector.shape_cast %63 : vector<7xf32> to vector<7x1xf32>
    %65 = vector.broadcast %64 : vector<7x1xf32> to vector<7x7xf32>
    %66 = arith.subf %62, %65 : vector<7x7xf32>
    %67 = math.exp %66 : vector<7x7xf32>
    %cst_22 = arith.constant dense<0.000000e+00> : vector<7xf32>
    %68 = vector.multi_reduction <add>, %67, %cst_22 [1] : vector<7x7xf32> to vector<7xf32>
    %69 = vector.shape_cast %68 : vector<7xf32> to vector<7x1xf32>
    %cst_23 = arith.constant 1.000000e-30 : f32
    %70 = vector.broadcast %cst_23 : f32 to vector<7x1xf32>
    %71 = arith.maximumf %69, %70 : vector<7x1xf32>
    %72 = vector.broadcast %71 : vector<7x1xf32> to vector<7x7xf32>
    %73 = arith.divf %67, %72 : vector<7x7xf32>
    %74 = arith.truncf %73 : vector<7x7xf32> to vector<7x7xbf16>
    %cst_24 = arith.constant dense<0.000000e+00> : vector<7x32xf32>
    %75 = tpu.matmul %74, %60, %cst_24 {dimension_numbers = #tpu.dot_dimension_numbers<[1], [0], [0], [1], [0, 0, 1, 1], [], []>} : vector<7x7xbf16>, vector<7x32xbf16>, vector<7x32xf32> -> vector<7x32xf32>
    %76 = vector.extract_strided_slice %12 {offsets = [0, 96], sizes = [7, 32], strides = [1, 1]} : vector<7x768xf32> to vector<7x32xf32>
    %77 = arith.truncf %76 : vector<7x32xf32> to vector<7x32xbf16>
    %78 = vector.extract_strided_slice %12 {offsets = [0, 352], sizes = [7, 32], strides = [1, 1]} : vector<7x768xf32> to vector<7x32xf32>
    %79 = arith.truncf %78 : vector<7x32xf32> to vector<7x32xbf16>
    %80 = vector.extract_strided_slice %12 {offsets = [0, 608], sizes = [7, 32], strides = [1, 1]} : vector<7x768xf32> to vector<7x32xf32>
    %81 = arith.truncf %80 : vector<7x32xf32> to vector<7x32xbf16>
    %cst_25 = arith.constant dense<0.000000e+00> : vector<7x7xf32>
    %82 = tpu.matmul %77, %79, %cst_25 {dimension_numbers = #tpu.dot_dimension_numbers<[1], [1], [0], [0], [0, 0, 1, 0], [], []>} : vector<7x32xbf16>, vector<7x32xbf16>, vector<7x7xf32> -> vector<7x7xf32>
    %83 = arith.addf %82, %5 : vector<7x7xf32>
    %cst_26 = arith.constant dense<0xFF800000> : vector<7xf32>
    %84 = vector.multi_reduction <maximumf>, %83, %cst_26 [1] : vector<7x7xf32> to vector<7xf32>
    %85 = vector.shape_cast %84 : vector<7xf32> to vector<7x1xf32>
    %86 = vector.broadcast %85 : vector<7x1xf32> to vector<7x7xf32>
    %87 = arith.subf %83, %86 : vector<7x7xf32>
    %88 = math.exp %87 : vector<7x7xf32>
    %cst_27 = arith.constant dense<0.000000e+00> : vector<7xf32>
    %89 = vector.multi_reduction <add>, %88, %cst_27 [1] : vector<7x7xf32> to vector<7xf32>
    %90 = vector.shape_cast %89 : vector<7xf32> to vector<7x1xf32>
    %cst_28 = arith.constant 1.000000e-30 : f32
    %91 = vector.broadcast %cst_28 : f32 to vector<7x1xf32>
    %92 = arith.maximumf %90, %91 : vector<7x1xf32>
    %93 = vector.broadcast %92 : vector<7x1xf32> to vector<7x7xf32>
    %94 = arith.divf %88, %93 : vector<7x7xf32>
    %95 = arith.truncf %94 : vector<7x7xf32> to vector<7x7xbf16>
    %cst_29 = arith.constant dense<0.000000e+00> : vector<7x32xf32>
    %96 = tpu.matmul %95, %81, %cst_29 {dimension_numbers = #tpu.dot_dimension_numbers<[1], [0], [0], [1], [0, 0, 1, 1], [], []>} : vector<7x7xbf16>, vector<7x32xbf16>, vector<7x32xf32> -> vector<7x32xf32>
    %97 = vector.extract_strided_slice %12 {offsets = [0, 128], sizes = [7, 32], strides = [1, 1]} : vector<7x768xf32> to vector<7x32xf32>
    %98 = arith.truncf %97 : vector<7x32xf32> to vector<7x32xbf16>
    %99 = vector.extract_strided_slice %12 {offsets = [0, 384], sizes = [7, 32], strides = [1, 1]} : vector<7x768xf32> to vector<7x32xf32>
    %100 = arith.truncf %99 : vector<7x32xf32> to vector<7x32xbf16>
    %101 = vector.extract_strided_slice %12 {offsets = [0, 640], sizes = [7, 32], strides = [1, 1]} : vector<7x768xf32> to vector<7x32xf32>
    %102 = arith.truncf %101 : vector<7x32xf32> to vector<7x32xbf16>
    %cst_30 = arith.constant dense<0.000000e+00> : vector<7x7xf32>
    %103 = tpu.matmul %98, %100, %cst_30 {dimension_numbers = #tpu.dot_dimension_numbers<[1], [1], [0], [0], [0, 0, 1, 0], [], []>} : vector<7x32xbf16>, vector<7x32xbf16>, vector<7x7xf32> -> vector<7x7xf32>
    %104 = arith.addf %103, %5 : vector<7x7xf32>
    %cst_31 = arith.constant dense<0xFF800000> : vector<7xf32>
    %105 = vector.multi_reduction <maximumf>, %104, %cst_31 [1] : vector<7x7xf32> to vector<7xf32>
    %106 = vector.shape_cast %105 : vector<7xf32> to vector<7x1xf32>
    %107 = vector.broadcast %106 : vector<7x1xf32> to vector<7x7xf32>
    %108 = arith.subf %104, %107 : vector<7x7xf32>
    %109 = math.exp %108 : vector<7x7xf32>
    %cst_32 = arith.constant dense<0.000000e+00> : vector<7xf32>
    %110 = vector.multi_reduction <add>, %109, %cst_32 [1] : vector<7x7xf32> to vector<7xf32>
    %111 = vector.shape_cast %110 : vector<7xf32> to vector<7x1xf32>
    %cst_33 = arith.constant 1.000000e-30 : f32
    %112 = vector.broadcast %cst_33 : f32 to vector<7x1xf32>
    %113 = arith.maximumf %111, %112 : vector<7x1xf32>
    %114 = vector.broadcast %113 : vector<7x1xf32> to vector<7x7xf32>
    %115 = arith.divf %109, %114 : vector<7x7xf32>
    %116 = arith.truncf %115 : vector<7x7xf32> to vector<7x7xbf16>
    %cst_34 = arith.constant dense<0.000000e+00> : vector<7x32xf32>
    %117 = tpu.matmul %116, %102, %cst_34 {dimension_numbers = #tpu.dot_dimension_numbers<[1], [0], [0], [1], [0, 0, 1, 1], [], []>} : vector<7x7xbf16>, vector<7x32xbf16>, vector<7x32xf32> -> vector<7x32xf32>
    %118 = vector.extract_strided_slice %12 {offsets = [0, 160], sizes = [7, 32], strides = [1, 1]} : vector<7x768xf32> to vector<7x32xf32>
    %119 = arith.truncf %118 : vector<7x32xf32> to vector<7x32xbf16>
    %120 = vector.extract_strided_slice %12 {offsets = [0, 416], sizes = [7, 32], strides = [1, 1]} : vector<7x768xf32> to vector<7x32xf32>
    %121 = arith.truncf %120 : vector<7x32xf32> to vector<7x32xbf16>
    %122 = vector.extract_strided_slice %12 {offsets = [0, 672], sizes = [7, 32], strides = [1, 1]} : vector<7x768xf32> to vector<7x32xf32>
    %123 = arith.truncf %122 : vector<7x32xf32> to vector<7x32xbf16>
    %cst_35 = arith.constant dense<0.000000e+00> : vector<7x7xf32>
    %124 = tpu.matmul %119, %121, %cst_35 {dimension_numbers = #tpu.dot_dimension_numbers<[1], [1], [0], [0], [0, 0, 1, 0], [], []>} : vector<7x32xbf16>, vector<7x32xbf16>, vector<7x7xf32> -> vector<7x7xf32>
    %125 = arith.addf %124, %5 : vector<7x7xf32>
    %cst_36 = arith.constant dense<0xFF800000> : vector<7xf32>
    %126 = vector.multi_reduction <maximumf>, %125, %cst_36 [1] : vector<7x7xf32> to vector<7xf32>
    %127 = vector.shape_cast %126 : vector<7xf32> to vector<7x1xf32>
    %128 = vector.broadcast %127 : vector<7x1xf32> to vector<7x7xf32>
    %129 = arith.subf %125, %128 : vector<7x7xf32>
    %130 = math.exp %129 : vector<7x7xf32>
    %cst_37 = arith.constant dense<0.000000e+00> : vector<7xf32>
    %131 = vector.multi_reduction <add>, %130, %cst_37 [1] : vector<7x7xf32> to vector<7xf32>
    %132 = vector.shape_cast %131 : vector<7xf32> to vector<7x1xf32>
    %cst_38 = arith.constant 1.000000e-30 : f32
    %133 = vector.broadcast %cst_38 : f32 to vector<7x1xf32>
    %134 = arith.maximumf %132, %133 : vector<7x1xf32>
    %135 = vector.broadcast %134 : vector<7x1xf32> to vector<7x7xf32>
    %136 = arith.divf %130, %135 : vector<7x7xf32>
    %137 = arith.truncf %136 : vector<7x7xf32> to vector<7x7xbf16>
    %cst_39 = arith.constant dense<0.000000e+00> : vector<7x32xf32>
    %138 = tpu.matmul %137, %123, %cst_39 {dimension_numbers = #tpu.dot_dimension_numbers<[1], [0], [0], [1], [0, 0, 1, 1], [], []>} : vector<7x7xbf16>, vector<7x32xbf16>, vector<7x32xf32> -> vector<7x32xf32>
    %139 = vector.extract_strided_slice %12 {offsets = [0, 192], sizes = [7, 32], strides = [1, 1]} : vector<7x768xf32> to vector<7x32xf32>
    %140 = arith.truncf %139 : vector<7x32xf32> to vector<7x32xbf16>
    %141 = vector.extract_strided_slice %12 {offsets = [0, 448], sizes = [7, 32], strides = [1, 1]} : vector<7x768xf32> to vector<7x32xf32>
    %142 = arith.truncf %141 : vector<7x32xf32> to vector<7x32xbf16>
    %143 = vector.extract_strided_slice %12 {offsets = [0, 704], sizes = [7, 32], strides = [1, 1]} : vector<7x768xf32> to vector<7x32xf32>
    %144 = arith.truncf %143 : vector<7x32xf32> to vector<7x32xbf16>
    %cst_40 = arith.constant dense<0.000000e+00> : vector<7x7xf32>
    %145 = tpu.matmul %140, %142, %cst_40 {dimension_numbers = #tpu.dot_dimension_numbers<[1], [1], [0], [0], [0, 0, 1, 0], [], []>} : vector<7x32xbf16>, vector<7x32xbf16>, vector<7x7xf32> -> vector<7x7xf32>
    %146 = arith.addf %145, %5 : vector<7x7xf32>
    %cst_41 = arith.constant dense<0xFF800000> : vector<7xf32>
    %147 = vector.multi_reduction <maximumf>, %146, %cst_41 [1] : vector<7x7xf32> to vector<7xf32>
    %148 = vector.shape_cast %147 : vector<7xf32> to vector<7x1xf32>
    %149 = vector.broadcast %148 : vector<7x1xf32> to vector<7x7xf32>
    %150 = arith.subf %146, %149 : vector<7x7xf32>
    %151 = math.exp %150 : vector<7x7xf32>
    %cst_42 = arith.constant dense<0.000000e+00> : vector<7xf32>
    %152 = vector.multi_reduction <add>, %151, %cst_42 [1] : vector<7x7xf32> to vector<7xf32>
    %153 = vector.shape_cast %152 : vector<7xf32> to vector<7x1xf32>
    %cst_43 = arith.constant 1.000000e-30 : f32
    %154 = vector.broadcast %cst_43 : f32 to vector<7x1xf32>
    %155 = arith.maximumf %153, %154 : vector<7x1xf32>
    %156 = vector.broadcast %155 : vector<7x1xf32> to vector<7x7xf32>
    %157 = arith.divf %151, %156 : vector<7x7xf32>
    %158 = arith.truncf %157 : vector<7x7xf32> to vector<7x7xbf16>
    %cst_44 = arith.constant dense<0.000000e+00> : vector<7x32xf32>
    %159 = tpu.matmul %158, %144, %cst_44 {dimension_numbers = #tpu.dot_dimension_numbers<[1], [0], [0], [1], [0, 0, 1, 1], [], []>} : vector<7x7xbf16>, vector<7x32xbf16>, vector<7x32xf32> -> vector<7x32xf32>
    %160 = vector.extract_strided_slice %12 {offsets = [0, 224], sizes = [7, 32], strides = [1, 1]} : vector<7x768xf32> to vector<7x32xf32>
    %161 = arith.truncf %160 : vector<7x32xf32> to vector<7x32xbf16>
    %162 = vector.extract_strided_slice %12 {offsets = [0, 480], sizes = [7, 32], strides = [1, 1]} : vector<7x768xf32> to vector<7x32xf32>
    %163 = arith.truncf %162 : vector<7x32xf32> to vector<7x32xbf16>
    %164 = vector.extract_strided_slice %12 {offsets = [0, 736], sizes = [7, 32], strides = [1, 1]} : vector<7x768xf32> to vector<7x32xf32>
    %165 = arith.truncf %164 : vector<7x32xf32> to vector<7x32xbf16>
    %cst_45 = arith.constant dense<0.000000e+00> : vector<7x7xf32>
    %166 = tpu.matmul %161, %163, %cst_45 {dimension_numbers = #tpu.dot_dimension_numbers<[1], [1], [0], [0], [0, 0, 1, 0], [], []>} : vector<7x32xbf16>, vector<7x32xbf16>, vector<7x7xf32> -> vector<7x7xf32>
    %167 = arith.addf %166, %5 : vector<7x7xf32>
    %cst_46 = arith.constant dense<0xFF800000> : vector<7xf32>
    %168 = vector.multi_reduction <maximumf>, %167, %cst_46 [1] : vector<7x7xf32> to vector<7xf32>
    %169 = vector.shape_cast %168 : vector<7xf32> to vector<7x1xf32>
    %170 = vector.broadcast %169 : vector<7x1xf32> to vector<7x7xf32>
    %171 = arith.subf %167, %170 : vector<7x7xf32>
    %172 = math.exp %171 : vector<7x7xf32>
    %cst_47 = arith.constant dense<0.000000e+00> : vector<7xf32>
    %173 = vector.multi_reduction <add>, %172, %cst_47 [1] : vector<7x7xf32> to vector<7xf32>
    %174 = vector.shape_cast %173 : vector<7xf32> to vector<7x1xf32>
    %cst_48 = arith.constant 1.000000e-30 : f32
    %175 = vector.broadcast %cst_48 : f32 to vector<7x1xf32>
    %176 = arith.maximumf %174, %175 : vector<7x1xf32>
    %177 = vector.broadcast %176 : vector<7x1xf32> to vector<7x7xf32>
    %178 = arith.divf %172, %177 : vector<7x7xf32>
    %179 = arith.truncf %178 : vector<7x7xf32> to vector<7x7xbf16>
    %cst_49 = arith.constant dense<0.000000e+00> : vector<7x32xf32>
    %180 = tpu.matmul %179, %165, %cst_49 {dimension_numbers = #tpu.dot_dimension_numbers<[1], [0], [0], [1], [0, 0, 1, 1], [], []>} : vector<7x7xbf16>, vector<7x32xbf16>, vector<7x32xf32> -> vector<7x32xf32>
    %181 = tpu.concatenate %33, %54, %75, %96, %117, %138, %159, %180 in 1 : vector<7x32xf32>, vector<7x32xf32>, vector<7x32xf32>, vector<7x32xf32>, vector<7x32xf32>, vector<7x32xf32>, vector<7x32xf32>, vector<7x32xf32> -> vector<7x256xf32>
    %182 = arith.truncf %181 : vector<7x256xf32> to vector<7x256xbf16>
    %c0_50 = arith.constant 0 : index
    %c0_51 = arith.constant 0 : index
    %c0_52 = arith.constant 0 : index
    %183 = vector.load %arg5[%c0_50, %c0_51, %c0_52] : memref<1x256x256xbf16, #tpu.memory_space<vmem>>, vector<1x256x256xbf16>
    %184 = vector.shape_cast %183 : vector<1x256x256xbf16> to vector<256x256xbf16>
    %cst_53 = arith.constant dense<0.000000e+00> : vector<7x256xf32>
    %185 = tpu.matmul %182, %184, %cst_53 {dimension_numbers = #tpu.dot_dimension_numbers<[1], [0], [0], [1], [0, 0, 1, 1], [], []>} : vector<7x256xbf16>, vector<256x256xbf16>, vector<7x256xf32> -> vector<7x256xf32>
    %c0_54 = arith.constant 0 : index
    %c0_55 = arith.constant 0 : index
    %c0_56 = arith.constant 0 : index
    %186 = vector.load %arg6[%c0_54, %c0_55, %c0_56] : memref<1x1x256xf32, #tpu.memory_space<vmem>>, vector<1x1x256xf32>
    %187 = vector.shape_cast %186 : vector<1x1x256xf32> to vector<1x256xf32>
    %188 = vector.broadcast %187 : vector<1x256xf32> to vector<7x256xf32>
    %189 = arith.addf %185, %188 : vector<7x256xf32>
    %190 = arith.addf %3, %189 : vector<7x256xf32>
    %c0_57 = arith.constant 0 : index
    %c0_58 = arith.constant 0 : index
    %c0_59 = arith.constant 0 : index
    %191 = vector.load %arg7[%c0_57, %c0_58, %c0_59] : memref<1x1x256xf32, #tpu.memory_space<vmem>>, vector<1x1x256xf32>
    %192 = vector.shape_cast %191 : vector<1x1x256xf32> to vector<1x256xf32>
    %c0_60 = arith.constant 0 : index
    %c0_61 = arith.constant 0 : index
    %c0_62 = arith.constant 0 : index
    %193 = vector.load %arg8[%c0_60, %c0_61, %c0_62] : memref<1x1x256xf32, #tpu.memory_space<vmem>>, vector<1x1x256xf32>
    %194 = vector.shape_cast %193 : vector<1x1x256xf32> to vector<1x256xf32>
    %cst_63 = arith.constant dense<0.000000e+00> : vector<7xf32>
    %195 = vector.multi_reduction <add>, %190, %cst_63 [1] : vector<7x256xf32> to vector<7xf32>
    %196 = vector.shape_cast %195 : vector<7xf32> to vector<7x1xf32>
    %cst_64 = arith.constant 2.560000e+02 : f32
    %197 = vector.broadcast %cst_64 : f32 to vector<7x1xf32>
    %198 = arith.divf %196, %197 : vector<7x1xf32>
    %199 = vector.broadcast %198 : vector<7x1xf32> to vector<7x256xf32>
    %200 = arith.subf %190, %199 : vector<7x256xf32>
    %201 = arith.mulf %200, %200 : vector<7x256xf32>
    %cst_65 = arith.constant dense<0.000000e+00> : vector<7xf32>
    %202 = vector.multi_reduction <add>, %201, %cst_65 [1] : vector<7x256xf32> to vector<7xf32>
    %203 = vector.shape_cast %202 : vector<7xf32> to vector<7x1xf32>
    %cst_66 = arith.constant 2.560000e+02 : f32
    %204 = vector.broadcast %cst_66 : f32 to vector<7x1xf32>
    %205 = arith.divf %203, %204 : vector<7x1xf32>
    %cst_67 = arith.constant 9.99999974E-6 : f32
    %206 = vector.broadcast %cst_67 : f32 to vector<7x1xf32>
    %207 = arith.addf %205, %206 : vector<7x1xf32>
    %208 = math.rsqrt %207 : vector<7x1xf32>
    %209 = vector.broadcast %208 : vector<7x1xf32> to vector<7x256xf32>
    %210 = arith.mulf %200, %209 : vector<7x256xf32>
    %211 = vector.broadcast %192 : vector<1x256xf32> to vector<7x256xf32>
    %212 = arith.mulf %210, %211 : vector<7x256xf32>
    %213 = vector.broadcast %194 : vector<1x256xf32> to vector<7x256xf32>
    %214 = arith.addf %212, %213 : vector<7x256xf32>
    %215 = arith.truncf %214 : vector<7x256xf32> to vector<7x256xbf16>
    %c0_68 = arith.constant 0 : index
    %c0_69 = arith.constant 0 : index
    %c0_70 = arith.constant 0 : index
    %216 = vector.load %arg9[%c0_68, %c0_69, %c0_70] : memref<1x256x256xbf16, #tpu.memory_space<vmem>>, vector<1x256x256xbf16>
    %217 = vector.shape_cast %216 : vector<1x256x256xbf16> to vector<256x256xbf16>
    %cst_71 = arith.constant dense<0.000000e+00> : vector<7x256xf32>
    %218 = tpu.matmul %215, %217, %cst_71 {dimension_numbers = #tpu.dot_dimension_numbers<[1], [0], [0], [1], [0, 0, 1, 1], [], []>} : vector<7x256xbf16>, vector<256x256xbf16>, vector<7x256xf32> -> vector<7x256xf32>
    %c0_72 = arith.constant 0 : index
    %c0_73 = arith.constant 0 : index
    %c0_74 = arith.constant 0 : index
    %219 = vector.load %arg10[%c0_72, %c0_73, %c0_74] : memref<1x1x256xf32, #tpu.memory_space<vmem>>, vector<1x1x256xf32>
    %220 = vector.shape_cast %219 : vector<1x1x256xf32> to vector<1x256xf32>
    %221 = vector.broadcast %220 : vector<1x256xf32> to vector<7x256xf32>
    %222 = arith.addf %218, %221 : vector<7x256xf32>
    %cst_75 = arith.constant 0.000000e+00 : f32
    %223 = vector.broadcast %cst_75 : f32 to vector<7x256xf32>
    %224 = arith.maximumf %222, %223 : vector<7x256xf32>
    %225 = arith.truncf %224 : vector<7x256xf32> to vector<7x256xbf16>
    %c0_76 = arith.constant 0 : index
    %c0_77 = arith.constant 0 : index
    %c0_78 = arith.constant 0 : index
    %226 = vector.load %arg11[%c0_76, %c0_77, %c0_78] : memref<1x256x256xbf16, #tpu.memory_space<vmem>>, vector<1x256x256xbf16>
    %227 = vector.shape_cast %226 : vector<1x256x256xbf16> to vector<256x256xbf16>
    %cst_79 = arith.constant dense<0.000000e+00> : vector<7x256xf32>
    %228 = tpu.matmul %225, %227, %cst_79 {dimension_numbers = #tpu.dot_dimension_numbers<[1], [0], [0], [1], [0, 0, 1, 1], [], []>} : vector<7x256xbf16>, vector<256x256xbf16>, vector<7x256xf32> -> vector<7x256xf32>
    %c0_80 = arith.constant 0 : index
    %c0_81 = arith.constant 0 : index
    %c0_82 = arith.constant 0 : index
    %229 = vector.load %arg12[%c0_80, %c0_81, %c0_82] : memref<1x1x256xf32, #tpu.memory_space<vmem>>, vector<1x1x256xf32>
    %230 = vector.shape_cast %229 : vector<1x1x256xf32> to vector<1x256xf32>
    %231 = vector.broadcast %230 : vector<1x256xf32> to vector<7x256xf32>
    %232 = arith.addf %228, %231 : vector<7x256xf32>
    %233 = arith.addf %214, %232 : vector<7x256xf32>
    %c0_83 = arith.constant 0 : index
    %c0_84 = arith.constant 0 : index
    %c0_85 = arith.constant 0 : index
    %234 = vector.load %arg13[%c0_83, %c0_84, %c0_85] : memref<1x1x256xf32, #tpu.memory_space<vmem>>, vector<1x1x256xf32>
    %235 = vector.shape_cast %234 : vector<1x1x256xf32> to vector<1x256xf32>
    %c0_86 = arith.constant 0 : index
    %c0_87 = arith.constant 0 : index
    %c0_88 = arith.constant 0 : index
    %236 = vector.load %arg14[%c0_86, %c0_87, %c0_88] : memref<1x1x256xf32, #tpu.memory_space<vmem>>, vector<1x1x256xf32>
    %237 = vector.shape_cast %236 : vector<1x1x256xf32> to vector<1x256xf32>
    %cst_89 = arith.constant dense<0.000000e+00> : vector<7xf32>
    %238 = vector.multi_reduction <add>, %233, %cst_89 [1] : vector<7x256xf32> to vector<7xf32>
    %239 = vector.shape_cast %238 : vector<7xf32> to vector<7x1xf32>
    %cst_90 = arith.constant 2.560000e+02 : f32
    %240 = vector.broadcast %cst_90 : f32 to vector<7x1xf32>
    %241 = arith.divf %239, %240 : vector<7x1xf32>
    %242 = vector.broadcast %241 : vector<7x1xf32> to vector<7x256xf32>
    %243 = arith.subf %233, %242 : vector<7x256xf32>
    %244 = arith.mulf %243, %243 : vector<7x256xf32>
    %cst_91 = arith.constant dense<0.000000e+00> : vector<7xf32>
    %245 = vector.multi_reduction <add>, %244, %cst_91 [1] : vector<7x256xf32> to vector<7xf32>
    %246 = vector.shape_cast %245 : vector<7xf32> to vector<7x1xf32>
    %cst_92 = arith.constant 2.560000e+02 : f32
    %247 = vector.broadcast %cst_92 : f32 to vector<7x1xf32>
    %248 = arith.divf %246, %247 : vector<7x1xf32>
    %cst_93 = arith.constant 9.99999974E-6 : f32
    %249 = vector.broadcast %cst_93 : f32 to vector<7x1xf32>
    %250 = arith.addf %248, %249 : vector<7x1xf32>
    %251 = math.rsqrt %250 : vector<7x1xf32>
    %252 = vector.broadcast %251 : vector<7x1xf32> to vector<7x256xf32>
    %253 = arith.mulf %243, %252 : vector<7x256xf32>
    %254 = vector.broadcast %235 : vector<1x256xf32> to vector<7x256xf32>
    %255 = arith.mulf %253, %254 : vector<7x256xf32>
    %256 = vector.broadcast %237 : vector<1x256xf32> to vector<7x256xf32>
    %257 = arith.addf %255, %256 : vector<7x256xf32>
    %c0_94 = arith.constant 0 : index
    %c0_95 = arith.constant 0 : index
    %258 = vector.load %arg16[%c0_94, %c0_95] : memref<7x256xf32, #tpu.memory_space<vmem>>, vector<7x256xf32>
    tpu.vector_store %arg16[%c0_94, %c0_95], %257 {strides = array<i32>} : memref<7x256xf32, #tpu.memory_space<vmem>>, vector<7x256xf32>,
    %c0_i32_96 = arith.constant 0 : i32
    %259 = arith.cmpi eq, %arg0, %c0_i32_96 : i32
    %260 = arith.extui %259 : i1 to i32
    %c0_i32_97 = arith.constant 0 : i32
    %261 = arith.cmpi ne, %260, %c0_i32_97 : i32
    scf.if %261 {
      %c0_98 = arith.constant 0 : index
      %c0_99 = arith.constant 0 : index
      %262 = vector.load %arg15[%c0_98, %c0_99] : memref<7x256xf32, #tpu.memory_space<vmem>>, vector<7x256xf32>
      tpu.vector_store %arg15[%c0_98, %c0_99], %257 {strides = array<i32>} : memref<7x256xf32, #tpu.memory_space<vmem>>, vector<7x256xf32>,
    } else {
    }
    return
  }
  func.func @transform_0(%arg0: i32) -> (i32, i32) {
    %c0_i32 = arith.constant 0 : i32
    %c0_i32_0 = arith.constant 0 : i32
    %c0_i32_1 = arith.constant 0 : i32
    return %c0_i32, %c0_i32_0 : i32, i32
  }
  func.func @transform_1(%arg0: i32) -> (i32, i32) {
    %c0_i32 = arith.constant 0 : i32
    %c0_i32_0 = arith.constant 0 : i32
    %c0_i32_1 = arith.constant 0 : i32
    return %c0_i32, %c0_i32_0 : i32, i32
  }
  func.func @transform_2(%arg0: i32) -> (i32, i32, i32) {
    %c0_i32 = arith.constant 0 : i32
    %c0_i32_0 = arith.constant 0 : i32
    %c0_i32_1 = arith.constant 0 : i32
    return %arg0, %c0_i32, %c0_i32_0 : i32, i32, i32
  }
  func.func @transform_3(%arg0: i32) -> (i32, i32, i32) {
    %c0_i32 = arith.constant 0 : i32
    %c0_i32_0 = arith.constant 0 : i32
    %c0_i32_1 = arith.constant 0 : i32
    return %arg0, %c0_i32, %c0_i32_0 : i32, i32, i32
  }
  func.func @transform_4(%arg0: i32) -> (i32, i32, i32) {
    %c0_i32 = arith.constant 0 : i32
    %c0_i32_0 = arith.constant 0 : i32
    %c0_i32_1 = arith.constant 0 : i32
    return %arg0, %c0_i32, %c0_i32_0 : i32, i32, i32
  }
  func.func @transform_5(%arg0: i32) -> (i32, i32, i32) {
    %c0_i32 = arith.constant 0 : i32
    %c0_i32_0 = arith.constant 0 : i32
    %c0_i32_1 = arith.constant 0 : i32
    return %arg0, %c0_i32, %c0_i32_0 : i32, i32, i32
  }
  func.func @transform_6(%arg0: i32) -> (i32, i32, i32) {
    %c0_i32 = arith.constant 0 : i32
    %c0_i32_0 = arith.constant 0 : i32
    %c0_i32_1 = arith.constant 0 : i32
    return %arg0, %c0_i32, %c0_i32_0 : i32, i32, i32
  }
  func.func @transform_7(%arg0: i32) -> (i32, i32, i32) {
    %c0_i32 = arith.constant 0 : i32
    %c0_i32_0 = arith.constant 0 : i32
    %c0_i32_1 = arith.constant 0 : i32
    return %arg0, %c0_i32, %c0_i32_0 : i32, i32, i32
  }
  func.func @transform_8(%arg0: i32) -> (i32, i32, i32) {
    %c0_i32 = arith.constant 0 : i32
    %c0_i32_0 = arith.constant 0 : i32
    %c0_i32_1 = arith.constant 0 : i32
    return %arg0, %c0_i32, %c0_i32_0 : i32, i32, i32
  }
  func.func @transform_9(%arg0: i32) -> (i32, i32, i32) {
    %c0_i32 = arith.constant 0 : i32
    %c0_i32_0 = arith.constant 0 : i32
    %c0_i32_1 = arith.constant 0 : i32
    return %arg0, %c0_i32, %c0_i32_0 : i32, i32, i32
  }
  func.func @transform_10(%arg0: i32) -> (i32, i32, i32) {
    %c0_i32 = arith.constant 0 : i32
    %c0_i32_0 = arith.constant 0 : i32
    %c0_i32_1 = arith.constant 0 : i32
    return %arg0, %c0_i32, %c0_i32_0 : i32, i32, i32
  }
  func.func @transform_11(%arg0: i32) -> (i32, i32, i32) {
    %c0_i32 = arith.constant 0 : i32
    %c0_i32_0 = arith.constant 0 : i32
    %c0_i32_1 = arith.constant 0 : i32
    return %arg0, %c0_i32, %c0_i32_0 : i32, i32, i32
  }
  func.func @transform_12(%arg0: i32) -> (i32, i32, i32) {
    %c0_i32 = arith.constant 0 : i32
    %c0_i32_0 = arith.constant 0 : i32
    %c0_i32_1 = arith.constant 0 : i32
    return %arg0, %c0_i32, %c0_i32_0 : i32, i32, i32
  }
  func.func @transform_13(%arg0: i32) -> (i32, i32, i32) {
    %c0_i32 = arith.constant 0 : i32
    %c0_i32_0 = arith.constant 0 : i32
    %c0_i32_1 = arith.constant 0 : i32
    return %arg0, %c0_i32, %c0_i32_0 : i32, i32, i32
  }
  func.func @transform_14(%arg0: i32) -> (i32, i32) {
    %c0_i32 = arith.constant 0 : i32
    %c0_i32_0 = arith.constant 0 : i32
    %c0_i32_1 = arith.constant 0 : i32
    return %c0_i32, %c0_i32_0 : i32, i32
  }
}

module attributes {stable_mosaic.version = 11 : i64} {
  func.func @_encoder_stack_kernel(%arg0: i32, %arg1: memref<7x256xf32, #tpu.memory_space<vmem>>, %arg2: memref<7x7xf32, #tpu.memory_space<vmem>>, %arg3: memref<1x256x768xbf16, #tpu.memory_space<vmem>>, %arg4: memref<1x1x768xf32, #tpu.memory_space<vmem>>, %arg5: memref<1x256x256xbf16, #tpu.memory_space<vmem>>, %arg6: memref<1x1x256xf32, #tpu.memory_space<vmem>>, %arg7: memref<1x1x256xf32, #tpu.memory_space<vmem>>, %arg8: memref<1x1x256xf32, #tpu.memory_space<vmem>>, %arg9: memref<1x256x256xbf16, #tpu.memory_space<vmem>>, %arg10: memref<1x1x256xf32, #tpu.memory_space<vmem>>, %arg11: memref<1x256x256xbf16, #tpu.memory_space<vmem>>, %arg12: memref<1x1x256xf32, #tpu.memory_space<vmem>>, %arg13: memref<1x1x256xf32, #tpu.memory_space<vmem>>, %arg14: memref<1x1x256xf32, #tpu.memory_space<vmem>>, %arg15: memref<7x256xf32, #tpu.memory_space<vmem>>, %arg16: memref<7x256xf32, #tpu.memory_space<vmem>>) attributes {dimension_semantics = [#tpu.dimension_semantics<arbitrary>], iteration_bounds = array<i64: 3>, scalar_prefetch = 0 : i64, scratch_operands = 1 : i64, tpu.core_type = #tpu.core_type<tc>, window_params = [{pipeline_mode = #tpu.pipeline_mode<synchronous>, transform_indices = @transform_0, window_bounds = array<i64: 7, 256>}, {pipeline_mode = #tpu.pipeline_mode<synchronous>, transform_indices = @transform_1, window_bounds = array<i64: 7, 7>}, {transform_indices = @transform_2, window_bounds = array<i64: 1, 256, 768>}, {transform_indices = @transform_3, window_bounds = array<i64: 1, 1, 768>}, {transform_indices = @transform_4, window_bounds = array<i64: 1, 256, 256>}, {transform_indices = @transform_5, window_bounds = array<i64: 1, 1, 256>}, {transform_indices = @transform_6, window_bounds = array<i64: 1, 1, 256>}, {transform_indices = @transform_7, window_bounds = array<i64: 1, 1, 256>}, {transform_indices = @transform_8, window_bounds = array<i64: 1, 256, 256>}, {transform_indices = @transform_9, window_bounds = array<i64: 1, 1, 256>}, {transform_indices = @transform_10, window_bounds = array<i64: 1, 256, 256>}, {transform_indices = @transform_11, window_bounds = array<i64: 1, 1, 256>}, {transform_indices = @transform_12, window_bounds = array<i64: 1, 1, 256>}, {transform_indices = @transform_13, window_bounds = array<i64: 1, 1, 256>}, {pipeline_mode = #tpu.pipeline_mode<synchronous>, transform_indices = @transform_14, window_bounds = array<i64: 7, 256>}]} {
    %c0_i32 = arith.constant 0 : i32
    %0 = arith.cmpi eq, %arg0, %c0_i32 : i32
    %1 = arith.extui %0 : i1 to i32
    %c0_i32_0 = arith.constant 0 : i32
    %2 = arith.cmpi ne, %1, %c0_i32_0 : i32
    scf.if %2 {
      %c0_97 = arith.constant 0 : index
      %c0_98 = arith.constant 0 : index
      %262 = vector.load %arg1[%c0_97, %c0_98] : memref<7x256xf32, #tpu.memory_space<vmem>>, vector<7x256xf32>
      %c0_99 = arith.constant 0 : index
      %c0_100 = arith.constant 0 : index
      %263 = vector.load %arg16[%c0_99, %c0_100] : memref<7x256xf32, #tpu.memory_space<vmem>>, vector<7x256xf32>
      tpu.vector_store %arg16[%c0_99, %c0_100], %262 {strides = array<i32>} : memref<7x256xf32, #tpu.memory_space<vmem>>, vector<7x256xf32>,
    } else {
    }
    %c0 = arith.constant 0 : index
    %c0_1 = arith.constant 0 : index
    %3 = vector.load %arg16[%c0, %c0_1] : memref<7x256xf32, #tpu.memory_space<vmem>>, vector<7x256xf32>
    %4 = arith.truncf %3 : vector<7x256xf32> to vector<7x256xbf16>
    %c0_2 = arith.constant 0 : index
    %c0_3 = arith.constant 0 : index
    %5 = vector.load %arg2[%c0_2, %c0_3] : memref<7x7xf32, #tpu.memory_space<vmem>>, vector<7x7xf32>
    %c0_4 = arith.constant 0 : index
    %c0_5 = arith.constant 0 : index
    %c0_6 = arith.constant 0 : index
    %6 = vector.load %arg3[%c0_4, %c0_5, %c0_6] : memref<1x256x768xbf16, #tpu.memory_space<vmem>>, vector<1x256x768xbf16>
    %7 = vector.shape_cast %6 : vector<1x256x768xbf16> to vector<256x768xbf16>
    %cst = arith.constant dense<0.000000e+00> : vector<7x768xf32>
    %8 = tpu.matmul %4, %7, %cst {dimension_numbers = #tpu.dot_dimension_numbers<[1], [0], [0], [1], [0, 0, 1, 1], [], []>} : vector<7x256xbf16>, vector<256x768xbf16>, vector<7x768xf32> -> vector<7x768xf32>
    %c0_7 = arith.constant 0 : index
    %c0_8 = arith.constant 0 : index
    %c0_9 = arith.constant 0 : index
    %9 = vector.load %arg4[%c0_7, %c0_8, %c0_9] : memref<1x1x768xf32, #tpu.memory_space<vmem>>, vector<1x1x768xf32>
    %10 = vector.shape_cast %9 : vector<1x1x768xf32> to vector<1x768xf32>
    %11 = vector.broadcast %10 : vector<1x768xf32> to vector<7x768xf32>
    %12 = arith.addf %8, %11 : vector<7x768xf32>
    %13 = vector.extract_strided_slice %12 {offsets = [0, 0], sizes = [7, 32], strides = [1, 1]} : vector<7x768xf32> to vector<7x32xf32>
    %14 = arith.truncf %13 : vector<7x32xf32> to vector<7x32xbf16>
    %15 = vector.extract_strided_slice %12 {offsets = [0, 256], sizes = [7, 32], strides = [1, 1]} : vector<7x768xf32> to vector<7x32xf32>
    %16 = arith.truncf %15 : vector<7x32xf32> to vector<7x32xbf16>
    %17 = vector.extract_strided_slice %12 {offsets = [0, 512], sizes = [7, 32], strides = [1, 1]} : vector<7x768xf32> to vector<7x32xf32>
    %18 = arith.truncf %17 : vector<7x32xf32> to vector<7x32xbf16>
    %cst_10 = arith.constant dense<0.000000e+00> : vector<7x7xf32>
    %19 = tpu.matmul %14, %16, %cst_10 {dimension_numbers = #tpu.dot_dimension_numbers<[1], [1], [0], [0], [0, 0, 1, 0], [], []>} : vector<7x32xbf16>, vector<7x32xbf16>, vector<7x7xf32> -> vector<7x7xf32>
    %20 = arith.addf %19, %5 : vector<7x7xf32>
    %cst_11 = arith.constant dense<0xFF800000> : vector<7xf32>
    %21 = vector.multi_reduction <maximumf>, %20, %cst_11 [1] : vector<7x7xf32> to vector<7xf32>
    %22 = vector.shape_cast %21 : vector<7xf32> to vector<7x1xf32>
    %23 = vector.broadcast %22 : vector<7x1xf32> to vector<7x7xf32>
    %24 = arith.subf %20, %23 : vector<7x7xf32>
    %25 = math.exp %24 : vector<7x7xf32>
    %cst_12 = arith.constant dense<0.000000e+00> : vector<7xf32>
    %26 = vector.multi_reduction <add>, %25, %cst_12 [1] : vector<7x7xf32> to vector<7xf32>
    %27 = vector.shape_cast %26 : vector<7xf32> to vector<7x1xf32>
    %cst_13 = arith.constant 1.000000e-30 : f32
    %28 = vector.broadcast %cst_13 : f32 to vector<7x1xf32>
    %29 = arith.maximumf %27, %28 : vector<7x1xf32>
    %30 = vector.broadcast %29 : vector<7x1xf32> to vector<7x7xf32>
    %31 = arith.divf %25, %30 : vector<7x7xf32>
    %32 = arith.truncf %31 : vector<7x7xf32> to vector<7x7xbf16>
    %cst_14 = arith.constant dense<0.000000e+00> : vector<7x32xf32>
    %33 = tpu.matmul %32, %18, %cst_14 {dimension_numbers = #tpu.dot_dimension_numbers<[1], [0], [0], [1], [0, 0, 1, 1], [], []>} : vector<7x7xbf16>, vector<7x32xbf16>, vector<7x32xf32> -> vector<7x32xf32>
    %34 = vector.extract_strided_slice %12 {offsets = [0, 32], sizes = [7, 32], strides = [1, 1]} : vector<7x768xf32> to vector<7x32xf32>
    %35 = arith.truncf %34 : vector<7x32xf32> to vector<7x32xbf16>
    %36 = vector.extract_strided_slice %12 {offsets = [0, 288], sizes = [7, 32], strides = [1, 1]} : vector<7x768xf32> to vector<7x32xf32>
    %37 = arith.truncf %36 : vector<7x32xf32> to vector<7x32xbf16>
    %38 = vector.extract_strided_slice %12 {offsets = [0, 544], sizes = [7, 32], strides = [1, 1]} : vector<7x768xf32> to vector<7x32xf32>
    %39 = arith.truncf %38 : vector<7x32xf32> to vector<7x32xbf16>
    %cst_15 = arith.constant dense<0.000000e+00> : vector<7x7xf32>
    %40 = tpu.matmul %35, %37, %cst_15 {dimension_numbers = #tpu.dot_dimension_numbers<[1], [1], [0], [0], [0, 0, 1, 0], [], []>} : vector<7x32xbf16>, vector<7x32xbf16>, vector<7x7xf32> -> vector<7x7xf32>
    %41 = arith.addf %40, %5 : vector<7x7xf32>
    %cst_16 = arith.constant dense<0xFF800000> : vector<7xf32>
    %42 = vector.multi_reduction <maximumf>, %41, %cst_16 [1] : vector<7x7xf32> to vector<7xf32>
    %43 = vector.shape_cast %42 : vector<7xf32> to vector<7x1xf32>
    %44 = vector.broadcast %43 : vector<7x1xf32> to vector<7x7xf32>
    %45 = arith.subf %41, %44 : vector<7x7xf32>
    %46 = math.exp %45 : vector<7x7xf32>
    %cst_17 = arith.constant dense<0.000000e+00> : vector<7xf32>
    %47 = vector.multi_reduction <add>, %46, %cst_17 [1] : vector<7x7xf32> to vector<7xf32>
    %48 = vector.shape_cast %47 : vector<7xf32> to vector<7x1xf32>
    %cst_18 = arith.constant 1.000000e-30 : f32
    %49 = vector.broadcast %cst_18 : f32 to vector<7x1xf32>
    %50 = arith.maximumf %48, %49 : vector<7x1xf32>
    %51 = vector.broadcast %50 : vector<7x1xf32> to vector<7x7xf32>
    %52 = arith.divf %46, %51 : vector<7x7xf32>
    %53 = arith.truncf %52 : vector<7x7xf32> to vector<7x7xbf16>
    %cst_19 = arith.constant dense<0.000000e+00> : vector<7x32xf32>
    %54 = tpu.matmul %53, %39, %cst_19 {dimension_numbers = #tpu.dot_dimension_numbers<[1], [0], [0], [1], [0, 0, 1, 1], [], []>} : vector<7x7xbf16>, vector<7x32xbf16>, vector<7x32xf32> -> vector<7x32xf32>
    %55 = vector.extract_strided_slice %12 {offsets = [0, 64], sizes = [7, 32], strides = [1, 1]} : vector<7x768xf32> to vector<7x32xf32>
    %56 = arith.truncf %55 : vector<7x32xf32> to vector<7x32xbf16>
    %57 = vector.extract_strided_slice %12 {offsets = [0, 320], sizes = [7, 32], strides = [1, 1]} : vector<7x768xf32> to vector<7x32xf32>
    %58 = arith.truncf %57 : vector<7x32xf32> to vector<7x32xbf16>
    %59 = vector.extract_strided_slice %12 {offsets = [0, 576], sizes = [7, 32], strides = [1, 1]} : vector<7x768xf32> to vector<7x32xf32>
    %60 = arith.truncf %59 : vector<7x32xf32> to vector<7x32xbf16>
    %cst_20 = arith.constant dense<0.000000e+00> : vector<7x7xf32>
    %61 = tpu.matmul %56, %58, %cst_20 {dimension_numbers = #tpu.dot_dimension_numbers<[1], [1], [0], [0], [0, 0, 1, 0], [], []>} : vector<7x32xbf16>, vector<7x32xbf16>, vector<7x7xf32> -> vector<7x7xf32>
    %62 = arith.addf %61, %5 : vector<7x7xf32>
    %cst_21 = arith.constant dense<0xFF800000> : vector<7xf32>
    %63 = vector.multi_reduction <maximumf>, %62, %cst_21 [1] : vector<7x7xf32> to vector<7xf32>
    %64 = vector.shape_cast %63 : vector<7xf32> to vector<7x1xf32>
    %65 = vector.broadcast %64 : vector<7x1xf32> to vector<7x7xf32>
    %66 = arith.subf %62, %65 : vector<7x7xf32>
    %67 = math.exp %66 : vector<7x7xf32>
    %cst_22 = arith.constant dense<0.000000e+00> : vector<7xf32>
    %68 = vector.multi_reduction <add>, %67, %cst_22 [1] : vector<7x7xf32> to vector<7xf32>
    %69 = vector.shape_cast %68 : vector<7xf32> to vector<7x1xf32>
    %cst_23 = arith.constant 1.000000e-30 : f32
    %70 = vector.broadcast %cst_23 : f32 to vector<7x1xf32>
    %71 = arith.maximumf %69, %70 : vector<7x1xf32>
    %72 = vector.broadcast %71 : vector<7x1xf32> to vector<7x7xf32>
    %73 = arith.divf %67, %72 : vector<7x7xf32>
    %74 = arith.truncf %73 : vector<7x7xf32> to vector<7x7xbf16>
    %cst_24 = arith.constant dense<0.000000e+00> : vector<7x32xf32>
    %75 = tpu.matmul %74, %60, %cst_24 {dimension_numbers = #tpu.dot_dimension_numbers<[1], [0], [0], [1], [0, 0, 1, 1], [], []>} : vector<7x7xbf16>, vector<7x32xbf16>, vector<7x32xf32> -> vector<7x32xf32>
    %76 = vector.extract_strided_slice %12 {offsets = [0, 96], sizes = [7, 32], strides = [1, 1]} : vector<7x768xf32> to vector<7x32xf32>
    %77 = arith.truncf %76 : vector<7x32xf32> to vector<7x32xbf16>
    %78 = vector.extract_strided_slice %12 {offsets = [0, 352], sizes = [7, 32], strides = [1, 1]} : vector<7x768xf32> to vector<7x32xf32>
    %79 = arith.truncf %78 : vector<7x32xf32> to vector<7x32xbf16>
    %80 = vector.extract_strided_slice %12 {offsets = [0, 608], sizes = [7, 32], strides = [1, 1]} : vector<7x768xf32> to vector<7x32xf32>
    %81 = arith.truncf %80 : vector<7x32xf32> to vector<7x32xbf16>
    %cst_25 = arith.constant dense<0.000000e+00> : vector<7x7xf32>
    %82 = tpu.matmul %77, %79, %cst_25 {dimension_numbers = #tpu.dot_dimension_numbers<[1], [1], [0], [0], [0, 0, 1, 0], [], []>} : vector<7x32xbf16>, vector<7x32xbf16>, vector<7x7xf32> -> vector<7x7xf32>
    %83 = arith.addf %82, %5 : vector<7x7xf32>
    %cst_26 = arith.constant dense<0xFF800000> : vector<7xf32>
    %84 = vector.multi_reduction <maximumf>, %83, %cst_26 [1] : vector<7x7xf32> to vector<7xf32>
    %85 = vector.shape_cast %84 : vector<7xf32> to vector<7x1xf32>
    %86 = vector.broadcast %85 : vector<7x1xf32> to vector<7x7xf32>
    %87 = arith.subf %83, %86 : vector<7x7xf32>
    %88 = math.exp %87 : vector<7x7xf32>
    %cst_27 = arith.constant dense<0.000000e+00> : vector<7xf32>
    %89 = vector.multi_reduction <add>, %88, %cst_27 [1] : vector<7x7xf32> to vector<7xf32>
    %90 = vector.shape_cast %89 : vector<7xf32> to vector<7x1xf32>
    %cst_28 = arith.constant 1.000000e-30 : f32
    %91 = vector.broadcast %cst_28 : f32 to vector<7x1xf32>
    %92 = arith.maximumf %90, %91 : vector<7x1xf32>
    %93 = vector.broadcast %92 : vector<7x1xf32> to vector<7x7xf32>
    %94 = arith.divf %88, %93 : vector<7x7xf32>
    %95 = arith.truncf %94 : vector<7x7xf32> to vector<7x7xbf16>
    %cst_29 = arith.constant dense<0.000000e+00> : vector<7x32xf32>
    %96 = tpu.matmul %95, %81, %cst_29 {dimension_numbers = #tpu.dot_dimension_numbers<[1], [0], [0], [1], [0, 0, 1, 1], [], []>} : vector<7x7xbf16>, vector<7x32xbf16>, vector<7x32xf32> -> vector<7x32xf32>
    %97 = vector.extract_strided_slice %12 {offsets = [0, 128], sizes = [7, 32], strides = [1, 1]} : vector<7x768xf32> to vector<7x32xf32>
    %98 = arith.truncf %97 : vector<7x32xf32> to vector<7x32xbf16>
    %99 = vector.extract_strided_slice %12 {offsets = [0, 384], sizes = [7, 32], strides = [1, 1]} : vector<7x768xf32> to vector<7x32xf32>
    %100 = arith.truncf %99 : vector<7x32xf32> to vector<7x32xbf16>
    %101 = vector.extract_strided_slice %12 {offsets = [0, 640], sizes = [7, 32], strides = [1, 1]} : vector<7x768xf32> to vector<7x32xf32>
    %102 = arith.truncf %101 : vector<7x32xf32> to vector<7x32xbf16>
    %cst_30 = arith.constant dense<0.000000e+00> : vector<7x7xf32>
    %103 = tpu.matmul %98, %100, %cst_30 {dimension_numbers = #tpu.dot_dimension_numbers<[1], [1], [0], [0], [0, 0, 1, 0], [], []>} : vector<7x32xbf16>, vector<7x32xbf16>, vector<7x7xf32> -> vector<7x7xf32>
    %104 = arith.addf %103, %5 : vector<7x7xf32>
    %cst_31 = arith.constant dense<0xFF800000> : vector<7xf32>
    %105 = vector.multi_reduction <maximumf>, %104, %cst_31 [1] : vector<7x7xf32> to vector<7xf32>
    %106 = vector.shape_cast %105 : vector<7xf32> to vector<7x1xf32>
    %107 = vector.broadcast %106 : vector<7x1xf32> to vector<7x7xf32>
    %108 = arith.subf %104, %107 : vector<7x7xf32>
    %109 = math.exp %108 : vector<7x7xf32>
    %cst_32 = arith.constant dense<0.000000e+00> : vector<7xf32>
    %110 = vector.multi_reduction <add>, %109, %cst_32 [1] : vector<7x7xf32> to vector<7xf32>
    %111 = vector.shape_cast %110 : vector<7xf32> to vector<7x1xf32>
    %cst_33 = arith.constant 1.000000e-30 : f32
    %112 = vector.broadcast %cst_33 : f32 to vector<7x1xf32>
    %113 = arith.maximumf %111, %112 : vector<7x1xf32>
    %114 = vector.broadcast %113 : vector<7x1xf32> to vector<7x7xf32>
    %115 = arith.divf %109, %114 : vector<7x7xf32>
    %116 = arith.truncf %115 : vector<7x7xf32> to vector<7x7xbf16>
    %cst_34 = arith.constant dense<0.000000e+00> : vector<7x32xf32>
    %117 = tpu.matmul %116, %102, %cst_34 {dimension_numbers = #tpu.dot_dimension_numbers<[1], [0], [0], [1], [0, 0, 1, 1], [], []>} : vector<7x7xbf16>, vector<7x32xbf16>, vector<7x32xf32> -> vector<7x32xf32>
    %118 = vector.extract_strided_slice %12 {offsets = [0, 160], sizes = [7, 32], strides = [1, 1]} : vector<7x768xf32> to vector<7x32xf32>
    %119 = arith.truncf %118 : vector<7x32xf32> to vector<7x32xbf16>
    %120 = vector.extract_strided_slice %12 {offsets = [0, 416], sizes = [7, 32], strides = [1, 1]} : vector<7x768xf32> to vector<7x32xf32>
    %121 = arith.truncf %120 : vector<7x32xf32> to vector<7x32xbf16>
    %122 = vector.extract_strided_slice %12 {offsets = [0, 672], sizes = [7, 32], strides = [1, 1]} : vector<7x768xf32> to vector<7x32xf32>
    %123 = arith.truncf %122 : vector<7x32xf32> to vector<7x32xbf16>
    %cst_35 = arith.constant dense<0.000000e+00> : vector<7x7xf32>
    %124 = tpu.matmul %119, %121, %cst_35 {dimension_numbers = #tpu.dot_dimension_numbers<[1], [1], [0], [0], [0, 0, 1, 0], [], []>} : vector<7x32xbf16>, vector<7x32xbf16>, vector<7x7xf32> -> vector<7x7xf32>
    %125 = arith.addf %124, %5 : vector<7x7xf32>
    %cst_36 = arith.constant dense<0xFF800000> : vector<7xf32>
    %126 = vector.multi_reduction <maximumf>, %125, %cst_36 [1] : vector<7x7xf32> to vector<7xf32>
    %127 = vector.shape_cast %126 : vector<7xf32> to vector<7x1xf32>
    %128 = vector.broadcast %127 : vector<7x1xf32> to vector<7x7xf32>
    %129 = arith.subf %125, %128 : vector<7x7xf32>
    %130 = math.exp %129 : vector<7x7xf32>
    %cst_37 = arith.constant dense<0.000000e+00> : vector<7xf32>
    %131 = vector.multi_reduction <add>, %130, %cst_37 [1] : vector<7x7xf32> to vector<7xf32>
    %132 = vector.shape_cast %131 : vector<7xf32> to vector<7x1xf32>
    %cst_38 = arith.constant 1.000000e-30 : f32
    %133 = vector.broadcast %cst_38 : f32 to vector<7x1xf32>
    %134 = arith.maximumf %132, %133 : vector<7x1xf32>
    %135 = vector.broadcast %134 : vector<7x1xf32> to vector<7x7xf32>
    %136 = arith.divf %130, %135 : vector<7x7xf32>
    %137 = arith.truncf %136 : vector<7x7xf32> to vector<7x7xbf16>
    %cst_39 = arith.constant dense<0.000000e+00> : vector<7x32xf32>
    %138 = tpu.matmul %137, %123, %cst_39 {dimension_numbers = #tpu.dot_dimension_numbers<[1], [0], [0], [1], [0, 0, 1, 1], [], []>} : vector<7x7xbf16>, vector<7x32xbf16>, vector<7x32xf32> -> vector<7x32xf32>
    %139 = vector.extract_strided_slice %12 {offsets = [0, 192], sizes = [7, 32], strides = [1, 1]} : vector<7x768xf32> to vector<7x32xf32>
    %140 = arith.truncf %139 : vector<7x32xf32> to vector<7x32xbf16>
    %141 = vector.extract_strided_slice %12 {offsets = [0, 448], sizes = [7, 32], strides = [1, 1]} : vector<7x768xf32> to vector<7x32xf32>
    %142 = arith.truncf %141 : vector<7x32xf32> to vector<7x32xbf16>
    %143 = vector.extract_strided_slice %12 {offsets = [0, 704], sizes = [7, 32], strides = [1, 1]} : vector<7x768xf32> to vector<7x32xf32>
    %144 = arith.truncf %143 : vector<7x32xf32> to vector<7x32xbf16>
    %cst_40 = arith.constant dense<0.000000e+00> : vector<7x7xf32>
    %145 = tpu.matmul %140, %142, %cst_40 {dimension_numbers = #tpu.dot_dimension_numbers<[1], [1], [0], [0], [0, 0, 1, 0], [], []>} : vector<7x32xbf16>, vector<7x32xbf16>, vector<7x7xf32> -> vector<7x7xf32>
    %146 = arith.addf %145, %5 : vector<7x7xf32>
    %cst_41 = arith.constant dense<0xFF800000> : vector<7xf32>
    %147 = vector.multi_reduction <maximumf>, %146, %cst_41 [1] : vector<7x7xf32> to vector<7xf32>
    %148 = vector.shape_cast %147 : vector<7xf32> to vector<7x1xf32>
    %149 = vector.broadcast %148 : vector<7x1xf32> to vector<7x7xf32>
    %150 = arith.subf %146, %149 : vector<7x7xf32>
    %151 = math.exp %150 : vector<7x7xf32>
    %cst_42 = arith.constant dense<0.000000e+00> : vector<7xf32>
    %152 = vector.multi_reduction <add>, %151, %cst_42 [1] : vector<7x7xf32> to vector<7xf32>
    %153 = vector.shape_cast %152 : vector<7xf32> to vector<7x1xf32>
    %cst_43 = arith.constant 1.000000e-30 : f32
    %154 = vector.broadcast %cst_43 : f32 to vector<7x1xf32>
    %155 = arith.maximumf %153, %154 : vector<7x1xf32>
    %156 = vector.broadcast %155 : vector<7x1xf32> to vector<7x7xf32>
    %157 = arith.divf %151, %156 : vector<7x7xf32>
    %158 = arith.truncf %157 : vector<7x7xf32> to vector<7x7xbf16>
    %cst_44 = arith.constant dense<0.000000e+00> : vector<7x32xf32>
    %159 = tpu.matmul %158, %144, %cst_44 {dimension_numbers = #tpu.dot_dimension_numbers<[1], [0], [0], [1], [0, 0, 1, 1], [], []>} : vector<7x7xbf16>, vector<7x32xbf16>, vector<7x32xf32> -> vector<7x32xf32>
    %160 = vector.extract_strided_slice %12 {offsets = [0, 224], sizes = [7, 32], strides = [1, 1]} : vector<7x768xf32> to vector<7x32xf32>
    %161 = arith.truncf %160 : vector<7x32xf32> to vector<7x32xbf16>
    %162 = vector.extract_strided_slice %12 {offsets = [0, 480], sizes = [7, 32], strides = [1, 1]} : vector<7x768xf32> to vector<7x32xf32>
    %163 = arith.truncf %162 : vector<7x32xf32> to vector<7x32xbf16>
    %164 = vector.extract_strided_slice %12 {offsets = [0, 736], sizes = [7, 32], strides = [1, 1]} : vector<7x768xf32> to vector<7x32xf32>
    %165 = arith.truncf %164 : vector<7x32xf32> to vector<7x32xbf16>
    %cst_45 = arith.constant dense<0.000000e+00> : vector<7x7xf32>
    %166 = tpu.matmul %161, %163, %cst_45 {dimension_numbers = #tpu.dot_dimension_numbers<[1], [1], [0], [0], [0, 0, 1, 0], [], []>} : vector<7x32xbf16>, vector<7x32xbf16>, vector<7x7xf32> -> vector<7x7xf32>
    %167 = arith.addf %166, %5 : vector<7x7xf32>
    %cst_46 = arith.constant dense<0xFF800000> : vector<7xf32>
    %168 = vector.multi_reduction <maximumf>, %167, %cst_46 [1] : vector<7x7xf32> to vector<7xf32>
    %169 = vector.shape_cast %168 : vector<7xf32> to vector<7x1xf32>
    %170 = vector.broadcast %169 : vector<7x1xf32> to vector<7x7xf32>
    %171 = arith.subf %167, %170 : vector<7x7xf32>
    %172 = math.exp %171 : vector<7x7xf32>
    %cst_47 = arith.constant dense<0.000000e+00> : vector<7xf32>
    %173 = vector.multi_reduction <add>, %172, %cst_47 [1] : vector<7x7xf32> to vector<7xf32>
    %174 = vector.shape_cast %173 : vector<7xf32> to vector<7x1xf32>
    %cst_48 = arith.constant 1.000000e-30 : f32
    %175 = vector.broadcast %cst_48 : f32 to vector<7x1xf32>
    %176 = arith.maximumf %174, %175 : vector<7x1xf32>
    %177 = vector.broadcast %176 : vector<7x1xf32> to vector<7x7xf32>
    %178 = arith.divf %172, %177 : vector<7x7xf32>
    %179 = arith.truncf %178 : vector<7x7xf32> to vector<7x7xbf16>
    %cst_49 = arith.constant dense<0.000000e+00> : vector<7x32xf32>
    %180 = tpu.matmul %179, %165, %cst_49 {dimension_numbers = #tpu.dot_dimension_numbers<[1], [0], [0], [1], [0, 0, 1, 1], [], []>} : vector<7x7xbf16>, vector<7x32xbf16>, vector<7x32xf32> -> vector<7x32xf32>
    %181 = tpu.concatenate %33, %54, %75, %96, %117, %138, %159, %180 in 1 : vector<7x32xf32>, vector<7x32xf32>, vector<7x32xf32>, vector<7x32xf32>, vector<7x32xf32>, vector<7x32xf32>, vector<7x32xf32>, vector<7x32xf32> -> vector<7x256xf32>
    %182 = arith.truncf %181 : vector<7x256xf32> to vector<7x256xbf16>
    %c0_50 = arith.constant 0 : index
    %c0_51 = arith.constant 0 : index
    %c0_52 = arith.constant 0 : index
    %183 = vector.load %arg5[%c0_50, %c0_51, %c0_52] : memref<1x256x256xbf16, #tpu.memory_space<vmem>>, vector<1x256x256xbf16>
    %184 = vector.shape_cast %183 : vector<1x256x256xbf16> to vector<256x256xbf16>
    %cst_53 = arith.constant dense<0.000000e+00> : vector<7x256xf32>
    %185 = tpu.matmul %182, %184, %cst_53 {dimension_numbers = #tpu.dot_dimension_numbers<[1], [0], [0], [1], [0, 0, 1, 1], [], []>} : vector<7x256xbf16>, vector<256x256xbf16>, vector<7x256xf32> -> vector<7x256xf32>
    %c0_54 = arith.constant 0 : index
    %c0_55 = arith.constant 0 : index
    %c0_56 = arith.constant 0 : index
    %186 = vector.load %arg6[%c0_54, %c0_55, %c0_56] : memref<1x1x256xf32, #tpu.memory_space<vmem>>, vector<1x1x256xf32>
    %187 = vector.shape_cast %186 : vector<1x1x256xf32> to vector<1x256xf32>
    %188 = vector.broadcast %187 : vector<1x256xf32> to vector<7x256xf32>
    %189 = arith.addf %185, %188 : vector<7x256xf32>
    %190 = arith.addf %3, %189 : vector<7x256xf32>
    %c0_57 = arith.constant 0 : index
    %c0_58 = arith.constant 0 : index
    %c0_59 = arith.constant 0 : index
    %191 = vector.load %arg7[%c0_57, %c0_58, %c0_59] : memref<1x1x256xf32, #tpu.memory_space<vmem>>, vector<1x1x256xf32>
    %192 = vector.shape_cast %191 : vector<1x1x256xf32> to vector<1x256xf32>
    %c0_60 = arith.constant 0 : index
    %c0_61 = arith.constant 0 : index
    %c0_62 = arith.constant 0 : index
    %193 = vector.load %arg8[%c0_60, %c0_61, %c0_62] : memref<1x1x256xf32, #tpu.memory_space<vmem>>, vector<1x1x256xf32>
    %194 = vector.shape_cast %193 : vector<1x1x256xf32> to vector<1x256xf32>
    %cst_63 = arith.constant dense<0.000000e+00> : vector<7xf32>
    %195 = vector.multi_reduction <add>, %190, %cst_63 [1] : vector<7x256xf32> to vector<7xf32>
    %196 = vector.shape_cast %195 : vector<7xf32> to vector<7x1xf32>
    %cst_64 = arith.constant 2.560000e+02 : f32
    %197 = vector.broadcast %cst_64 : f32 to vector<7x1xf32>
    %198 = arith.divf %196, %197 : vector<7x1xf32>
    %199 = vector.broadcast %198 : vector<7x1xf32> to vector<7x256xf32>
    %200 = arith.subf %190, %199 : vector<7x256xf32>
    %201 = arith.mulf %200, %200 : vector<7x256xf32>
    %cst_65 = arith.constant dense<0.000000e+00> : vector<7xf32>
    %202 = vector.multi_reduction <add>, %201, %cst_65 [1] : vector<7x256xf32> to vector<7xf32>
    %203 = vector.shape_cast %202 : vector<7xf32> to vector<7x1xf32>
    %cst_66 = arith.constant 2.560000e+02 : f32
    %204 = vector.broadcast %cst_66 : f32 to vector<7x1xf32>
    %205 = arith.divf %203, %204 : vector<7x1xf32>
    %cst_67 = arith.constant 9.99999974E-6 : f32
    %206 = vector.broadcast %cst_67 : f32 to vector<7x1xf32>
    %207 = arith.addf %205, %206 : vector<7x1xf32>
    %208 = math.rsqrt %207 : vector<7x1xf32>
    %209 = vector.broadcast %208 : vector<7x1xf32> to vector<7x256xf32>
    %210 = arith.mulf %200, %209 : vector<7x256xf32>
    %211 = vector.broadcast %192 : vector<1x256xf32> to vector<7x256xf32>
    %212 = arith.mulf %210, %211 : vector<7x256xf32>
    %213 = vector.broadcast %194 : vector<1x256xf32> to vector<7x256xf32>
    %214 = arith.addf %212, %213 : vector<7x256xf32>
    %215 = arith.truncf %214 : vector<7x256xf32> to vector<7x256xbf16>
    %c0_68 = arith.constant 0 : index
    %c0_69 = arith.constant 0 : index
    %c0_70 = arith.constant 0 : index
    %216 = vector.load %arg9[%c0_68, %c0_69, %c0_70] : memref<1x256x256xbf16, #tpu.memory_space<vmem>>, vector<1x256x256xbf16>
    %217 = vector.shape_cast %216 : vector<1x256x256xbf16> to vector<256x256xbf16>
    %cst_71 = arith.constant dense<0.000000e+00> : vector<7x256xf32>
    %218 = tpu.matmul %215, %217, %cst_71 {dimension_numbers = #tpu.dot_dimension_numbers<[1], [0], [0], [1], [0, 0, 1, 1], [], []>} : vector<7x256xbf16>, vector<256x256xbf16>, vector<7x256xf32> -> vector<7x256xf32>
    %c0_72 = arith.constant 0 : index
    %c0_73 = arith.constant 0 : index
    %c0_74 = arith.constant 0 : index
    %219 = vector.load %arg10[%c0_72, %c0_73, %c0_74] : memref<1x1x256xf32, #tpu.memory_space<vmem>>, vector<1x1x256xf32>
    %220 = vector.shape_cast %219 : vector<1x1x256xf32> to vector<1x256xf32>
    %221 = vector.broadcast %220 : vector<1x256xf32> to vector<7x256xf32>
    %222 = arith.addf %218, %221 : vector<7x256xf32>
    %cst_75 = arith.constant 0.000000e+00 : f32
    %223 = vector.broadcast %cst_75 : f32 to vector<7x256xf32>
    %224 = arith.maximumf %222, %223 : vector<7x256xf32>
    %225 = arith.truncf %224 : vector<7x256xf32> to vector<7x256xbf16>
    %c0_76 = arith.constant 0 : index
    %c0_77 = arith.constant 0 : index
    %c0_78 = arith.constant 0 : index
    %226 = vector.load %arg11[%c0_76, %c0_77, %c0_78] : memref<1x256x256xbf16, #tpu.memory_space<vmem>>, vector<1x256x256xbf16>
    %227 = vector.shape_cast %226 : vector<1x256x256xbf16> to vector<256x256xbf16>
    %cst_79 = arith.constant dense<0.000000e+00> : vector<7x256xf32>
    %228 = tpu.matmul %225, %227, %cst_79 {dimension_numbers = #tpu.dot_dimension_numbers<[1], [0], [0], [1], [0, 0, 1, 1], [], []>} : vector<7x256xbf16>, vector<256x256xbf16>, vector<7x256xf32> -> vector<7x256xf32>
    %c0_80 = arith.constant 0 : index
    %c0_81 = arith.constant 0 : index
    %c0_82 = arith.constant 0 : index
    %229 = vector.load %arg12[%c0_80, %c0_81, %c0_82] : memref<1x1x256xf32, #tpu.memory_space<vmem>>, vector<1x1x256xf32>
    %230 = vector.shape_cast %229 : vector<1x1x256xf32> to vector<1x256xf32>
    %231 = vector.broadcast %230 : vector<1x256xf32> to vector<7x256xf32>
    %232 = arith.addf %228, %231 : vector<7x256xf32>
    %233 = arith.addf %214, %232 : vector<7x256xf32>
    %c0_83 = arith.constant 0 : index
    %c0_84 = arith.constant 0 : index
    %c0_85 = arith.constant 0 : index
    %234 = vector.load %arg13[%c0_83, %c0_84, %c0_85] : memref<1x1x256xf32, #tpu.memory_space<vmem>>, vector<1x1x256xf32>
    %235 = vector.shape_cast %234 : vector<1x1x256xf32> to vector<1x256xf32>
    %c0_86 = arith.constant 0 : index
    %c0_87 = arith.constant 0 : index
    %c0_88 = arith.constant 0 : index
    %236 = vector.load %arg14[%c0_86, %c0_87, %c0_88] : memref<1x1x256xf32, #tpu.memory_space<vmem>>, vector<1x1x256xf32>
    %237 = vector.shape_cast %236 : vector<1x1x256xf32> to vector<1x256xf32>
    %cst_89 = arith.constant dense<0.000000e+00> : vector<7xf32>
    %238 = vector.multi_reduction <add>, %233, %cst_89 [1] : vector<7x256xf32> to vector<7xf32>
    %239 = vector.shape_cast %238 : vector<7xf32> to vector<7x1xf32>
    %cst_90 = arith.constant 2.560000e+02 : f32
    %240 = vector.broadcast %cst_90 : f32 to vector<7x1xf32>
    %241 = arith.divf %239, %240 : vector<7x1xf32>
    %242 = vector.broadcast %241 : vector<7x1xf32> to vector<7x256xf32>
    %243 = arith.subf %233, %242 : vector<7x256xf32>
    %244 = arith.mulf %243, %243 : vector<7x256xf32>
    %cst_91 = arith.constant dense<0.000000e+00> : vector<7xf32>
    %245 = vector.multi_reduction <add>, %244, %cst_91 [1] : vector<7x256xf32> to vector<7xf32>
    %246 = vector.shape_cast %245 : vector<7xf32> to vector<7x1xf32>
    %cst_92 = arith.constant 2.560000e+02 : f32
    %247 = vector.broadcast %cst_92 : f32 to vector<7x1xf32>
    %248 = arith.divf %246, %247 : vector<7x1xf32>
    %cst_93 = arith.constant 9.99999974E-6 : f32
    %249 = vector.broadcast %cst_93 : f32 to vector<7x1xf32>
    %250 = arith.addf %248, %249 : vector<7x1xf32>
    %251 = math.rsqrt %250 : vector<7x1xf32>
    %252 = vector.broadcast %251 : vector<7x1xf32> to vector<7x256xf32>
    %253 = arith.mulf %243, %252 : vector<7x256xf32>
    %254 = vector.broadcast %235 : vector<1x256xf32> to vector<7x256xf32>
    %255 = arith.mulf %253, %254 : vector<7x256xf32>
    %256 = vector.broadcast %237 : vector<1x256xf32> to vector<7x256xf32>
    %257 = arith.addf %255, %256 : vector<7x256xf32>
    %c0_94 = arith.constant 0 : index
    %c0_95 = arith.constant 0 : index
    %258 = vector.load %arg16[%c0_94, %c0_95] : memref<7x256xf32, #tpu.memory_space<vmem>>, vector<7x256xf32>
    tpu.vector_store %arg16[%c0_94, %c0_95], %257 {strides = array<i32>} : memref<7x256xf32, #tpu.memory_space<vmem>>, vector<7x256xf32>,
    %c2_i32 = arith.constant 2 : i32
    %259 = arith.cmpi eq, %arg0, %c2_i32 : i32
    %260 = arith.extui %259 : i1 to i32
    %c0_i32_96 = arith.constant 0 : i32
    %261 = arith.cmpi ne, %260, %c0_i32_96 : i32
    scf.if %261 {
      %c0_97 = arith.constant 0 : index
      %c0_98 = arith.constant 0 : index
      %262 = vector.load %arg15[%c0_97, %c0_98] : memref<7x256xf32, #tpu.memory_space<vmem>>, vector<7x256xf32>
      tpu.vector_store %arg15[%c0_97, %c0_98], %257 {strides = array<i32>} : memref<7x256xf32, #tpu.memory_space<vmem>>, vector<7x256xf32>,
    } else {
    }
    return
  }
  func.func @transform_0(%arg0: i32) -> (i32, i32) {
    %c0_i32 = arith.constant 0 : i32
    %c0_i32_0 = arith.constant 0 : i32
    %c0_i32_1 = arith.constant 0 : i32
    return %c0_i32, %c0_i32_0 : i32, i32
  }
  func.func @transform_1(%arg0: i32) -> (i32, i32) {
    %c0_i32 = arith.constant 0 : i32
    %c0_i32_0 = arith.constant 0 : i32
    %c0_i32_1 = arith.constant 0 : i32
    return %c0_i32, %c0_i32_0 : i32, i32
  }
  func.func @transform_2(%arg0: i32) -> (i32, i32, i32) {
    %c0_i32 = arith.constant 0 : i32
    %c0_i32_0 = arith.constant 0 : i32
    %c0_i32_1 = arith.constant 0 : i32
    return %arg0, %c0_i32, %c0_i32_0 : i32, i32, i32
  }
  func.func @transform_3(%arg0: i32) -> (i32, i32, i32) {
    %c0_i32 = arith.constant 0 : i32
    %c0_i32_0 = arith.constant 0 : i32
    %c0_i32_1 = arith.constant 0 : i32
    return %arg0, %c0_i32, %c0_i32_0 : i32, i32, i32
  }
  func.func @transform_4(%arg0: i32) -> (i32, i32, i32) {
    %c0_i32 = arith.constant 0 : i32
    %c0_i32_0 = arith.constant 0 : i32
    %c0_i32_1 = arith.constant 0 : i32
    return %arg0, %c0_i32, %c0_i32_0 : i32, i32, i32
  }
  func.func @transform_5(%arg0: i32) -> (i32, i32, i32) {
    %c0_i32 = arith.constant 0 : i32
    %c0_i32_0 = arith.constant 0 : i32
    %c0_i32_1 = arith.constant 0 : i32
    return %arg0, %c0_i32, %c0_i32_0 : i32, i32, i32
  }
  func.func @transform_6(%arg0: i32) -> (i32, i32, i32) {
    %c0_i32 = arith.constant 0 : i32
    %c0_i32_0 = arith.constant 0 : i32
    %c0_i32_1 = arith.constant 0 : i32
    return %arg0, %c0_i32, %c0_i32_0 : i32, i32, i32
  }
  func.func @transform_7(%arg0: i32) -> (i32, i32, i32) {
    %c0_i32 = arith.constant 0 : i32
    %c0_i32_0 = arith.constant 0 : i32
    %c0_i32_1 = arith.constant 0 : i32
    return %arg0, %c0_i32, %c0_i32_0 : i32, i32, i32
  }
  func.func @transform_8(%arg0: i32) -> (i32, i32, i32) {
    %c0_i32 = arith.constant 0 : i32
    %c0_i32_0 = arith.constant 0 : i32
    %c0_i32_1 = arith.constant 0 : i32
    return %arg0, %c0_i32, %c0_i32_0 : i32, i32, i32
  }
  func.func @transform_9(%arg0: i32) -> (i32, i32, i32) {
    %c0_i32 = arith.constant 0 : i32
    %c0_i32_0 = arith.constant 0 : i32
    %c0_i32_1 = arith.constant 0 : i32
    return %arg0, %c0_i32, %c0_i32_0 : i32, i32, i32
  }
  func.func @transform_10(%arg0: i32) -> (i32, i32, i32) {
    %c0_i32 = arith.constant 0 : i32
    %c0_i32_0 = arith.constant 0 : i32
    %c0_i32_1 = arith.constant 0 : i32
    return %arg0, %c0_i32, %c0_i32_0 : i32, i32, i32
  }
  func.func @transform_11(%arg0: i32) -> (i32, i32, i32) {
    %c0_i32 = arith.constant 0 : i32
    %c0_i32_0 = arith.constant 0 : i32
    %c0_i32_1 = arith.constant 0 : i32
    return %arg0, %c0_i32, %c0_i32_0 : i32, i32, i32
  }
  func.func @transform_12(%arg0: i32) -> (i32, i32, i32) {
    %c0_i32 = arith.constant 0 : i32
    %c0_i32_0 = arith.constant 0 : i32
    %c0_i32_1 = arith.constant 0 : i32
    return %arg0, %c0_i32, %c0_i32_0 : i32, i32, i32
  }
  func.func @transform_13(%arg0: i32) -> (i32, i32, i32) {
    %c0_i32 = arith.constant 0 : i32
    %c0_i32_0 = arith.constant 0 : i32
    %c0_i32_1 = arith.constant 0 : i32
    return %arg0, %c0_i32, %c0_i32_0 : i32, i32, i32
  }
  func.func @transform_14(%arg0: i32) -> (i32, i32) {
    %c0_i32 = arith.constant 0 : i32
    %c0_i32_0 = arith.constant 0 : i32
    %c0_i32_1 = arith.constant 0 : i32
    return %c0_i32, %c0_i32_0 : i32, i32
  }
}

module attributes {stable_mosaic.version = 11 : i64} {
  func.func @_heads_kernel(%arg0: memref<7x256xf32, #tpu.memory_space<vmem>>, %arg1: memref<256x26xbf16, #tpu.memory_space<vmem>>, %arg2: memref<1x26xf32, #tpu.memory_space<vmem>>, %arg3: memref<256x128xbf16, #tpu.memory_space<vmem>>, %arg4: memref<1x128xf32, #tpu.memory_space<vmem>>, %arg5: memref<128x128xbf16, #tpu.memory_space<vmem>>, %arg6: memref<1x128xf32, #tpu.memory_space<vmem>>, %arg7: memref<128x4xbf16, #tpu.memory_space<vmem>>, %arg8: memref<1x4xf32, #tpu.memory_space<vmem>>, %arg9: memref<7x26xf32, #tpu.memory_space<vmem>>, %arg10: memref<7x4xf32, #tpu.memory_space<vmem>>) attributes {dimension_semantics = [], scalar_prefetch = 0 : i64, scratch_operands = 0 : i64, tpu.core_type = #tpu.core_type<tc>} {
    %c0 = arith.constant 0 : index
    %c0_0 = arith.constant 0 : index
    %0 = vector.load %arg0[%c0, %c0_0] : memref<7x256xf32, #tpu.memory_space<vmem>>, vector<7x256xf32>
    %1 = arith.truncf %0 : vector<7x256xf32> to vector<7x256xbf16>
    %c0_1 = arith.constant 0 : index
    %c0_2 = arith.constant 0 : index
    %2 = vector.load %arg1[%c0_1, %c0_2] : memref<256x26xbf16, #tpu.memory_space<vmem>>, vector<256x26xbf16>
    %cst = arith.constant dense<0.000000e+00> : vector<7x26xf32>
    %3 = tpu.matmul %1, %2, %cst {dimension_numbers = #tpu.dot_dimension_numbers<[1], [0], [0], [1], [0, 0, 1, 1], [], []>} : vector<7x256xbf16>, vector<256x26xbf16>, vector<7x26xf32> -> vector<7x26xf32>
    %c0_3 = arith.constant 0 : index
    %c0_4 = arith.constant 0 : index
    %4 = vector.load %arg2[%c0_3, %c0_4] : memref<1x26xf32, #tpu.memory_space<vmem>>, vector<1x26xf32>
    %5 = vector.broadcast %4 : vector<1x26xf32> to vector<7x26xf32>
    %6 = arith.addf %3, %5 : vector<7x26xf32>
    %c0_5 = arith.constant 0 : index
    %c0_6 = arith.constant 0 : index
    %7 = vector.load %arg9[%c0_5, %c0_6] : memref<7x26xf32, #tpu.memory_space<vmem>>, vector<7x26xf32>
    tpu.vector_store %arg9[%c0_5, %c0_6], %6 {strides = array<i32>} : memref<7x26xf32, #tpu.memory_space<vmem>>, vector<7x26xf32>,
    %c0_7 = arith.constant 0 : index
    %c0_8 = arith.constant 0 : index
    %8 = vector.load %arg3[%c0_7, %c0_8] : memref<256x128xbf16, #tpu.memory_space<vmem>>, vector<256x128xbf16>
    %cst_9 = arith.constant dense<0.000000e+00> : vector<7x128xf32>
    %9 = tpu.matmul %1, %8, %cst_9 {dimension_numbers = #tpu.dot_dimension_numbers<[1], [0], [0], [1], [0, 0, 1, 1], [], []>} : vector<7x256xbf16>, vector<256x128xbf16>, vector<7x128xf32> -> vector<7x128xf32>
    %c0_10 = arith.constant 0 : index
    %c0_11 = arith.constant 0 : index
    %10 = vector.load %arg4[%c0_10, %c0_11] : memref<1x128xf32, #tpu.memory_space<vmem>>, vector<1x128xf32>
    %11 = vector.broadcast %10 : vector<1x128xf32> to vector<7x128xf32>
    %12 = arith.addf %9, %11 : vector<7x128xf32>
    %cst_12 = arith.constant 0.000000e+00 : f32
    %13 = vector.broadcast %cst_12 : f32 to vector<7x128xf32>
    %14 = arith.maximumf %12, %13 : vector<7x128xf32>
    %15 = arith.truncf %14 : vector<7x128xf32> to vector<7x128xbf16>
    %c0_13 = arith.constant 0 : index
    %c0_14 = arith.constant 0 : index
    %16 = vector.load %arg5[%c0_13, %c0_14] : memref<128x128xbf16, #tpu.memory_space<vmem>>, vector<128x128xbf16>
    %cst_15 = arith.constant dense<0.000000e+00> : vector<7x128xf32>
    %17 = tpu.matmul %15, %16, %cst_15 {dimension_numbers = #tpu.dot_dimension_numbers<[1], [0], [0], [1], [0, 0, 1, 1], [], []>} : vector<7x128xbf16>, vector<128x128xbf16>, vector<7x128xf32> -> vector<7x128xf32>
    %c0_16 = arith.constant 0 : index
    %c0_17 = arith.constant 0 : index
    %18 = vector.load %arg6[%c0_16, %c0_17] : memref<1x128xf32, #tpu.memory_space<vmem>>, vector<1x128xf32>
    %19 = vector.broadcast %18 : vector<1x128xf32> to vector<7x128xf32>
    %20 = arith.addf %17, %19 : vector<7x128xf32>
    %cst_18 = arith.constant 0.000000e+00 : f32
    %21 = vector.broadcast %cst_18 : f32 to vector<7x128xf32>
    %22 = arith.maximumf %20, %21 : vector<7x128xf32>
    %23 = arith.truncf %22 : vector<7x128xf32> to vector<7x128xbf16>
    %c0_19 = arith.constant 0 : index
    %c0_20 = arith.constant 0 : index
    %24 = vector.load %arg7[%c0_19, %c0_20] : memref<128x4xbf16, #tpu.memory_space<vmem>>, vector<128x4xbf16>
    %cst_21 = arith.constant dense<0.000000e+00> : vector<7x4xf32>
    %25 = tpu.matmul %23, %24, %cst_21 {dimension_numbers = #tpu.dot_dimension_numbers<[1], [0], [0], [1], [0, 0, 1, 1], [], []>} : vector<7x128xbf16>, vector<128x4xbf16>, vector<7x4xf32> -> vector<7x4xf32>
    %c0_22 = arith.constant 0 : index
    %c0_23 = arith.constant 0 : index
    %26 = vector.load %arg8[%c0_22, %c0_23] : memref<1x4xf32, #tpu.memory_space<vmem>>, vector<1x4xf32>
    %27 = vector.broadcast %26 : vector<1x4xf32> to vector<7x4xf32>
    %28 = arith.addf %25, %27 : vector<7x4xf32>
    %c0_24 = arith.constant 0 : index
    %c0_25 = arith.constant 0 : index
    %29 = vector.load %arg10[%c0_24, %c0_25] : memref<7x4xf32, #tpu.memory_space<vmem>>, vector<7x4xf32>
    tpu.vector_store %arg10[%c0_24, %c0_25], %28 {strides = array<i32>} : memref<7x4xf32, #tpu.memory_space<vmem>>, vector<7x4xf32>,
    return
  }
}

</mosaic_0001>

<llo_original>
// kernel: fwd.6
$region0: #{fwd.6}
  #allocation0 [shape = 'u32[]', space=smem, size = 0x4, offset = 0x4, fixed_abs, tag = 'smem constant byte address 0x4 - core index']
  #allocation1 [shape = 'u32[144,128]{1,0:T(1,128)}', space=vmem, size = 0x12000, scoped, tag = 'internal scratch']
  %s0 = inlined_call_operand.vmem [shape: bf16[10,96], index: 0, kind: input, shape index: {}]
  %s1 = inlined_call_operand.hbm [shape: bf16[96,128], index: 1, kind: input, shape index: {}]
  %s2 = inlined_call_operand.hbm [shape: f32[1,128], index: 2, kind: input, shape index: {}]
  %s3 = inlined_call_operand.vmem [shape: f32[10,128], index: 3, kind: output, shape index: {}]
  %s4 = sld [smem:[#allocation0]]
  $region30: #{fwd.6} parent=0
    _
  %s6 = ssub.s32 1, %s4
  %s7 = scalar_select 0, %s6, %s4
  $region1: #{fwd.6} parent=0
    #allocation2 [shape = 'u8[24576]{0}', space=vmem, size = 0x6000, scoped, tag = 'input window, operand 1, single buffered']
    #allocation3 [shape = 's32[1]{0}', space=sflag, size = 0x4, scoped, tag = 'scoped memory for fwd.6']
    #allocation4 [shape = 'u8[512]{0}', space=vmem, size = 0x400, scoped, tag = 'input window, operand 2, single buffered']
    #allocation5 [shape = 's32[1]{0}', space=sflag, size = 0x4, scoped, tag = 'scoped memory for fwd.6']
    %8 = vsyncpa [#allocation3], 0
    %9 = vsyncpa [#allocation5], 0
    // Predicated region
    $region2: #{fwd.6} parent=1 // pred_check
      _
    $region3: #{fwd.6} parent=1 // pred_check_branch
      %11 = sbr.rel (0) target = $region5
    $region4: #{fwd.6} parent=1 // pred_region
      _
    $region5: #{fwd.6} parent=1 // pred_fallthru
      _
    // Predicated region
    $region6: #{fwd.6} parent=1 // pred_check
      _
    $region7: #{fwd.6} parent=1 // pred_check_branch
      %13 = sbr.rel (0) target = $region9
    $region8: #{fwd.6} parent=1 // pred_region
      %s15 = ssub.s32 768, 768
      %16 = vsyncadd [#allocation3], %s15
      %s17 = sshll.u32 [#allocation2], 4
      %s18 = int_to_ptr.vmem [resolvable:$true] %s17
      %23 = dma.hbm_to_vmem [thread:$0]  %s1, 768, %s18, [#allocation3], 64, 64, 4
    $region9: #{fwd.6} parent=1 // pred_fallthru
      _
    // Predicated region
    $region10: #{fwd.6} parent=1 // pred_check
      _
    $region11: #{fwd.6} parent=1 // pred_check_branch
      %25 = sbr.rel (0) target = $region13
    $region12: #{fwd.6} parent=1 // pred_region
      %s27 = ssub.s32 16, 16
      %28 = vsyncadd [#allocation5], %s27
      %s30 = sshll.u32 [#allocation4], 4
      %s31 = int_to_ptr.vmem [resolvable:$true] %s30
      %33 = dma.hbm_to_vmem [thread:$0]  %s2, 16, %s31, [#allocation5]
    $region13: #{fwd.6} parent=1 // pred_fallthru
      _
    // Predicated region
    $region14: #{fwd.6} parent=1 // pred_check
      _
    $region15: #{fwd.6} parent=1 // pred_check_branch
      %35 = sbr.rel (0) target = $region17
    $region16: #{fwd.6} parent=1 // pred_region
      %36 = dma.done [#allocation3], 768
    $region17: #{fwd.6} parent=1 // pred_fallthru
      _
    // Predicated region
    $region18: #{fwd.6} parent=1 // pred_check
      _
    $region19: #{fwd.6} parent=1 // pred_check_branch
      %38 = sbr.rel (0) target = $region21
    $region20: #{fwd.6} parent=1 // pred_region
      %39 = dma.done [#allocation5], 16
    $region21: #{fwd.6} parent=1 // pred_fallthru
      _
    %v41 = vld [vmem:[%s0] sm:$0xf]
    %v42 = vld [vmem:[%s0 + $0x4] sm:$0x1]
    %v43 = vld [vmem:[#allocation2] sm:$0xf]
    %v44 = vld [vmem:[#allocation2 + $0x4] sm:$0xf]
    %v45 = vld [vmem:[#allocation2 + $0x8] sm:$0xf]
    %v46 = vld [vmem:[#allocation2 + $0xc] sm:$0xf]
    %v47 = vld [vmem:[#allocation2 + $0x10] sm:$0xf]
    %v48 = vld [vmem:[#allocation2 + $0x14] sm:$0xf]
    %v49 = vld [vmem:[#allocation2 + $0x18] sm:$0xf]
    %v50 = vld [vmem:[#allocation2 + $0x1c] sm:$0xf]
    %v51 = vld [vmem:[#allocation2 + $0x20] sm:$0xf]
    %v52 = vld [vmem:[#allocation2 + $0x24] sm:$0xf]
    %v53 = vld [vmem:[#allocation2 + $0x28] sm:$0xf]
    %v54 = vld [vmem:[#allocation2 + $0x2c] sm:$0xf]
    %v55 = vld [vmem:[#allocation4] sm:$0x1]
    %v57 = vlaneseq
    %v58 = vshrl.u32 %v57, 7
    %v59 = vsub.s32 0, %v58
    %v60 = vrot.slane %v55, %v59
    %v64 = vunpack.c.l.b16 %v41
    %v65 = vunpack.c.l.b16 %v42
    %v66 = vpack.c.b16 %v65, %v64
    %v79 = vunpack.c.l.b16 %v43
    %v80 = vunpack.c.l.b16 %v44
    %v81 = vunpack.c.l.b16 %v45
    %v82 = vunpack.c.l.b16 %v46
    %v83 = vunpack.c.l.b16 %v47
    %v84 = vunpack.c.l.b16 %v48
    %v85 = vunpack.c.l.b16 %v49
    %v86 = vunpack.c.l.b16 %v50
    %v87 = vunpack.c.l.b16 %v51
    %v88 = vunpack.c.l.b16 %v52
    %v89 = vunpack.c.l.b16 %v53
    %v90 = vunpack.c.l.b16 %v54
    %v91 = vpack.c.b16 %v80, %v79
    %v92 = vpack.c.b16 %v82, %v81
    %v93 = vpack.c.b16 %v84, %v83
    %v94 = vpack.c.b16 %v86, %v85
    %v95 = vpack.c.b16 %v88, %v87
    %v96 = vpack.c.b16 %v90, %v89
    %vm103 = vcmask 785408
    %v105 = vsel %vm103, %v66, 0
    %107 = vmatprep.subr.bf16.mxu0 0
    %108 = vmatpush1.bf16.msra.mxu0 0
    %109 = vmatprep.subr.bf16.mxu0 0
    %110 = vmatpush1.bf16.msra.mxu0 0
    %111 = vmatprep.subr.bf16.mxu0 0
    %112 = vmatpush1.bf16.msra.mxu0 %v96
    %113 = vmatprep.subr.bf16.mxu0 0
    %114 = vmatpush1.bf16.msra.mxu0 %v95
    %115 = vmatprep.subr.bf16.mxu0 0
    %116 = vmatpush1.bf16.msra.mxu0 %v94
    %117 = vmatprep.subr.bf16.mxu0 0
    %118 = vmatpush1.bf16.msra.mxu0 %v93
    %119 = vmatprep.subr.bf16.mxu0 0
    %120 = vmatpush1.bf16.msra.mxu0 %v92
    %121 = vmatprep.subr.bf16.mxu0 0
    %122 = vmatpush1.bf16.msra.mxu0 %v91
    %123 = vmatprep.subr.bf16.mxu0 0
    %124 = vmatpush2.bf16.msra.mxu0 0
    %125 = vmatprep.subr.bf16.mxu0 0
    %126 = vmatpush2.bf16.msra.mxu0 0
    %127 = vmatprep.subr.bf16.mxu0 0
    %128 = vmatpush2.bf16.msra.mxu0 0
    %129 = vmatprep.subr.bf16.mxu0 0
    %130 = vmatpush2.bf16.msra.mxu0 0
    %131 = vmatprep.subr.bf16.mxu0 0
    %132 = vmatpush2.bf16.msra.mxu0 0
    %133 = vmatprep.subr.bf16.mxu0 0
    %134 = vmatpush2.bf16.msra.mxu0 0
    %135 = vmatprep.subr.bf16.mxu0 0
    %136 = vmatpush2.bf16.msra.mxu0 0
    %137 = vmatprep.subr.bf16.mxu0 0
    %138 = vmatpush2.bf16.msra.mxu0 0
    %139 = vmatprep.mubr.bf16.mxu0 0
    %140 = vmatmul.mubr.bf16.gmra.mxu0 %v105
    %v141 = vpop.f32.mrf.mxu0
    %v142 = vadd.f32 %v60, %v141
    %v143 = vpop.f32.mrf.mxu0
    %v144 = vpop.f32.mrf.mxu0
    %v145 = vadd.f32 %v60, %v144
    %v146 = vpop.f32.mrf.mxu0
    %147 = vdwg.mxu0
    %148 = vst [vmem:[%s3] sm:$0xff] %v142
    %149 = vst [vmem:[%s3 + $0x8] sm:$0x3] %v145
    // Predicated region
    $region22: #{fwd.6} parent=1 // pred_check
      _
    $region23: #{fwd.6} parent=1 // pred_check_branch
      %151 = sbr.rel (0) target = $region25
    $region24: #{fwd.6} parent=1 // pred_region
      _
    $region25: #{fwd.6} parent=1 // pred_fallthru
      _
    // Predicated region
    $region26: #{fwd.6} parent=1 // pred_check
      _
    $region27: #{fwd.6} parent=1 // pred_check_branch
      %153 = sbr.rel (0) target = $region29
    $region28: #{fwd.6} parent=1 // pred_region
      _
    $region29: #{fwd.6} parent=1 // pred_fallthru
      _
    %154 = vsyncpa [#allocation3], 1
    %155 = vsyncpa [#allocation5], 1

// kernel: fwd.7
$region0: #{fwd.7}
  #allocation0 [shape = 'u32[]', space=smem, size = 0x4, offset = 0x4, fixed_abs, tag = 'smem constant byte address 0x4 - core index']
  #allocation1 [shape = 'u32[144,128]{1,0:T(1,128)}', space=vmem, size = 0x12000, scoped, tag = 'internal scratch']
  %s0 = inlined_call_operand.vmem [shape: bf16[7,32,49], index: 0, kind: input, shape index: {}]
  %s1 = inlined_call_operand.vmem [shape: f32[7,32,49], index: 1, kind: input, shape index: {}]
  %s2 = inlined_call_operand.vmem [shape: bf16[32,32], index: 2, kind: input, shape index: {}]
  %s3 = inlined_call_operand.vmem [shape: f32[32,1], index: 3, kind: input, shape index: {}]
  %s4 = inlined_call_operand.vmem [shape: f32[7,32,49], index: 4, kind: output, shape index: {}]
  %s5 = sld [smem:[#allocation0]]
  $region26: #{fwd.7} parent=0
    _
  %s7 = ssub.s32 1, %s5
  %s8 = scalar_select 0, %s7, %s5
  // Predicated region
  $region2: #{fwd.7} parent=0 // pred_check
    _
  $region3: #{fwd.7} parent=0 // pred_check_branch
    %10 = sbr.rel (0) target = $region5
  $region4: #{fwd.7} parent=0 // pred_region
    _
  $region5: #{fwd.7} parent=0 // pred_fallthru
    _
  // Predicated region
  $region6: #{fwd.7} parent=0 // pred_check
    _
  $region7: #{fwd.7} parent=0 // pred_check_branch
    %12 = sbr.rel (0) target = $region9
  $region8: #{fwd.7} parent=0 // pred_region
    _
  $region9: #{fwd.7} parent=0 // pred_fallthru
    _
  // Predicated region
  $region10: #{fwd.7} parent=0 // pred_check
    _
  $region11: #{fwd.7} parent=0 // pred_check_branch
    %14 = sbr.rel (0) target = $region13
  $region12: #{fwd.7} parent=0 // pred_region
    _
  $region13: #{fwd.7} parent=0 // pred_fallthru
    _
  // Predicated region
  $region14: #{fwd.7} parent=0 // pred_check
    _
  $region15: #{fwd.7} parent=0 // pred_check_branch
    %16 = sbr.rel (0) target = $region17
  $region16: #{fwd.7} parent=0 // pred_region
    _
  $region17: #{fwd.7} parent=0 // pred_fallthru
    _
  %v18 = vld [vmem:[%s2] sm:$0xf]
  %v19 = vld [vmem:[%s2 + $0x4] sm:$0xf]
  %v20 = vld [vmem:[%s2 + $0x8] sm:$0xf]
  %v21 = vld [vmem:[%s2 + $0xc] sm:$0xf]
  %v22 = vld [vmem:[%s3] sm:$0xff]
  %v23 = vld [vmem:[%s3 + $0x8] sm:$0xff]
  %v24 = vld [vmem:[%s3 + $0x10] sm:$0xff]
  %v25 = vld [vmem:[%s3 + $0x18] sm:$0xff]
  %v26 = vld [vmem:[%s0] sm:$0xf]
  %v27 = vld [vmem:[%s0 + $0x4] sm:$0xf]
  %v28 = vld [vmem:[%s0 + $0x8] sm:$0xf]
  %v29 = vld [vmem:[%s0 + $0xc] sm:$0xf]
  %31 = vset.pattern.permute.xlu0 0
  %32 = vperm.xlu0 %31, %v22
  %v33 = vpop.permute.xlu0 %32
  %36 = vset.pattern.permute.xlu0 0
  %37 = vperm.xlu0 %36, %v23
  %v38 = vpop.permute.xlu0 %37
  %41 = vset.pattern.permute.xlu0 0
  %42 = vperm.xlu0 %41, %v24
  %v43 = vpop.permute.xlu0 %42
  %46 = vset.pattern.permute.xlu0 0
  %47 = vperm.xlu0 %46, %v25
  %v48 = vpop.permute.xlu0 %47
  %v54 = vunpack.c.l.b16 %v18
  %v55 = vunpack.c.l.b16 %v19
  %v56 = vunpack.c.l.b16 %v20
  %v57 = vunpack.c.l.b16 %v21
  %v58 = vpack.c.b16 %v55, %v54
  %v59 = vpack.c.b16 %v57, %v56
  %v64 = vunpack.c.l.b16 %v26
  %v65 = vunpack.c.l.b16 %v27
  %v66 = vunpack.c.l.b16 %v28
  %v67 = vunpack.c.l.b16 %v29
  %v68 = vpack.c.b16 %v65, %v64
  %v69 = vpack.c.b16 %v67, %v66
  %vm72 = vcmask 261120
  %v74 = vsel %vm72, %v58, 0
  %v77 = vsel %vm72, %v59, 0
  %79 = vmatprep.subr.bf16.mxu0 0
  %80 = vmatpush1.bf16.msra.mxu0 0
  %81 = vmatprep.subr.bf16.mxu0 0
  %82 = vmatpush1.bf16.msra.mxu0 0
  %83 = vmatprep.subr.bf16.mxu0 0
  %84 = vmatpush1.bf16.msra.mxu0 0
  %85 = vmatprep.subr.bf16.mxu0 0
  %86 = vmatpush1.bf16.msra.mxu0 0
  %87 = vmatprep.subr.bf16.mxu0 0
  %88 = vmatpush1.bf16.msra.mxu0 0
  %89 = vmatprep.subr.bf16.mxu0 0
  %90 = vmatpush1.bf16.msra.mxu0 0
  %91 = vmatprep.subr.bf16.mxu0 0
  %92 = vmatpush1.bf16.msra.mxu0 %v69
  %93 = vmatprep.subr.bf16.mxu0 0
  %94 = vmatpush1.bf16.msra.mxu0 %v68
  %95 = vmatprep.subr.bf16.mxu0 0
  %96 = vmatpush2.bf16.msra.mxu0 0
  %97 = vmatprep.subr.bf16.mxu0 0
  %98 = vmatpush2.bf16.msra.mxu0 0
  %99 = vmatprep.subr.bf16.mxu0 0
  %100 = vmatpush2.bf16.msra.mxu0 0
  %101 = vmatprep.subr.bf16.mxu0 0
  %102 = vmatpush2.bf16.msra.mxu0 0
  %103 = vmatprep.subr.bf16.mxu0 0
  %104 = vmatpush2.bf16.msra.mxu0 0
  %105 = vmatprep.subr.bf16.mxu0 0
  %106 = vmatpush2.bf16.msra.mxu0 0
  %107 = vmatprep.subr.bf16.mxu0 0
  %108 = vmatpush2.bf16.msra.mxu0 0
  %109 = vmatprep.subr.bf16.mxu0 0
  %110 = vmatpush2.bf16.msra.mxu0 0
  %111 = vmatprep.mubr.bf16.mxu0 0
  %112 = vmatmul.mubr.bf16.gmra.mxu0 %v74
  %v113 = vpop.f32.mrf.mxu0
  %v114 = vadd.f32 %v33, %v113
  %v115 = vpop.f32.mrf.mxu0
  %v116 = vpop.f32.mrf.mxu0
  %v117 = vadd.f32 %v38, %v116
  %v118 = vpop.f32.mrf.mxu0
  %119 = vmatprep.mubr.bf16.mxu0 0
  %120 = vmatmul.mubr.bf16.gmra.mxu0 %v77
  %v121 = vpop.f32.mrf.mxu0
  %v122 = vadd.f32 %v43, %v121
  %v123 = vpop.f32.mrf.mxu0
  %v124 = vpop.f32.mrf.mxu0
  %v125 = vadd.f32 %v48, %v124
  %v126 = vpop.f32.mrf.mxu0
  %127 = vdwg.mxu0
  %v128 = vld [vmem:[%s1] sm:$0xff]
  %v129 = vld [vmem:[%s1 + $0x8] sm:$0xff]
  %v130 = vld [vmem:[%s1 + $0x10] sm:$0xff]
  %v131 = vld [vmem:[%s1 + $0x18] sm:$0xff]
  %v132 = vadd.f32 %v114, %v128
  %v133 = vadd.f32 %v117, %v129
  %v134 = vadd.f32 %v122, %v130
  %v135 = vadd.f32 %v125, %v131
  %vm136 = vcmask 400384
  %137 = vst.msk [vmem:[%s4] sm:$0xff] %vm136, %v132
  %138 = vst.msk [vmem:[%s4 + $0x8] sm:$0xff] %vm136, %v133
  %139 = vst.msk [vmem:[%s4 + $0x10] sm:$0xff] %vm136, %v134
  %140 = vst.msk [vmem:[%s4 + $0x18] sm:$0xff] %vm136, %v135
  %s141 = scalar_lea.vmem %s0, 16
  %v142 = vld [vmem:[%s141] sm:$0xf]
  %v143 = vld [vmem:[%s141 + $0x4] sm:$0xf]
  %v144 = vld [vmem:[%s141 + $0x8] sm:$0xf]
  %v145 = vld [vmem:[%s141 + $0xc] sm:$0xf]
  %v150 = vunpack.c.l.b16 %v142
  %v151 = vunpack.c.l.b16 %v143
  %v152 = vunpack.c.l.b16 %v144
  %v153 = vunpack.c.l.b16 %v145
  %v154 = vpack.c.b16 %v151, %v150
  %v155 = vpack.c.b16 %v153, %v152
  %158 = vmatprep.subr.bf16.mxu0 0
  %159 = vmatpush1.bf16.msra.mxu0 0
  %160 = vmatprep.subr.bf16.mxu0 0
  %161 = vmatpush1.bf16.msra.mxu0 0
  %162 = vmatprep.subr.bf16.mxu0 0
  %163 = vmatpush1.bf16.msra.mxu0 0
  %164 = vmatprep.subr.bf16.mxu0 0
  %165 = vmatpush1.bf16.msra.mxu0 0
  %166 = vmatprep.subr.bf16.mxu0 0
  %167 = vmatpush1.bf16.msra.mxu0 0
  %168 = vmatprep.subr.bf16.mxu0 0
  %169 = vmatpush1.bf16.msra.mxu0 0
  %170 = vmatprep.subr.bf16.mxu0 0
  %171 = vmatpush1.bf16.msra.mxu0 %v155
  %172 = vmatprep.subr.bf16.mxu0 0
  %173 = vmatpush1.bf16.msra.mxu0 %v154
  %174 = vmatprep.subr.bf16.mxu0 0
  %175 = vmatpush2.bf16.msra.mxu0 0
  %176 = vmatprep.subr.bf16.mxu0 0
  %177 = vmatpush2.bf16.msra.mxu0 0
  %178 = vmatprep.subr.bf16.mxu0 0
  %179 = vmatpush2.bf16.msra.mxu0 0
  %180 = vmatprep.subr.bf16.mxu0 0
  %181 = vmatpush2.bf16.msra.mxu0 0
  %182 = vmatprep.subr.bf16.mxu0 0
  %183 = vmatpush2.bf16.msra.mxu0 0
  %184 = vmatprep.subr.bf16.mxu0 0
  %185 = vmatpush2.bf16.msra.mxu0 0
  %186 = vmatprep.subr.bf16.mxu0 0
  %187 = vmatpush2.bf16.msra.mxu0 0
  %188 = vmatprep.subr.bf16.mxu0 0
  %189 = vmatpush2.bf16.msra.mxu0 0
  %190 = vmatprep.mubr.bf16.mxu0 0
  %191 = vmatmul.mubr.bf16.gmra.mxu0 %v74
  %v192 = vpop.f32.mrf.mxu0
  %v193 = vadd.f32 %v33, %v192
  %v194 = vpop.f32.mrf.mxu0
  %v195 = vpop.f32.mrf.mxu0
  %v196 = vadd.f32 %v38, %v195
  %v197 = vpop.f32.mrf.mxu0
  %198 = vmatprep.mubr.bf16.mxu0 0
  %199 = vmatmul.mubr.bf16.gmra.mxu0 %v77
  %v200 = vpop.f32.mrf.mxu0
  %v201 = vadd.f32 %v43, %v200
  %v202 = vpop.f32.mrf.mxu0
  %v203 = vpop.f32.mrf.mxu0
  %v204 = vadd.f32 %v48, %v203
  %v205 = vpop.f32.mrf.mxu0
  %206 = vdwg.mxu0
  %s207 = scalar_lea.vmem %s1, 32
  %v208 = vld [vmem:[%s207] sm:$0xff]
  %v209 = vld [vmem:[%s207 + $0x8] sm:$0xff]
  %v210 = vld [vmem:[%s207 + $0x10] sm:$0xff]
  %v211 = vld [vmem:[%s207 + $0x18] sm:$0xff]
  %v212 = vadd.f32 %v193, %v208
  %v213 = vadd.f32 %v196, %v209
  %v214 = vadd.f32 %v201, %v210
  %v215 = vadd.f32 %v204, %v211
  %s216 = scalar_lea.vmem %s4, 32
  %217 = vst.msk [vmem:[%s216] sm:$0xff] %vm136, %v212
  %218 = vst.msk [vmem:[%s216 + $0x8] sm:$0xff] %vm136, %v213
  %219 = vst.msk [vmem:[%s216 + $0x10] sm:$0xff] %vm136, %v214
  %220 = vst.msk [vmem:[%s216 + $0x18] sm:$0xff] %vm136, %v215
  %s221 = scalar_lea.vmem %s0, 32
  %v222 = vld [vmem:[%s221] sm:$0xf]
  %v223 = vld [vmem:[%s221 + $0x4] sm:$0xf]
  %v224 = vld [vmem:[%s221 + $0x8] sm:$0xf]
  %v225 = vld [vmem:[%s221 + $0xc] sm:$0xf]
  %v230 = vunpack.c.l.b16 %v222
  %v231 = vunpack.c.l.b16 %v223
  %v232 = vunpack.c.l.b16 %v224
  %v233 = vunpack.c.l.b16 %v225
  %v234 = vpack.c.b16 %v231, %v230
  %v235 = vpack.c.b16 %v233, %v232
  %238 = vmatprep.subr.bf16.mxu0 0
  %239 = vmatpush1.bf16.msra.mxu0 0
  %240 = vmatprep.subr.bf16.mxu0 0
  %241 = vmatpush1.bf16.msra.mxu0 0
  %242 = vmatprep.subr.bf16.mxu0 0
  %243 = vmatpush1.bf16.msra.mxu0 0
  %244 = vmatprep.subr.bf16.mxu0 0
  %245 = vmatpush1.bf16.msra.mxu0 0
  %246 = vmatprep.subr.bf16.mxu0 0
  %247 = vmatpush1.bf16.msra.mxu0 0
  %248 = vmatprep.subr.bf16.mxu0 0
  %249 = vmatpush1.bf16.msra.mxu0 0
  %250 = vmatprep.subr.bf16.mxu0 0
  %251 = vmatpush1.bf16.msra.mxu0 %v235
  %252 = vmatprep.subr.bf16.mxu0 0
  %253 = vmatpush1.bf16.msra.mxu0 %v234
  %254 = vmatprep.subr.bf16.mxu0 0
  %255 = vmatpush2.bf16.msra.mxu0 0
  %256 = vmatprep.subr.bf16.mxu0 0
  %257 = vmatpush2.bf16.msra.mxu0 0
  %258 = vmatprep.subr.bf16.mxu0 0
  %259 = vmatpush2.bf16.msra.mxu0 0
  %260 = vmatprep.subr.bf16.mxu0 0
  %261 = vmatpush2.bf16.msra.mxu0 0
  %262 = vmatprep.subr.bf16.mxu0 0
  %263 = vmatpush2.bf16.msra.mxu0 0
  %264 = vmatprep.subr.bf16.mxu0 0
  %265 = vmatpush2.bf16.msra.mxu0 0
  %266 = vmatprep.subr.bf16.mxu0 0
  %267 = vmatpush2.bf16.msra.mxu0 0
  %268 = vmatprep.subr.bf16.mxu0 0
  %269 = vmatpush2.bf16.msra.mxu0 0
  %270 = vmatprep.mubr.bf16.mxu0 0
  %271 = vmatmul.mubr.bf16.gmra.mxu0 %v74
  %v272 = vpop.f32.mrf.mxu0
  %v273 = vadd.f32 %v33, %v272
  %v274 = vpop.f32.mrf.mxu0
  %v275 = vpop.f32.mrf.mxu0
  %v276 = vadd.f32 %v38, %v275
  %v277 = vpop.f32.mrf.mxu0
  %278 = vmatprep.mubr.bf16.mxu0 0
  %279 = vmatmul.mubr.bf16.gmra.mxu0 %v77
  %v280 = vpop.f32.mrf.mxu0
  %v281 = vadd.f32 %v43, %v280
  %v282 = vpop.f32.mrf.mxu0
  %v283 = vpop.f32.mrf.mxu0
  %v284 = vadd.f32 %v48, %v283
  %v285 = vpop.f32.mrf.mxu0
  %286 = vdwg.mxu0
  %s287 = scalar_lea.vmem %s1, 64
  %v288 = vld [vmem:[%s287] sm:$0xff]
  %v289 = vld [vmem:[%s287 + $0x8] sm:$0xff]
  %v290 = vld [vmem:[%s287 + $0x10] sm:$0xff]
  %v291 = vld [vmem:[%s287 + $0x18] sm:$0xff]
  %v292 = vadd.f32 %v273, %v288
  %v293 = vadd.f32 %v276, %v289
  %v294 = vadd.f32 %v281, %v290
  %v295 = vadd.f32 %v284, %v291
  %s296 = scalar_lea.vmem %s4, 64
  %297 = vst.msk [vmem:[%s296] sm:$0xff] %vm136, %v292
  %298 = vst.msk [vmem:[%s296 + $0x8] sm:$0xff] %vm136, %v293
  %299 = vst.msk [vmem:[%s296 + $0x10] sm:$0xff] %vm136, %v294
  %300 = vst.msk [vmem:[%s296 + $0x18] sm:$0xff] %vm136, %v295
  %s301 = scalar_lea.vmem %s0, 48
  %v302 = vld [vmem:[%s301] sm:$0xf]
  %v303 = vld [vmem:[%s301 + $0x4] sm:$0xf]
  %v304 = vld [vmem:[%s301 + $0x8] sm:$0xf]
  %v305 = vld [vmem:[%s301 + $0xc] sm:$0xf]
  %v310 = vunpack.c.l.b16 %v302
  %v311 = vunpack.c.l.b16 %v303
  %v312 = vunpack.c.l.b16 %v304
  %v313 = vunpack.c.l.b16 %v305
  %v314 = vpack.c.b16 %v311, %v310
  %v315 = vpack.c.b16 %v313, %v312
  %318 = vmatprep.subr.bf16.mxu0 0
  %319 = vmatpush1.bf16.msra.mxu0 0
  %320 = vmatprep.subr.bf16.mxu0 0
  %321 = vmatpush1.bf16.msra.mxu0 0
  %322 = vmatprep.subr.bf16.mxu0 0
  %323 = vmatpush1.bf16.msra.mxu0 0
  %324 = vmatprep.subr.bf16.mxu0 0
  %325 = vmatpush1.bf16.msra.mxu0 0
  %326 = vmatprep.subr.bf16.mxu0 0
  %327 = vmatpush1.bf16.msra.mxu0 0
  %328 = vmatprep.subr.bf16.mxu0 0
  %329 = vmatpush1.bf16.msra.mxu0 0
  %330 = vmatprep.subr.bf16.mxu0 0
  %331 = vmatpush1.bf16.msra.mxu0 %v315
  %332 = vmatprep.subr.bf16.mxu0 0
  %333 = vmatpush1.bf16.msra.mxu0 %v314
  %334 = vmatprep.subr.bf16.mxu0 0
  %335 = vmatpush2.bf16.msra.mxu0 0
  %336 = vmatprep.subr.bf16.mxu0 0
  %337 = vmatpush2.bf16.msra.mxu0 0
  %338 = vmatprep.subr.bf16.mxu0 0
  %339 = vmatpush2.bf16.msra.mxu0 0
  %340 = vmatprep.subr.bf16.mxu0 0
  %341 = vmatpush2.bf16.msra.mxu0 0
  %342 = vmatprep.subr.bf16.mxu0 0
  %343 = vmatpush2.bf16.msra.mxu0 0
  %344 = vmatprep.subr.bf16.mxu0 0
  %345 = vmatpush2.bf16.msra.mxu0 0
  %346 = vmatprep.subr.bf16.mxu0 0
  %347 = vmatpush2.bf16.msra.mxu0 0
  %348 = vmatprep.subr.bf16.mxu0 0
  %349 = vmatpush2.bf16.msra.mxu0 0
  %350 = vmatprep.mubr.bf16.mxu0 0
  %351 = vmatmul.mubr.bf16.gmra.mxu0 %v74
  %v352 = vpop.f32.mrf.mxu0
  %v353 = vadd.f32 %v33, %v352
  %v354 = vpop.f32.mrf.mxu0
  %v355 = vpop.f32.mrf.mxu0
  %v356 = vadd.f32 %v38, %v355
  %v357 = vpop.f32.mrf.mxu0
  %358 = vmatprep.mubr.bf16.mxu0 0
  %359 = vmatmul.mubr.bf16.gmra.mxu0 %v77
  %v360 = vpop.f32.mrf.mxu0
  %v361 = vadd.f32 %v43, %v360
  %v362 = vpop.f32.mrf.mxu0
  %v363 = vpop.f32.mrf.mxu0
  %v364 = vadd.f32 %v48, %v363
  %v365 = vpop.f32.mrf.mxu0
  %366 = vdwg.mxu0
  %s367 = scalar_lea.vmem %s1, 96
  %v368 = vld [vmem:[%s367] sm:$0xff]
  %v369 = vld [vmem:[%s367 + $0x8] sm:$0xff]
  %v370 = vld [vmem:[%s367 + $0x10] sm:$0xff]
  %v371 = vld [vmem:[%s367 + $0x18] sm:$0xff]
  %v372 = vadd.f32 %v353, %v368
  %v373 = vadd.f32 %v356, %v369
  %v374 = vadd.f32 %v361, %v370
  %v375 = vadd.f32 %v364, %v371
  %s376 = scalar_lea.vmem %s4, 96
  %377 = vst.msk [vmem:[%s376] sm:$0xff] %vm136, %v372
  %378 = vst.msk [vmem:[%s376 + $0x8] sm:$0xff] %vm136, %v373
  %379 = vst.msk [vmem:[%s376 + $0x10] sm:$0xff] %vm136, %v374
  %380 = vst.msk [vmem:[%s376 + $0x18] sm:$0xff] %vm136, %v375
  %s381 = scalar_lea.vmem %s0, 64
  %v382 = vld [vmem:[%s381] sm:$0xf]
  %v383 = vld [vmem:[%s381 + $0x4] sm:$0xf]
  %v384 = vld [vmem:[%s381 + $0x8] sm:$0xf]
  %v385 = vld [vmem:[%s381 + $0xc] sm:$0xf]
  %v390 = vunpack.c.l.b16 %v382
  %v391 = vunpack.c.l.b16 %v383
  %v392 = vunpack.c.l.b16 %v384
  %v393 = vunpack.c.l.b16 %v385
  %v394 = vpack.c.b16 %v391, %v390
  %v395 = vpack.c.b16 %v393, %v392
  %398 = vmatprep.subr.bf16.mxu0 0
  %399 = vmatpush1.bf16.msra.mxu0 0
  %400 = vmatprep.subr.bf16.mxu0 0
  %401 = vmatpush1.bf16.msra.mxu0 0
  %402 = vmatprep.subr.bf16.mxu0 0
  %403 = vmatpush1.bf16.msra.mxu0 0
  %404 = vmatprep.subr.bf16.mxu0 0
  %405 = vmatpush1.bf16.msra.mxu0 0
  %406 = vmatprep.subr.bf16.mxu0 0
  %407 = vmatpush1.bf16.msra.mxu0 0
  %408 = vmatprep.subr.bf16.mxu0 0
  %409 = vmatpush1.bf16.msra.mxu0 0
  %410 = vmatprep.subr.bf16.mxu0 0
  %411 = vmatpush1.bf16.msra.mxu0 %v395
  %412 = vmatprep.subr.bf16.mxu0 0
  %413 = vmatpush1.bf16.msra.mxu0 %v394
  %414 = vmatprep.subr.bf16.mxu0 0
  %415 = vmatpush2.bf16.msra.mxu0 0
  %416 = vmatprep.subr.bf16.mxu0 0
  %417 = vmatpush2.bf16.msra.mxu0 0
  %418 = vmatprep.subr.bf16.mxu0 0
  %419 = vmatpush2.bf16.msra.mxu0 0
  %420 = vmatprep.subr.bf16.mxu0 0
  %421 = vmatpush2.bf16.msra.mxu0 0
  %422 = vmatprep.subr.bf16.mxu0 0
  %423 = vmatpush2.bf16.msra.mxu0 0
  %424 = vmatprep.subr.bf16.mxu0 0
  %425 = vmatpush2.bf16.msra.mxu0 0
  %426 = vmatprep.subr.bf16.mxu0 0
  %427 = vmatpush2.bf16.msra.mxu0 0
  %428 = vmatprep.subr.bf16.mxu0 0
  %429 = vmatpush2.bf16.msra.mxu0 0
  %430 = vmatprep.mubr.bf16.mxu0 0
  %431 = vmatmul.mubr.bf16.gmra.mxu0 %v74
  %v432 = vpop.f32.mrf.mxu0
  %v433 = vadd.f32 %v33, %v432
  %v434 = vpop.f32.mrf.mxu0
  %v435 = vpop.f32.mrf.mxu0
  %v436 = vadd.f32 %v38, %v435
  %v437 = vpop.f32.mrf.mxu0
  %438 = vmatprep.mubr.bf16.mxu0 0
  %439 = vmatmul.mubr.bf16.gmra.mxu0 %v77
  %v440 = vpop.f32.mrf.mxu0
  %v441 = vadd.f32 %v43, %v440
  %v442 = vpop.f32.mrf.mxu0
  %v443 = vpop.f32.mrf.mxu0
  %v444 = vadd.f32 %v48, %v443
  %v445 = vpop.f32.mrf.mxu0
  %446 = vdwg.mxu0
  %s447 = scalar_lea.vmem %s1, 128
  %v448 = vld [vmem:[%s447] sm:$0xff]
  %v449 = vld [vmem:[%s447 + $0x8] sm:$0xff]
  %v450 = vld [vmem:[%s447 + $0x10] sm:$0xff]
  %v451 = vld [vmem:[%s447 + $0x18] sm:$0xff]
  %v452 = vadd.f32 %v433, %v448
  %v453 = vadd.f32 %v436, %v449
  %v454 = vadd.f32 %v441, %v450
  %v455 = vadd.f32 %v444, %v451
  %s456 = scalar_lea.vmem %s4, 128
  %457 = vst.msk [vmem:[%s456] sm:$0xff] %vm136, %v452
  %458 = vst.msk [vmem:[%s456 + $0x8] sm:$0xff] %vm136, %v453
  %459 = vst.msk [vmem:[%s456 + $0x10] sm:$0xff] %vm136, %v454
  %460 = vst.msk [vmem:[%s456 + $0x18] sm:$0xff] %vm136, %v455
  %s461 = scalar_lea.vmem %s0, 80
  %v462 = vld [vmem:[%s461] sm:$0xf]
  %v463 = vld [vmem:[%s461 + $0x4] sm:$0xf]
  %v464 = vld [vmem:[%s461 + $0x8] sm:$0xf]
  %v465 = vld [vmem:[%s461 + $0xc] sm:$0xf]
  %v470 = vunpack.c.l.b16 %v462
  %v471 = vunpack.c.l.b16 %v463
  %v472 = vunpack.c.l.b16 %v464
  %v473 = vunpack.c.l.b16 %v465
  %v474 = vpack.c.b16 %v471, %v470
  %v475 = vpack.c.b16 %v473, %v472
  %478 = vmatprep.subr.bf16.mxu0 0
  %479 = vmatpush1.bf16.msra.mxu0 0
  %480 = vmatprep.subr.bf16.mxu0 0
  %481 = vmatpush1.bf16.msra.mxu0 0
  %482 = vmatprep.subr.bf16.mxu0 0
  %483 = vmatpush1.bf16.msra.mxu0 0
  %484 = vmatprep.subr.bf16.mxu0 0
  %485 = vmatpush1.bf16.msra.mxu0 0
  %486 = vmatprep.subr.bf16.mxu0 0
  %487 = vmatpush1.bf16.msra.mxu0 0
  %488 = vmatprep.subr.bf16.mxu0 0
  %489 = vmatpush1.bf16.msra.mxu0 0
  %490 = vmatprep.subr.bf16.mxu0 0
  %491 = vmatpush1.bf16.msra.mxu0 %v475
  %492 = vmatprep.subr.bf16.mxu0 0
  %493 = vmatpush1.bf16.msra.mxu0 %v474
  %494 = vmatprep.subr.bf16.mxu0 0
  %495 = vmatpush2.bf16.msra.mxu0 0
  %496 = vmatprep.subr.bf16.mxu0 0
  %497 = vmatpush2.bf16.msra.mxu0 0
  %498 = vmatprep.subr.bf16.mxu0 0
  %499 = vmatpush2.bf16.msra.mxu0 0
  %500 = vmatprep.subr.bf16.mxu0 0
  %501 = vmatpush2.bf16.msra.mxu0 0
  %502 = vmatprep.subr.bf16.mxu0 0
  %503 = vmatpush2.bf16.msra.mxu0 0
  %504 = vmatprep.subr.bf16.mxu0 0
  %505 = vmatpush2.bf16.msra.mxu0 0
  %506 = vmatprep.subr.bf16.mxu0 0
  %507 = vmatpush2.bf16.msra.mxu0 0
  %508 = vmatprep.subr.bf16.mxu0 0
  %509 = vmatpush2.bf16.msra.mxu0 0
  %510 = vmatprep.mubr.bf16.mxu0 0
  %511 = vmatmul.mubr.bf16.gmra.mxu0 %v74
  %v512 = vpop.f32.mrf.mxu0
  %v513 = vadd.f32 %v33, %v512
  %v514 = vpop.f32.mrf.mxu0
  %v515 = vpop.f32.mrf.mxu0
  %v516 = vadd.f32 %v38, %v515
  %v517 = vpop.f32.mrf.mxu0
  %518 = vmatprep.mubr.bf16.mxu0 0
  %519 = vmatmul.mubr.bf16.gmra.mxu0 %v77
  %v520 = vpop.f32.mrf.mxu0
  %v521 = vadd.f32 %v43, %v520
  %v522 = vpop.f32.mrf.mxu0
  %v523 = vpop.f32.mrf.mxu0
  %v524 = vadd.f32 %v48, %v523
  %v525 = vpop.f32.mrf.mxu0
  %526 = vdwg.mxu0
  %s527 = scalar_lea.vmem %s1, 160
  %v528 = vld [vmem:[%s527] sm:$0xff]
  %v529 = vld [vmem:[%s527 + $0x8] sm:$0xff]
  %v530 = vld [vmem:[%s527 + $0x10] sm:$0xff]
  %v531 = vld [vmem:[%s527 + $0x18] sm:$0xff]
  %v532 = vadd.f32 %v513, %v528
  %v533 = vadd.f32 %v516, %v529
  %v534 = vadd.f32 %v521, %v530
  %v535 = vadd.f32 %v524, %v531
  %s536 = scalar_lea.vmem %s4, 160
  %537 = vst.msk [vmem:[%s536] sm:$0xff] %vm136, %v532
  %538 = vst.msk [vmem:[%s536 + $0x8] sm:$0xff] %vm136, %v533
  %539 = vst.msk [vmem:[%s536 + $0x10] sm:$0xff] %vm136, %v534
  %540 = vst.msk [vmem:[%s536 + $0x18] sm:$0xff] %vm136, %v535
  %s541 = scalar_lea.vmem %s0, 96
  %v542 = vld [vmem:[%s541] sm:$0xf]
  %v543 = vld [vmem:[%s541 + $0x4] sm:$0xf]
  %v544 = vld [vmem:[%s541 + $0x8] sm:$0xf]
  %v545 = vld [vmem:[%s541 + $0xc] sm:$0xf]
  %v550 = vunpack.c.l.b16 %v542
  %v551 = vunpack.c.l.b16 %v543
  %v552 = vunpack.c.l.b16 %v544
  %v553 = vunpack.c.l.b16 %v545
  %v554 = vpack.c.b16 %v551, %v550
  %v555 = vpack.c.b16 %v553, %v552
  %558 = vmatprep.subr.bf16.mxu0 0
  %559 = vmatpush1.bf16.msra.mxu0 0
  %560 = vmatprep.subr.bf16.mxu0 0
  %561 = vmatpush1.bf16.msra.mxu0 0
  %562 = vmatprep.subr.bf16.mxu0 0
  %563 = vmatpush1.bf16.msra.mxu0 0
  %564 = vmatprep.subr.bf16.mxu0 0
  %565 = vmatpush1.bf16.msra.mxu0 0
  %566 = vmatprep.subr.bf16.mxu0 0
  %567 = vmatpush1.bf16.msra.mxu0 0
  %568 = vmatprep.subr.bf16.mxu0 0
  %569 = vmatpush1.bf16.msra.mxu0 0
  %570 = vmatprep.subr.bf16.mxu0 0
  %571 = vmatpush1.bf16.msra.mxu0 %v555
  %572 = vmatprep.subr.bf16.mxu0 0
  %573 = vmatpush1.bf16.msra.mxu0 %v554
  %574 = vmatprep.subr.bf16.mxu0 0
  %575 = vmatpush2.bf16.msra.mxu0 0
  %576 = vmatprep.subr.bf16.mxu0 0
  %577 = vmatpush2.bf16.msra.mxu0 0
  %578 = vmatprep.subr.bf16.mxu0 0
  %579 = vmatpush2.bf16.msra.mxu0 0
  %580 = vmatprep.subr.bf16.mxu0 0
  %581 = vmatpush2.bf16.msra.mxu0 0
  %582 = vmatprep.subr.bf16.mxu0 0
  %583 = vmatpush2.bf16.msra.mxu0 0
  %584 = vmatprep.subr.bf16.mxu0 0
  %585 = vmatpush2.bf16.msra.mxu0 0
  %586 = vmatprep.subr.bf16.mxu0 0
  %587 = vmatpush2.bf16.msra.mxu0 0
  %588 = vmatprep.subr.bf16.mxu0 0
  %589 = vmatpush2.bf16.msra.mxu0 0
  %590 = vmatprep.mubr.bf16.mxu0 0
  %591 = vmatmul.mubr.bf16.gmra.mxu0 %v74
  %v592 = vpop.f32.mrf.mxu0
  %v593 = vadd.f32 %v33, %v592
  %v594 = vpop.f32.mrf.mxu0
  %v595 = vpop.f32.mrf.mxu0
  %v596 = vadd.f32 %v38, %v595
  %v597 = vpop.f32.mrf.mxu0
  %598 = vmatprep.mubr.bf16.mxu0 0
  %599 = vmatmul.mubr.bf16.gmra.mxu0 %v77
  %v600 = vpop.f32.mrf.mxu0
  %v601 = vadd.f32 %v43, %v600
  %v602 = vpop.f32.mrf.mxu0
  %v603 = vpop.f32.mrf.mxu0
  %v604 = vadd.f32 %v48, %v603
  %v605 = vpop.f32.mrf.mxu0
  %606 = vdwg.mxu0
  %s607 = scalar_lea.vmem %s1, 192
  %v608 = vld [vmem:[%s607] sm:$0xff]
  %v609 = vld [vmem:[%s607 + $0x8] sm:$0xff]
  %v610 = vld [vmem:[%s607 + $0x10] sm:$0xff]
  %v611 = vld [vmem:[%s607 + $0x18] sm:$0xff]
  %v612 = vadd.f32 %v593, %v608
  %v613 = vadd.f32 %v596, %v609
  %v614 = vadd.f32 %v601, %v610
  %v615 = vadd.f32 %v604, %v611
  %s616 = scalar_lea.vmem %s4, 192
  %617 = vst.msk [vmem:[%s616] sm:$0xff] %vm136, %v612
  %618 = vst.msk [vmem:[%s616 + $0x8] sm:$0xff] %vm136, %v613
  %619 = vst.msk [vmem:[%s616 + $0x10] sm:$0xff] %vm136, %v614
  %620 = vst.msk [vmem:[%s616 + $0x18] sm:$0xff] %vm136, %v615
  // Predicated region
  $region18: #{fwd.7} parent=0 // pred_check
    _
  $region19: #{fwd.7} parent=0 // pred_check_branch
    %622 = sbr.rel (0) target = $region21
  $region20: #{fwd.7} parent=0 // pred_region
    _
  $region21: #{fwd.7} parent=0 // pred_fallthru
    _
  // Predicated region
  $region22: #{fwd.7} parent=0 // pred_check
    _
  $region23: #{fwd.7} parent=0 // pred_check_branch
    %624 = sbr.rel (0) target = $region25
  $region24: #{fwd.7} parent=0 // pred_region
    _
  $region25: #{fwd.7} parent=0 // pred_fallthru
    _

// kernel: fwd.8
$region0: #{fwd.8}
  #allocation0 [shape = 'u32[]', space=smem, size = 0x4, offset = 0x4, fixed_abs, tag = 'smem constant byte address 0x4 - core index']
  #allocation1 [shape = 'u32[144,128]{1,0:T(1,128)}', space=vmem, size = 0x12000, scoped, tag = 'internal scratch']
  %s0 = inlined_call_operand.vmem [shape: bf16[7,1568], index: 0, kind: input, shape index: {}]
  %s1 = inlined_call_operand.vmem [shape: bf16[1568,64], index: 1, kind: input, shape index: {}]
  %s2 = inlined_call_operand.vmem [shape: f32[1,64], index: 2, kind: input, shape index: {}]
  %s3 = inlined_call_operand.vmem [shape: f32[7,64], index: 3, kind: output, shape index: {}]
  %s4 = sld [smem:[#allocation0]]
  $region22: #{fwd.8} parent=0
    _
  %s6 = ssub.s32 1, %s4
  %s7 = scalar_select 0, %s6, %s4
  // Predicated region
  $region2: #{fwd.8} parent=0 // pred_check
    _
  $region3: #{fwd.8} parent=0 // pred_check_branch
    %9 = sbr.rel (0) target = $region5
  $region4: #{fwd.8} parent=0 // pred_region
    _
  $region5: #{fwd.8} parent=0 // pred_fallthru
    _
  // Predicated region
  $region6: #{fwd.8} parent=0 // pred_check
    _
  $region7: #{fwd.8} parent=0 // pred_check_branch
    %11 = sbr.rel (0) target = $region9
  $region8: #{fwd.8} parent=0 // pred_region
    _
  $region9: #{fwd.8} parent=0 // pred_fallthru
    _
  // Predicated region
  $region10: #{fwd.8} parent=0 // pred_check
    _
  $region11: #{fwd.8} parent=0 // pred_check_branch
    %13 = sbr.rel (0) target = $region13
  $region12: #{fwd.8} parent=0 // pred_region
    _
  $region13: #{fwd.8} parent=0 // pred_fallthru
    _
  %v15 = vld [vmem:[%s0] sm:$0xff]
  %v16 = vld [vmem:[%s0 + $0x8] sm:$0xff]
  %v17 = vld [vmem:[%s0 + $0x10] sm:$0xff]
  %v18 = vld [vmem:[%s0 + $0x18] sm:$0xff]
  %v19 = vld [vmem:[%s0 + $0x20] sm:$0xff]
  %v20 = vld [vmem:[%s0 + $0x28] sm:$0xff]
  %v21 = vld [vmem:[%s0 + $0x30] sm:$0xf]
  %v22 = vld [vmem:[%s1] sm:$0xf]
  %v23 = vld [vmem:[%s1 + $0x4] sm:$0xf]
  %v24 = vld [vmem:[%s1 + $0x8] sm:$0xf]
  %v25 = vld [vmem:[%s1 + $0xc] sm:$0xf]
  %v26 = vld [vmem:[%s1 + $0x10] sm:$0xf]
  %v27 = vld [vmem:[%s1 + $0x14] sm:$0xf]
  %v28 = vld [vmem:[%s1 + $0x18] sm:$0xf]
  %v29 = vld [vmem:[%s1 + $0x1c] sm:$0xf]
  %v30 = vld [vmem:[%s1 + $0x20] sm:$0xf]
  %v31 = vld [vmem:[%s1 + $0x24] sm:$0xf]
  %v32 = vld [vmem:[%s1 + $0x28] sm:$0xf]
  %v33 = vld [vmem:[%s1 + $0x2c] sm:$0xf]
  %v34 = vld [vmem:[%s1 + $0x30] sm:$0xf]
  %v35 = vld [vmem:[%s1 + $0x34] sm:$0xf]
  %v36 = vld [vmem:[%s1 + $0x38] sm:$0xf]
  %v37 = vld [vmem:[%s1 + $0x3c] sm:$0xf]
  %v38 = vld [vmem:[%s1 + $0x40] sm:$0xf]
  %v39 = vld [vmem:[%s1 + $0x44] sm:$0xf]
  %v40 = vld [vmem:[%s1 + $0x48] sm:$0xf]
  %v41 = vld [vmem:[%s1 + $0x4c] sm:$0xf]
  %v42 = vld [vmem:[%s1 + $0x50] sm:$0xf]
  %v43 = vld [vmem:[%s1 + $0x54] sm:$0xf]
  %v44 = vld [vmem:[%s1 + $0x58] sm:$0xf]
  %v45 = vld [vmem:[%s1 + $0x5c] sm:$0xf]
  %v46 = vld [vmem:[%s1 + $0x60] sm:$0xf]
  %v47 = vld [vmem:[%s1 + $0x64] sm:$0xf]
  %v48 = vld [vmem:[%s1 + $0x68] sm:$0xf]
  %v49 = vld [vmem:[%s1 + $0x6c] sm:$0xf]
  %v50 = vld [vmem:[%s1 + $0x70] sm:$0xf]
  %v51 = vld [vmem:[%s1 + $0x74] sm:$0xf]
  %v52 = vld [vmem:[%s1 + $0x78] sm:$0xf]
  %v53 = vld [vmem:[%s1 + $0x7c] sm:$0xf]
  %v54 = vld [vmem:[%s1 + $0x80] sm:$0xf]
  %v55 = vld [vmem:[%s1 + $0x84] sm:$0xf]
  %v56 = vld [vmem:[%s1 + $0x88] sm:$0xf]
  %v57 = vld [vmem:[%s1 + $0x8c] sm:$0xf]
  %v58 = vld [vmem:[%s1 + $0x90] sm:$0xf]
  %v59 = vld [vmem:[%s1 + $0x94] sm:$0xf]
  %v60 = vld [vmem:[%s1 + $0x98] sm:$0xf]
  %v61 = vld [vmem:[%s1 + $0x9c] sm:$0xf]
  %v62 = vld [vmem:[%s1 + $0xa0] sm:$0xf]
  %v63 = vld [vmem:[%s1 + $0xa4] sm:$0xf]
  %v64 = vld [vmem:[%s1 + $0xa8] sm:$0xf]
  %v65 = vld [vmem:[%s1 + $0xac] sm:$0xf]
  %v66 = vld [vmem:[%s1 + $0xb0] sm:$0xf]
  %v67 = vld [vmem:[%s1 + $0xb4] sm:$0xf]
  %v68 = vld [vmem:[%s1 + $0xb8] sm:$0xf]
  %v69 = vld [vmem:[%s1 + $0xbc] sm:$0xf]
  %v70 = vld [vmem:[%s1 + $0xc0] sm:$0xf]
  %v71 = vld [vmem:[%s1 + $0xc4] sm:$0xf]
  %v72 = vld [vmem:[%s1 + $0xc8] sm:$0xf]
  %v73 = vld [vmem:[%s1 + $0xcc] sm:$0xf]
  %v74 = vld [vmem:[%s1 + $0xd0] sm:$0xf]
  %v75 = vld [vmem:[%s1 + $0xd4] sm:$0xf]
  %v76 = vld [vmem:[%s1 + $0xd8] sm:$0xf]
  %v77 = vld [vmem:[%s1 + $0xdc] sm:$0xf]
  %v78 = vld [vmem:[%s1 + $0xe0] sm:$0xf]
  %v79 = vld [vmem:[%s1 + $0xe4] sm:$0xf]
  %v80 = vld [vmem:[%s1 + $0xe8] sm:$0xf]
  %v81 = vld [vmem:[%s1 + $0xec] sm:$0xf]
  %v82 = vld [vmem:[%s1 + $0xf0] sm:$0xf]
  %v83 = vld [vmem:[%s1 + $0xf4] sm:$0xf]
  %v84 = vld [vmem:[%s1 + $0xf8] sm:$0xf]
  %v85 = vld [vmem:[%s1 + $0xfc] sm:$0xf]
  %v86 = vld [vmem:[%s1 + $0x100] sm:$0xf]
  %v87 = vld [vmem:[%s1 + $0x104] sm:$0xf]
  %v88 = vld [vmem:[%s1 + $0x108] sm:$0xf]
  %v89 = vld [vmem:[%s1 + $0x10c] sm:$0xf]
  %v90 = vld [vmem:[%s1 + $0x110] sm:$0xf]
  %v91 = vld [vmem:[%s1 + $0x114] sm:$0xf]
  %v92 = vld [vmem:[%s1 + $0x118] sm:$0xf]
  %v93 = vld [vmem:[%s1 + $0x11c] sm:$0xf]
  %v94 = vld [vmem:[%s1 + $0x120] sm:$0xf]
  %v95 = vld [vmem:[%s1 + $0x124] sm:$0xf]
  %v96 = vld [vmem:[%s1 + $0x128] sm:$0xf]
  %v97 = vld [vmem:[%s1 + $0x12c] sm:$0xf]
  %v98 = vld [vmem:[%s1 + $0x130] sm:$0xf]
  %v99 = vld [vmem:[%s1 + $0x134] sm:$0xf]
  %v100 = vld [vmem:[%s1 + $0x138] sm:$0xf]
  %v101 = vld [vmem:[%s1 + $0x13c] sm:$0xf]
  %v102 = vld [vmem:[%s1 + $0x140] sm:$0xf]
  %v103 = vld [vmem:[%s1 + $0x144] sm:$0xf]
  %v104 = vld [vmem:[%s1 + $0x148] sm:$0xf]
  %v105 = vld [vmem:[%s1 + $0x14c] sm:$0xf]
  %v106 = vld [vmem:[%s1 + $0x150] sm:$0xf]
  %v107 = vld [vmem:[%s1 + $0x154] sm:$0xf]
  %v108 = vld [vmem:[%s1 + $0x158] sm:$0xf]
  %v109 = vld [vmem:[%s1 + $0x15c] sm:$0xf]
  %v110 = vld [vmem:[%s1 + $0x160] sm:$0xf]
  %v111 = vld [vmem:[%s1 + $0x164] sm:$0xf]
  %v112 = vld [vmem:[%s1 + $0x168] sm:$0xf]
  %v113 = vld [vmem:[%s1 + $0x16c] sm:$0xf]
  %v114 = vld [vmem:[%s1 + $0x170] sm:$0xf]
  %v115 = vld [vmem:[%s1 + $0x174] sm:$0xf]
  %v116 = vld [vmem:[%s1 + $0x178] sm:$0xf]
  %v117 = vld [vmem:[%s1 + $0x17c] sm:$0xf]
  %v118 = vld [vmem:[%s1 + $0x180] sm:$0xf]
  %v119 = vld [vmem:[%s1 + $0x184] sm:$0xf]
  %v120 = vld [vmem:[%s1 + $0x188] sm:$0xf]
  %v121 = vld [vmem:[%s1 + $0x18c] sm:$0xf]
  %v122 = vld [vmem:[%s1 + $0x190] sm:$0xf]
  %v123 = vld [vmem:[%s1 + $0x194] sm:$0xf]
  %v124 = vld [vmem:[%s1 + $0x198] sm:$0xf]
  %v125 = vld [vmem:[%s1 + $0x19c] sm:$0xf]
  %v126 = vld [vmem:[%s1 + $0x1a0] sm:$0xf]
  %v127 = vld [vmem:[%s1 + $0x1a4] sm:$0xf]
  %v128 = vld [vmem:[%s1 + $0x1a8] sm:$0xf]
  %v129 = vld [vmem:[%s1 + $0x1ac] sm:$0xf]
  %v130 = vld [vmem:[%s1 + $0x1b0] sm:$0xf]
  %v131 = vld [vmem:[%s1 + $0x1b4] sm:$0xf]
  %v132 = vld [vmem:[%s1 + $0x1b8] sm:$0xf]
  %v133 = vld [vmem:[%s1 + $0x1bc] sm:$0xf]
  %v134 = vld [vmem:[%s1 + $0x1c0] sm:$0xf]
  %v135 = vld [vmem:[%s1 + $0x1c4] sm:$0xf]
  %v136 = vld [vmem:[%s1 + $0x1c8] sm:$0xf]
  %v137 = vld [vmem:[%s1 + $0x1cc] sm:$0xf]
  %v138 = vld [vmem:[%s1 + $0x1d0] sm:$0xf]
  %v139 = vld [vmem:[%s1 + $0x1d4] sm:$0xf]
  %v140 = vld [vmem:[%s1 + $0x1d8] sm:$0xf]
  %v141 = vld [vmem:[%s1 + $0x1dc] sm:$0xf]
  %v142 = vld [vmem:[%s1 + $0x1e0] sm:$0xf]
  %v143 = vld [vmem:[%s1 + $0x1e4] sm:$0xf]
  %v144 = vld [vmem:[%s1 + $0x1e8] sm:$0xf]
  %v145 = vld [vmem:[%s1 + $0x1ec] sm:$0xf]
  %v146 = vld [vmem:[%s1 + $0x1f0] sm:$0xf]
  %v147 = vld [vmem:[%s1 + $0x1f4] sm:$0xf]
  %v148 = vld [vmem:[%s1 + $0x1f8] sm:$0xf]
  %v149 = vld [vmem:[%s1 + $0x1fc] sm:$0xf]
  %v150 = vld [vmem:[%s1 + $0x200] sm:$0xf]
  %v151 = vld [vmem:[%s1 + $0x204] sm:$0xf]
  %v152 = vld [vmem:[%s1 + $0x208] sm:$0xf]
  %v153 = vld [vmem:[%s1 + $0x20c] sm:$0xf]
  %v154 = vld [vmem:[%s1 + $0x210] sm:$0xf]
  %v155 = vld [vmem:[%s1 + $0x214] sm:$0xf]
  %v156 = vld [vmem:[%s1 + $0x218] sm:$0xf]
  %v157 = vld [vmem:[%s1 + $0x21c] sm:$0xf]
  %v158 = vld [vmem:[%s1 + $0x220] sm:$0xf]
  %v159 = vld [vmem:[%s1 + $0x224] sm:$0xf]
  %v160 = vld [vmem:[%s1 + $0x228] sm:$0xf]
  %v161 = vld [vmem:[%s1 + $0x22c] sm:$0xf]
  %v162 = vld [vmem:[%s1 + $0x230] sm:$0xf]
  %v163 = vld [vmem:[%s1 + $0x234] sm:$0xf]
  %v164 = vld [vmem:[%s1 + $0x238] sm:$0xf]
  %v165 = vld [vmem:[%s1 + $0x23c] sm:$0xf]
  %v166 = vld [vmem:[%s1 + $0x240] sm:$0xf]
  %v167 = vld [vmem:[%s1 + $0x244] sm:$0xf]
  %v168 = vld [vmem:[%s1 + $0x248] sm:$0xf]
  %v169 = vld [vmem:[%s1 + $0x24c] sm:$0xf]
  %v170 = vld [vmem:[%s1 + $0x250] sm:$0xf]
  %v171 = vld [vmem:[%s1 + $0x254] sm:$0xf]
  %v172 = vld [vmem:[%s1 + $0x258] sm:$0xf]
  %v173 = vld [vmem:[%s1 + $0x25c] sm:$0xf]
  %v174 = vld [vmem:[%s1 + $0x260] sm:$0xf]
  %v175 = vld [vmem:[%s1 + $0x264] sm:$0xf]
  %v176 = vld [vmem:[%s1 + $0x268] sm:$0xf]
  %v177 = vld [vmem:[%s1 + $0x26c] sm:$0xf]
  %v178 = vld [vmem:[%s1 + $0x270] sm:$0xf]
  %v179 = vld [vmem:[%s1 + $0x274] sm:$0xf]
  %v180 = vld [vmem:[%s1 + $0x278] sm:$0xf]
  %v181 = vld [vmem:[%s1 + $0x27c] sm:$0xf]
  %v182 = vld [vmem:[%s1 + $0x280] sm:$0xf]
  %v183 = vld [vmem:[%s1 + $0x284] sm:$0xf]
  %v184 = vld [vmem:[%s1 + $0x288] sm:$0xf]
  %v185 = vld [vmem:[%s1 + $0x28c] sm:$0xf]
  %v186 = vld [vmem:[%s1 + $0x290] sm:$0xf]
  %v187 = vld [vmem:[%s1 + $0x294] sm:$0xf]
  %v188 = vld [vmem:[%s1 + $0x298] sm:$0xf]
  %v189 = vld [vmem:[%s1 + $0x29c] sm:$0xf]
  %v190 = vld [vmem:[%s1 + $0x2a0] sm:$0xf]
  %v191 = vld [vmem:[%s1 + $0x2a4] sm:$0xf]
  %v192 = vld [vmem:[%s1 + $0x2a8] sm:$0xf]
  %v193 = vld [vmem:[%s1 + $0x2ac] sm:$0xf]
  %v194 = vld [vmem:[%s1 + $0x2b0] sm:$0xf]
  %v195 = vld [vmem:[%s1 + $0x2b4] sm:$0xf]
  %v196 = vld [vmem:[%s1 + $0x2b8] sm:$0xf]
  %v197 = vld [vmem:[%s1 + $0x2bc] sm:$0xf]
  %v198 = vld [vmem:[%s1 + $0x2c0] sm:$0xf]
  %v199 = vld [vmem:[%s1 + $0x2c4] sm:$0xf]
  %v200 = vld [vmem:[%s1 + $0x2c8] sm:$0xf]
  %v201 = vld [vmem:[%s1 + $0x2cc] sm:$0xf]
  %v202 = vld [vmem:[%s1 + $0x2d0] sm:$0xf]
  %v203 = vld [vmem:[%s1 + $0x2d4] sm:$0xf]
  %v204 = vld [vmem:[%s1 + $0x2d8] sm:$0xf]
  %v205 = vld [vmem:[%s1 + $0x2dc] sm:$0xf]
  %v206 = vld [vmem:[%s1 + $0x2e0] sm:$0xf]
  %v207 = vld [vmem:[%s1 + $0x2e4] sm:$0xf]
  %v208 = vld [vmem:[%s1 + $0x2e8] sm:$0xf]
  %v209 = vld [vmem:[%s1 + $0x2ec] sm:$0xf]
  %v210 = vld [vmem:[%s1 + $0x2f0] sm:$0xf]
  %v211 = vld [vmem:[%s1 + $0x2f4] sm:$0xf]
  %v212 = vld [vmem:[%s1 + $0x2f8] sm:$0xf]
  %v213 = vld [vmem:[%s1 + $0x2fc] sm:$0xf]
  %v214 = vld [vmem:[%s1 + $0x300] sm:$0xf]
  %v215 = vld [vmem:[%s1 + $0x304] sm:$0xf]
  %v216 = vld [vmem:[%s1 + $0x308] sm:$0xf]
  %v217 = vld [vmem:[%s1 + $0x30c] sm:$0xf]
  %v218 = vld [vmem:[%s2] sm:$0x1]
  %v220 = vlaneseq
  %v221 = vshrl.u32 %v220, 7
  %v222 = vsub.s32 0, %v221
  %v223 = vrot.slane %v218, %v222
  %v232 = vunpack.c.l.b16 %v15
  %v233 = vunpack.c.h.b16 %v15
  %v234 = vunpack.c.l.b16 %v16
  %v235 = vunpack.c.h.b16 %v16
  %v236 = vunpack.c.l.b16 %v17
  %v237 = vunpack.c.h.b16 %v17
  %v238 = vunpack.c.l.b16 %v18
  %v239 = vunpack.c.h.b16 %v18
  %v240 = vunpack.c.l.b16 %v19
  %v241 = vunpack.c.h.b16 %v19
  %v242 = vunpack.c.l.b16 %v20
  %v243 = vunpack.c.h.b16 %v20
  %v244 = vunpack.c.l.b16 %v21
  %v245 = vpack.c.b16 %v232, %v232
  %v246 = vpack.c.b16 %v233, %v233
  %v247 = vpack.c.b16 %v234, %v234
  %v248 = vpack.c.b16 %v235, %v235
  %v249 = vpack.c.b16 %v236, %v236
  %v250 = vpack.c.b16 %v237, %v237
  %v251 = vpack.c.b16 %v238, %v238
  %v252 = vpack.c.b16 %v239, %v239
  %v253 = vpack.c.b16 %v240, %v240
  %v254 = vpack.c.b16 %v241, %v241
  %v255 = vpack.c.b16 %v242, %v242
  %v256 = vpack.c.b16 %v243, %v243
  %v257 = vpack.c.b16 %v244, %v244
  %v466 = vunpack.c.l.b16 %v22
  %v467 = vunpack.c.l.b16 %v23
  %v468 = vunpack.c.l.b16 %v24
  %v469 = vunpack.c.l.b16 %v25
  %v470 = vunpack.c.l.b16 %v26
  %v471 = vunpack.c.l.b16 %v27
  %v472 = vunpack.c.l.b16 %v28
  %v473 = vunpack.c.l.b16 %v29
  %v474 = vunpack.c.l.b16 %v30
  %v475 = vunpack.c.l.b16 %v31
  %v476 = vunpack.c.l.b16 %v32
  %v477 = vunpack.c.l.b16 %v33
  %v478 = vunpack.c.l.b16 %v34
  %v479 = vunpack.c.l.b16 %v35
  %v480 = vunpack.c.l.b16 %v36
  %v481 = vunpack.c.l.b16 %v37
  %v482 = vunpack.c.l.b16 %v38
  %v483 = vunpack.c.l.b16 %v39
  %v484 = vunpack.c.l.b16 %v40
  %v485 = vunpack.c.l.b16 %v41
  %v486 = vunpack.c.l.b16 %v42
  %v487 = vunpack.c.l.b16 %v43
  %v488 = vunpack.c.l.b16 %v44
  %v489 = vunpack.c.l.b16 %v45
  %v490 = vunpack.c.l.b16 %v46
  %v491 = vunpack.c.l.b16 %v47
  %v492 = vunpack.c.l.b16 %v48
  %v493 = vunpack.c.l.b16 %v49
  %v494 = vunpack.c.l.b16 %v50
  %v495 = vunpack.c.l.b16 %v51
  %v496 = vunpack.c.l.b16 %v52
  %v497 = vunpack.c.l.b16 %v53
  %v498 = vunpack.c.l.b16 %v54
  %v499 = vunpack.c.l.b16 %v55
  %v500 = vunpack.c.l.b16 %v56
  %v501 = vunpack.c.l.b16 %v57
  %v502 = vunpack.c.l.b16 %v58
  %v503 = vunpack.c.l.b16 %v59
  %v504 = vunpack.c.l.b16 %v60
  %v505 = vunpack.c.l.b16 %v61
  %v506 = vunpack.c.l.b16 %v62
  %v507 = vunpack.c.l.b16 %v63
  %v508 = vunpack.c.l.b16 %v64
  %v509 = vunpack.c.l.b16 %v65
  %v510 = vunpack.c.l.b16 %v66
  %v511 = vunpack.c.l.b16 %v67
  %v512 = vunpack.c.l.b16 %v68
  %v513 = vunpack.c.l.b16 %v69
  %v514 = vunpack.c.l.b16 %v70
  %v515 = vunpack.c.l.b16 %v71
  %v516 = vunpack.c.l.b16 %v72
  %v517 = vunpack.c.l.b16 %v73
  %v518 = vunpack.c.l.b16 %v74
  %v519 = vunpack.c.l.b16 %v75
  %v520 = vunpack.c.l.b16 %v76
  %v521 = vunpack.c.l.b16 %v77
  %v522 = vunpack.c.l.b16 %v78
  %v523 = vunpack.c.l.b16 %v79
  %v524 = vunpack.c.l.b16 %v80
  %v525 = vunpack.c.l.b16 %v81
  %v526 = vunpack.c.l.b16 %v82
  %v527 = vunpack.c.l.b16 %v83
  %v528 = vunpack.c.l.b16 %v84
  %v529 = vunpack.c.l.b16 %v85
  %v530 = vunpack.c.l.b16 %v86
  %v531 = vunpack.c.l.b16 %v87
  %v532 = vunpack.c.l.b16 %v88
  %v533 = vunpack.c.l.b16 %v89
  %v534 = vunpack.c.l.b16 %v90
  %v535 = vunpack.c.l.b16 %v91
  %v536 = vunpack.c.l.b16 %v92
  %v537 = vunpack.c.l.b16 %v93
  %v538 = vunpack.c.l.b16 %v94
  %v539 = vunpack.c.l.b16 %v95
  %v540 = vunpack.c.l.b16 %v96
  %v541 = vunpack.c.l.b16 %v97
  %v542 = vunpack.c.l.b16 %v98
  %v543 = vunpack.c.l.b16 %v99
  %v544 = vunpack.c.l.b16 %v100
  %v545 = vunpack.c.l.b16 %v101
  %v546 = vunpack.c.l.b16 %v102
  %v547 = vunpack.c.l.b16 %v103
  %v548 = vunpack.c.l.b16 %v104
  %v549 = vunpack.c.l.b16 %v105
  %v550 = vunpack.c.l.b16 %v106
  %v551 = vunpack.c.l.b16 %v107
  %v552 = vunpack.c.l.b16 %v108
  %v553 = vunpack.c.l.b16 %v109
  %v554 = vunpack.c.l.b16 %v110
  %v555 = vunpack.c.l.b16 %v111
  %v556 = vunpack.c.l.b16 %v112
  %v557 = vunpack.c.l.b16 %v113
  %v558 = vunpack.c.l.b16 %v114
  %v559 = vunpack.c.l.b16 %v115
  %v560 = vunpack.c.l.b16 %v116
  %v561 = vunpack.c.l.b16 %v117
  %v562 = vunpack.c.l.b16 %v118
  %v563 = vunpack.c.l.b16 %v119
  %v564 = vunpack.c.l.b16 %v120
  %v565 = vunpack.c.l.b16 %v121
  %v566 = vunpack.c.l.b16 %v122
  %v567 = vunpack.c.l.b16 %v123
  %v568 = vunpack.c.l.b16 %v124
  %v569 = vunpack.c.l.b16 %v125
  %v570 = vunpack.c.l.b16 %v126
  %v571 = vunpack.c.l.b16 %v127
  %v572 = vunpack.c.l.b16 %v128
  %v573 = vunpack.c.l.b16 %v129
  %v574 = vunpack.c.l.b16 %v130
  %v575 = vunpack.c.l.b16 %v131
  %v576 = vunpack.c.l.b16 %v132
  %v577 = vunpack.c.l.b16 %v133
  %v578 = vunpack.c.l.b16 %v134
  %v579 = vunpack.c.l.b16 %v135
  %v580 = vunpack.c.l.b16 %v136
  %v581 = vunpack.c.l.b16 %v137
  %v582 = vunpack.c.l.b16 %v138
  %v583 = vunpack.c.l.b16 %v139
  %v584 = vunpack.c.l.b16 %v140
  %v585 = vunpack.c.l.b16 %v141
  %v586 = vunpack.c.l.b16 %v142
  %v587 = vunpack.c.l.b16 %v143
  %v588 = vunpack.c.l.b16 %v144
  %v589 = vunpack.c.l.b16 %v145
  %v590 = vunpack.c.l.b16 %v146
  %v591 = vunpack.c.l.b16 %v147
  %v592 = vunpack.c.l.b16 %v148
  %v593 = vunpack.c.l.b16 %v149
  %v594 = vunpack.c.l.b16 %v150
  %v595 = vunpack.c.l.b16 %v151
  %v596 = vunpack.c.l.b16 %v152
  %v597 = vunpack.c.l.b16 %v153
  %v598 = vunpack.c.l.b16 %v154
  %v599 = vunpack.c.l.b16 %v155
  %v600 = vunpack.c.l.b16 %v156
  %v601 = vunpack.c.l.b16 %v157
  %v602 = vunpack.c.l.b16 %v158
  %v603 = vunpack.c.l.b16 %v159
  %v604 = vunpack.c.l.b16 %v160
  %v605 = vunpack.c.l.b16 %v161
  %v606 = vunpack.c.l.b16 %v162
  %v607 = vunpack.c.l.b16 %v163
  %v608 = vunpack.c.l.b16 %v164
  %v609 = vunpack.c.l.b16 %v165
  %v610 = vunpack.c.l.b16 %v166
  %v611 = vunpack.c.l.b16 %v167
  %v612 = vunpack.c.l.b16 %v168
  %v613 = vunpack.c.l.b16 %v169
  %v614 = vunpack.c.l.b16 %v170
  %v615 = vunpack.c.l.b16 %v171
  %v616 = vunpack.c.l.b16 %v172
  %v617 = vunpack.c.l.b16 %v173
  %v618 = vunpack.c.l.b16 %v174
  %v619 = vunpack.c.l.b16 %v175
  %v620 = vunpack.c.l.b16 %v176
  %v621 = vunpack.c.l.b16 %v177
  %v622 = vunpack.c.l.b16 %v178
  %v623 = vunpack.c.l.b16 %v179
  %v624 = vunpack.c.l.b16 %v180
  %v625 = vunpack.c.l.b16 %v181
  %v626 = vunpack.c.l.b16 %v182
  %v627 = vunpack.c.l.b16 %v183
  %v628 = vunpack.c.l.b16 %v184
  %v629 = vunpack.c.l.b16 %v185
  %v630 = vunpack.c.l.b16 %v186
  %v631 = vunpack.c.l.b16 %v187
  %v632 = vunpack.c.l.b16 %v188
  %v633 = vunpack.c.l.b16 %v189
  %v634 = vunpack.c.l.b16 %v190
  %v635 = vunpack.c.l.b16 %v191
  %v636 = vunpack.c.l.b16 %v192
  %v637 = vunpack.c.l.b16 %v193
  %v638 = vunpack.c.l.b16 %v194
  %v639 = vunpack.c.l.b16 %v195
  %v640 = vunpack.c.l.b16 %v196
  %v641 = vunpack.c.l.b16 %v197
  %v642 = vunpack.c.l.b16 %v198
  %v643 = vunpack.c.l.b16 %v199
  %v644 = vunpack.c.l.b16 %v200
  %v645 = vunpack.c.l.b16 %v201
  %v646 = vunpack.c.l.b16 %v202
  %v647 = vunpack.c.l.b16 %v203
  %v648 = vunpack.c.l.b16 %v204
  %v649 = vunpack.c.l.b16 %v205
  %v650 = vunpack.c.l.b16 %v206
  %v651 = vunpack.c.l.b16 %v207
  %v652 = vunpack.c.l.b16 %v208
  %v653 = vunpack.c.l.b16 %v209
  %v654 = vunpack.c.l.b16 %v210
  %v655 = vunpack.c.l.b16 %v211
  %v656 = vunpack.c.l.b16 %v212
  %v657 = vunpack.c.l.b16 %v213
  %v658 = vunpack.c.l.b16 %v214
  %v659 = vunpack.c.l.b16 %v215
  %v660 = vunpack.c.l.b16 %v216
  %v661 = vunpack.c.l.b16 %v217
  %v662 = vpack.c.b16 %v467, %v466
  %v663 = vpack.c.b16 %v469, %v468
  %v664 = vpack.c.b16 %v471, %v470
  %v665 = vpack.c.b16 %v473, %v472
  %v666 = vpack.c.b16 %v475, %v474
  %v667 = vpack.c.b16 %v477, %v476
  %v668 = vpack.c.b16 %v479, %v478
  %v669 = vpack.c.b16 %v481, %v480
  %v670 = vpack.c.b16 %v483, %v482
  %v671 = vpack.c.b16 %v485, %v484
  %v672 = vpack.c.b16 %v487, %v486
  %v673 = vpack.c.b16 %v489, %v488
  %v674 = vpack.c.b16 %v491, %v490
  %v675 = vpack.c.b16 %v493, %v492
  %v676 = vpack.c.b16 %v495, %v494
  %v677 = vpack.c.b16 %v497, %v496
  %v678 = vpack.c.b16 %v499, %v498
  %v679 = vpack.c.b16 %v501, %v500
  %v680 = vpack.c.b16 %v503, %v502
  %v681 = vpack.c.b16 %v505, %v504
  %v682 = vpack.c.b16 %v507, %v506
  %v683 = vpack.c.b16 %v509, %v508
  %v684 = vpack.c.b16 %v511, %v510
  %v685 = vpack.c.b16 %v513, %v512
  %v686 = vpack.c.b16 %v515, %v514
  %v687 = vpack.c.b16 %v517, %v516
  %v688 = vpack.c.b16 %v519, %v518
  %v689 = vpack.c.b16 %v521, %v520
  %v690 = vpack.c.b16 %v523, %v522
  %v691 = vpack.c.b16 %v525, %v524
  %v692 = vpack.c.b16 %v527, %v526
  %v693 = vpack.c.b16 %v529, %v528
  %v694 = vpack.c.b16 %v531, %v530
  %v695 = vpack.c.b16 %v533, %v532
  %v696 = vpack.c.b16 %v535, %v534
  %v697 = vpack.c.b16 %v537, %v536
  %v698 = vpack.c.b16 %v539, %v538
  %v699 = vpack.c.b16 %v541, %v540
  %v700 = vpack.c.b16 %v543, %v542
  %v701 = vpack.c.b16 %v545, %v544
  %v702 = vpack.c.b16 %v547, %v546
  %v703 = vpack.c.b16 %v549, %v548
  %v704 = vpack.c.b16 %v551, %v550
  %v705 = vpack.c.b16 %v553, %v552
  %v706 = vpack.c.b16 %v555, %v554
  %v707 = vpack.c.b16 %v557, %v556
  %v708 = vpack.c.b16 %v559, %v558
  %v709 = vpack.c.b16 %v561, %v560
  %v710 = vpack.c.b16 %v563, %v562
  %v711 = vpack.c.b16 %v565, %v564
  %v712 = vpack.c.b16 %v567, %v566
  %v713 = vpack.c.b16 %v569, %v568
  %v714 = vpack.c.b16 %v571, %v570
  %v715 = vpack.c.b16 %v573, %v572
  %v716 = vpack.c.b16 %v575, %v574
  %v717 = vpack.c.b16 %v577, %v576
  %v718 = vpack.c.b16 %v579, %v578
  %v719 = vpack.c.b16 %v581, %v580
  %v720 = vpack.c.b16 %v583, %v582
  %v721 = vpack.c.b16 %v585, %v584
  %v722 = vpack.c.b16 %v587, %v586
  %v723 = vpack.c.b16 %v589, %v588
  %v724 = vpack.c.b16 %v591, %v590
  %v725 = vpack.c.b16 %v593, %v592
  %v726 = vpack.c.b16 %v595, %v594
  %v727 = vpack.c.b16 %v597, %v596
  %v728 = vpack.c.b16 %v599, %v598
  %v729 = vpack.c.b16 %v601, %v600
  %v730 = vpack.c.b16 %v603, %v602
  %v731 = vpack.c.b16 %v605, %v604
  %v732 = vpack.c.b16 %v607, %v606
  %v733 = vpack.c.b16 %v609, %v608
  %v734 = vpack.c.b16 %v611, %v610
  %v735 = vpack.c.b16 %v613, %v612
  %v736 = vpack.c.b16 %v615, %v614
  %v737 = vpack.c.b16 %v617, %v616
  %v738 = vpack.c.b16 %v619, %v618
  %v739 = vpack.c.b16 %v621, %v620
  %v740 = vpack.c.b16 %v623, %v622
  %v741 = vpack.c.b16 %v625, %v624
  %v742 = vpack.c.b16 %v627, %v626
  %v743 = vpack.c.b16 %v629, %v628
  %v744 = vpack.c.b16 %v631, %v630
  %v745 = vpack.c.b16 %v633, %v632
  %v746 = vpack.c.b16 %v635, %v634
  %v747 = vpack.c.b16 %v637, %v636
  %v748 = vpack.c.b16 %v639, %v638
  %v749 = vpack.c.b16 %v641, %v640
  %v750 = vpack.c.b16 %v643, %v642
  %v751 = vpack.c.b16 %v645, %v644
  %v752 = vpack.c.b16 %v647, %v646
  %v753 = vpack.c.b16 %v649, %v648
  %v754 = vpack.c.b16 %v651, %v650
  %v755 = vpack.c.b16 %v653, %v652
  %v756 = vpack.c.b16 %v655, %v654
  %v757 = vpack.c.b16 %v657, %v656
  %v758 = vpack.c.b16 %v659, %v658
  %v759 = vpack.c.b16 %v661, %v660
  %vm858 = vcmask 261120
  %v860 = vsel %vm858, %v257, 0
  %862 = vmatprep.subr.bf16.mxu0 0
  %863 = vmatpush1.bf16.msra.mxu0 %v669
  %864 = vmatprep.subr.bf16.mxu0 0
  %865 = vmatpush1.bf16.msra.mxu0 %v668
  %866 = vmatprep.subr.bf16.mxu0 0
  %867 = vmatpush1.bf16.msra.mxu0 %v667
  %868 = vmatprep.subr.bf16.mxu0 0
  %869 = vmatpush1.bf16.msra.mxu0 %v666
  %870 = vmatprep.subr.bf16.mxu0 0
  %871 = vmatpush1.bf16.msra.mxu0 %v665
  %872 = vmatprep.subr.bf16.mxu0 0
  %873 = vmatpush1.bf16.msra.mxu0 %v664
  %874 = vmatprep.subr.bf16.mxu0 0
  %875 = vmatpush1.bf16.msra.mxu0 %v663
  %876 = vmatprep.subr.bf16.mxu0 0
  %877 = vmatpush1.bf16.msra.mxu0 %v662
  %878 = vmatprep.subr.bf16.mxu0 0
  %879 = vmatpush2.bf16.msra.mxu0 %v677
  %880 = vmatprep.subr.bf16.mxu0 0
  %881 = vmatpush2.bf16.msra.mxu0 %v676
  %882 = vmatprep.subr.bf16.mxu0 0
  %883 = vmatpush2.bf16.msra.mxu0 %v675
  %884 = vmatprep.subr.bf16.mxu0 0
  %885 = vmatpush2.bf16.msra.mxu0 %v674
  %886 = vmatprep.subr.bf16.mxu0 0
  %887 = vmatpush2.bf16.msra.mxu0 %v673
  %888 = vmatprep.subr.bf16.mxu0 0
  %889 = vmatpush2.bf16.msra.mxu0 %v672
  %890 = vmatprep.subr.bf16.mxu0 0
  %891 = vmatpush2.bf16.msra.mxu0 %v671
  %892 = vmatprep.subr.bf16.mxu0 0
  %893 = vmatpush2.bf16.msra.mxu0 %v670
  %894 = vmatprep.mubr.bf16.mxu0 %v246
  %895 = vmatmul.mubr.bf16.gmra.mxu0 %v245
  %v896 = vpop.f32.mrf.mxu0
  %v897 = vadd.f32 %v223, %v896
  %v898 = vpop.f32.mrf.mxu0
  %v899 = vpop.f32.mrf.mxu0
  %v900 = vpop.f32.mrf.mxu0
  %901 = vdwg.mxu0
  %902 = vmatprep.subr.bf16.mxu0 0
  %903 = vmatpush1.bf16.msra.mxu0 %v685
  %904 = vmatprep.subr.bf16.mxu0 0
  %905 = vmatpush1.bf16.msra.mxu0 %v684
  %906 = vmatprep.subr.bf16.mxu0 0
  %907 = vmatpush1.bf16.msra.mxu0 %v683
  %908 = vmatprep.subr.bf16.mxu0 0
  %909 = vmatpush1.bf16.msra.mxu0 %v682
  %910 = vmatprep.subr.bf16.mxu0 0
  %911 = vmatpush1.bf16.msra.mxu0 %v681
  %912 = vmatprep.subr.bf16.mxu0 0
  %913 = vmatpush1.bf16.msra.mxu0 %v680
  %914 = vmatprep.subr.bf16.mxu0 0
  %915 = vmatpush1.bf16.msra.mxu0 %v679
  %916 = vmatprep.subr.bf16.mxu0 0
  %917 = vmatpush1.bf16.msra.mxu0 %v678
  %918 = vmatprep.subr.bf16.mxu0 0
  %919 = vmatpush2.bf16.msra.mxu0 %v693
  %920 = vmatprep.subr.bf16.mxu0 0
  %921 = vmatpush2.bf16.msra.mxu0 %v692
  %922 = vmatprep.subr.bf16.mxu0 0
  %923 = vmatpush2.bf16.msra.mxu0 %v691
  %924 = vmatprep.subr.bf16.mxu0 0
  %925 = vmatpush2.bf16.msra.mxu0 %v690
  %926 = vmatprep.subr.bf16.mxu0 0
  %927 = vmatpush2.bf16.msra.mxu0 %v689
  %928 = vmatprep.subr.bf16.mxu0 0
  %929 = vmatpush2.bf16.msra.mxu0 %v688
  %930 = vmatprep.subr.bf16.mxu0 0
  %931 = vmatpush2.bf16.msra.mxu0 %v687
  %932 = vmatprep.subr.bf16.mxu0 0
  %933 = vmatpush2.bf16.msra.mxu0 %v686
  %934 = vmatprep.mubr.bf16.mxu0 %v248
  %935 = vmatmul.mubr.bf16.gmra.mxu0 %v247
  %v936 = vpop.f32.mrf.mxu0
  %v937 = vadd.f32 %v897, %v936
  %v938 = vpop.f32.mrf.mxu0
  %v939 = vpop.f32.mrf.mxu0
  %v940 = vpop.f32.mrf.mxu0
  %941 = vdwg.mxu0
  %942 = vmatprep.subr.bf16.mxu0 0
  %943 = vmatpush1.bf16.msra.mxu0 %v701
  %944 = vmatprep.subr.bf16.mxu0 0
  %945 = vmatpush1.bf16.msra.mxu0 %v700
  %946 = vmatprep.subr.bf16.mxu0 0
  %947 = vmatpush1.bf16.msra.mxu0 %v699
  %948 = vmatprep.subr.bf16.mxu0 0
  %949 = vmatpush1.bf16.msra.mxu0 %v698
  %950 = vmatprep.subr.bf16.mxu0 0
  %951 = vmatpush1.bf16.msra.mxu0 %v697
  %952 = vmatprep.subr.bf16.mxu0 0
  %953 = vmatpush1.bf16.msra.mxu0 %v696
  %954 = vmatprep.subr.bf16.mxu0 0
  %955 = vmatpush1.bf16.msra.mxu0 %v695
  %956 = vmatprep.subr.bf16.mxu0 0
  %957 = vmatpush1.bf16.msra.mxu0 %v694
  %958 = vmatprep.subr.bf16.mxu0 0
  %959 = vmatpush2.bf16.msra.mxu0 %v709
  %960 = vmatprep.subr.bf16.mxu0 0
  %961 = vmatpush2.bf16.msra.mxu0 %v708
  %962 = vmatprep.subr.bf16.mxu0 0
  %963 = vmatpush2.bf16.msra.mxu0 %v707
  %964 = vmatprep.subr.bf16.mxu0 0
  %965 = vmatpush2.bf16.msra.mxu0 %v706
  %966 = vmatprep.subr.bf16.mxu0 0
  %967 = vmatpush2.bf16.msra.mxu0 %v705
  %968 = vmatprep.subr.bf16.mxu0 0
  %969 = vmatpush2.bf16.msra.mxu0 %v704
  %970 = vmatprep.subr.bf16.mxu0 0
  %971 = vmatpush2.bf16.msra.mxu0 %v703
  %972 = vmatprep.subr.bf16.mxu0 0
  %973 = vmatpush2.bf16.msra.mxu0 %v702
  %974 = vmatprep.mubr.bf16.mxu0 %v250
  %975 = vmatmul.mubr.bf16.gmra.mxu0 %v249
  %v976 = vpop.f32.mrf.mxu0
  %v977 = vadd.f32 %v937, %v976
  %v978 = vpop.f32.mrf.mxu0
  %v979 = vpop.f32.mrf.mxu0
  %v980 = vpop.f32.mrf.mxu0
  %981 = vdwg.mxu0
  %982 = vmatprep.subr.bf16.mxu0 0
  %983 = vmatpush1.bf16.msra.mxu0 %v717
  %984 = vmatprep.subr.bf16.mxu0 0
  %985 = vmatpush1.bf16.msra.mxu0 %v716
  %986 = vmatprep.subr.bf16.mxu0 0
  %987 = vmatpush1.bf16.msra.mxu0 %v715
  %988 = vmatprep.subr.bf16.mxu0 0
  %989 = vmatpush1.bf16.msra.mxu0 %v714
  %990 = vmatprep.subr.bf16.mxu0 0
  %991 = vmatpush1.bf16.msra.mxu0 %v713
  %992 = vmatprep.subr.bf16.mxu0 0
  %993 = vmatpush1.bf16.msra.mxu0 %v712
  %994 = vmatprep.subr.bf16.mxu0 0
  %995 = vmatpush1.bf16.msra.mxu0 %v711
  %996 = vmatprep.subr.bf16.mxu0 0
  %997 = vmatpush1.bf16.msra.mxu0 %v710
  %998 = vmatprep.subr.bf16.mxu0 0
  %999 = vmatpush2.bf16.msra.mxu0 %v725
  %1000 = vmatprep.subr.bf16.mxu0 0
  %1001 = vmatpush2.bf16.msra.mxu0 %v724
  %1002 = vmatprep.subr.bf16.mxu0 0
  %1003 = vmatpush2.bf16.msra.mxu0 %v723
  %1004 = vmatprep.subr.bf16.mxu0 0
  %1005 = vmatpush2.bf16.msra.mxu0 %v722
  %1006 = vmatprep.subr.bf16.mxu0 0
  %1007 = vmatpush2.bf16.msra.mxu0 %v721
  %1008 = vmatprep.subr.bf16.mxu0 0
  %1009 = vmatpush2.bf16.msra.mxu0 %v720
  %1010 = vmatprep.subr.bf16.mxu0 0
  %1011 = vmatpush2.bf16.msra.mxu0 %v719
  %1012 = vmatprep.subr.bf16.mxu0 0
  %1013 = vmatpush2.bf16.msra.mxu0 %v718
  %1014 = vmatprep.mubr.bf16.mxu0 %v252
  %1015 = vmatmul.mubr.bf16.gmra.mxu0 %v251
  %v1016 = vpop.f32.mrf.mxu0
  %v1017 = vadd.f32 %v977, %v1016
  %v1018 = vpop.f32.mrf.mxu0
  %v1019 = vpop.f32.mrf.mxu0
  %v1020 = vpop.f32.mrf.mxu0
  %1021 = vdwg.mxu0
  %1022 = vmatprep.subr.bf16.mxu0 0
  %1023 = vmatpush1.bf16.msra.mxu0 %v733
  %1024 = vmatprep.subr.bf16.mxu0 0
  %1025 = vmatpush1.bf16.msra.mxu0 %v732
  %1026 = vmatprep.subr.bf16.mxu0 0
  %1027 = vmatpush1.bf16.msra.mxu0 %v731
  %1028 = vmatprep.subr.bf16.mxu0 0
  %1029 = vmatpush1.bf16.msra.mxu0 %v730
  %1030 = vmatprep.subr.bf16.mxu0 0
  %1031 = vmatpush1.bf16.msra.mxu0 %v729
  %1032 = vmatprep.subr.bf16.mxu0 0
  %1033 = vmatpush1.bf16.msra.mxu0 %v728
  %1034 = vmatprep.subr.bf16.mxu0 0
  %1035 = vmatpush1.bf16.msra.mxu0 %v727
  %1036 = vmatprep.subr.bf16.mxu0 0
  %1037 = vmatpush1.bf16.msra.mxu0 %v726
  %1038 = vmatprep.subr.bf16.mxu0 0
  %1039 = vmatpush2.bf16.msra.mxu0 %v741
  %1040 = vmatprep.subr.bf16.mxu0 0
  %1041 = vmatpush2.bf16.msra.mxu0 %v740
  %1042 = vmatprep.subr.bf16.mxu0 0
  %1043 = vmatpush2.bf16.msra.mxu0 %v739
  %1044 = vmatprep.subr.bf16.mxu0 0
  %1045 = vmatpush2.bf16.msra.mxu0 %v738
  %1046 = vmatprep.subr.bf16.mxu0 0
  %1047 = vmatpush2.bf16.msra.mxu0 %v737
  %1048 = vmatprep.subr.bf16.mxu0 0
  %1049 = vmatpush2.bf16.msra.mxu0 %v736
  %1050 = vmatprep.subr.bf16.mxu0 0
  %1051 = vmatpush2.bf16.msra.mxu0 %v735
  %1052 = vmatprep.subr.bf16.mxu0 0
  %1053 = vmatpush2.bf16.msra.mxu0 %v734
  %1054 = vmatprep.mubr.bf16.mxu0 %v254
  %1055 = vmatmul.mubr.bf16.gmra.mxu0 %v253
  %v1056 = vpop.f32.mrf.mxu0
  %v1057 = vadd.f32 %v1017, %v1056
  %v1058 = vpop.f32.mrf.mxu0
  %v1059 = vpop.f32.mrf.mxu0
  %v1060 = vpop.f32.mrf.mxu0
  %1061 = vdwg.mxu0
  %1062 = vmatprep.subr.bf16.mxu0 0
  %1063 = vmatpush1.bf16.msra.mxu0 %v749
  %1064 = vmatprep.subr.bf16.mxu0 0
  %1065 = vmatpush1.bf16.msra.mxu0 %v748
  %1066 = vmatprep.subr.bf16.mxu0 0
  %1067 = vmatpush1.bf16.msra.mxu0 %v747
  %1068 = vmatprep.subr.bf16.mxu0 0
  %1069 = vmatpush1.bf16.msra.mxu0 %v746
  %1070 = vmatprep.subr.bf16.mxu0 0
  %1071 = vmatpush1.bf16.msra.mxu0 %v745
  %1072 = vmatprep.subr.bf16.mxu0 0
  %1073 = vmatpush1.bf16.msra.mxu0 %v744
  %1074 = vmatprep.subr.bf16.mxu0 0
  %1075 = vmatpush1.bf16.msra.mxu0 %v743
  %1076 = vmatprep.subr.bf16.mxu0 0
  %1077 = vmatpush1.bf16.msra.mxu0 %v742
  %1078 = vmatprep.subr.bf16.mxu0 0
  %1079 = vmatpush2.bf16.msra.mxu0 %v757
  %1080 = vmatprep.subr.bf16.mxu0 0
  %1081 = vmatpush2.bf16.msra.mxu0 %v756
  %1082 = vmatprep.subr.bf16.mxu0 0
  %1083 = vmatpush2.bf16.msra.mxu0 %v755
  %1084 = vmatprep.subr.bf16.mxu0 0
  %1085 = vmatpush2.bf16.msra.mxu0 %v754
  %1086 = vmatprep.subr.bf16.mxu0 0
  %1087 = vmatpush2.bf16.msra.mxu0 %v753
  %1088 = vmatprep.subr.bf16.mxu0 0
  %1089 = vmatpush2.bf16.msra.mxu0 %v752
  %1090 = vmatprep.subr.bf16.mxu0 0
  %1091 = vmatpush2.bf16.msra.mxu0 %v751
  %1092 = vmatprep.subr.bf16.mxu0 0
  %1093 = vmatpush2.bf16.msra.mxu0 %v750
  %1094 = vmatprep.mubr.bf16.mxu0 %v256
  %1095 = vmatmul.mubr.bf16.gmra.mxu0 %v255
  %v1096 = vpop.f32.mrf.mxu0
  %v1097 = vadd.f32 %v1057, %v1096
  %v1098 = vpop.f32.mrf.mxu0
  %v1099 = vpop.f32.mrf.mxu0
  %v1100 = vpop.f32.mrf.mxu0
  %1101 = vdwg.mxu0
  %1102 = vmatprep.subr.bf16.mxu0 0
  %1103 = vmatpush1.bf16.msra.mxu0 0
  %1104 = vmatprep.subr.bf16.mxu0 0
  %1105 = vmatpush1.bf16.msra.mxu0 0
  %1106 = vmatprep.subr.bf16.mxu0 0
  %1107 = vmatpush1.bf16.msra.mxu0 0
  %1108 = vmatprep.subr.bf16.mxu0 0
  %1109 = vmatpush1.bf16.msra.mxu0 0
  %1110 = vmatprep.subr.bf16.mxu0 0
  %1111 = vmatpush1.bf16.msra.mxu0 0
  %1112 = vmatprep.subr.bf16.mxu0 0
  %1113 = vmatpush1.bf16.msra.mxu0 0
  %1114 = vmatprep.subr.bf16.mxu0 0
  %1115 = vmatpush1.bf16.msra.mxu0 %v759
  %1116 = vmatprep.subr.bf16.mxu0 0
  %1117 = vmatpush1.bf16.msra.mxu0 %v758
  %1118 = vmatprep.subr.bf16.mxu0 0
  %1119 = vmatpush2.bf16.msra.mxu0 0
  %1120 = vmatprep.subr.bf16.mxu0 0
  %1121 = vmatpush2.bf16.msra.mxu0 0
  %1122 = vmatprep.subr.bf16.mxu0 0
  %1123 = vmatpush2.bf16.msra.mxu0 0
  %1124 = vmatprep.subr.bf16.mxu0 0
  %1125 = vmatpush2.bf16.msra.mxu0 0
  %1126 = vmatprep.subr.bf16.mxu0 0
  %1127 = vmatpush2.bf16.msra.mxu0 0
  %1128 = vmatprep.subr.bf16.mxu0 0
  %1129 = vmatpush2.bf16.msra.mxu0 0
  %1130 = vmatprep.subr.bf16.mxu0 0
  %1131 = vmatpush2.bf16.msra.mxu0 0
  %1132 = vmatprep.subr.bf16.mxu0 0
  %1133 = vmatpush2.bf16.msra.mxu0 0
  %1134 = vmatprep.mubr.bf16.mxu0 0
  %1135 = vmatmul.mubr.bf16.gmra.mxu0 %v860
  %v1136 = vpop.f32.mrf.mxu0
  %v1137 = vadd.f32 %v1097, %v1136
  %v1138 = vpop.f32.mrf.mxu0
  %v1139 = vpop.f32.mrf.mxu0
  %v1140 = vpop.f32.mrf.mxu0
  %1141 = vdwg.mxu0
  %vm1142 = vcmask 522240
  %1143 = vst.msk [vmem:[%s3] sm:$0x7f] %vm1142, %v1137
  // Predicated region
  $region14: #{fwd.8} parent=0 // pred_check
    _
  $region15: #{fwd.8} parent=0 // pred_check_branch
    %1145 = sbr.rel (0) target = $region17
  $region16: #{fwd.8} parent=0 // pred_region
    _
  $region17: #{fwd.8} parent=0 // pred_fallthru
    _
  // Predicated region
  $region18: #{fwd.8} parent=0 // pred_check
    _
  $region19: #{fwd.8} parent=0 // pred_check_branch
    %1147 = sbr.rel (0) target = $region21
  $region20: #{fwd.8} parent=0 // pred_region
    _
  $region21: #{fwd.8} parent=0 // pred_fallthru
    _

// kernel: fwd.11
$region0: #{fwd.11}
  #allocation0 [shape = 'u32[]', space=smem, size = 0x4, offset = 0x4, fixed_abs, tag = 'smem constant byte address 0x4 - core index']
  #allocation1 [shape = 'u32[144,128]{1,0:T(1,128)}', space=vmem, size = 0x12000, scoped, tag = 'internal scratch']
  %s0 = inlined_call_operand.vmem [shape: f32[7,256], index: 0, kind: input, shape index: {}]
  %s1 = inlined_call_operand.vmem [shape: bf16[256,26], index: 1, kind: input, shape index: {}]
  %s2 = inlined_call_operand.vmem [shape: f32[1,26], index: 2, kind: input, shape index: {}]
  %s3 = inlined_call_operand.vmem [shape: bf16[256,128], index: 3, kind: input, shape index: {}]
  %s4 = inlined_call_operand.vmem [shape: f32[1,128], index: 4, kind: input, shape index: {}]
  %s5 = inlined_call_operand.vmem [shape: bf16[128,128], index: 5, kind: input, shape index: {}]
  %s6 = inlined_call_operand.vmem [shape: f32[1,128], index: 6, kind: input, shape index: {}]
  %s7 = inlined_call_operand.vmem [shape: bf16[128,4], index: 7, kind: input, shape index: {}]
  %s8 = inlined_call_operand.vmem [shape: f32[1,4], index: 8, kind: input, shape index: {}]
  %s9 = inlined_call_operand.vmem [shape: f32[7,26], index: 9, kind: output, shape index: {0}]
  %s10 = inlined_call_operand.vmem [shape: f32[7,4], index: 10, kind: output, shape index: {1}]
  %11 = xla_tuple %s9, %s10
  %s12 = sld [smem:[#allocation0]]
  $region54: #{fwd.11} parent=0
    _
  %s14 = ssub.s32 1, %s12
  %s15 = scalar_select 0, %s14, %s12
  // Predicated region
  $region2: #{fwd.11} parent=0 // pred_check
    _
  $region3: #{fwd.11} parent=0 // pred_check_branch
    %17 = sbr.rel (0) target = $region5
  $region4: #{fwd.11} parent=0 // pred_region
    _
  $region5: #{fwd.11} parent=0 // pred_fallthru
    _
  // Predicated region
  $region6: #{fwd.11} parent=0 // pred_check
    _
  $region7: #{fwd.11} parent=0 // pred_check_branch
    %19 = sbr.rel (0) target = $region9
  $region8: #{fwd.11} parent=0 // pred_region
    _
  $region9: #{fwd.11} parent=0 // pred_fallthru
    _
  // Predicated region
  $region10: #{fwd.11} parent=0 // pred_check
    _
  $region11: #{fwd.11} parent=0 // pred_check_branch
    %21 = sbr.rel (0) target = $region13
  $region12: #{fwd.11} parent=0 // pred_region
    _
  $region13: #{fwd.11} parent=0 // pred_fallthru
    _
  // Predicated region
  $region14: #{fwd.11} parent=0 // pred_check
    _
  $region15: #{fwd.11} parent=0 // pred_check_branch
    %23 = sbr.rel (0) target = $region17
  $region16: #{fwd.11} parent=0 // pred_region
    _
  $region17: #{fwd.11} parent=0 // pred_fallthru
    _
  // Predicated region
  $region18: #{fwd.11} parent=0 // pred_check
    _
  $region19: #{fwd.11} parent=0 // pred_check_branch
    %25 = sbr.rel (0) target = $region21
  $region20: #{fwd.11} parent=0 // pred_region
    _
  $region21: #{fwd.11} parent=0 // pred_fallthru
    _
  // Predicated region
  $region22: #{fwd.11} parent=0 // pred_check
    _
  $region23: #{fwd.11} parent=0 // pred_check_branch
    %27 = sbr.rel (0) target = $region25
  $region24: #{fwd.11} parent=0 // pred_region
    _
  $region25: #{fwd.11} parent=0 // pred_fallthru
    _
  // Predicated region
  $region26: #{fwd.11} parent=0 // pred_check
    _
  $region27: #{fwd.11} parent=0 // pred_check_branch
    %29 = sbr.rel (0) target = $region29
  $region28: #{fwd.11} parent=0 // pred_region
    _
  $region29: #{fwd.11} parent=0 // pred_fallthru
    _
  // Predicated region
  $region30: #{fwd.11} parent=0 // pred_check
    _
  $region31: #{fwd.11} parent=0 // pred_check_branch
    %31 = sbr.rel (0) target = $region33
  $region32: #{fwd.11} parent=0 // pred_region
    _
  $region33: #{fwd.11} parent=0 // pred_fallthru
    _
  // Predicated region
  $region34: #{fwd.11} parent=0 // pred_check
    _
  $region35: #{fwd.11} parent=0 // pred_check_branch
    %33 = sbr.rel (0) target = $region37
  $region36: #{fwd.11} parent=0 // pred_region
    _
  $region37: #{fwd.11} parent=0 // pred_fallthru
    _
  %v35 = vld [vmem:[%s0] sm:$0x7f]
  %v36 = vld [vmem:[%s0 + $0x8] sm:$0x7f]
  %v37 = vpack.c.bf16 %v35, %v35
  %v38 = vpack.c.bf16 %v36, %v36
  %v39 = vld [vmem:[%s1] sm:$0xf]
  %v40 = vld [vmem:[%s1 + $0x4] sm:$0xf]
  %v41 = vld [vmem:[%s1 + $0x8] sm:$0xf]
  %v42 = vld [vmem:[%s1 + $0xc] sm:$0xf]
  %v43 = vld [vmem:[%s1 + $0x10] sm:$0xf]
  %v44 = vld [vmem:[%s1 + $0x14] sm:$0xf]
  %v45 = vld [vmem:[%s1 + $0x18] sm:$0xf]
  %v46 = vld [vmem:[%s1 + $0x1c] sm:$0xf]
  %v47 = vld [vmem:[%s1 + $0x20] sm:$0xf]
  %v48 = vld [vmem:[%s1 + $0x24] sm:$0xf]
  %v49 = vld [vmem:[%s1 + $0x28] sm:$0xf]
  %v50 = vld [vmem:[%s1 + $0x2c] sm:$0xf]
  %v51 = vld [vmem:[%s1 + $0x30] sm:$0xf]
  %v52 = vld [vmem:[%s1 + $0x34] sm:$0xf]
  %v53 = vld [vmem:[%s1 + $0x38] sm:$0xf]
  %v54 = vld [vmem:[%s1 + $0x3c] sm:$0xf]
  %v55 = vld [vmem:[%s1 + $0x40] sm:$0xf]
  %v56 = vld [vmem:[%s1 + $0x44] sm:$0xf]
  %v57 = vld [vmem:[%s1 + $0x48] sm:$0xf]
  %v58 = vld [vmem:[%s1 + $0x4c] sm:$0xf]
  %v59 = vld [vmem:[%s1 + $0x50] sm:$0xf]
  %v60 = vld [vmem:[%s1 + $0x54] sm:$0xf]
  %v61 = vld [vmem:[%s1 + $0x58] sm:$0xf]
  %v62 = vld [vmem:[%s1 + $0x5c] sm:$0xf]
  %v63 = vld [vmem:[%s1 + $0x60] sm:$0xf]
  %v64 = vld [vmem:[%s1 + $0x64] sm:$0xf]
  %v65 = vld [vmem:[%s1 + $0x68] sm:$0xf]
  %v66 = vld [vmem:[%s1 + $0x6c] sm:$0xf]
  %v67 = vld [vmem:[%s1 + $0x70] sm:$0xf]
  %v68 = vld [vmem:[%s1 + $0x74] sm:$0xf]
  %v69 = vld [vmem:[%s1 + $0x78] sm:$0xf]
  %v70 = vld [vmem:[%s1 + $0x7c] sm:$0xf]
  %v71 = vld [vmem:[%s2] sm:$0x1]
  %v73 = vlaneseq
  %v74 = vshrl.u32 %v73, 7
  %v75 = vsub.s32 0, %v74
  %v76 = vrot.slane %v71, %v75
  %v110 = vunpack.c.l.b16 %v39
  %v111 = vunpack.c.l.b16 %v40
  %v112 = vunpack.c.l.b16 %v41
  %v113 = vunpack.c.l.b16 %v42
  %v114 = vunpack.c.l.b16 %v43
  %v115 = vunpack.c.l.b16 %v44
  %v116 = vunpack.c.l.b16 %v45
  %v117 = vunpack.c.l.b16 %v46
  %v118 = vunpack.c.l.b16 %v47
  %v119 = vunpack.c.l.b16 %v48
  %v120 = vunpack.c.l.b16 %v49
  %v121 = vunpack.c.l.b16 %v50
  %v122 = vunpack.c.l.b16 %v51
  %v123 = vunpack.c.l.b16 %v52
  %v124 = vunpack.c.l.b16 %v53
  %v125 = vunpack.c.l.b16 %v54
  %v126 = vunpack.c.l.b16 %v55
  %v127 = vunpack.c.l.b16 %v56
  %v128 = vunpack.c.l.b16 %v57
  %v129 = vunpack.c.l.b16 %v58
  %v130 = vunpack.c.l.b16 %v59
  %v131 = vunpack.c.l.b16 %v60
  %v132 = vunpack.c.l.b16 %v61
  %v133 = vunpack.c.l.b16 %v62
  %v134 = vunpack.c.l.b16 %v63
  %v135 = vunpack.c.l.b16 %v64
  %v136 = vunpack.c.l.b16 %v65
  %v137 = vunpack.c.l.b16 %v66
  %v138 = vunpack.c.l.b16 %v67
  %v139 = vunpack.c.l.b16 %v68
  %v140 = vunpack.c.l.b16 %v69
  %v141 = vunpack.c.l.b16 %v70
  %v142 = vpack.c.b16 %v111, %v110
  %v143 = vpack.c.b16 %v113, %v112
  %v144 = vpack.c.b16 %v115, %v114
  %v145 = vpack.c.b16 %v117, %v116
  %v146 = vpack.c.b16 %v119, %v118
  %v147 = vpack.c.b16 %v121, %v120
  %v148 = vpack.c.b16 %v123, %v122
  %v149 = vpack.c.b16 %v125, %v124
  %v150 = vpack.c.b16 %v127, %v126
  %v151 = vpack.c.b16 %v129, %v128
  %v152 = vpack.c.b16 %v131, %v130
  %v153 = vpack.c.b16 %v133, %v132
  %v154 = vpack.c.b16 %v135, %v134
  %v155 = vpack.c.b16 %v137, %v136
  %v156 = vpack.c.b16 %v139, %v138
  %v157 = vpack.c.b16 %v141, %v140
  %174 = vmatprep.subr.bf16.mxu0 0
  %175 = vmatpush1.bf16.msra.mxu0 %v149
  %176 = vmatprep.subr.bf16.mxu0 0
  %177 = vmatpush1.bf16.msra.mxu0 %v148
  %178 = vmatprep.subr.bf16.mxu0 0
  %179 = vmatpush1.bf16.msra.mxu0 %v147
  %180 = vmatprep.subr.bf16.mxu0 0
  %181 = vmatpush1.bf16.msra.mxu0 %v146
  %182 = vmatprep.subr.bf16.mxu0 0
  %183 = vmatpush1.bf16.msra.mxu0 %v145
  %184 = vmatprep.subr.bf16.mxu0 0
  %185 = vmatpush1.bf16.msra.mxu0 %v144
  %186 = vmatprep.subr.bf16.mxu0 0
  %187 = vmatpush1.bf16.msra.mxu0 %v143
  %188 = vmatprep.subr.bf16.mxu0 0
  %189 = vmatpush1.bf16.msra.mxu0 %v142
  %190 = vmatprep.subr.bf16.mxu0 0
  %191 = vmatpush2.bf16.msra.mxu0 %v157
  %192 = vmatprep.subr.bf16.mxu0 0
  %193 = vmatpush2.bf16.msra.mxu0 %v156
  %194 = vmatprep.subr.bf16.mxu0 0
  %195 = vmatpush2.bf16.msra.mxu0 %v155
  %196 = vmatprep.subr.bf16.mxu0 0
  %197 = vmatpush2.bf16.msra.mxu0 %v154
  %198 = vmatprep.subr.bf16.mxu0 0
  %199 = vmatpush2.bf16.msra.mxu0 %v153
  %200 = vmatprep.subr.bf16.mxu0 0
  %201 = vmatpush2.bf16.msra.mxu0 %v152
  %202 = vmatprep.subr.bf16.mxu0 0
  %203 = vmatpush2.bf16.msra.mxu0 %v151
  %204 = vmatprep.subr.bf16.mxu0 0
  %205 = vmatpush2.bf16.msra.mxu0 %v150
  %206 = vmatprep.mubr.bf16.mxu0 %v38
  %207 = vmatmul.mubr.bf16.gmra.mxu0 %v37
  %v208 = vpop.f32.mrf.mxu0
  %v209 = vadd.f32 %v76, %v208
  %v210 = vpop.f32.mrf.mxu0
  %v211 = vpop.f32.mrf.mxu0
  %v212 = vpop.f32.mrf.mxu0
  %213 = vdwg.mxu0
  %vm214 = vcmask 210944
  %215 = vst.msk [vmem:[%s9] sm:$0x7f] %vm214, %v209
  %v216 = vld [vmem:[%s3] sm:$0xf]
  %v217 = vld [vmem:[%s3 + $0x4] sm:$0xf]
  %v218 = vld [vmem:[%s3 + $0x8] sm:$0xf]
  %v219 = vld [vmem:[%s3 + $0xc] sm:$0xf]
  %v220 = vld [vmem:[%s3 + $0x10] sm:$0xf]
  %v221 = vld [vmem:[%s3 + $0x14] sm:$0xf]
  %v222 = vld [vmem:[%s3 + $0x18] sm:$0xf]
  %v223 = vld [vmem:[%s3 + $0x1c] sm:$0xf]
  %v224 = vld [vmem:[%s3 + $0x20] sm:$0xf]
  %v225 = vld [vmem:[%s3 + $0x24] sm:$0xf]
  %v226 = vld [vmem:[%s3 + $0x28] sm:$0xf]
  %v227 = vld [vmem:[%s3 + $0x2c] sm:$0xf]
  %v228 = vld [vmem:[%s3 + $0x30] sm:$0xf]
  %v229 = vld [vmem:[%s3 + $0x34] sm:$0xf]
  %v230 = vld [vmem:[%s3 + $0x38] sm:$0xf]
  %v231 = vld [vmem:[%s3 + $0x3c] sm:$0xf]
  %v232 = vld [vmem:[%s3 + $0x40] sm:$0xf]
  %v233 = vld [vmem:[%s3 + $0x44] sm:$0xf]
  %v234 = vld [vmem:[%s3 + $0x48] sm:$0xf]
  %v235 = vld [vmem:[%s3 + $0x4c] sm:$0xf]
  %v236 = vld [vmem:[%s3 + $0x50] sm:$0xf]
  %v237 = vld [vmem:[%s3 + $0x54] sm:$0xf]
  %v238 = vld [vmem:[%s3 + $0x58] sm:$0xf]
  %v239 = vld [vmem:[%s3 + $0x5c] sm:$0xf]
  %v240 = vld [vmem:[%s3 + $0x60] sm:$0xf]
  %v241 = vld [vmem:[%s3 + $0x64] sm:$0xf]
  %v242 = vld [vmem:[%s3 + $0x68] sm:$0xf]
  %v243 = vld [vmem:[%s3 + $0x6c] sm:$0xf]
  %v244 = vld [vmem:[%s3 + $0x70] sm:$0xf]
  %v245 = vld [vmem:[%s3 + $0x74] sm:$0xf]
  %v246 = vld [vmem:[%s3 + $0x78] sm:$0xf]
  %v247 = vld [vmem:[%s3 + $0x7c] sm:$0xf]
  %v248 = vld [vmem:[%s4] sm:$0x1]
  %v250 = vlaneseq
  %v251 = vshrl.u32 %v250, 7
  %v252 = vsub.s32 0, %v251
  %v253 = vrot.slane %v248, %v252
  %v287 = vunpack.c.l.b16 %v216
  %v288 = vunpack.c.l.b16 %v217
  %v289 = vunpack.c.l.b16 %v218
  %v290 = vunpack.c.l.b16 %v219
  %v291 = vunpack.c.l.b16 %v220
  %v292 = vunpack.c.l.b16 %v221
  %v293 = vunpack.c.l.b16 %v222
  %v294 = vunpack.c.l.b16 %v223
  %v295 = vunpack.c.l.b16 %v224
  %v296 = vunpack.c.l.b16 %v225
  %v297 = vunpack.c.l.b16 %v226
  %v298 = vunpack.c.l.b16 %v227
  %v299 = vunpack.c.l.b16 %v228
  %v300 = vunpack.c.l.b16 %v229
  %v301 = vunpack.c.l.b16 %v230
  %v302 = vunpack.c.l.b16 %v231
  %v303 = vunpack.c.l.b16 %v232
  %v304 = vunpack.c.l.b16 %v233
  %v305 = vunpack.c.l.b16 %v234
  %v306 = vunpack.c.l.b16 %v235
  %v307 = vunpack.c.l.b16 %v236
  %v308 = vunpack.c.l.b16 %v237
  %v309 = vunpack.c.l.b16 %v238
  %v310 = vunpack.c.l.b16 %v239
  %v311 = vunpack.c.l.b16 %v240
  %v312 = vunpack.c.l.b16 %v241
  %v313 = vunpack.c.l.b16 %v242
  %v314 = vunpack.c.l.b16 %v243
  %v315 = vunpack.c.l.b16 %v244
  %v316 = vunpack.c.l.b16 %v245
  %v317 = vunpack.c.l.b16 %v246
  %v318 = vunpack.c.l.b16 %v247
  %v319 = vpack.c.b16 %v288, %v287
  %v320 = vpack.c.b16 %v290, %v289
  %v321 = vpack.c.b16 %v292, %v291
  %v322 = vpack.c.b16 %v294, %v293
  %v323 = vpack.c.b16 %v296, %v295
  %v324 = vpack.c.b16 %v298, %v297
  %v325 = vpack.c.b16 %v300, %v299
  %v326 = vpack.c.b16 %v302, %v301
  %v327 = vpack.c.b16 %v304, %v303
  %v328 = vpack.c.b16 %v306, %v305
  %v329 = vpack.c.b16 %v308, %v307
  %v330 = vpack.c.b16 %v310, %v309
  %v331 = vpack.c.b16 %v312, %v311
  %v332 = vpack.c.b16 %v314, %v313
  %v333 = vpack.c.b16 %v316, %v315
  %v334 = vpack.c.b16 %v318, %v317
  %351 = vmatprep.subr.bf16.mxu0 0
  %352 = vmatpush1.bf16.msra.mxu0 %v326
  %353 = vmatprep.subr.bf16.mxu0 0
  %354 = vmatpush1.bf16.msra.mxu0 %v325
  %355 = vmatprep.subr.bf16.mxu0 0
  %356 = vmatpush1.bf16.msra.mxu0 %v324
  %357 = vmatprep.subr.bf16.mxu0 0
  %358 = vmatpush1.bf16.msra.mxu0 %v323
  %359 = vmatprep.subr.bf16.mxu0 0
  %360 = vmatpush1.bf16.msra.mxu0 %v322
  %361 = vmatprep.subr.bf16.mxu0 0
  %362 = vmatpush1.bf16.msra.mxu0 %v321
  %363 = vmatprep.subr.bf16.mxu0 0
  %364 = vmatpush1.bf16.msra.mxu0 %v320
  %365 = vmatprep.subr.bf16.mxu0 0
  %366 = vmatpush1.bf16.msra.mxu0 %v319
  %367 = vmatprep.subr.bf16.mxu0 0
  %368 = vmatpush2.bf16.msra.mxu0 %v334
  %369 = vmatprep.subr.bf16.mxu0 0
  %370 = vmatpush2.bf16.msra.mxu0 %v333
  %371 = vmatprep.subr.bf16.mxu0 0
  %372 = vmatpush2.bf16.msra.mxu0 %v332
  %373 = vmatprep.subr.bf16.mxu0 0
  %374 = vmatpush2.bf16.msra.mxu0 %v331
  %375 = vmatprep.subr.bf16.mxu0 0
  %376 = vmatpush2.bf16.msra.mxu0 %v330
  %377 = vmatprep.subr.bf16.mxu0 0
  %378 = vmatpush2.bf16.msra.mxu0 %v329
  %379 = vmatprep.subr.bf16.mxu0 0
  %380 = vmatpush2.bf16.msra.mxu0 %v328
  %381 = vmatprep.subr.bf16.mxu0 0
  %382 = vmatpush2.bf16.msra.mxu0 %v327
  %383 = vmatprep.mubr.bf16.mxu0 %v38
  %384 = vmatmul.mubr.bf16.gmra.mxu0 %v37
  %v385 = vpop.f32.mrf.mxu0
  %v386 = vadd.f32 %v253, %v385
  %v387 = vpop.f32.mrf.mxu0
  %v388 = vpop.f32.mrf.mxu0
  %v389 = vpop.f32.mrf.mxu0
  %390 = vdwg.mxu0
  %v391 = vmax.f32 %v386, 0.0
  %v392 = vpack.c.bf16 %v391, %v391
  %v393 = vld [vmem:[%s5] sm:$0xf]
  %v394 = vld [vmem:[%s5 + $0x4] sm:$0xf]
  %v395 = vld [vmem:[%s5 + $0x8] sm:$0xf]
  %v396 = vld [vmem:[%s5 + $0xc] sm:$0xf]
  %v397 = vld [vmem:[%s5 + $0x10] sm:$0xf]
  %v398 = vld [vmem:[%s5 + $0x14] sm:$0xf]
  %v399 = vld [vmem:[%s5 + $0x18] sm:$0xf]
  %v400 = vld [vmem:[%s5 + $0x1c] sm:$0xf]
  %v401 = vld [vmem:[%s5 + $0x20] sm:$0xf]
  %v402 = vld [vmem:[%s5 + $0x24] sm:$0xf]
  %v403 = vld [vmem:[%s5 + $0x28] sm:$0xf]
  %v404 = vld [vmem:[%s5 + $0x2c] sm:$0xf]
  %v405 = vld [vmem:[%s5 + $0x30] sm:$0xf]
  %v406 = vld [vmem:[%s5 + $0x34] sm:$0xf]
  %v407 = vld [vmem:[%s5 + $0x38] sm:$0xf]
  %v408 = vld [vmem:[%s5 + $0x3c] sm:$0xf]
  %v409 = vld [vmem:[%s6] sm:$0x1]
  %v411 = vlaneseq
  %v412 = vshrl.u32 %v411, 7
  %v413 = vsub.s32 0, %v412
  %v414 = vrot.slane %v409, %v413
  %v432 = vunpack.c.l.b16 %v393
  %v433 = vunpack.c.l.b16 %v394
  %v434 = vunpack.c.l.b16 %v395
  %v435 = vunpack.c.l.b16 %v396
  %v436 = vunpack.c.l.b16 %v397
  %v437 = vunpack.c.l.b16 %v398
  %v438 = vunpack.c.l.b16 %v399
  %v439 = vunpack.c.l.b16 %v400
  %v440 = vunpack.c.l.b16 %v401
  %v441 = vunpack.c.l.b16 %v402
  %v442 = vunpack.c.l.b16 %v403
  %v443 = vunpack.c.l.b16 %v404
  %v444 = vunpack.c.l.b16 %v405
  %v445 = vunpack.c.l.b16 %v406
  %v446 = vunpack.c.l.b16 %v407
  %v447 = vunpack.c.l.b16 %v408
  %v448 = vpack.c.b16 %v433, %v432
  %v449 = vpack.c.b16 %v435, %v434
  %v450 = vpack.c.b16 %v437, %v436
  %v451 = vpack.c.b16 %v439, %v438
  %v452 = vpack.c.b16 %v441, %v440
  %v453 = vpack.c.b16 %v443, %v442
  %v454 = vpack.c.b16 %v445, %v444
  %v455 = vpack.c.b16 %v447, %v446
  %464 = vmatprep.subr.bf16.mxu0 0
  %465 = vmatpush1.bf16.msra.mxu0 %v455
  %466 = vmatprep.subr.bf16.mxu0 0
  %467 = vmatpush1.bf16.msra.mxu0 %v454
  %468 = vmatprep.subr.bf16.mxu0 0
  %469 = vmatpush1.bf16.msra.mxu0 %v453
  %470 = vmatprep.subr.bf16.mxu0 0
  %471 = vmatpush1.bf16.msra.mxu0 %v452
  %472 = vmatprep.subr.bf16.mxu0 0
  %473 = vmatpush1.bf16.msra.mxu0 %v451
  %474 = vmatprep.subr.bf16.mxu0 0
  %475 = vmatpush1.bf16.msra.mxu0 %v450
  %476 = vmatprep.subr.bf16.mxu0 0
  %477 = vmatpush1.bf16.msra.mxu0 %v449
  %478 = vmatprep.subr.bf16.mxu0 0
  %479 = vmatpush1.bf16.msra.mxu0 %v448
  %480 = vmatprep.subr.bf16.mxu0 0
  %481 = vmatpush2.bf16.msra.mxu0 0
  %482 = vmatprep.subr.bf16.mxu0 0
  %483 = vmatpush2.bf16.msra.mxu0 0
  %484 = vmatprep.subr.bf16.mxu0 0
  %485 = vmatpush2.bf16.msra.mxu0 0
  %486 = vmatprep.subr.bf16.mxu0 0
  %487 = vmatpush2.bf16.msra.mxu0 0
  %488 = vmatprep.subr.bf16.mxu0 0
  %489 = vmatpush2.bf16.msra.mxu0 0
  %490 = vmatprep.subr.bf16.mxu0 0
  %491 = vmatpush2.bf16.msra.mxu0 0
  %492 = vmatprep.subr.bf16.mxu0 0
  %493 = vmatpush2.bf16.msra.mxu0 0
  %494 = vmatprep.subr.bf16.mxu0 0
  %495 = vmatpush2.bf16.msra.mxu0 0
  %496 = vmatprep.mubr.bf16.mxu0 0
  %497 = vmatmul.mubr.bf16.gmra.mxu0 %v392
  %v498 = vpop.f32.mrf.mxu0
  %v499 = vadd.f32 %v414, %v498
  %v500 = vpop.f32.mrf.mxu0
  %v501 = vpop.f32.mrf.mxu0
  %v502 = vpop.f32.mrf.mxu0
  %503 = vdwg.mxu0
  %v504 = vmax.f32 %v499, 0.0
  %v505 = vpack.c.bf16 %v504, %v504
  %v506 = vld [vmem:[%s7] sm:$0xf]
  %v507 = vld [vmem:[%s7 + $0x4] sm:$0xf]
  %v508 = vld [vmem:[%s7 + $0x8] sm:$0xf]
  %v509 = vld [vmem:[%s7 + $0xc] sm:$0xf]
  %v510 = vld [vmem:[%s7 + $0x10] sm:$0xf]
  %v511 = vld [vmem:[%s7 + $0x14] sm:$0xf]
  %v512 = vld [vmem:[%s7 + $0x18] sm:$0xf]
  %v513 = vld [vmem:[%s7 + $0x1c] sm:$0xf]
  %v514 = vld [vmem:[%s7 + $0x20] sm:$0xf]
  %v515 = vld [vmem:[%s7 + $0x24] sm:$0xf]
  %v516 = vld [vmem:[%s7 + $0x28] sm:$0xf]
  %v517 = vld [vmem:[%s7 + $0x2c] sm:$0xf]
  %v518 = vld [vmem:[%s7 + $0x30] sm:$0xf]
  %v519 = vld [vmem:[%s7 + $0x34] sm:$0xf]
  %v520 = vld [vmem:[%s7 + $0x38] sm:$0xf]
  %v521 = vld [vmem:[%s7 + $0x3c] sm:$0xf]
  %v522 = vld [vmem:[%s8] sm:$0x1]
  %v524 = vlaneseq
  %v525 = vshrl.u32 %v524, 7
  %v526 = vsub.s32 0, %v525
  %v527 = vrot.slane %v522, %v526
  %v545 = vunpack.c.l.b16 %v506
  %v546 = vunpack.c.l.b16 %v507
  %v547 = vunpack.c.l.b16 %v508
  %v548 = vunpack.c.l.b16 %v509
  %v549 = vunpack.c.l.b16 %v510
  %v550 = vunpack.c.l.b16 %v511
  %v551 = vunpack.c.l.b16 %v512
  %v552 = vunpack.c.l.b16 %v513
  %v553 = vunpack.c.l.b16 %v514
  %v554 = vunpack.c.l.b16 %v515
  %v555 = vunpack.c.l.b16 %v516
  %v556 = vunpack.c.l.b16 %v517
  %v557 = vunpack.c.l.b16 %v518
  %v558 = vunpack.c.l.b16 %v519
  %v559 = vunpack.c.l.b16 %v520
  %v560 = vunpack.c.l.b16 %v521
  %v561 = vpack.c.b16 %v546, %v545
  %v562 = vpack.c.b16 %v548, %v547
  %v563 = vpack.c.b16 %v550, %v549
  %v564 = vpack.c.b16 %v552, %v551
  %v565 = vpack.c.b16 %v554, %v553
  %v566 = vpack.c.b16 %v556, %v555
  %v567 = vpack.c.b16 %v558, %v557
  %v568 = vpack.c.b16 %v560, %v559
  %577 = vmatprep.subr.bf16.mxu0 0
  %578 = vmatpush1.bf16.msra.mxu0 %v568
  %579 = vmatprep.subr.bf16.mxu0 0
  %580 = vmatpush1.bf16.msra.mxu0 %v567
  %581 = vmatprep.subr.bf16.mxu0 0
  %582 = vmatpush1.bf16.msra.mxu0 %v566
  %583 = vmatprep.subr.bf16.mxu0 0
  %584 = vmatpush1.bf16.msra.mxu0 %v565
  %585 = vmatprep.subr.bf16.mxu0 0
  %586 = vmatpush1.bf16.msra.mxu0 %v564
  %587 = vmatprep.subr.bf16.mxu0 0
  %588 = vmatpush1.bf16.msra.mxu0 %v563
  %589 = vmatprep.subr.bf16.mxu0 0
  %590 = vmatpush1.bf16.msra.mxu0 %v562
  %591 = vmatprep.subr.bf16.mxu0 0
  %592 = vmatpush1.bf16.msra.mxu0 %v561
  %593 = vmatprep.subr.bf16.mxu0 0
  %594 = vmatpush2.bf16.msra.mxu0 0
  %595 = vmatprep.subr.bf16.mxu0 0
  %596 = vmatpush2.bf16.msra.mxu0 0
  %597 = vmatprep.subr.bf16.mxu0 0
  %598 = vmatpush2.bf16.msra.mxu0 0
  %599 = vmatprep.subr.bf16.mxu0 0
  %600 = vmatpush2.bf16.msra.mxu0 0
  %601 = vmatprep.subr.bf16.mxu0 0
  %602 = vmatpush2.bf16.msra.mxu0 0
  %603 = vmatprep.subr.bf16.mxu0 0
  %604 = vmatpush2.bf16.msra.mxu0 0
  %605 = vmatprep.subr.bf16.mxu0 0
  %606 = vmatpush2.bf16.msra.mxu0 0
  %607 = vmatprep.subr.bf16.mxu0 0
  %608 = vmatpush2.bf16.msra.mxu0 0
  %609 = vmatprep.mubr.bf16.mxu0 0
  %610 = vmatmul.mubr.bf16.gmra.mxu0 %v505
  %v611 = vpop.f32.mrf.mxu0
  %v612 = vadd.f32 %v527, %v611
  %v613 = vpop.f32.mrf.mxu0
  %v614 = vpop.f32.mrf.mxu0
  %v615 = vpop.f32.mrf.mxu0
  %616 = vdwg.mxu0
  %vm617 = vcmask 30720
  %618 = vst.msk [vmem:[%s10] sm:$0x7f] %vm617, %v612
  // Predicated region
  $region38: #{fwd.11} parent=0 // pred_check
    _
  $region39: #{fwd.11} parent=0 // pred_check_branch
    %620 = sbr.rel (0) target = $region41
  $region40: #{fwd.11} parent=0 // pred_region
    _
  $region41: #{fwd.11} parent=0 // pred_fallthru
    _
  // Predicated region
  $region42: #{fwd.11} parent=0 // pred_check
    _
  $region43: #{fwd.11} parent=0 // pred_check_branch
    %622 = sbr.rel (0) target = $region45
  $region44: #{fwd.11} parent=0 // pred_region
    _
  $region45: #{fwd.11} parent=0 // pred_fallthru
    _
  // Predicated region
  $region46: #{fwd.11} parent=0 // pred_check
    _
  $region47: #{fwd.11} parent=0 // pred_check_branch
    %624 = sbr.rel (0) target = $region49
  $region48: #{fwd.11} parent=0 // pred_region
    _
  $region49: #{fwd.11} parent=0 // pred_fallthru
    _
  // Predicated region
  $region50: #{fwd.11} parent=0 // pred_check
    _
  $region51: #{fwd.11} parent=0 // pred_check_branch
    %626 = sbr.rel (0) target = $region53
  $region52: #{fwd.11} parent=0 // pred_region
    _
  $region53: #{fwd.11} parent=0 // pred_fallthru
    _

// kernel: fwd.9
$region0: #{fwd.9}
  #allocation0 [shape = 'u32[]', space=smem, size = 0x4, offset = 0x4, fixed_abs, tag = 'smem constant byte address 0x4 - core index']
  #allocation1 [shape = 'u32[144,128]{1,0:T(1,128)}', space=vmem, size = 0x12000, scoped, tag = 'internal scratch']
  #allocation2 [shape = 'f32[7,256]{1,0:T(8,128)}', space=vmem, size = 0x2000, scoped, tag = 'scratch operand']
  %s0 = inlined_call_operand.vmem [shape: f32[7,256], index: 0, kind: input, shape index: {}]
  %s1 = inlined_call_operand.vmem [shape: f32[7,7], index: 1, kind: input, shape index: {}]
  %s2 = inlined_call_operand.vmem [shape: bf16[1,256,768], index: 2, kind: input, shape index: {}]
  %s3 = inlined_call_operand.vmem [shape: f32[1,1,768], index: 3, kind: input, shape index: {}]
  %s4 = inlined_call_operand.vmem [shape: bf16[1,256,256], index: 4, kind: input, shape index: {}]
  %s5 = inlined_call_operand.vmem [shape: f32[1,1,256], index: 5, kind: input, shape index: {}]
  %s6 = inlined_call_operand.vmem [shape: f32[1,1,256], index: 6, kind: input, shape index: {}]
  %s7 = inlined_call_operand.vmem [shape: f32[1,1,256], index: 7, kind: input, shape index: {}]
  %s8 = inlined_call_operand.vmem [shape: bf16[1,256,256], index: 8, kind: input, shape index: {}]
  %s9 = inlined_call_operand.vmem [shape: f32[1,1,256], index: 9, kind: input, shape index: {}]
  %s10 = inlined_call_operand.vmem [shape: bf16[1,256,256], index: 10, kind: input, shape index: {}]
  %s11 = inlined_call_operand.vmem [shape: f32[1,1,256], index: 11, kind: input, shape index: {}]
  %s12 = inlined_call_operand.vmem [shape: f32[1,1,256], index: 12, kind: input, shape index: {}]
  %s13 = inlined_call_operand.vmem [shape: f32[1,1,256], index: 13, kind: input, shape index: {}]
  %s14 = inlined_call_operand.vmem [shape: f32[7,256], index: 14, kind: output, shape index: {}]
  %s15 = sld [smem:[#allocation0]]
  $region74: #{fwd.9} parent=0
    _
  %s17 = ssub.s32 1, %s15
  %s18 = scalar_select 0, %s17, %s15
  // Predicated region
  $region2: #{fwd.9} parent=0 // pred_check
    _
  $region3: #{fwd.9} parent=0 // pred_check_branch
    %20 = sbr.rel (0) target = $region5
  $region4: #{fwd.9} parent=0 // pred_region
    _
  $region5: #{fwd.9} parent=0 // pred_fallthru
    _
  // Predicated region
  $region6: #{fwd.9} parent=0 // pred_check
    _
  $region7: #{fwd.9} parent=0 // pred_check_branch
    %22 = sbr.rel (0) target = $region9
  $region8: #{fwd.9} parent=0 // pred_region
    _
  $region9: #{fwd.9} parent=0 // pred_fallthru
    _
  // Predicated region
  $region10: #{fwd.9} parent=0 // pred_check
    _
  $region11: #{fwd.9} parent=0 // pred_check_branch
    %24 = sbr.rel (0) target = $region13
  $region12: #{fwd.9} parent=0 // pred_region
    _
  $region13: #{fwd.9} parent=0 // pred_fallthru
    _
  // Predicated region
  $region14: #{fwd.9} parent=0 // pred_check
    _
  $region15: #{fwd.9} parent=0 // pred_check_branch
    %26 = sbr.rel (0) target = $region17
  $region16: #{fwd.9} parent=0 // pred_region
    _
  $region17: #{fwd.9} parent=0 // pred_fallthru
    _
  // Predicated region
  $region18: #{fwd.9} parent=0 // pred_check
    _
  $region19: #{fwd.9} parent=0 // pred_check_branch
    %28 = sbr.rel (0) target = $region21
  $region20: #{fwd.9} parent=0 // pred_region
    _
  $region21: #{fwd.9} parent=0 // pred_fallthru
    _
  // Predicated region
  $region22: #{fwd.9} parent=0 // pred_check
    _
  $region23: #{fwd.9} parent=0 // pred_check_branch
    %30 = sbr.rel (0) target = $region25
  $region24: #{fwd.9} parent=0 // pred_region
    _
  $region25: #{fwd.9} parent=0 // pred_fallthru
    _
  // Predicated region
  $region26: #{fwd.9} parent=0 // pred_check
    _
  $region27: #{fwd.9} parent=0 // pred_check_branch
    %32 = sbr.rel (0) target = $region29
  $region28: #{fwd.9} parent=0 // pred_region
    _
  $region29: #{fwd.9} parent=0 // pred_fallthru
    _
  // Predicated region
  $region30: #{fwd.9} parent=0 // pred_check
    _
  $region31: #{fwd.9} parent=0 // pred_check_branch
    %34 = sbr.rel (0) target = $region33
  $region32: #{fwd.9} parent=0 // pred_region
    _
  $region33: #{fwd.9} parent=0 // pred_fallthru
    _
  // Predicated region
  $region34: #{fwd.9} parent=0 // pred_check
    _
  $region35: #{fwd.9} parent=0 // pred_check_branch
    %36 = sbr.rel (0) target = $region37
  $region36: #{fwd.9} parent=0 // pred_region
    _
  $region37: #{fwd.9} parent=0 // pred_fallthru
    _
  // Predicated region
  $region38: #{fwd.9} parent=0 // pred_check
    _
  $region39: #{fwd.9} parent=0 // pred_check_branch
    %38 = sbr.rel (0) target = $region41
  $region40: #{fwd.9} parent=0 // pred_region
    _
  $region41: #{fwd.9} parent=0 // pred_fallthru
    _
  // Predicated region
  $region42: #{fwd.9} parent=0 // pred_check
    _
  $region43: #{fwd.9} parent=0 // pred_check_branch
    %40 = sbr.rel (0) target = $region45
  $region44: #{fwd.9} parent=0 // pred_region
    _
  $region45: #{fwd.9} parent=0 // pred_fallthru
    _
  // Predicated region
  $region46: #{fwd.9} parent=0 // pred_check
    _
  $region47: #{fwd.9} parent=0 // pred_check_branch
    %42 = sbr.rel (0) target = $region49
  $region48: #{fwd.9} parent=0 // pred_region
    _
  $region49: #{fwd.9} parent=0 // pred_fallthru
    _
  // Predicated region
  $region50: #{fwd.9} parent=0 // pred_check
    _
  $region51: #{fwd.9} parent=0 // pred_check_branch
    %44 = sbr.rel (0) target = $region53
  $region52: #{fwd.9} parent=0 // pred_region
    _
  $region53: #{fwd.9} parent=0 // pred_fallthru
    _
  // Predicated region
  $region54: #{fwd.9} parent=0 // pred_check
    _
  $region55: #{fwd.9} parent=0 // pred_check_branch
    %46 = sbr.rel (0) target = $region57
  $region56: #{fwd.9} parent=0 // pred_region
    _
  $region57: #{fwd.9} parent=0 // pred_fallthru
    _
  %p48 = scmp.eq.s32.totalorder 0, 0
  // Predicated region
  $region58: #{fwd.9} parent=0 // pred_check
    %p49 = pneg %p48
  $region59: #{fwd.9} parent=0 // pred_check_branch
    %51 = sbr.rel (%p49) target = $region61
  $region60: #{fwd.9} parent=0 // pred_region
    %v52 = vld [vmem:[%s0] sm:$0x7f]
    %v53 = vld [vmem:[%s0 + $0x8] sm:$0x7f]
    %54 = vst [vmem:[#allocation2] sm:$0x7f] %v52
    %55 = vst [vmem:[#allocation2 + $0x8] sm:$0x7f] %v53
  $region61: #{fwd.9} parent=0 // pred_fallthru
    _
  %v56 = vld [vmem:[#allocation2] sm:$0x7f]
  %v57 = vld [vmem:[#allocation2 + $0x8] sm:$0x7f]
  %v58 = vpack.c.bf16 %v56, %v56
  %v59 = vpack.c.bf16 %v57, %v57
  %v60 = vld [vmem:[%s1] sm:$0x7f]
  %v61 = vld [vmem:[%s2] sm:$0xff]
  %v62 = vld [vmem:[%s2 + $0x8] sm:$0xff]
  %v63 = vld [vmem:[%s2 + $0x10] sm:$0xff]
  %v64 = vld [vmem:[%s2 + $0x18] sm:$0xff]
  %v65 = vld [vmem:[%s2 + $0x20] sm:$0xff]
  %v66 = vld [vmem:[%s2 + $0x28] sm:$0xff]
  %v67 = vld [vmem:[%s2 + $0x30] sm:$0xff]
  %v68 = vld [vmem:[%s2 + $0x38] sm:$0xff]
  %v69 = vld [vmem:[%s2 + $0x40] sm:$0xff]
  %v70 = vld [vmem:[%s2 + $0x48] sm:$0xff]
  %v71 = vld [vmem:[%s2 + $0x50] sm:$0xff]
  %v72 = vld [vmem:[%s2 + $0x58] sm:$0xff]
  %v73 = vld [vmem:[%s2 + $0x60] sm:$0xff]
  %v74 = vld [vmem:[%s2 + $0x68] sm:$0xff]
  %v75 = vld [vmem:[%s2 + $0x70] sm:$0xff]
  %v76 = vld [vmem:[%s2 + $0x78] sm:$0xff]
  %v77 = vld [vmem:[%s2 + $0x80] sm:$0xff]
  %v78 = vld [vmem:[%s2 + $0x88] sm:$0xff]
  %v79 = vld [vmem:[%s2 + $0x90] sm:$0xff]
  %v80 = vld [vmem:[%s2 + $0x98] sm:$0xff]
  %v81 = vld [vmem:[%s2 + $0xa0] sm:$0xff]
  %v82 = vld [vmem:[%s2 + $0xa8] sm:$0xff]
  %v83 = vld [vmem:[%s2 + $0xb0] sm:$0xff]
  %v84 = vld [vmem:[%s2 + $0xb8] sm:$0xff]
  %v85 = vld [vmem:[%s2 + $0xc0] sm:$0xff]
  %v86 = vld [vmem:[%s2 + $0xc8] sm:$0xff]
  %v87 = vld [vmem:[%s2 + $0xd0] sm:$0xff]
  %v88 = vld [vmem:[%s2 + $0xd8] sm:$0xff]
  %v89 = vld [vmem:[%s2 + $0xe0] sm:$0xff]
  %v90 = vld [vmem:[%s2 + $0xe8] sm:$0xff]
  %v91 = vld [vmem:[%s2 + $0xf0] sm:$0xff]
  %v92 = vld [vmem:[%s2 + $0xf8] sm:$0xff]
  %v93 = vld [vmem:[%s2 + $0x100] sm:$0xff]
  %v94 = vld [vmem:[%s2 + $0x108] sm:$0xff]
  %v95 = vld [vmem:[%s2 + $0x110] sm:$0xff]
  %v96 = vld [vmem:[%s2 + $0x118] sm:$0xff]
  %v97 = vld [vmem:[%s2 + $0x120] sm:$0xff]
  %v98 = vld [vmem:[%s2 + $0x128] sm:$0xff]
  %v99 = vld [vmem:[%s2 + $0x130] sm:$0xff]
  %v100 = vld [vmem:[%s2 + $0x138] sm:$0xff]
  %v101 = vld [vmem:[%s2 + $0x140] sm:$0xff]
  %v102 = vld [vmem:[%s2 + $0x148] sm:$0xff]
  %v103 = vld [vmem:[%s2 + $0x150] sm:$0xff]
  %v104 = vld [vmem:[%s2 + $0x158] sm:$0xff]
  %v105 = vld [vmem:[%s2 + $0x160] sm:$0xff]
  %v106 = vld [vmem:[%s2 + $0x168] sm:$0xff]
  %v107 = vld [vmem:[%s2 + $0x170] sm:$0xff]
  %v108 = vld [vmem:[%s2 + $0x178] sm:$0xff]
  %v109 = vld [vmem:[%s2 + $0x180] sm:$0xff]
  %v110 = vld [vmem:[%s2 + $0x188] sm:$0xff]
  %v111 = vld [vmem:[%s2 + $0x190] sm:$0xff]
  %v112 = vld [vmem:[%s2 + $0x198] sm:$0xff]
  %v113 = vld [vmem:[%s2 + $0x1a0] sm:$0xff]
  %v114 = vld [vmem:[%s2 + $0x1a8] sm:$0xff]
  %v115 = vld [vmem:[%s2 + $0x1b0] sm:$0xff]
  %v116 = vld [vmem:[%s2 + $0x1b8] sm:$0xff]
  %v117 = vld [vmem:[%s2 + $0x1c0] sm:$0xff]
  %v118 = vld [vmem:[%s2 + $0x1c8] sm:$0xff]
  %v119 = vld [vmem:[%s2 + $0x1d0] sm:$0xff]
  %v120 = vld [vmem:[%s2 + $0x1d8] sm:$0xff]
  %v121 = vld [vmem:[%s2 + $0x1e0] sm:$0xff]
  %v122 = vld [vmem:[%s2 + $0x1e8] sm:$0xff]
  %v123 = vld [vmem:[%s2 + $0x1f0] sm:$0xff]
  %v124 = vld [vmem:[%s2 + $0x1f8] sm:$0xff]
  %v125 = vld [vmem:[%s2 + $0x200] sm:$0xff]
  %v126 = vld [vmem:[%s2 + $0x208] sm:$0xff]
  %v127 = vld [vmem:[%s2 + $0x210] sm:$0xff]
  %v128 = vld [vmem:[%s2 + $0x218] sm:$0xff]
  %v129 = vld [vmem:[%s2 + $0x220] sm:$0xff]
  %v130 = vld [vmem:[%s2 + $0x228] sm:$0xff]
  %v131 = vld [vmem:[%s2 + $0x230] sm:$0xff]
  %v132 = vld [vmem:[%s2 + $0x238] sm:$0xff]
  %v133 = vld [vmem:[%s2 + $0x240] sm:$0xff]
  %v134 = vld [vmem:[%s2 + $0x248] sm:$0xff]
  %v135 = vld [vmem:[%s2 + $0x250] sm:$0xff]
  %v136 = vld [vmem:[%s2 + $0x258] sm:$0xff]
  %v137 = vld [vmem:[%s2 + $0x260] sm:$0xff]
  %v138 = vld [vmem:[%s2 + $0x268] sm:$0xff]
  %v139 = vld [vmem:[%s2 + $0x270] sm:$0xff]
  %v140 = vld [vmem:[%s2 + $0x278] sm:$0xff]
  %v141 = vld [vmem:[%s2 + $0x280] sm:$0xff]
  %v142 = vld [vmem:[%s2 + $0x288] sm:$0xff]
  %v143 = vld [vmem:[%s2 + $0x290] sm:$0xff]
  %v144 = vld [vmem:[%s2 + $0x298] sm:$0xff]
  %v145 = vld [vmem:[%s2 + $0x2a0] sm:$0xff]
  %v146 = vld [vmem:[%s2 + $0x2a8] sm:$0xff]
  %v147 = vld [vmem:[%s2 + $0x2b0] sm:$0xff]
  %v148 = vld [vmem:[%s2 + $0x2b8] sm:$0xff]
  %v149 = vld [vmem:[%s2 + $0x2c0] sm:$0xff]
  %v150 = vld [vmem:[%s2 + $0x2c8] sm:$0xff]
  %v151 = vld [vmem:[%s2 + $0x2d0] sm:$0xff]
  %v152 = vld [vmem:[%s2 + $0x2d8] sm:$0xff]
  %v153 = vld [vmem:[%s2 + $0x2e0] sm:$0xff]
  %v154 = vld [vmem:[%s2 + $0x2e8] sm:$0xff]
  %v155 = vld [vmem:[%s2 + $0x2f0] sm:$0xff]
  %v156 = vld [vmem:[%s2 + $0x2f8] sm:$0xff]
  %v157 = vld [vmem:[%s3] sm:$0x3f]
  %v159 = vlaneseq
  %v160 = vshrl.u32 %v159, 7
  %v161 = vsub.s32 0, %v160
  %v162 = vrot.slane %v157, %v161
  %v163 = vlaneseq
  %v164 = vshrl.u32 %v163, 7
  %v165 = vsub.s32 1, %v164
  %v166 = vrot.slane %v157, %v165
  %v167 = vlaneseq
  %v168 = vshrl.u32 %v167, 7
  %v169 = vsub.s32 2, %v168
  %v170 = vrot.slane %v157, %v169
  %v171 = vlaneseq
  %v172 = vshrl.u32 %v171, 7
  %v173 = vsub.s32 3, %v172
  %v174 = vrot.slane %v157, %v173
  %v175 = vlaneseq
  %v176 = vshrl.u32 %v175, 7
  %v177 = vsub.s32 4, %v176
  %v178 = vrot.slane %v157, %v177
  %v179 = vlaneseq
  %v180 = vshrl.u32 %v179, 7
  %v181 = vsub.s32 5, %v180
  %v182 = vrot.slane %v157, %v181
  %v285 = vunpack.c.l.b16 %v61
  %v286 = vunpack.c.h.b16 %v61
  %v287 = vunpack.c.l.b16 %v62
  %v288 = vunpack.c.h.b16 %v62
  %v289 = vunpack.c.l.b16 %v63
  %v290 = vunpack.c.h.b16 %v63
  %v291 = vunpack.c.l.b16 %v64
  %v292 = vunpack.c.h.b16 %v64
  %v293 = vunpack.c.l.b16 %v65
  %v294 = vunpack.c.h.b16 %v65
  %v295 = vunpack.c.l.b16 %v66
  %v296 = vunpack.c.h.b16 %v66
  %v297 = vunpack.c.l.b16 %v67
  %v298 = vunpack.c.h.b16 %v67
  %v299 = vunpack.c.l.b16 %v68
  %v300 = vunpack.c.h.b16 %v68
  %v301 = vunpack.c.l.b16 %v69
  %v302 = vunpack.c.h.b16 %v69
  %v303 = vunpack.c.l.b16 %v70
  %v304 = vunpack.c.h.b16 %v70
  %v305 = vunpack.c.l.b16 %v71
  %v306 = vunpack.c.h.b16 %v71
  %v307 = vunpack.c.l.b16 %v72
  %v308 = vunpack.c.h.b16 %v72
  %v309 = vunpack.c.l.b16 %v73
  %v310 = vunpack.c.h.b16 %v73
  %v311 = vunpack.c.l.b16 %v74
  %v312 = vunpack.c.h.b16 %v74
  %v313 = vunpack.c.l.b16 %v75
  %v314 = vunpack.c.h.b16 %v75
  %v315 = vunpack.c.l.b16 %v76
  %v316 = vunpack.c.h.b16 %v76
  %v317 = vunpack.c.l.b16 %v77
  %v318 = vunpack.c.h.b16 %v77
  %v319 = vunpack.c.l.b16 %v78
  %v320 = vunpack.c.h.b16 %v78
  %v321 = vunpack.c.l.b16 %v79
  %v322 = vunpack.c.h.b16 %v79
  %v323 = vunpack.c.l.b16 %v80
  %v324 = vunpack.c.h.b16 %v80
  %v325 = vunpack.c.l.b16 %v81
  %v326 = vunpack.c.h.b16 %v81
  %v327 = vunpack.c.l.b16 %v82
  %v328 = vunpack.c.h.b16 %v82
  %v329 = vunpack.c.l.b16 %v83
  %v330 = vunpack.c.h.b16 %v83
  %v331 = vunpack.c.l.b16 %v84
  %v332 = vunpack.c.h.b16 %v84
  %v333 = vunpack.c.l.b16 %v85
  %v334 = vunpack.c.h.b16 %v85
  %v335 = vunpack.c.l.b16 %v86
  %v336 = vunpack.c.h.b16 %v86
  %v337 = vunpack.c.l.b16 %v87
  %v338 = vunpack.c.h.b16 %v87
  %v339 = vunpack.c.l.b16 %v88
  %v340 = vunpack.c.h.b16 %v88
  %v341 = vunpack.c.l.b16 %v89
  %v342 = vunpack.c.h.b16 %v89
  %v343 = vunpack.c.l.b16 %v90
  %v344 = vunpack.c.h.b16 %v90
  %v345 = vunpack.c.l.b16 %v91
  %v346 = vunpack.c.h.b16 %v91
  %v347 = vunpack.c.l.b16 %v92
  %v348 = vunpack.c.h.b16 %v92
  %v349 = vunpack.c.l.b16 %v93
  %v350 = vunpack.c.h.b16 %v93
  %v351 = vunpack.c.l.b16 %v94
  %v352 = vunpack.c.h.b16 %v94
  %v353 = vunpack.c.l.b16 %v95
  %v354 = vunpack.c.h.b16 %v95
  %v355 = vunpack.c.l.b16 %v96
  %v356 = vunpack.c.h.b16 %v96
  %v357 = vunpack.c.l.b16 %v97
  %v358 = vunpack.c.h.b16 %v97
  %v359 = vunpack.c.l.b16 %v98
  %v360 = vunpack.c.h.b16 %v98
  %v361 = vunpack.c.l.b16 %v99
  %v362 = vunpack.c.h.b16 %v99
  %v363 = vunpack.c.l.b16 %v100
  %v364 = vunpack.c.h.b16 %v100
  %v365 = vunpack.c.l.b16 %v101
  %v366 = vunpack.c.h.b16 %v101
  %v367 = vunpack.c.l.b16 %v102
  %v368 = vunpack.c.h.b16 %v102
  %v369 = vunpack.c.l.b16 %v103
  %v370 = vunpack.c.h.b16 %v103
  %v371 = vunpack.c.l.b16 %v104
  %v372 = vunpack.c.h.b16 %v104
  %v373 = vunpack.c.l.b16 %v105
  %v374 = vunpack.c.h.b16 %v105
  %v375 = vunpack.c.l.b16 %v106
  %v376 = vunpack.c.h.b16 %v106
  %v377 = vunpack.c.l.b16 %v107
  %v378 = vunpack.c.h.b16 %v107
  %v379 = vunpack.c.l.b16 %v108
  %v380 = vunpack.c.h.b16 %v108
  %v381 = vunpack.c.l.b16 %v109
  %v382 = vunpack.c.h.b16 %v109
  %v383 = vunpack.c.l.b16 %v110
  %v384 = vunpack.c.h.b16 %v110
  %v385 = vunpack.c.l.b16 %v111
  %v386 = vunpack.c.h.b16 %v111
  %v387 = vunpack.c.l.b16 %v112
  %v388 = vunpack.c.h.b16 %v112
  %v389 = vunpack.c.l.b16 %v113
  %v390 = vunpack.c.h.b16 %v113
  %v391 = vunpack.c.l.b16 %v114
  %v392 = vunpack.c.h.b16 %v114
  %v393 = vunpack.c.l.b16 %v115
  %v394 = vunpack.c.h.b16 %v115
  %v395 = vunpack.c.l.b16 %v116
  %v396 = vunpack.c.h.b16 %v116
  %v397 = vunpack.c.l.b16 %v117
  %v398 = vunpack.c.h.b16 %v117
  %v399 = vunpack.c.l.b16 %v118
  %v400 = vunpack.c.h.b16 %v118
  %v401 = vunpack.c.l.b16 %v119
  %v402 = vunpack.c.h.b16 %v119
  %v403 = vunpack.c.l.b16 %v120
  %v404 = vunpack.c.h.b16 %v120
  %v405 = vunpack.c.l.b16 %v121
  %v406 = vunpack.c.h.b16 %v121
  %v407 = vunpack.c.l.b16 %v122
  %v408 = vunpack.c.h.b16 %v122
  %v409 = vunpack.c.l.b16 %v123
  %v410 = vunpack.c.h.b16 %v123
  %v411 = vunpack.c.l.b16 %v124
  %v412 = vunpack.c.h.b16 %v124
  %v413 = vunpack.c.l.b16 %v125
  %v414 = vunpack.c.h.b16 %v125
  %v415 = vunpack.c.l.b16 %v126
  %v416 = vunpack.c.h.b16 %v126
  %v417 = vunpack.c.l.b16 %v127
  %v418 = vunpack.c.h.b16 %v127
  %v419 = vunpack.c.l.b16 %v128
  %v420 = vunpack.c.h.b16 %v128
  %v421 = vunpack.c.l.b16 %v129
  %v422 = vunpack.c.h.b16 %v129
  %v423 = vunpack.c.l.b16 %v130
  %v424 = vunpack.c.h.b16 %v130
  %v425 = vunpack.c.l.b16 %v131
  %v426 = vunpack.c.h.b16 %v131
  %v427 = vunpack.c.l.b16 %v132
  %v428 = vunpack.c.h.b16 %v132
  %v429 = vunpack.c.l.b16 %v133
  %v430 = vunpack.c.h.b16 %v133
  %v431 = vunpack.c.l.b16 %v134
  %v432 = vunpack.c.h.b16 %v134
  %v433 = vunpack.c.l.b16 %v135
  %v434 = vunpack.c.h.b16 %v135
  %v435 = vunpack.c.l.b16 %v136
  %v436 = vunpack.c.h.b16 %v136
  %v437 = vunpack.c.l.b16 %v137
  %v438 = vunpack.c.h.b16 %v137
  %v439 = vunpack.c.l.b16 %v138
  %v440 = vunpack.c.h.b16 %v138
  %v441 = vunpack.c.l.b16 %v139
  %v442 = vunpack.c.h.b16 %v139
  %v443 = vunpack.c.l.b16 %v140
  %v444 = vunpack.c.h.b16 %v140
  %v445 = vunpack.c.l.b16 %v141
  %v446 = vunpack.c.h.b16 %v141
  %v447 = vunpack.c.l.b16 %v142
  %v448 = vunpack.c.h.b16 %v142
  %v449 = vunpack.c.l.b16 %v143
  %v450 = vunpack.c.h.b16 %v143
  %v451 = vunpack.c.l.b16 %v144
  %v452 = vunpack.c.h.b16 %v144
  %v453 = vunpack.c.l.b16 %v145
  %v454 = vunpack.c.h.b16 %v145
  %v455 = vunpack.c.l.b16 %v146
  %v456 = vunpack.c.h.b16 %v146
  %v457 = vunpack.c.l.b16 %v147
  %v458 = vunpack.c.h.b16 %v147
  %v459 = vunpack.c.l.b16 %v148
  %v460 = vunpack.c.h.b16 %v148
  %v461 = vunpack.c.l.b16 %v149
  %v462 = vunpack.c.h.b16 %v149
  %v463 = vunpack.c.l.b16 %v150
  %v464 = vunpack.c.h.b16 %v150
  %v465 = vunpack.c.l.b16 %v151
  %v466 = vunpack.c.h.b16 %v151
  %v467 = vunpack.c.l.b16 %v152
  %v468 = vunpack.c.h.b16 %v152
  %v469 = vunpack.c.l.b16 %v153
  %v470 = vunpack.c.h.b16 %v153
  %v471 = vunpack.c.l.b16 %v154
  %v472 = vunpack.c.h.b16 %v154
  %v473 = vunpack.c.l.b16 %v155
  %v474 = vunpack.c.h.b16 %v155
  %v475 = vunpack.c.l.b16 %v156
  %v476 = vunpack.c.h.b16 %v156
  %v477 = vpack.c.b16 %v291, %v285
  %v478 = vpack.c.b16 %v292, %v286
  %v479 = vpack.c.b16 %v293, %v287
  %v480 = vpack.c.b16 %v294, %v288
  %v481 = vpack.c.b16 %v295, %v289
  %v482 = vpack.c.b16 %v296, %v290
  %v483 = vpack.c.b16 %v303, %v297
  %v484 = vpack.c.b16 %v304, %v298
  %v485 = vpack.c.b16 %v305, %v299
  %v486 = vpack.c.b16 %v306, %v300
  %v487 = vpack.c.b16 %v307, %v301
  %v488 = vpack.c.b16 %v308, %v302
  %v489 = vpack.c.b16 %v315, %v309
  %v490 = vpack.c.b16 %v316, %v310
  %v491 = vpack.c.b16 %v317, %v311
  %v492 = vpack.c.b16 %v318, %v312
  %v493 = vpack.c.b16 %v319, %v313
  %v494 = vpack.c.b16 %v320, %v314
  %v495 = vpack.c.b16 %v327, %v321
  %v496 = vpack.c.b16 %v328, %v322
  %v497 = vpack.c.b16 %v329, %v323
  %v498 = vpack.c.b16 %v330, %v324
  %v499 = vpack.c.b16 %v331, %v325
  %v500 = vpack.c.b16 %v332, %v326
  %v501 = vpack.c.b16 %v339, %v333
  %v502 = vpack.c.b16 %v340, %v334
  %v503 = vpack.c.b16 %v341, %v335
  %v504 = vpack.c.b16 %v342, %v336
  %v505 = vpack.c.b16 %v343, %v337
  %v506 = vpack.c.b16 %v344, %v338
  %v507 = vpack.c.b16 %v351, %v345
  %v508 = vpack.c.b16 %v352, %v346
  %v509 = vpack.c.b16 %v353, %v347
  %v510 = vpack.c.b16 %v354, %v348
  %v511 = vpack.c.b16 %v355, %v349
  %v512 = vpack.c.b16 %v356, %v350
  %v513 = vpack.c.b16 %v363, %v357
  %v514 = vpack.c.b16 %v364, %v358
  %v515 = vpack.c.b16 %v365, %v359
  %v516 = vpack.c.b16 %v366, %v360
  %v517 = vpack.c.b16 %v367, %v361
  %v518 = vpack.c.b16 %v368, %v362
  %v519 = vpack.c.b16 %v375, %v369
  %v520 = vpack.c.b16 %v376, %v370
  %v521 = vpack.c.b16 %v377, %v371
  %v522 = vpack.c.b16 %v378, %v372
  %v523 = vpack.c.b16 %v379, %v373
  %v524 = vpack.c.b16 %v380, %v374
  %v525 = vpack.c.b16 %v387, %v381
  %v526 = vpack.c.b16 %v388, %v382
  %v527 = vpack.c.b16 %v389, %v383
  %v528 = vpack.c.b16 %v390, %v384
  %v529 = vpack.c.b16 %v391, %v385
  %v530 = vpack.c.b16 %v392, %v386
  %v531 = vpack.c.b16 %v399, %v393
  %v532 = vpack.c.b16 %v400, %v394
  %v533 = vpack.c.b16 %v401, %v395
  %v534 = vpack.c.b16 %v402, %v396
  %v535 = vpack.c.b16 %v403, %v397
  %v536 = vpack.c.b16 %v404, %v398
  %v537 = vpack.c.b16 %v411, %v405
  %v538 = vpack.c.b16 %v412, %v406
  %v539 = vpack.c.b16 %v413, %v407
  %v540 = vpack.c.b16 %v414, %v408
  %v541 = vpack.c.b16 %v415, %v409
  %v542 = vpack.c.b16 %v416, %v410
  %v543 = vpack.c.b16 %v423, %v417
  %v544 = vpack.c.b16 %v424, %v418
  %v545 = vpack.c.b16 %v425, %v419
  %v546 = vpack.c.b16 %v426, %v420
  %v547 = vpack.c.b16 %v427, %v421
  %v548 = vpack.c.b16 %v428, %v422
  %v549 = vpack.c.b16 %v435, %v429
  %v550 = vpack.c.b16 %v436, %v430
  %v551 = vpack.c.b16 %v437, %v431
  %v552 = vpack.c.b16 %v438, %v432
  %v553 = vpack.c.b16 %v439, %v433
  %v554 = vpack.c.b16 %v440, %v434
  %v555 = vpack.c.b16 %v447, %v441
  %v556 = vpack.c.b16 %v448, %v442
  %v557 = vpack.c.b16 %v449, %v443
  %v558 = vpack.c.b16 %v450, %v444
  %v559 = vpack.c.b16 %v451, %v445
  %v560 = vpack.c.b16 %v452, %v446
  %v561 = vpack.c.b16 %v459, %v453
  %v562 = vpack.c.b16 %v460, %v454
  %v563 = vpack.c.b16 %v461, %v455
  %v564 = vpack.c.b16 %v462, %v456
  %v565 = vpack.c.b16 %v463, %v457
  %v566 = vpack.c.b16 %v464, %v458
  %v567 = vpack.c.b16 %v471, %v465
  %v568 = vpack.c.b16 %v472, %v466
  %v569 = vpack.c.b16 %v473, %v467
  %v570 = vpack.c.b16 %v474, %v468
  %v571 = vpack.c.b16 %v475, %v469
  %v572 = vpack.c.b16 %v476, %v470
  %669 = vmatprep.subr.bf16.mxu0 %v520
  %670 = vmatpush1.bf16.msra.mxu0 %v519
  %671 = vmatprep.subr.bf16.mxu0 %v514
  %672 = vmatpush1.bf16.msra.mxu0 %v513
  %673 = vmatprep.subr.bf16.mxu0 %v508
  %674 = vmatpush1.bf16.msra.mxu0 %v507
  %675 = vmatprep.subr.bf16.mxu0 %v502
  %676 = vmatpush1.bf16.msra.mxu0 %v501
  %677 = vmatprep.subr.bf16.mxu0 %v496
  %678 = vmatpush1.bf16.msra.mxu0 %v495
  %679 = vmatprep.subr.bf16.mxu0 %v490
  %680 = vmatpush1.bf16.msra.mxu0 %v489
  %681 = vmatprep.subr.bf16.mxu0 %v484
  %682 = vmatpush1.bf16.msra.mxu0 %v483
  %683 = vmatprep.subr.bf16.mxu0 %v478
  %684 = vmatpush1.bf16.msra.mxu0 %v477
  %685 = vmatprep.subr.bf16.mxu0 %v568
  %686 = vmatpush2.bf16.msra.mxu0 %v567
  %687 = vmatprep.subr.bf16.mxu0 %v562
  %688 = vmatpush2.bf16.msra.mxu0 %v561
  %689 = vmatprep.subr.bf16.mxu0 %v556
  %690 = vmatpush2.bf16.msra.mxu0 %v555
  %691 = vmatprep.subr.bf16.mxu0 %v550
  %692 = vmatpush2.bf16.msra.mxu0 %v549
  %693 = vmatprep.subr.bf16.mxu0 %v544
  %694 = vmatpush2.bf16.msra.mxu0 %v543
  %695 = vmatprep.subr.bf16.mxu0 %v538
  %696 = vmatpush2.bf16.msra.mxu0 %v537
  %697 = vmatprep.subr.bf16.mxu0 %v532
  %698 = vmatpush2.bf16.msra.mxu0 %v531
  %699 = vmatprep.subr.bf16.mxu0 %v526
  %700 = vmatpush2.bf16.msra.mxu0 %v525
  %701 = vmatprep.mubr.bf16.mxu0 %v59
  %702 = vmatmul.mubr.bf16.gmra.mxu0 %v58
  %v703 = vpop.f32.mrf.mxu0
  %v704 = vadd.f32 %v162, %v703
  %v705 = vpop.f32.mrf.mxu0
  %v706 = vadd.f32 %v166, %v705
  %v707 = vpop.f32.mrf.mxu0
  %v708 = vpop.f32.mrf.mxu0
  %709 = vdwg.mxu0
  %710 = vmatprep.subr.bf16.mxu0 %v522
  %711 = vmatpush1.bf16.msra.mxu0 %v521
  %712 = vmatprep.subr.bf16.mxu0 %v516
  %713 = vmatpush1.bf16.msra.mxu0 %v515
  %714 = vmatprep.subr.bf16.mxu0 %v510
  %715 = vmatpush1.bf16.msra.mxu0 %v509
  %716 = vmatprep.subr.bf16.mxu0 %v504
  %717 = vmatpush1.bf16.msra.mxu0 %v503
  %718 = vmatprep.subr.bf16.mxu0 %v498
  %719 = vmatpush1.bf16.msra.mxu0 %v497
  %720 = vmatprep.subr.bf16.mxu0 %v492
  %721 = vmatpush1.bf16.msra.mxu0 %v491
  %722 = vmatprep.subr.bf16.mxu0 %v486
  %723 = vmatpush1.bf16.msra.mxu0 %v485
  %724 = vmatprep.subr.bf16.mxu0 %v480
  %725 = vmatpush1.bf16.msra.mxu0 %v479
  %726 = vmatprep.subr.bf16.mxu0 %v570
  %727 = vmatpush2.bf16.msra.mxu0 %v569
  %728 = vmatprep.subr.bf16.mxu0 %v564
  %729 = vmatpush2.bf16.msra.mxu0 %v563
  %730 = vmatprep.subr.bf16.mxu0 %v558
  %731 = vmatpush2.bf16.msra.mxu0 %v557
  %732 = vmatprep.subr.bf16.mxu0 %v552
  %733 = vmatpush2.bf16.msra.mxu0 %v551
  %734 = vmatprep.subr.bf16.mxu0 %v546
  %735 = vmatpush2.bf16.msra.mxu0 %v545
  %736 = vmatprep.subr.bf16.mxu0 %v540
  %737 = vmatpush2.bf16.msra.mxu0 %v539
  %738 = vmatprep.subr.bf16.mxu0 %v534
  %739 = vmatpush2.bf16.msra.mxu0 %v533
  %740 = vmatprep.subr.bf16.mxu0 %v528
  %741 = vmatpush2.bf16.msra.mxu0 %v527
  %742 = vmatprep.mubr.bf16.mxu0 %v59
  %743 = vmatmul.mubr.bf16.gmra.mxu0 %v58
  %v744 = vpop.f32.mrf.mxu0
  %v745 = vadd.f32 %v170, %v744
  %v746 = vpop.f32.mrf.mxu0
  %v747 = vadd.f32 %v174, %v746
  %v748 = vpop.f32.mrf.mxu0
  %v749 = vpop.f32.mrf.mxu0
  %750 = vdwg.mxu0
  %751 = vmatprep.subr.bf16.mxu0 %v524
  %752 = vmatpush1.bf16.msra.mxu0 %v523
  %753 = vmatprep.subr.bf16.mxu0 %v518
  %754 = vmatpush1.bf16.msra.mxu0 %v517
  %755 = vmatprep.subr.bf16.mxu0 %v512
  %756 = vmatpush1.bf16.msra.mxu0 %v511
  %757 = vmatprep.subr.bf16.mxu0 %v506
  %758 = vmatpush1.bf16.msra.mxu0 %v505
  %759 = vmatprep.subr.bf16.mxu0 %v500
  %760 = vmatpush1.bf16.msra.mxu0 %v499
  %761 = vmatprep.subr.bf16.mxu0 %v494
  %762 = vmatpush1.bf16.msra.mxu0 %v493
  %763 = vmatprep.subr.bf16.mxu0 %v488
  %764 = vmatpush1.bf16.msra.mxu0 %v487
  %765 = vmatprep.subr.bf16.mxu0 %v482
  %766 = vmatpush1.bf16.msra.mxu0 %v481
  %767 = vmatprep.subr.bf16.mxu0 %v572
  %768 = vmatpush2.bf16.msra.mxu0 %v571
  %769 = vmatprep.subr.bf16.mxu0 %v566
  %770 = vmatpush2.bf16.msra.mxu0 %v565
  %771 = vmatprep.subr.bf16.mxu0 %v560
  %772 = vmatpush2.bf16.msra.mxu0 %v559
  %773 = vmatprep.subr.bf16.mxu0 %v554
  %774 = vmatpush2.bf16.msra.mxu0 %v553
  %775 = vmatprep.subr.bf16.mxu0 %v548
  %776 = vmatpush2.bf16.msra.mxu0 %v547
  %777 = vmatprep.subr.bf16.mxu0 %v542
  %778 = vmatpush2.bf16.msra.mxu0 %v541
  %779 = vmatprep.subr.bf16.mxu0 %v536
  %780 = vmatpush2.bf16.msra.mxu0 %v535
  %781 = vmatprep.subr.bf16.mxu0 %v530
  %782 = vmatpush2.bf16.msra.mxu0 %v529
  %783 = vmatprep.mubr.bf16.mxu0 %v59
  %784 = vmatmul.mubr.bf16.gmra.mxu0 %v58
  %v785 = vpop.f32.mrf.mxu0
  %v786 = vadd.f32 %v178, %v785
  %v787 = vpop.f32.mrf.mxu0
  %v788 = vadd.f32 %v182, %v787
  %v789 = vpop.f32.mrf.mxu0
  %v790 = vpop.f32.mrf.mxu0
  %791 = vdwg.mxu0
  %v792 = vpack.c.bf16 %v704, %v704
  %v793 = vpack.c.bf16 %v745, %v745
  %v794 = vpack.c.bf16 %v786, %v786
  %vm795 = vcmask 261120
  %v797 = vsel %vm795, %v792, 0
  %v800 = vsel %vm795, %v793, 0
  %802 = vmatprep.subr.bf16.mxu0 0
  %803 = vmatpush1.bf16.xpose.msra.mxu0 0
  %804 = vmatprep.subr.bf16.mxu0 0
  %805 = vmatpush1.bf16.xpose.msra.mxu0 0
  %806 = vmatprep.subr.bf16.mxu0 0
  %807 = vmatpush1.bf16.xpose.msra.mxu0 0
  %808 = vmatprep.subr.bf16.mxu0 0
  %809 = vmatpush1.bf16.xpose.msra.mxu0 0
  %810 = vmatprep.subr.bf16.mxu0 0
  %811 = vmatpush1.bf16.xpose.msra.mxu0 0
  %812 = vmatprep.subr.bf16.mxu0 0
  %813 = vmatpush1.bf16.xpose.msra.mxu0 0
  %814 = vmatprep.subr.bf16.mxu0 0
  %815 = vmatpush1.bf16.xpose.msra.mxu0 0
  %816 = vmatprep.subr.bf16.mxu0 0
  %817 = vmatpush1.bf16.xpose.msra.mxu0 %v800
  %818 = vmatprep.subr.bf16.mxu0 0
  %819 = vmatpush2.bf16.xpose.msra.mxu0 0
  %820 = vmatprep.subr.bf16.mxu0 0
  %821 = vmatpush2.bf16.xpose.msra.mxu0 0
  %822 = vmatprep.subr.bf16.mxu0 0
  %823 = vmatpush2.bf16.xpose.msra.mxu0 0
  %824 = vmatprep.subr.bf16.mxu0 0
  %825 = vmatpush2.bf16.xpose.msra.mxu0 0
  %826 = vmatprep.subr.bf16.mxu0 0
  %827 = vmatpush2.bf16.xpose.msra.mxu0 0
  %828 = vmatprep.subr.bf16.mxu0 0
  %829 = vmatpush2.bf16.xpose.msra.mxu0 0
  %830 = vmatprep.subr.bf16.mxu0 0
  %831 = vmatpush2.bf16.xpose.msra.mxu0 0
  %832 = vmatprep.subr.bf16.mxu0 0
  %833 = vmatpush2.bf16.xpose.msra.mxu0 0
  %834 = vmatprep.mubr.bf16.mxu0 0
  %835 = vmatmul.mubr.bf16.gmra.mxu0 %v797
  %v836 = vpop.f32.mrf.mxu0
  %v837 = vadd.f32 %v60, %v836
  %v838 = vpop.f32.mrf.mxu0
  %v839 = vpop.f32.mrf.mxu0
  %v840 = vpop.f32.mrf.mxu0
  %841 = vdwg.mxu0
  %vm842 = vcmask 55296
  %v843 = vsel %vm842, %v837, -inf
  %844 = vmax.xlane.f32.xlu0 %v843
  %v845 = vpop.xlane.xlu0 %844
  %v846 = vsub.f32 %v837, %v845
  %v847 = vmul.f32 %v846, 1.442695
  %v848 = vpow.pop %v847
  %v849 = vsel %vm842, %v848, 0.0
  %850 = vadd.xlane.f32.xlu0 %v849
  %v851 = vpop.xlane.xlu0 %850
  %v852 = vmax.f32 %v851, 1e-30
  %v853 = vrcp.pop %v852
  %v854 = vmul.f32 %v848, %v853
  %v855 = vpack.c.bf16 %v854, %v854
  %vm856 = vcmask 56320
  %v858 = vsel %vm856, %v855, 0
  %vm860 = vcmask 1042432
  %vm861 = vcmask 1043456
  %v862 = vsel %vm860, 4294967295, 65535
  %v863 = vsel %vm861, %v862, 0
  %v865 = vand.u32 %v794, %v863
  %867 = vmatprep.subr.bf16.mxu0 0
  %868 = vmatpush1.bf16.msra.mxu0 0
  %869 = vmatprep.subr.bf16.mxu0 0
  %870 = vmatpush1.bf16.msra.mxu0 0
  %871 = vmatprep.subr.bf16.mxu0 0
  %872 = vmatpush1.bf16.msra.mxu0 0
  %873 = vmatprep.subr.bf16.mxu0 0
  %874 = vmatpush1.bf16.msra.mxu0 0
  %875 = vmatprep.subr.bf16.mxu0 0
  %876 = vmatpush1.bf16.msra.mxu0 0
  %877 = vmatprep.subr.bf16.mxu0 0
  %878 = vmatpush1.bf16.msra.mxu0 0
  %879 = vmatprep.subr.bf16.mxu0 0
  %880 = vmatpush1.bf16.msra.mxu0 0
  %881 = vmatprep.subr.bf16.mxu0 0
  %882 = vmatpush1.bf16.msra.mxu0 %v865
  %883 = vmatprep.subr.bf16.mxu0 0
  %884 = vmatpush2.bf16.msra.mxu0 0
  %885 = vmatprep.subr.bf16.mxu0 0
  %886 = vmatpush2.bf16.msra.mxu0 0
  %887 = vmatprep.subr.bf16.mxu0 0
  %888 = vmatpush2.bf16.msra.mxu0 0
  %889 = vmatprep.subr.bf16.mxu0 0
  %890 = vmatpush2.bf16.msra.mxu0 0
  %891 = vmatprep.subr.bf16.mxu0 0
  %892 = vmatpush2.bf16.msra.mxu0 0
  %893 = vmatprep.subr.bf16.mxu0 0
  %894 = vmatpush2.bf16.msra.mxu0 0
  %895 = vmatprep.subr.bf16.mxu0 0
  %896 = vmatpush2.bf16.msra.mxu0 0
  %897 = vmatprep.subr.bf16.mxu0 0
  %898 = vmatpush2.bf16.msra.mxu0 0
  %899 = vmatprep.mubr.bf16.mxu0 0
  %900 = vmatmul.mubr.bf16.gmra.mxu0 %v858
  %v901 = vpop.f32.mrf.mxu0
  %v902 = vadd.f32 0.0, %v901
  %v903 = vpop.f32.mrf.mxu0
  %v904 = vpop.f32.mrf.mxu0
  %v905 = vpop.f32.mrf.mxu0
  %906 = vdwg.mxu0
  %908 = vrot.lane.b32.xlu0 %v792, 96
  %v909 = vpop.permute.xlu0 %908
  %911 = vrot.lane.b32.xlu0 %v793, 96
  %v912 = vpop.permute.xlu0 %911
  %v914 = vsel %vm795, %v909, 0
  %v917 = vsel %vm795, %v912, 0
  %919 = vmatprep.subr.bf16.mxu0 0
  %920 = vmatpush1.bf16.xpose.msra.mxu0 0
  %921 = vmatprep.subr.bf16.mxu0 0
  %922 = vmatpush1.bf16.xpose.msra.mxu0 0
  %923 = vmatprep.subr.bf16.mxu0 0
  %924 = vmatpush1.bf16.xpose.msra.mxu0 0
  %925 = vmatprep.subr.bf16.mxu0 0
  %926 = vmatpush1.bf16.xpose.msra.mxu0 0
  %927 = vmatprep.subr.bf16.mxu0 0
  %928 = vmatpush1.bf16.xpose.msra.mxu0 0
  %929 = vmatprep.subr.bf16.mxu0 0
  %930 = vmatpush1.bf16.xpose.msra.mxu0 0
  %931 = vmatprep.subr.bf16.mxu0 0
  %932 = vmatpush1.bf16.xpose.msra.mxu0 0
  %933 = vmatprep.subr.bf16.mxu0 0
  %934 = vmatpush1.bf16.xpose.msra.mxu0 %v917
  %935 = vmatprep.subr.bf16.mxu0 0
  %936 = vmatpush2.bf16.xpose.msra.mxu0 0
  %937 = vmatprep.subr.bf16.mxu0 0
  %938 = vmatpush2.bf16.xpose.msra.mxu0 0
  %939 = vmatprep.subr.bf16.mxu0 0
  %940 = vmatpush2.bf16.xpose.msra.mxu0 0
  %941 = vmatprep.subr.bf16.mxu0 0
  %942 = vmatpush2.bf16.xpose.msra.mxu0 0
  %943 = vmatprep.subr.bf16.mxu0 0
  %944 = vmatpush2.bf16.xpose.msra.mxu0 0
  %945 = vmatprep.subr.bf16.mxu0 0
  %946 = vmatpush2.bf16.xpose.msra.mxu0 0
  %947 = vmatprep.subr.bf16.mxu0 0
  %948 = vmatpush2.bf16.xpose.msra.mxu0 0
  %949 = vmatprep.subr.bf16.mxu0 0
  %950 = vmatpush2.bf16.xpose.msra.mxu0 0
  %951 = vmatprep.mubr.bf16.mxu0 0
  %952 = vmatmul.mubr.bf16.gmra.mxu0 %v914
  %v953 = vpop.f32.mrf.mxu0
  %v954 = vadd.f32 %v60, %v953
  %v955 = vpop.f32.mrf.mxu0
  %v956 = vpop.f32.mrf.mxu0
  %v957 = vpop.f32.mrf.mxu0
  %958 = vdwg.mxu0
  %v959 = vsel %vm842, %v954, -inf
  %960 = vmax.xlane.f32.xlu0 %v959
  %v961 = vpop.xlane.xlu0 %960
  %v962 = vsub.f32 %v954, %v961
  %v963 = vmul.f32 %v962, 1.442695
  %v964 = vpow.pop %v963
  %v965 = vsel %vm842, %v964, 0.0
  %966 = vadd.xlane.f32.xlu0 %v965
  %v967 = vpop.xlane.xlu0 %966
  %v968 = vmax.f32 %v967, 1e-30
  %v969 = vrcp.pop %v968
  %v970 = vmul.f32 %v964, %v969
  %v971 = vpack.c.bf16 %v970, %v970
  %973 = vrot.lane.b32.xlu0 %v794, 96
  %v974 = vpop.permute.xlu0 %973
  %v976 = vsel %vm856, %v971, 0
  %v979 = vand.u32 %v974, %v863
  %981 = vmatprep.subr.bf16.mxu0 0
  %982 = vmatpush1.bf16.msra.mxu0 0
  %983 = vmatprep.subr.bf16.mxu0 0
  %984 = vmatpush1.bf16.msra.mxu0 0
  %985 = vmatprep.subr.bf16.mxu0 0
  %986 = vmatpush1.bf16.msra.mxu0 0
  %987 = vmatprep.subr.bf16.mxu0 0
  %988 = vmatpush1.bf16.msra.mxu0 0
  %989 = vmatprep.subr.bf16.mxu0 0
  %990 = vmatpush1.bf16.msra.mxu0 0
  %991 = vmatprep.subr.bf16.mxu0 0
  %992 = vmatpush1.bf16.msra.mxu0 0
  %993 = vmatprep.subr.bf16.mxu0 0
  %994 = vmatpush1.bf16.msra.mxu0 0
  %995 = vmatprep.subr.bf16.mxu0 0
  %996 = vmatpush1.bf16.msra.mxu0 %v979
  %997 = vmatprep.subr.bf16.mxu0 0
  %998 = vmatpush2.bf16.msra.mxu0 0
  %999 = vmatprep.subr.bf16.mxu0 0
  %1000 = vmatpush2.bf16.msra.mxu0 0
  %1001 = vmatprep.subr.bf16.mxu0 0
  %1002 = vmatpush2.bf16.msra.mxu0 0
  %1003 = vmatprep.subr.bf16.mxu0 0
  %1004 = vmatpush2.bf16.msra.mxu0 0
  %1005 = vmatprep.subr.bf16.mxu0 0
  %1006 = vmatpush2.bf16.msra.mxu0 0
  %1007 = vmatprep.subr.bf16.mxu0 0
  %1008 = vmatpush2.bf16.msra.mxu0 0
  %1009 = vmatprep.subr.bf16.mxu0 0
  %1010 = vmatpush2.bf16.msra.mxu0 0
  %1011 = vmatprep.subr.bf16.mxu0 0
  %1012 = vmatpush2.bf16.msra.mxu0 0
  %1013 = vmatprep.mubr.bf16.mxu0 0
  %1014 = vmatmul.mubr.bf16.gmra.mxu0 %v976
  %v1015 = vpop.f32.mrf.mxu0
  %v1016 = vadd.f32 0.0, %v1015
  %v1017 = vpop.f32.mrf.mxu0
  %v1018 = vpop.f32.mrf.mxu0
  %v1019 = vpop.f32.mrf.mxu0
  %1020 = vdwg.mxu0
  %1021 = vrot.lane.b32.xlu0 %v792, 64
  %v1022 = vpop.permute.xlu0 %1021
  %1023 = vrot.lane.b32.xlu0 %v793, 64
  %v1024 = vpop.permute.xlu0 %1023
  %v1026 = vsel %vm795, %v1022, 0
  %v1029 = vsel %vm795, %v1024, 0
  %1031 = vmatprep.subr.bf16.mxu0 0
  %1032 = vmatpush1.bf16.xpose.msra.mxu0 0
  %1033 = vmatprep.subr.bf16.mxu0 0
  %1034 = vmatpush1.bf16.xpose.msra.mxu0 0
  %1035 = vmatprep.subr.bf16.mxu0 0
  %1036 = vmatpush1.bf16.xpose.msra.mxu0 0
  %1037 = vmatprep.subr.bf16.mxu0 0
  %1038 = vmatpush1.bf16.xpose.msra.mxu0 0
  %1039 = vmatprep.subr.bf16.mxu0 0
  %1040 = vmatpush1.bf16.xpose.msra.mxu0 0
  %1041 = vmatprep.subr.bf16.mxu0 0
  %1042 = vmatpush1.bf16.xpose.msra.mxu0 0
  %1043 = vmatprep.subr.bf16.mxu0 0
  %1044 = vmatpush1.bf16.xpose.msra.mxu0 0
  %1045 = vmatprep.subr.bf16.mxu0 0
  %1046 = vmatpush1.bf16.xpose.msra.mxu0 %v1029
  %1047 = vmatprep.subr.bf16.mxu0 0
  %1048 = vmatpush2.bf16.xpose.msra.mxu0 0
  %1049 = vmatprep.subr.bf16.mxu0 0
  %1050 = vmatpush2.bf16.xpose.msra.mxu0 0
  %1051 = vmatprep.subr.bf16.mxu0 0
  %1052 = vmatpush2.bf16.xpose.msra.mxu0 0
  %1053 = vmatprep.subr.bf16.mxu0 0
  %1054 = vmatpush2.bf16.xpose.msra.mxu0 0
  %1055 = vmatprep.subr.bf16.mxu0 0
  %1056 = vmatpush2.bf16.xpose.msra.mxu0 0
  %1057 = vmatprep.subr.bf16.mxu0 0
  %1058 = vmatpush2.bf16.xpose.msra.mxu0 0
  %1059 = vmatprep.subr.bf16.mxu0 0
  %1060 = vmatpush2.bf16.xpose.msra.mxu0 0
  %1061 = vmatprep.subr.bf16.mxu0 0
  %1062 = vmatpush2.bf16.xpose.msra.mxu0 0
  %1063 = vmatprep.mubr.bf16.mxu0 0
  %1064 = vmatmul.mubr.bf16.gmra.mxu0 %v1026
  %v1065 = vpop.f32.mrf.mxu0
  %v1066 = vadd.f32 %v60, %v1065
  %v1067 = vpop.f32.mrf.mxu0
  %v1068 = vpop.f32.mrf.mxu0
  %v1069 = vpop.f32.mrf.mxu0
  %1070 = vdwg.mxu0
  %v1071 = vsel %vm842, %v1066, -inf
  %1072 = vmax.xlane.f32.xlu0 %v1071
  %v1073 = vpop.xlane.xlu0 %1072
  %v1074 = vsub.f32 %v1066, %v1073
  %v1075 = vmul.f32 %v1074, 1.442695
  %v1076 = vpow.pop %v1075
  %v1077 = vsel %vm842, %v1076, 0.0
  %1078 = vadd.xlane.f32.xlu0 %v1077
  %v1079 = vpop.xlane.xlu0 %1078
  %v1080 = vmax.f32 %v1079, 1e-30
  %v1081 = vrcp.pop %v1080
  %v1082 = vmul.f32 %v1076, %v1081
  %v1083 = vpack.c.bf16 %v1082, %v1082
  %1084 = vrot.lane.b32.xlu0 %v794, 64
  %v1085 = vpop.permute.xlu0 %1084
  %v1087 = vsel %vm856, %v1083, 0
  %v1090 = vand.u32 %v1085, %v863
  %1092 = vmatprep.subr.bf16.mxu0 0
  %1093 = vmatpush1.bf16.msra.mxu0 0
  %1094 = vmatprep.subr.bf16.mxu0 0
  %1095 = vmatpush1.bf16.msra.mxu0 0
  %1096 = vmatprep.subr.bf16.mxu0 0
  %1097 = vmatpush1.bf16.msra.mxu0 0
  %1098 = vmatprep.subr.bf16.mxu0 0
  %1099 = vmatpush1.bf16.msra.mxu0 0
  %1100 = vmatprep.subr.bf16.mxu0 0
  %1101 = vmatpush1.bf16.msra.mxu0 0
  %1102 = vmatprep.subr.bf16.mxu0 0
  %1103 = vmatpush1.bf16.msra.mxu0 0
  %1104 = vmatprep.subr.bf16.mxu0 0
  %1105 = vmatpush1.bf16.msra.mxu0 0
  %1106 = vmatprep.subr.bf16.mxu0 0
  %1107 = vmatpush1.bf16.msra.mxu0 %v1090
  %1108 = vmatprep.subr.bf16.mxu0 0
  %1109 = vmatpush2.bf16.msra.mxu0 0
  %1110 = vmatprep.subr.bf16.mxu0 0
  %1111 = vmatpush2.bf16.msra.mxu0 0
  %1112 = vmatprep.subr.bf16.mxu0 0
  %1113 = vmatpush2.bf16.msra.mxu0 0
  %1114 = vmatprep.subr.bf16.mxu0 0
  %1115 = vmatpush2.bf16.msra.mxu0 0
  %1116 = vmatprep.subr.bf16.mxu0 0
  %1117 = vmatpush2.bf16.msra.mxu0 0
  %1118 = vmatprep.subr.bf16.mxu0 0
  %1119 = vmatpush2.bf16.msra.mxu0 0
  %1120 = vmatprep.subr.bf16.mxu0 0
  %1121 = vmatpush2.bf16.msra.mxu0 0
  %1122 = vmatprep.subr.bf16.mxu0 0
  %1123 = vmatpush2.bf16.msra.mxu0 0
  %1124 = vmatprep.mubr.bf16.mxu0 0
  %1125 = vmatmul.mubr.bf16.gmra.mxu0 %v1087
  %v1126 = vpop.f32.mrf.mxu0
  %v1127 = vadd.f32 0.0, %v1126
  %v1128 = vpop.f32.mrf.mxu0
  %v1129 = vpop.f32.mrf.mxu0
  %v1130 = vpop.f32.mrf.mxu0
  %1131 = vdwg.mxu0
  %1132 = vrot.lane.b32.xlu0 %v792, 32
  %v1133 = vpop.permute.xlu0 %1132
  %1134 = vrot.lane.b32.xlu0 %v793, 32
  %v1135 = vpop.permute.xlu0 %1134
  %v1137 = vsel %vm795, %v1133, 0
  %v1140 = vsel %vm795, %v1135, 0
  %1142 = vmatprep.subr.bf16.mxu0 0
  %1143 = vmatpush1.bf16.xpose.msra.mxu0 0
  %1144 = vmatprep.subr.bf16.mxu0 0
  %1145 = vmatpush1.bf16.xpose.msra.mxu0 0
  %1146 = vmatprep.subr.bf16.mxu0 0
  %1147 = vmatpush1.bf16.xpose.msra.mxu0 0
  %1148 = vmatprep.subr.bf16.mxu0 0
  %1149 = vmatpush1.bf16.xpose.msra.mxu0 0
  %1150 = vmatprep.subr.bf16.mxu0 0
  %1151 = vmatpush1.bf16.xpose.msra.mxu0 0
  %1152 = vmatprep.subr.bf16.mxu0 0
  %1153 = vmatpush1.bf16.xpose.msra.mxu0 0
  %1154 = vmatprep.subr.bf16.mxu0 0
  %1155 = vmatpush1.bf16.xpose.msra.mxu0 0
  %1156 = vmatprep.subr.bf16.mxu0 0
  %1157 = vmatpush1.bf16.xpose.msra.mxu0 %v1140
  %1158 = vmatprep.subr.bf16.mxu0 0
  %1159 = vmatpush2.bf16.xpose.msra.mxu0 0
  %1160 = vmatprep.subr.bf16.mxu0 0
  %1161 = vmatpush2.bf16.xpose.msra.mxu0 0
  %1162 = vmatprep.subr.bf16.mxu0 0
  %1163 = vmatpush2.bf16.xpose.msra.mxu0 0
  %1164 = vmatprep.subr.bf16.mxu0 0
  %1165 = vmatpush2.bf16.xpose.msra.mxu0 0
  %1166 = vmatprep.subr.bf16.mxu0 0
  %1167 = vmatpush2.bf16.xpose.msra.mxu0 0
  %1168 = vmatprep.subr.bf16.mxu0 0
  %1169 = vmatpush2.bf16.xpose.msra.mxu0 0
  %1170 = vmatprep.subr.bf16.mxu0 0
  %1171 = vmatpush2.bf16.xpose.msra.mxu0 0
  %1172 = vmatprep.subr.bf16.mxu0 0
  %1173 = vmatpush2.bf16.xpose.msra.mxu0 0
  %1174 = vmatprep.mubr.bf16.mxu0 0
  %1175 = vmatmul.mubr.bf16.gmra.mxu0 %v1137
  %v1176 = vpop.f32.mrf.mxu0
  %v1177 = vadd.f32 %v60, %v1176
  %v1178 = vpop.f32.mrf.mxu0
  %v1179 = vpop.f32.mrf.mxu0
  %v1180 = vpop.f32.mrf.mxu0
  %1181 = vdwg.mxu0
  %v1182 = vsel %vm842, %v1177, -inf
  %1183 = vmax.xlane.f32.xlu0 %v1182
  %v1184 = vpop.xlane.xlu0 %1183
  %v1185 = vsub.f32 %v1177, %v1184
  %v1186 = vmul.f32 %v1185, 1.442695
  %v1187 = vpow.pop %v1186
  %v1188 = vsel %vm842, %v1187, 0.0
  %1189 = vadd.xlane.f32.xlu0 %v1188
  %v1190 = vpop.xlane.xlu0 %1189
  %v1191 = vmax.f32 %v1190, 1e-30
  %v1192 = vrcp.pop %v1191
  %v1193 = vmul.f32 %v1187, %v1192
  %v1194 = vpack.c.bf16 %v1193, %v1193
  %1195 = vrot.lane.b32.xlu0 %v794, 32
  %v1196 = vpop.permute.xlu0 %1195
  %v1198 = vsel %vm856, %v1194, 0
  %v1201 = vand.u32 %v1196, %v863
  %1203 = vmatprep.subr.bf16.mxu0 0
  %1204 = vmatpush1.bf16.msra.mxu0 0
  %1205 = vmatprep.subr.bf16.mxu0 0
  %1206 = vmatpush1.bf16.msra.mxu0 0
  %1207 = vmatprep.subr.bf16.mxu0 0
  %1208 = vmatpush1.bf16.msra.mxu0 0
  %1209 = vmatprep.subr.bf16.mxu0 0
  %1210 = vmatpush1.bf16.msra.mxu0 0
  %1211 = vmatprep.subr.bf16.mxu0 0
  %1212 = vmatpush1.bf16.msra.mxu0 0
  %1213 = vmatprep.subr.bf16.mxu0 0
  %1214 = vmatpush1.bf16.msra.mxu0 0
  %1215 = vmatprep.subr.bf16.mxu0 0
  %1216 = vmatpush1.bf16.msra.mxu0 0
  %1217 = vmatprep.subr.bf16.mxu0 0
  %1218 = vmatpush1.bf16.msra.mxu0 %v1201
  %1219 = vmatprep.subr.bf16.mxu0 0
  %1220 = vmatpush2.bf16.msra.mxu0 0
  %1221 = vmatprep.subr.bf16.mxu0 0
  %1222 = vmatpush2.bf16.msra.mxu0 0
  %1223 = vmatprep.subr.bf16.mxu0 0
  %1224 = vmatpush2.bf16.msra.mxu0 0
  %1225 = vmatprep.subr.bf16.mxu0 0
  %1226 = vmatpush2.bf16.msra.mxu0 0
  %1227 = vmatprep.subr.bf16.mxu0 0
  %1228 = vmatpush2.bf16.msra.mxu0 0
  %1229 = vmatprep.subr.bf16.mxu0 0
  %1230 = vmatpush2.bf16.msra.mxu0 0
  %1231 = vmatprep.subr.bf16.mxu0 0
  %1232 = vmatpush2.bf16.msra.mxu0 0
  %1233 = vmatprep.subr.bf16.mxu0 0
  %1234 = vmatpush2.bf16.msra.mxu0 0
  %1235 = vmatprep.mubr.bf16.mxu0 0
  %1236 = vmatmul.mubr.bf16.gmra.mxu0 %v1198
  %v1237 = vpop.f32.mrf.mxu0
  %v1238 = vadd.f32 0.0, %v1237
  %v1239 = vpop.f32.mrf.mxu0
  %v1240 = vpop.f32.mrf.mxu0
  %v1241 = vpop.f32.mrf.mxu0
  %1242 = vdwg.mxu0
  %v1243 = vpack.c.bf16 %v706, %v706
  %v1244 = vpack.c.bf16 %v747, %v747
  %v1245 = vpack.c.bf16 %v788, %v788
  %v1247 = vsel %vm795, %v1243, 0
  %v1250 = vsel %vm795, %v1244, 0
  %1252 = vmatprep.subr.bf16.mxu0 0
  %1253 = vmatpush1.bf16.xpose.msra.mxu0 0
  %1254 = vmatprep.subr.bf16.mxu0 0
  %1255 = vmatpush1.bf16.xpose.msra.mxu0 0
  %1256 = vmatprep.subr.bf16.mxu0 0
  %1257 = vmatpush1.bf16.xpose.msra.mxu0 0
  %1258 = vmatprep.subr.bf16.mxu0 0
  %1259 = vmatpush1.bf16.xpose.msra.mxu0 0
  %1260 = vmatprep.subr.bf16.mxu0 0
  %1261 = vmatpush1.bf16.xpose.msra.mxu0 0
  %1262 = vmatprep.subr.bf16.mxu0 0
  %1263 = vmatpush1.bf16.xpose.msra.mxu0 0
  %1264 = vmatprep.subr.bf16.mxu0 0
  %1265 = vmatpush1.bf16.xpose.msra.mxu0 0
  %1266 = vmatprep.subr.bf16.mxu0 0
  %1267 = vmatpush1.bf16.xpose.msra.mxu0 %v1250
  %1268 = vmatprep.subr.bf16.mxu0 0
  %1269 = vmatpush2.bf16.xpose.msra.mxu0 0
  %1270 = vmatprep.subr.bf16.mxu0 0
  %1271 = vmatpush2.bf16.xpose.msra.mxu0 0
  %1272 = vmatprep.subr.bf16.mxu0 0
  %1273 = vmatpush2.bf16.xpose.msra.mxu0 0
  %1274 = vmatprep.subr.bf16.mxu0 0
  %1275 = vmatpush2.bf16.xpose.msra.mxu0 0
  %1276 = vmatprep.subr.bf16.mxu0 0
  %1277 = vmatpush2.bf16.xpose.msra.mxu0 0
  %1278 = vmatprep.subr.bf16.mxu0 0
  %1279 = vmatpush2.bf16.xpose.msra.mxu0 0
  %1280 = vmatprep.subr.bf16.mxu0 0
  %1281 = vmatpush2.bf16.xpose.msra.mxu0 0
  %1282 = vmatprep.subr.bf16.mxu0 0
  %1283 = vmatpush2.bf16.xpose.msra.mxu0 0
  %1284 = vmatprep.mubr.bf16.mxu0 0
  %1285 = vmatmul.mubr.bf16.gmra.mxu0 %v1247
  %v1286 = vpop.f32.mrf.mxu0
  %v1287 = vadd.f32 %v60, %v1286
  %v1288 = vpop.f32.mrf.mxu0
  %v1289 = vpop.f32.mrf.mxu0
  %v1290 = vpop.f32.mrf.mxu0
  %1291 = vdwg.mxu0
  %v1292 = vsel %vm842, %v1287, -inf
  %1293 = vmax.xlane.f32.xlu0 %v1292
  %v1294 = vpop.xlane.xlu0 %1293
  %v1295 = vsub.f32 %v1287, %v1294
  %v1296 = vmul.f32 %v1295, 1.442695
  %v1297 = vpow.pop %v1296
  %v1298 = vsel %vm842, %v1297, 0.0
  %1299 = vadd.xlane.f32.xlu0 %v1298
  %v1300 = vpop.xlane.xlu0 %1299
  %v1301 = vmax.f32 %v1300, 1e-30
  %v1302 = vrcp.pop %v1301
  %v1303 = vmul.f32 %v1297, %v1302
  %v1304 = vpack.c.bf16 %v1303, %v1303
  %v1306 = vsel %vm856, %v1304, 0
  %v1309 = vand.u32 %v1245, %v863
  %1311 = vmatprep.subr.bf16.mxu0 0
  %1312 = vmatpush1.bf16.msra.mxu0 0
  %1313 = vmatprep.subr.bf16.mxu0 0
  %1314 = vmatpush1.bf16.msra.mxu0 0
  %1315 = vmatprep.subr.bf16.mxu0 0
  %1316 = vmatpush1.bf16.msra.mxu0 0
  %1317 = vmatprep.subr.bf16.mxu0 0
  %1318 = vmatpush1.bf16.msra.mxu0 0
  %1319 = vmatprep.subr.bf16.mxu0 0
  %1320 = vmatpush1.bf16.msra.mxu0 0
  %1321 = vmatprep.subr.bf16.mxu0 0
  %1322 = vmatpush1.bf16.msra.mxu0 0
  %1323 = vmatprep.subr.bf16.mxu0 0
  %1324 = vmatpush1.bf16.msra.mxu0 0
  %1325 = vmatprep.subr.bf16.mxu0 0
  %1326 = vmatpush1.bf16.msra.mxu0 %v1309
  %1327 = vmatprep.subr.bf16.mxu0 0
  %1328 = vmatpush2.bf16.msra.mxu0 0
  %1329 = vmatprep.subr.bf16.mxu0 0
  %1330 = vmatpush2.bf16.msra.mxu0 0
  %1331 = vmatprep.subr.bf16.mxu0 0
  %1332 = vmatpush2.bf16.msra.mxu0 0
  %1333 = vmatprep.subr.bf16.mxu0 0
  %1334 = vmatpush2.bf16.msra.mxu0 0
  %1335 = vmatprep.subr.bf16.mxu0 0
  %1336 = vmatpush2.bf16.msra.mxu0 0
  %1337 = vmatprep.subr.bf16.mxu0 0
  %1338 = vmatpush2.bf16.msra.mxu0 0
  %1339 = vmatprep.subr.bf16.mxu0 0
  %1340 = vmatpush2.bf16.msra.mxu0 0
  %1341 = vmatprep.subr.bf16.mxu0 0
  %1342 = vmatpush2.bf16.msra.mxu0 0
  %1343 = vmatprep.mubr.bf16.mxu0 0
  %1344 = vmatmul.mubr.bf16.gmra.mxu0 %v1306
  %v1345 = vpop.f32.mrf.mxu0
  %v1346 = vadd.f32 0.0, %v1345
  %v1347 = vpop.f32.mrf.mxu0
  %v1348 = vpop.f32.mrf.mxu0
  %v1349 = vpop.f32.mrf.mxu0
  %1350 = vdwg.mxu0
  %1352 = vrot.lane.b32.xlu0 %v1243, 96
  %v1353 = vpop.permute.xlu0 %1352
  %1355 = vrot.lane.b32.xlu0 %v1244, 96
  %v1356 = vpop.permute.xlu0 %1355
  %v1358 = vsel %vm795, %v1353, 0
  %v1361 = vsel %vm795, %v1356, 0
  %1363 = vmatprep.subr.bf16.mxu0 0
  %1364 = vmatpush1.bf16.xpose.msra.mxu0 0
  %1365 = vmatprep.subr.bf16.mxu0 0
  %1366 = vmatpush1.bf16.xpose.msra.mxu0 0
  %1367 = vmatprep.subr.bf16.mxu0 0
  %1368 = vmatpush1.bf16.xpose.msra.mxu0 0
  %1369 = vmatprep.subr.bf16.mxu0 0
  %1370 = vmatpush1.bf16.xpose.msra.mxu0 0
  %1371 = vmatprep.subr.bf16.mxu0 0
  %1372 = vmatpush1.bf16.xpose.msra.mxu0 0
  %1373 = vmatprep.subr.bf16.mxu0 0
  %1374 = vmatpush1.bf16.xpose.msra.mxu0 0
  %1375 = vmatprep.subr.bf16.mxu0 0
  %1376 = vmatpush1.bf16.xpose.msra.mxu0 0
  %1377 = vmatprep.subr.bf16.mxu0 0
  %1378 = vmatpush1.bf16.xpose.msra.mxu0 %v1361
  %1379 = vmatprep.subr.bf16.mxu0 0
  %1380 = vmatpush2.bf16.xpose.msra.mxu0 0
  %1381 = vmatprep.subr.bf16.mxu0 0
  %1382 = vmatpush2.bf16.xpose.msra.mxu0 0
  %1383 = vmatprep.subr.bf16.mxu0 0
  %1384 = vmatpush2.bf16.xpose.msra.mxu0 0
  %1385 = vmatprep.subr.bf16.mxu0 0
  %1386 = vmatpush2.bf16.xpose.msra.mxu0 0
  %1387 = vmatprep.subr.bf16.mxu0 0
  %1388 = vmatpush2.bf16.xpose.msra.mxu0 0
  %1389 = vmatprep.subr.bf16.mxu0 0
  %1390 = vmatpush2.bf16.xpose.msra.mxu0 0
  %1391 = vmatprep.subr.bf16.mxu0 0
  %1392 = vmatpush2.bf16.xpose.msra.mxu0 0
  %1393 = vmatprep.subr.bf16.mxu0 0
  %1394 = vmatpush2.bf16.xpose.msra.mxu0 0
  %1395 = vmatprep.mubr.bf16.mxu0 0
  %1396 = vmatmul.mubr.bf16.gmra.mxu0 %v1358
  %v1397 = vpop.f32.mrf.mxu0
  %v1398 = vadd.f32 %v60, %v1397
  %v1399 = vpop.f32.mrf.mxu0
  %v1400 = vpop.f32.mrf.mxu0
  %v1401 = vpop.f32.mrf.mxu0
  %1402 = vdwg.mxu0
  %v1403 = vsel %vm842, %v1398, -inf
  %1404 = vmax.xlane.f32.xlu0 %v1403
  %v1405 = vpop.xlane.xlu0 %1404
  %v1406 = vsub.f32 %v1398, %v1405
  %v1407 = vmul.f32 %v1406, 1.442695
  %v1408 = vpow.pop %v1407
  %v1409 = vsel %vm842, %v1408, 0.0
  %1410 = vadd.xlane.f32.xlu0 %v1409
  %v1411 = vpop.xlane.xlu0 %1410
  %v1412 = vmax.f32 %v1411, 1e-30
  %v1413 = vrcp.pop %v1412
  %v1414 = vmul.f32 %v1408, %v1413
  %v1415 = vpack.c.bf16 %v1414, %v1414
  %1417 = vrot.lane.b32.xlu0 %v1245, 96
  %v1418 = vpop.permute.xlu0 %1417
  %v1420 = vsel %vm856, %v1415, 0
  %v1423 = vand.u32 %v1418, %v863
  %1425 = vmatprep.subr.bf16.mxu0 0
  %1426 = vmatpush1.bf16.msra.mxu0 0
  %1427 = vmatprep.subr.bf16.mxu0 0
  %1428 = vmatpush1.bf16.msra.mxu0 0
  %1429 = vmatprep.subr.bf16.mxu0 0
  %1430 = vmatpush1.bf16.msra.mxu0 0
  %1431 = vmatprep.subr.bf16.mxu0 0
  %1432 = vmatpush1.bf16.msra.mxu0 0
  %1433 = vmatprep.subr.bf16.mxu0 0
  %1434 = vmatpush1.bf16.msra.mxu0 0
  %1435 = vmatprep.subr.bf16.mxu0 0
  %1436 = vmatpush1.bf16.msra.mxu0 0
  %1437 = vmatprep.subr.bf16.mxu0 0
  %1438 = vmatpush1.bf16.msra.mxu0 0
  %1439 = vmatprep.subr.bf16.mxu0 0
  %1440 = vmatpush1.bf16.msra.mxu0 %v1423
  %1441 = vmatprep.subr.bf16.mxu0 0
  %1442 = vmatpush2.bf16.msra.mxu0 0
  %1443 = vmatprep.subr.bf16.mxu0 0
  %1444 = vmatpush2.bf16.msra.mxu0 0
  %1445 = vmatprep.subr.bf16.mxu0 0
  %1446 = vmatpush2.bf16.msra.mxu0 0
  %1447 = vmatprep.subr.bf16.mxu0 0
  %1448 = vmatpush2.bf16.msra.mxu0 0
  %1449 = vmatprep.subr.bf16.mxu0 0
  %1450 = vmatpush2.bf16.msra.mxu0 0
  %1451 = vmatprep.subr.bf16.mxu0 0
  %1452 = vmatpush2.bf16.msra.mxu0 0
  %1453 = vmatprep.subr.bf16.mxu0 0
  %1454 = vmatpush2.bf16.msra.mxu0 0
  %1455 = vmatprep.subr.bf16.mxu0 0
  %1456 = vmatpush2.bf16.msra.mxu0 0
  %1457 = vmatprep.mubr.bf16.mxu0 0
  %1458 = vmatmul.mubr.bf16.gmra.mxu0 %v1420
  %v1459 = vpop.f32.mrf.mxu0
  %v1460 = vadd.f32 0.0, %v1459
  %v1461 = vpop.f32.mrf.mxu0
  %v1462 = vpop.f32.mrf.mxu0
  %v1463 = vpop.f32.mrf.mxu0
  %1464 = vdwg.mxu0
  %1465 = vrot.lane.b32.xlu0 %v1243, 64
  %v1466 = vpop.permute.xlu0 %1465
  %1467 = vrot.lane.b32.xlu0 %v1244, 64
  %v1468 = vpop.permute.xlu0 %1467
  %v1470 = vsel %vm795, %v1466, 0
  %v1473 = vsel %vm795, %v1468, 0
  %1475 = vmatprep.subr.bf16.mxu0 0
  %1476 = vmatpush1.bf16.xpose.msra.mxu0 0
  %1477 = vmatprep.subr.bf16.mxu0 0
  %1478 = vmatpush1.bf16.xpose.msra.mxu0 0
  %1479 = vmatprep.subr.bf16.mxu0 0
  %1480 = vmatpush1.bf16.xpose.msra.mxu0 0
  %1481 = vmatprep.subr.bf16.mxu0 0
  %1482 = vmatpush1.bf16.xpose.msra.mxu0 0
  %1483 = vmatprep.subr.bf16.mxu0 0
  %1484 = vmatpush1.bf16.xpose.msra.mxu0 0
  %1485 = vmatprep.subr.bf16.mxu0 0
  %1486 = vmatpush1.bf16.xpose.msra.mxu0 0
  %1487 = vmatprep.subr.bf16.mxu0 0
  %1488 = vmatpush1.bf16.xpose.msra.mxu0 0
  %1489 = vmatprep.subr.bf16.mxu0 0
  %1490 = vmatpush1.bf16.xpose.msra.mxu0 %v1473
  %1491 = vmatprep.subr.bf16.mxu0 0
  %1492 = vmatpush2.bf16.xpose.msra.mxu0 0
  %1493 = vmatprep.subr.bf16.mxu0 0
  %1494 = vmatpush2.bf16.xpose.msra.mxu0 0
  %1495 = vmatprep.subr.bf16.mxu0 0
  %1496 = vmatpush2.bf16.xpose.msra.mxu0 0
  %1497 = vmatprep.subr.bf16.mxu0 0
  %1498 = vmatpush2.bf16.xpose.msra.mxu0 0
  %1499 = vmatprep.subr.bf16.mxu0 0
  %1500 = vmatpush2.bf16.xpose.msra.mxu0 0
  %1501 = vmatprep.subr.bf16.mxu0 0
  %1502 = vmatpush2.bf16.xpose.msra.mxu0 0
  %1503 = vmatprep.subr.bf16.mxu0 0
  %1504 = vmatpush2.bf16.xpose.msra.mxu0 0
  %1505 = vmatprep.subr.bf16.mxu0 0
  %1506 = vmatpush2.bf16.xpose.msra.mxu0 0
  %1507 = vmatprep.mubr.bf16.mxu0 0
  %1508 = vmatmul.mubr.bf16.gmra.mxu0 %v1470
  %v1509 = vpop.f32.mrf.mxu0
  %v1510 = vadd.f32 %v60, %v1509
  %v1511 = vpop.f32.mrf.mxu0
  %v1512 = vpop.f32.mrf.mxu0
  %v1513 = vpop.f32.mrf.mxu0
  %1514 = vdwg.mxu0
  %v1515 = vsel %vm842, %v1510, -inf
  %1516 = vmax.xlane.f32.xlu0 %v1515
  %v1517 = vpop.xlane.xlu0 %1516
  %v1518 = vsub.f32 %v1510, %v1517
  %v1519 = vmul.f32 %v1518, 1.442695
  %v1520 = vpow.pop %v1519
  %v1521 = vsel %vm842, %v1520, 0.0
  %1522 = vadd.xlane.f32.xlu0 %v1521
  %v1523 = vpop.xlane.xlu0 %1522
  %v1524 = vmax.f32 %v1523, 1e-30
  %v1525 = vrcp.pop %v1524
  %v1526 = vmul.f32 %v1520, %v1525
  %v1527 = vpack.c.bf16 %v1526, %v1526
  %1528 = vrot.lane.b32.xlu0 %v1245, 64
  %v1529 = vpop.permute.xlu0 %1528
  %v1531 = vsel %vm856, %v1527, 0
  %v1534 = vand.u32 %v1529, %v863
  %1536 = vmatprep.subr.bf16.mxu0 0
  %1537 = vmatpush1.bf16.msra.mxu0 0
  %1538 = vmatprep.subr.bf16.mxu0 0
  %1539 = vmatpush1.bf16.msra.mxu0 0
  %1540 = vmatprep.subr.bf16.mxu0 0
  %1541 = vmatpush1.bf16.msra.mxu0 0
  %1542 = vmatprep.subr.bf16.mxu0 0
  %1543 = vmatpush1.bf16.msra.mxu0 0
  %1544 = vmatprep.subr.bf16.mxu0 0
  %1545 = vmatpush1.bf16.msra.mxu0 0
  %1546 = vmatprep.subr.bf16.mxu0 0
  %1547 = vmatpush1.bf16.msra.mxu0 0
  %1548 = vmatprep.subr.bf16.mxu0 0
  %1549 = vmatpush1.bf16.msra.mxu0 0
  %1550 = vmatprep.subr.bf16.mxu0 0
  %1551 = vmatpush1.bf16.msra.mxu0 %v1534
  %1552 = vmatprep.subr.bf16.mxu0 0
  %1553 = vmatpush2.bf16.msra.mxu0 0
  %1554 = vmatprep.subr.bf16.mxu0 0
  %1555 = vmatpush2.bf16.msra.mxu0 0
  %1556 = vmatprep.subr.bf16.mxu0 0
  %1557 = vmatpush2.bf16.msra.mxu0 0
  %1558 = vmatprep.subr.bf16.mxu0 0
  %1559 = vmatpush2.bf16.msra.mxu0 0
  %1560 = vmatprep.subr.bf16.mxu0 0
  %1561 = vmatpush2.bf16.msra.mxu0 0
  %1562 = vmatprep.subr.bf16.mxu0 0
  %1563 = vmatpush2.bf16.msra.mxu0 0
  %1564 = vmatprep.subr.bf16.mxu0 0
  %1565 = vmatpush2.bf16.msra.mxu0 0
  %1566 = vmatprep.subr.bf16.mxu0 0
  %1567 = vmatpush2.bf16.msra.mxu0 0
  %1568 = vmatprep.mubr.bf16.mxu0 0
  %1569 = vmatmul.mubr.bf16.gmra.mxu0 %v1531
  %v1570 = vpop.f32.mrf.mxu0
  %v1571 = vadd.f32 0.0, %v1570
  %v1572 = vpop.f32.mrf.mxu0
  %v1573 = vpop.f32.mrf.mxu0
  %v1574 = vpop.f32.mrf.mxu0
  %1575 = vdwg.mxu0
  %1576 = vrot.lane.b32.xlu0 %v1243, 32
  %v1577 = vpop.permute.xlu0 %1576
  %1578 = vrot.lane.b32.xlu0 %v1244, 32
  %v1579 = vpop.permute.xlu0 %1578
  %v1581 = vsel %vm795, %v1577, 0
  %v1584 = vsel %vm795, %v1579, 0
  %1586 = vmatprep.subr.bf16.mxu0 0
  %1587 = vmatpush1.bf16.xpose.msra.mxu0 0
  %1588 = vmatprep.subr.bf16.mxu0 0
  %1589 = vmatpush1.bf16.xpose.msra.mxu0 0
  %1590 = vmatprep.subr.bf16.mxu0 0
  %1591 = vmatpush1.bf16.xpose.msra.mxu0 0
  %1592 = vmatprep.subr.bf16.mxu0 0
  %1593 = vmatpush1.bf16.xpose.msra.mxu0 0
  %1594 = vmatprep.subr.bf16.mxu0 0
  %1595 = vmatpush1.bf16.xpose.msra.mxu0 0
  %1596 = vmatprep.subr.bf16.mxu0 0
  %1597 = vmatpush1.bf16.xpose.msra.mxu0 0
  %1598 = vmatprep.subr.bf16.mxu0 0
  %1599 = vmatpush1.bf16.xpose.msra.mxu0 0
  %1600 = vmatprep.subr.bf16.mxu0 0
  %1601 = vmatpush1.bf16.xpose.msra.mxu0 %v1584
  %1602 = vmatprep.subr.bf16.mxu0 0
  %1603 = vmatpush2.bf16.xpose.msra.mxu0 0
  %1604 = vmatprep.subr.bf16.mxu0 0
  %1605 = vmatpush2.bf16.xpose.msra.mxu0 0
  %1606 = vmatprep.subr.bf16.mxu0 0
  %1607 = vmatpush2.bf16.xpose.msra.mxu0 0
  %1608 = vmatprep.subr.bf16.mxu0 0
  %1609 = vmatpush2.bf16.xpose.msra.mxu0 0
  %1610 = vmatprep.subr.bf16.mxu0 0
  %1611 = vmatpush2.bf16.xpose.msra.mxu0 0
  %1612 = vmatprep.subr.bf16.mxu0 0
  %1613 = vmatpush2.bf16.xpose.msra.mxu0 0
  %1614 = vmatprep.subr.bf16.mxu0 0
  %1615 = vmatpush2.bf16.xpose.msra.mxu0 0
  %1616 = vmatprep.subr.bf16.mxu0 0
  %1617 = vmatpush2.bf16.xpose.msra.mxu0 0
  %1618 = vmatprep.mubr.bf16.mxu0 0
  %1619 = vmatmul.mubr.bf16.gmra.mxu0 %v1581
  %v1620 = vpop.f32.mrf.mxu0
  %v1621 = vadd.f32 %v60, %v1620
  %v1622 = vpop.f32.mrf.mxu0
  %v1623 = vpop.f32.mrf.mxu0
  %v1624 = vpop.f32.mrf.mxu0
  %1625 = vdwg.mxu0
  %v1626 = vsel %vm842, %v1621, -inf
  %1627 = vmax.xlane.f32.xlu0 %v1626
  %v1628 = vpop.xlane.xlu0 %1627
  %v1629 = vsub.f32 %v1621, %v1628
  %v1630 = vmul.f32 %v1629, 1.442695
  %v1631 = vpow.pop %v1630
  %v1632 = vsel %vm842, %v1631, 0.0
  %1633 = vadd.xlane.f32.xlu0 %v1632
  %v1634 = vpop.xlane.xlu0 %1633
  %v1635 = vmax.f32 %v1634, 1e-30
  %v1636 = vrcp.pop %v1635
  %v1637 = vmul.f32 %v1631, %v1636
  %v1638 = vpack.c.bf16 %v1637, %v1637
  %1639 = vrot.lane.b32.xlu0 %v1245, 32
  %v1640 = vpop.permute.xlu0 %1639
  %v1642 = vsel %vm856, %v1638, 0
  %v1645 = vand.u32 %v1640, %v863
  %1647 = vmatprep.subr.bf16.mxu0 0
  %1648 = vmatpush1.bf16.msra.mxu0 0
  %1649 = vmatprep.subr.bf16.mxu0 0
  %1650 = vmatpush1.bf16.msra.mxu0 0
  %1651 = vmatprep.subr.bf16.mxu0 0
  %1652 = vmatpush1.bf16.msra.mxu0 0
  %1653 = vmatprep.subr.bf16.mxu0 0
  %1654 = vmatpush1.bf16.msra.mxu0 0
  %1655 = vmatprep.subr.bf16.mxu0 0
  %1656 = vmatpush1.bf16.msra.mxu0 0
  %1657 = vmatprep.subr.bf16.mxu0 0
  %1658 = vmatpush1.bf16.msra.mxu0 0
  %1659 = vmatprep.subr.bf16.mxu0 0
  %1660 = vmatpush1.bf16.msra.mxu0 0
  %1661 = vmatprep.subr.bf16.mxu0 0
  %1662 = vmatpush1.bf16.msra.mxu0 %v1645
  %1663 = vmatprep.subr.bf16.mxu0 0
  %1664 = vmatpush2.bf16.msra.mxu0 0
  %1665 = vmatprep.subr.bf16.mxu0 0
  %1666 = vmatpush2.bf16.msra.mxu0 0
  %1667 = vmatprep.subr.bf16.mxu0 0
  %1668 = vmatpush2.bf16.msra.mxu0 0
  %1669 = vmatprep.subr.bf16.mxu0 0
  %1670 = vmatpush2.bf16.msra.mxu0 0
  %1671 = vmatprep.subr.bf16.mxu0 0
  %1672 = vmatpush2.bf16.msra.mxu0 0
  %1673 = vmatprep.subr.bf16.mxu0 0
  %1674 = vmatpush2.bf16.msra.mxu0 0
  %1675 = vmatprep.subr.bf16.mxu0 0
  %1676 = vmatpush2.bf16.msra.mxu0 0
  %1677 = vmatprep.subr.bf16.mxu0 0
  %1678 = vmatpush2.bf16.msra.mxu0 0
  %1679 = vmatprep.mubr.bf16.mxu0 0
  %1680 = vmatmul.mubr.bf16.gmra.mxu0 %v1642
  %v1681 = vpop.f32.mrf.mxu0
  %v1682 = vadd.f32 0.0, %v1681
  %v1683 = vpop.f32.mrf.mxu0
  %v1684 = vpop.f32.mrf.mxu0
  %v1685 = vpop.f32.mrf.mxu0
  %1686 = vdwg.mxu0
  %1688 = vrot.lane.b32.xlu0 %v1016, 32
  %v1689 = vpop.permute.xlu0 %1688
  %1692 = vrot.lane.b32.xlu0 %v1127, 64
  %v1693 = vpop.permute.xlu0 %1692
  %1696 = vrot.lane.b32.xlu0 %v1238, 96
  %v1697 = vpop.permute.xlu0 %1696
  %1700 = vrot.lane.b32.xlu0 %v1460, 32
  %v1701 = vpop.permute.xlu0 %1700
  %1704 = vrot.lane.b32.xlu0 %v1571, 64
  %v1705 = vpop.permute.xlu0 %1704
  %1708 = vrot.lane.b32.xlu0 %v1682, 96
  %v1709 = vpop.permute.xlu0 %1708
  %v1711 = vsel %vm795, %v902, %v1689
  %vm1712 = vcmask 523264
  %v1713 = vsel %vm1712, %v1711, %v1693
  %vm1714 = vcmask 785408
  %v1715 = vsel %vm1714, %v1713, %v1697
  %v1716 = vsel %vm795, %v1346, %v1701
  %v1717 = vsel %vm1712, %v1716, %v1705
  %v1718 = vsel %vm1714, %v1717, %v1709
  %v1719 = vpack.c.bf16 %v1715, %v1715
  %v1720 = vpack.c.bf16 %v1718, %v1718
  %v1721 = vld [vmem:[%s4] sm:$0xff]
  %v1722 = vld [vmem:[%s4 + $0x8] sm:$0xff]
  %v1723 = vld [vmem:[%s4 + $0x10] sm:$0xff]
  %v1724 = vld [vmem:[%s4 + $0x18] sm:$0xff]
  %v1725 = vld [vmem:[%s4 + $0x20] sm:$0xff]
  %v1726 = vld [vmem:[%s4 + $0x28] sm:$0xff]
  %v1727 = vld [vmem:[%s4 + $0x30] sm:$0xff]
  %v1728 = vld [vmem:[%s4 + $0x38] sm:$0xff]
  %v1729 = vld [vmem:[%s4 + $0x40] sm:$0xff]
  %v1730 = vld [vmem:[%s4 + $0x48] sm:$0xff]
  %v1731 = vld [vmem:[%s4 + $0x50] sm:$0xff]
  %v1732 = vld [vmem:[%s4 + $0x58] sm:$0xff]
  %v1733 = vld [vmem:[%s4 + $0x60] sm:$0xff]
  %v1734 = vld [vmem:[%s4 + $0x68] sm:$0xff]
  %v1735 = vld [vmem:[%s4 + $0x70] sm:$0xff]
  %v1736 = vld [vmem:[%s4 + $0x78] sm:$0xff]
  %v1737 = vld [vmem:[%s4 + $0x80] sm:$0xff]
  %v1738 = vld [vmem:[%s4 + $0x88] sm:$0xff]
  %v1739 = vld [vmem:[%s4 + $0x90] sm:$0xff]
  %v1740 = vld [vmem:[%s4 + $0x98] sm:$0xff]
  %v1741 = vld [vmem:[%s4 + $0xa0] sm:$0xff]
  %v1742 = vld [vmem:[%s4 + $0xa8] sm:$0xff]
  %v1743 = vld [vmem:[%s4 + $0xb0] sm:$0xff]
  %v1744 = vld [vmem:[%s4 + $0xb8] sm:$0xff]
  %v1745 = vld [vmem:[%s4 + $0xc0] sm:$0xff]
  %v1746 = vld [vmem:[%s4 + $0xc8] sm:$0xff]
  %v1747 = vld [vmem:[%s4 + $0xd0] sm:$0xff]
  %v1748 = vld [vmem:[%s4 + $0xd8] sm:$0xff]
  %v1749 = vld [vmem:[%s4 + $0xe0] sm:$0xff]
  %v1750 = vld [vmem:[%s4 + $0xe8] sm:$0xff]
  %v1751 = vld [vmem:[%s4 + $0xf0] sm:$0xff]
  %v1752 = vld [vmem:[%s4 + $0xf8] sm:$0xff]
  %v1753 = vld [vmem:[%s5] sm:$0x3]
  %v1755 = vlaneseq
  %v1756 = vshrl.u32 %v1755, 7
  %v1757 = vsub.s32 0, %v1756
  %v1758 = vrot.slane %v1753, %v1757
  %v1759 = vlaneseq
  %v1760 = vshrl.u32 %v1759, 7
  %v1761 = vsub.s32 1, %v1760
  %v1762 = vrot.slane %v1753, %v1761
  %v1797 = vunpack.c.l.b16 %v1721
  %v1798 = vunpack.c.h.b16 %v1721
  %v1799 = vunpack.c.l.b16 %v1722
  %v1800 = vunpack.c.h.b16 %v1722
  %v1801 = vunpack.c.l.b16 %v1723
  %v1802 = vunpack.c.h.b16 %v1723
  %v1803 = vunpack.c.l.b16 %v1724
  %v1804 = vunpack.c.h.b16 %v1724
  %v1805 = vunpack.c.l.b16 %v1725
  %v1806 = vunpack.c.h.b16 %v1725
  %v1807 = vunpack.c.l.b16 %v1726
  %v1808 = vunpack.c.h.b16 %v1726
  %v1809 = vunpack.c.l.b16 %v1727
  %v1810 = vunpack.c.h.b16 %v1727
  %v1811 = vunpack.c.l.b16 %v1728
  %v1812 = vunpack.c.h.b16 %v1728
  %v1813 = vunpack.c.l.b16 %v1729
  %v1814 = vunpack.c.h.b16 %v1729
  %v1815 = vunpack.c.l.b16 %v1730
  %v1816 = vunpack.c.h.b16 %v1730
  %v1817 = vunpack.c.l.b16 %v1731
  %v1818 = vunpack.c.h.b16 %v1731
  %v1819 = vunpack.c.l.b16 %v1732
  %v1820 = vunpack.c.h.b16 %v1732
  %v1821 = vunpack.c.l.b16 %v1733
  %v1822 = vunpack.c.h.b16 %v1733
  %v1823 = vunpack.c.l.b16 %v1734
  %v1824 = vunpack.c.h.b16 %v1734
  %v1825 = vunpack.c.l.b16 %v1735
  %v1826 = vunpack.c.h.b16 %v1735
  %v1827 = vunpack.c.l.b16 %v1736
  %v1828 = vunpack.c.h.b16 %v1736
  %v1829 = vunpack.c.l.b16 %v1737
  %v1830 = vunpack.c.h.b16 %v1737
  %v1831 = vunpack.c.l.b16 %v1738
  %v1832 = vunpack.c.h.b16 %v1738
  %v1833 = vunpack.c.l.b16 %v1739
  %v1834 = vunpack.c.h.b16 %v1739
  %v1835 = vunpack.c.l.b16 %v1740
  %v1836 = vunpack.c.h.b16 %v1740
  %v1837 = vunpack.c.l.b16 %v1741
  %v1838 = vunpack.c.h.b16 %v1741
  %v1839 = vunpack.c.l.b16 %v1742
  %v1840 = vunpack.c.h.b16 %v1742
  %v1841 = vunpack.c.l.b16 %v1743
  %v1842 = vunpack.c.h.b16 %v1743
  %v1843 = vunpack.c.l.b16 %v1744
  %v1844 = vunpack.c.h.b16 %v1744
  %v1845 = vunpack.c.l.b16 %v1745
  %v1846 = vunpack.c.h.b16 %v1745
  %v1847 = vunpack.c.l.b16 %v1746
  %v1848 = vunpack.c.h.b16 %v1746
  %v1849 = vunpack.c.l.b16 %v1747
  %v1850 = vunpack.c.h.b16 %v1747
  %v1851 = vunpack.c.l.b16 %v1748
  %v1852 = vunpack.c.h.b16 %v1748
  %v1853 = vunpack.c.l.b16 %v1749
  %v1854 = vunpack.c.h.b16 %v1749
  %v1855 = vunpack.c.l.b16 %v1750
  %v1856 = vunpack.c.h.b16 %v1750
  %v1857 = vunpack.c.l.b16 %v1751
  %v1858 = vunpack.c.h.b16 %v1751
  %v1859 = vunpack.c.l.b16 %v1752
  %v1860 = vunpack.c.h.b16 %v1752
  %v1861 = vpack.c.b16 %v1799, %v1797
  %v1862 = vpack.c.b16 %v1800, %v1798
  %v1863 = vpack.c.b16 %v1803, %v1801
  %v1864 = vpack.c.b16 %v1804, %v1802
  %v1865 = vpack.c.b16 %v1807, %v1805
  %v1866 = vpack.c.b16 %v1808, %v1806
  %v1867 = vpack.c.b16 %v1811, %v1809
  %v1868 = vpack.c.b16 %v1812, %v1810
  %v1869 = vpack.c.b16 %v1815, %v1813
  %v1870 = vpack.c.b16 %v1816, %v1814
  %v1871 = vpack.c.b16 %v1819, %v1817
  %v1872 = vpack.c.b16 %v1820, %v1818
  %v1873 = vpack.c.b16 %v1823, %v1821
  %v1874 = vpack.c.b16 %v1824, %v1822
  %v1875 = vpack.c.b16 %v1827, %v1825
  %v1876 = vpack.c.b16 %v1828, %v1826
  %v1877 = vpack.c.b16 %v1831, %v1829
  %v1878 = vpack.c.b16 %v1832, %v1830
  %v1879 = vpack.c.b16 %v1835, %v1833
  %v1880 = vpack.c.b16 %v1836, %v1834
  %v1881 = vpack.c.b16 %v1839, %v1837
  %v1882 = vpack.c.b16 %v1840, %v1838
  %v1883 = vpack.c.b16 %v1843, %v1841
  %v1884 = vpack.c.b16 %v1844, %v1842
  %v1885 = vpack.c.b16 %v1847, %v1845
  %v1886 = vpack.c.b16 %v1848, %v1846
  %v1887 = vpack.c.b16 %v1851, %v1849
  %v1888 = vpack.c.b16 %v1852, %v1850
  %v1889 = vpack.c.b16 %v1855, %v1853
  %v1890 = vpack.c.b16 %v1856, %v1854
  %v1891 = vpack.c.b16 %v1859, %v1857
  %v1892 = vpack.c.b16 %v1860, %v1858
  %1925 = vmatprep.subr.bf16.mxu0 %v1876
  %1926 = vmatpush1.bf16.msra.mxu0 %v1875
  %1927 = vmatprep.subr.bf16.mxu0 %v1874
  %1928 = vmatpush1.bf16.msra.mxu0 %v1873
  %1929 = vmatprep.subr.bf16.mxu0 %v1872
  %1930 = vmatpush1.bf16.msra.mxu0 %v1871
  %1931 = vmatprep.subr.bf16.mxu0 %v1870
  %1932 = vmatpush1.bf16.msra.mxu0 %v1869
  %1933 = vmatprep.subr.bf16.mxu0 %v1868
  %1934 = vmatpush1.bf16.msra.mxu0 %v1867
  %1935 = vmatprep.subr.bf16.mxu0 %v1866
  %1936 = vmatpush1.bf16.msra.mxu0 %v1865
  %1937 = vmatprep.subr.bf16.mxu0 %v1864
  %1938 = vmatpush1.bf16.msra.mxu0 %v1863
  %1939 = vmatprep.subr.bf16.mxu0 %v1862
  %1940 = vmatpush1.bf16.msra.mxu0 %v1861
  %1941 = vmatprep.subr.bf16.mxu0 %v1892
  %1942 = vmatpush2.bf16.msra.mxu0 %v1891
  %1943 = vmatprep.subr.bf16.mxu0 %v1890
  %1944 = vmatpush2.bf16.msra.mxu0 %v1889
  %1945 = vmatprep.subr.bf16.mxu0 %v1888
  %1946 = vmatpush2.bf16.msra.mxu0 %v1887
  %1947 = vmatprep.subr.bf16.mxu0 %v1886
  %1948 = vmatpush2.bf16.msra.mxu0 %v1885
  %1949 = vmatprep.subr.bf16.mxu0 %v1884
  %1950 = vmatpush2.bf16.msra.mxu0 %v1883
  %1951 = vmatprep.subr.bf16.mxu0 %v1882
  %1952 = vmatpush2.bf16.msra.mxu0 %v1881
  %1953 = vmatprep.subr.bf16.mxu0 %v1880
  %1954 = vmatpush2.bf16.msra.mxu0 %v1879
  %1955 = vmatprep.subr.bf16.mxu0 %v1878
  %1956 = vmatpush2.bf16.msra.mxu0 %v1877
  %1957 = vmatprep.mubr.bf16.mxu0 %v1720
  %1958 = vmatmul.mubr.bf16.gmra.mxu0 %v1719
  %v1959 = vpop.f32.mrf.mxu0
  %v1960 = vadd.f32 %v1758, %v1959
  %v1961 = vpop.f32.mrf.mxu0
  %v1962 = vadd.f32 %v1762, %v1961
  %v1963 = vpop.f32.mrf.mxu0
  %v1964 = vpop.f32.mrf.mxu0
  %1965 = vdwg.mxu0
  %v1966 = vadd.f32 %v56, %v1960
  %v1967 = vadd.f32 %v57, %v1962
  %v1968 = vld [vmem:[%s6] sm:$0x3]
  %v1969 = vld [vmem:[%s7] sm:$0x3]
  %vm1970 = vcmask 1046528
  %v1971 = vsel %vm1970, %v1966, 0.0
  %v1972 = vsel %vm1970, %v1967, 0.0
  %v1973 = vadd.f32 %v1971, %v1972
  %1974 = vadd.xlane.f32.xlu0 %v1973
  %v1975 = vpop.xlane.xlu0 %1974
  %v1976 = vrcp.pop 256.0
  %v1977 = vmul.f32 %v1975, %v1976
  %v1978 = vsub.f32 %v1966, %v1977
  %v1979 = vsub.f32 %v1967, %v1977
  %v1980 = vmul.f32 %v1978, %v1978
  %v1981 = vmul.f32 %v1979, %v1979
  %v1982 = vsel %vm1970, %v1980, 0.0
  %v1983 = vsel %vm1970, %v1981, 0.0
  %v1984 = vadd.f32 %v1982, %v1983
  %1985 = vadd.xlane.f32.xlu0 %v1984
  %v1986 = vpop.xlane.xlu0 %1985
  %v1987 = vmul.f32 %v1986, %v1976
  %v1988 = vadd.f32 %v1987, 1e-05
  %v1989 = vrsqrt.pop %v1988
  %v1990 = vmul.f32 %v1978, %v1989
  %v1991 = vmul.f32 %v1979, %v1989
  %v1993 = vlaneseq
  %v1994 = vshrl.u32 %v1993, 7
  %v1995 = vsub.s32 0, %v1994
  %v1996 = vrot.slane %v1968, %v1995
  %v1997 = vlaneseq
  %v1998 = vshrl.u32 %v1997, 7
  %v1999 = vsub.s32 1, %v1998
  %v2000 = vrot.slane %v1968, %v1999
  %v2003 = vmul.f32 %v1990, %v1996
  %v2004 = vmul.f32 %v1991, %v2000
  %v2006 = vlaneseq
  %v2007 = vshrl.u32 %v2006, 7
  %v2008 = vsub.s32 0, %v2007
  %v2009 = vrot.slane %v1969, %v2008
  %v2010 = vlaneseq
  %v2011 = vshrl.u32 %v2010, 7
  %v2012 = vsub.s32 1, %v2011
  %v2013 = vrot.slane %v1969, %v2012
  %v2016 = vadd.f32 %v2003, %v2009
  %v2017 = vadd.f32 %v2004, %v2013
  %v2018 = vpack.c.bf16 %v2016, %v2016
  %v2019 = vpack.c.bf16 %v2017, %v2017
  %v2020 = vld [vmem:[%s8] sm:$0xff]
  %v2021 = vld [vmem:[%s8 + $0x8] sm:$0xff]
  %v2022 = vld [vmem:[%s8 + $0x10] sm:$0xff]
  %v2023 = vld [vmem:[%s8 + $0x18] sm:$0xff]
  %v2024 = vld [vmem:[%s8 + $0x20] sm:$0xff]
  %v2025 = vld [vmem:[%s8 + $0x28] sm:$0xff]
  %v2026 = vld [vmem:[%s8 + $0x30] sm:$0xff]
  %v2027 = vld [vmem:[%s8 + $0x38] sm:$0xff]
  %v2028 = vld [vmem:[%s8 + $0x40] sm:$0xff]
  %v2029 = vld [vmem:[%s8 + $0x48] sm:$0xff]
  %v2030 = vld [vmem:[%s8 + $0x50] sm:$0xff]
  %v2031 = vld [vmem:[%s8 + $0x58] sm:$0xff]
  %v2032 = vld [vmem:[%s8 + $0x60] sm:$0xff]
  %v2033 = vld [vmem:[%s8 + $0x68] sm:$0xff]
  %v2034 = vld [vmem:[%s8 + $0x70] sm:$0xff]
  %v2035 = vld [vmem:[%s8 + $0x78] sm:$0xff]
  %v2036 = vld [vmem:[%s8 + $0x80] sm:$0xff]
  %v2037 = vld [vmem:[%s8 + $0x88] sm:$0xff]
  %v2038 = vld [vmem:[%s8 + $0x90] sm:$0xff]
  %v2039 = vld [vmem:[%s8 + $0x98] sm:$0xff]
  %v2040 = vld [vmem:[%s8 + $0xa0] sm:$0xff]
  %v2041 = vld [vmem:[%s8 + $0xa8] sm:$0xff]
  %v2042 = vld [vmem:[%s8 + $0xb0] sm:$0xff]
  %v2043 = vld [vmem:[%s8 + $0xb8] sm:$0xff]
  %v2044 = vld [vmem:[%s8 + $0xc0] sm:$0xff]
  %v2045 = vld [vmem:[%s8 + $0xc8] sm:$0xff]
  %v2046 = vld [vmem:[%s8 + $0xd0] sm:$0xff]
  %v2047 = vld [vmem:[%s8 + $0xd8] sm:$0xff]
  %v2048 = vld [vmem:[%s8 + $0xe0] sm:$0xff]
  %v2049 = vld [vmem:[%s8 + $0xe8] sm:$0xff]
  %v2050 = vld [vmem:[%s8 + $0xf0] sm:$0xff]
  %v2051 = vld [vmem:[%s8 + $0xf8] sm:$0xff]
  %v2052 = vld [vmem:[%s9] sm:$0x3]
  %v2054 = vlaneseq
  %v2055 = vshrl.u32 %v2054, 7
  %v2056 = vsub.s32 0, %v2055
  %v2057 = vrot.slane %v2052, %v2056
  %v2058 = vlaneseq
  %v2059 = vshrl.u32 %v2058, 7
  %v2060 = vsub.s32 1, %v2059
  %v2061 = vrot.slane %v2052, %v2060
  %v2096 = vunpack.c.l.b16 %v2020
  %v2097 = vunpack.c.h.b16 %v2020
  %v2098 = vunpack.c.l.b16 %v2021
  %v2099 = vunpack.c.h.b16 %v2021
  %v2100 = vunpack.c.l.b16 %v2022
  %v2101 = vunpack.c.h.b16 %v2022
  %v2102 = vunpack.c.l.b16 %v2023
  %v2103 = vunpack.c.h.b16 %v2023
  %v2104 = vunpack.c.l.b16 %v2024
  %v2105 = vunpack.c.h.b16 %v2024
  %v2106 = vunpack.c.l.b16 %v2025
  %v2107 = vunpack.c.h.b16 %v2025
  %v2108 = vunpack.c.l.b16 %v2026
  %v2109 = vunpack.c.h.b16 %v2026
  %v2110 = vunpack.c.l.b16 %v2027
  %v2111 = vunpack.c.h.b16 %v2027
  %v2112 = vunpack.c.l.b16 %v2028
  %v2113 = vunpack.c.h.b16 %v2028
  %v2114 = vunpack.c.l.b16 %v2029
  %v2115 = vunpack.c.h.b16 %v2029
  %v2116 = vunpack.c.l.b16 %v2030
  %v2117 = vunpack.c.h.b16 %v2030
  %v2118 = vunpack.c.l.b16 %v2031
  %v2119 = vunpack.c.h.b16 %v2031
  %v2120 = vunpack.c.l.b16 %v2032
  %v2121 = vunpack.c.h.b16 %v2032
  %v2122 = vunpack.c.l.b16 %v2033
  %v2123 = vunpack.c.h.b16 %v2033
  %v2124 = vunpack.c.l.b16 %v2034
  %v2125 = vunpack.c.h.b16 %v2034
  %v2126 = vunpack.c.l.b16 %v2035
  %v2127 = vunpack.c.h.b16 %v2035
  %v2128 = vunpack.c.l.b16 %v2036
  %v2129 = vunpack.c.h.b16 %v2036
  %v2130 = vunpack.c.l.b16 %v2037
  %v2131 = vunpack.c.h.b16 %v2037
  %v2132 = vunpack.c.l.b16 %v2038
  %v2133 = vunpack.c.h.b16 %v2038
  %v2134 = vunpack.c.l.b16 %v2039
  %v2135 = vunpack.c.h.b16 %v2039
  %v2136 = vunpack.c.l.b16 %v2040
  %v2137 = vunpack.c.h.b16 %v2040
  %v2138 = vunpack.c.l.b16 %v2041
  %v2139 = vunpack.c.h.b16 %v2041
  %v2140 = vunpack.c.l.b16 %v2042
  %v2141 = vunpack.c.h.b16 %v2042
  %v2142 = vunpack.c.l.b16 %v2043
  %v2143 = vunpack.c.h.b16 %v2043
  %v2144 = vunpack.c.l.b16 %v2044
  %v2145 = vunpack.c.h.b16 %v2044
  %v2146 = vunpack.c.l.b16 %v2045
  %v2147 = vunpack.c.h.b16 %v2045
  %v2148 = vunpack.c.l.b16 %v2046
  %v2149 = vunpack.c.h.b16 %v2046
  %v2150 = vunpack.c.l.b16 %v2047
  %v2151 = vunpack.c.h.b16 %v2047
  %v2152 = vunpack.c.l.b16 %v2048
  %v2153 = vunpack.c.h.b16 %v2048
  %v2154 = vunpack.c.l.b16 %v2049
  %v2155 = vunpack.c.h.b16 %v2049
  %v2156 = vunpack.c.l.b16 %v2050
  %v2157 = vunpack.c.h.b16 %v2050
  %v2158 = vunpack.c.l.b16 %v2051
  %v2159 = vunpack.c.h.b16 %v2051
  %v2160 = vpack.c.b16 %v2098, %v2096
  %v2161 = vpack.c.b16 %v2099, %v2097
  %v2162 = vpack.c.b16 %v2102, %v2100
  %v2163 = vpack.c.b16 %v2103, %v2101
  %v2164 = vpack.c.b16 %v2106, %v2104
  %v2165 = vpack.c.b16 %v2107, %v2105
  %v2166 = vpack.c.b16 %v2110, %v2108
  %v2167 = vpack.c.b16 %v2111, %v2109
  %v2168 = vpack.c.b16 %v2114, %v2112
  %v2169 = vpack.c.b16 %v2115, %v2113
  %v2170 = vpack.c.b16 %v2118, %v2116
  %v2171 = vpack.c.b16 %v2119, %v2117
  %v2172 = vpack.c.b16 %v2122, %v2120
  %v2173 = vpack.c.b16 %v2123, %v2121
  %v2174 = vpack.c.b16 %v2126, %v2124
  %v2175 = vpack.c.b16 %v2127, %v2125
  %v2176 = vpack.c.b16 %v2130, %v2128
  %v2177 = vpack.c.b16 %v2131, %v2129
  %v2178 = vpack.c.b16 %v2134, %v2132
  %v2179 = vpack.c.b16 %v2135, %v2133
  %v2180 = vpack.c.b16 %v2138, %v2136
  %v2181 = vpack.c.b16 %v2139, %v2137
  %v2182 = vpack.c.b16 %v2142, %v2140
  %v2183 = vpack.c.b16 %v2143, %v2141
  %v2184 = vpack.c.b16 %v2146, %v2144
  %v2185 = vpack.c.b16 %v2147, %v2145
  %v2186 = vpack.c.b16 %v2150, %v2148
  %v2187 = vpack.c.b16 %v2151, %v2149
  %v2188 = vpack.c.b16 %v2154, %v2152
  %v2189 = vpack.c.b16 %v2155, %v2153
  %v2190 = vpack.c.b16 %v2158, %v2156
  %v2191 = vpack.c.b16 %v2159, %v2157
  %2224 = vmatprep.subr.bf16.mxu0 %v2175
  %2225 = vmatpush1.bf16.msra.mxu0 %v2174
  %2226 = vmatprep.subr.bf16.mxu0 %v2173
  %2227 = vmatpush1.bf16.msra.mxu0 %v2172
  %2228 = vmatprep.subr.bf16.mxu0 %v2171
  %2229 = vmatpush1.bf16.msra.mxu0 %v2170
  %2230 = vmatprep.subr.bf16.mxu0 %v2169
  %2231 = vmatpush1.bf16.msra.mxu0 %v2168
  %2232 = vmatprep.subr.bf16.mxu0 %v2167
  %2233 = vmatpush1.bf16.msra.mxu0 %v2166
  %2234 = vmatprep.subr.bf16.mxu0 %v2165
  %2235 = vmatpush1.bf16.msra.mxu0 %v2164
  %2236 = vmatprep.subr.bf16.mxu0 %v2163
  %2237 = vmatpush1.bf16.msra.mxu0 %v2162
  %2238 = vmatprep.subr.bf16.mxu0 %v2161
  %2239 = vmatpush1.bf16.msra.mxu0 %v2160
  %2240 = vmatprep.subr.bf16.mxu0 %v2191
  %2241 = vmatpush2.bf16.msra.mxu0 %v2190
  %2242 = vmatprep.subr.bf16.mxu0 %v2189
  %2243 = vmatpush2.bf16.msra.mxu0 %v2188
  %2244 = vmatprep.subr.bf16.mxu0 %v2187
  %2245 = vmatpush2.bf16.msra.mxu0 %v2186
  %2246 = vmatprep.subr.bf16.mxu0 %v2185
  %2247 = vmatpush2.bf16.msra.mxu0 %v2184
  %2248 = vmatprep.subr.bf16.mxu0 %v2183
  %2249 = vmatpush2.bf16.msra.mxu0 %v2182
  %2250 = vmatprep.subr.bf16.mxu0 %v2181
  %2251 = vmatpush2.bf16.msra.mxu0 %v2180
  %2252 = vmatprep.subr.bf16.mxu0 %v2179
  %2253 = vmatpush2.bf16.msra.mxu0 %v2178
  %2254 = vmatprep.subr.bf16.mxu0 %v2177
  %2255 = vmatpush2.bf16.msra.mxu0 %v2176
  %2256 = vmatprep.mubr.bf16.mxu0 %v2019
  %2257 = vmatmul.mubr.bf16.gmra.mxu0 %v2018
  %v2258 = vpop.f32.mrf.mxu0
  %v2259 = vadd.f32 %v2057, %v2258
  %v2260 = vpop.f32.mrf.mxu0
  %v2261 = vadd.f32 %v2061, %v2260
  %v2262 = vpop.f32.mrf.mxu0
  %v2263 = vpop.f32.mrf.mxu0
  %2264 = vdwg.mxu0
  %v2265 = vmax.f32 %v2259, 0.0
  %v2266 = vmax.f32 %v2261, 0.0
  %v2267 = vpack.c.bf16 %v2265, %v2265
  %v2268 = vpack.c.bf16 %v2266, %v2266
  %v2269 = vld [vmem:[%s10] sm:$0xff]
  %v2270 = vld [vmem:[%s10 + $0x8] sm:$0xff]
  %v2271 = vld [vmem:[%s10 + $0x10] sm:$0xff]
  %v2272 = vld [vmem:[%s10 + $0x18] sm:$0xff]
  %v2273 = vld [vmem:[%s10 + $0x20] sm:$0xff]
  %v2274 = vld [vmem:[%s10 + $0x28] sm:$0xff]
  %v2275 = vld [vmem:[%s10 + $0x30] sm:$0xff]
  %v2276 = vld [vmem:[%s10 + $0x38] sm:$0xff]
  %v2277 = vld [vmem:[%s10 + $0x40] sm:$0xff]
  %v2278 = vld [vmem:[%s10 + $0x48] sm:$0xff]
  %v2279 = vld [vmem:[%s10 + $0x50] sm:$0xff]
  %v2280 = vld [vmem:[%s10 + $0x58] sm:$0xff]
  %v2281 = vld [vmem:[%s10 + $0x60] sm:$0xff]
  %v2282 = vld [vmem:[%s10 + $0x68] sm:$0xff]
  %v2283 = vld [vmem:[%s10 + $0x70] sm:$0xff]
  %v2284 = vld [vmem:[%s10 + $0x78] sm:$0xff]
  %v2285 = vld [vmem:[%s10 + $0x80] sm:$0xff]
  %v2286 = vld [vmem:[%s10 + $0x88] sm:$0xff]
  %v2287 = vld [vmem:[%s10 + $0x90] sm:$0xff]
  %v2288 = vld [vmem:[%s10 + $0x98] sm:$0xff]
  %v2289 = vld [vmem:[%s10 + $0xa0] sm:$0xff]
  %v2290 = vld [vmem:[%s10 + $0xa8] sm:$0xff]
  %v2291 = vld [vmem:[%s10 + $0xb0] sm:$0xff]
  %v2292 = vld [vmem:[%s10 + $0xb8] sm:$0xff]
  %v2293 = vld [vmem:[%s10 + $0xc0] sm:$0xff]
  %v2294 = vld [vmem:[%s10 + $0xc8] sm:$0xff]
  %v2295 = vld [vmem:[%s10 + $0xd0] sm:$0xff]
  %v2296 = vld [vmem:[%s10 + $0xd8] sm:$0xff]
  %v2297 = vld [vmem:[%s10 + $0xe0] sm:$0xff]
  %v2298 = vld [vmem:[%s10 + $0xe8] sm:$0xff]
  %v2299 = vld [vmem:[%s10 + $0xf0] sm:$0xff]
  %v2300 = vld [vmem:[%s10 + $0xf8] sm:$0xff]
  %v2301 = vld [vmem:[%s11] sm:$0x3]
  %v2303 = vlaneseq
  %v2304 = vshrl.u32 %v2303, 7
  %v2305 = vsub.s32 0, %v2304
  %v2306 = vrot.slane %v2301, %v2305
  %v2307 = vlaneseq
  %v2308 = vshrl.u32 %v2307, 7
  %v2309 = vsub.s32 1, %v2308
  %v2310 = vrot.slane %v2301, %v2309
  %v2345 = vunpack.c.l.b16 %v2269
  %v2346 = vunpack.c.h.b16 %v2269
  %v2347 = vunpack.c.l.b16 %v2270
  %v2348 = vunpack.c.h.b16 %v2270
  %v2349 = vunpack.c.l.b16 %v2271
  %v2350 = vunpack.c.h.b16 %v2271
  %v2351 = vunpack.c.l.b16 %v2272
  %v2352 = vunpack.c.h.b16 %v2272
  %v2353 = vunpack.c.l.b16 %v2273
  %v2354 = vunpack.c.h.b16 %v2273
  %v2355 = vunpack.c.l.b16 %v2274
  %v2356 = vunpack.c.h.b16 %v2274
  %v2357 = vunpack.c.l.b16 %v2275
  %v2358 = vunpack.c.h.b16 %v2275
  %v2359 = vunpack.c.l.b16 %v2276
  %v2360 = vunpack.c.h.b16 %v2276
  %v2361 = vunpack.c.l.b16 %v2277
  %v2362 = vunpack.c.h.b16 %v2277
  %v2363 = vunpack.c.l.b16 %v2278
  %v2364 = vunpack.c.h.b16 %v2278
  %v2365 = vunpack.c.l.b16 %v2279
  %v2366 = vunpack.c.h.b16 %v2279
  %v2367 = vunpack.c.l.b16 %v2280
  %v2368 = vunpack.c.h.b16 %v2280
  %v2369 = vunpack.c.l.b16 %v2281
  %v2370 = vunpack.c.h.b16 %v2281
  %v2371 = vunpack.c.l.b16 %v2282
  %v2372 = vunpack.c.h.b16 %v2282
  %v2373 = vunpack.c.l.b16 %v2283
  %v2374 = vunpack.c.h.b16 %v2283
  %v2375 = vunpack.c.l.b16 %v2284
  %v2376 = vunpack.c.h.b16 %v2284
  %v2377 = vunpack.c.l.b16 %v2285
  %v2378 = vunpack.c.h.b16 %v2285
  %v2379 = vunpack.c.l.b16 %v2286
  %v2380 = vunpack.c.h.b16 %v2286
  %v2381 = vunpack.c.l.b16 %v2287
  %v2382 = vunpack.c.h.b16 %v2287
  %v2383 = vunpack.c.l.b16 %v2288
  %v2384 = vunpack.c.h.b16 %v2288
  %v2385 = vunpack.c.l.b16 %v2289
  %v2386 = vunpack.c.h.b16 %v2289
  %v2387 = vunpack.c.l.b16 %v2290
  %v2388 = vunpack.c.h.b16 %v2290
  %v2389 = vunpack.c.l.b16 %v2291
  %v2390 = vunpack.c.h.b16 %v2291
  %v2391 = vunpack.c.l.b16 %v2292
  %v2392 = vunpack.c.h.b16 %v2292
  %v2393 = vunpack.c.l.b16 %v2293
  %v2394 = vunpack.c.h.b16 %v2293
  %v2395 = vunpack.c.l.b16 %v2294
  %v2396 = vunpack.c.h.b16 %v2294
  %v2397 = vunpack.c.l.b16 %v2295
  %v2398 = vunpack.c.h.b16 %v2295
  %v2399 = vunpack.c.l.b16 %v2296
  %v2400 = vunpack.c.h.b16 %v2296
  %v2401 = vunpack.c.l.b16 %v2297
  %v2402 = vunpack.c.h.b16 %v2297
  %v2403 = vunpack.c.l.b16 %v2298
  %v2404 = vunpack.c.h.b16 %v2298
  %v2405 = vunpack.c.l.b16 %v2299
  %v2406 = vunpack.c.h.b16 %v2299
  %v2407 = vunpack.c.l.b16 %v2300
  %v2408 = vunpack.c.h.b16 %v2300
  %v2409 = vpack.c.b16 %v2347, %v2345
  %v2410 = vpack.c.b16 %v2348, %v2346
  %v2411 = vpack.c.b16 %v2351, %v2349
  %v2412 = vpack.c.b16 %v2352, %v2350
  %v2413 = vpack.c.b16 %v2355, %v2353
  %v2414 = vpack.c.b16 %v2356, %v2354
  %v2415 = vpack.c.b16 %v2359, %v2357
  %v2416 = vpack.c.b16 %v2360, %v2358
  %v2417 = vpack.c.b16 %v2363, %v2361
  %v2418 = vpack.c.b16 %v2364, %v2362
  %v2419 = vpack.c.b16 %v2367, %v2365
  %v2420 = vpack.c.b16 %v2368, %v2366
  %v2421 = vpack.c.b16 %v2371, %v2369
  %v2422 = vpack.c.b16 %v2372, %v2370
  %v2423 = vpack.c.b16 %v2375, %v2373
  %v2424 = vpack.c.b16 %v2376, %v2374
  %v2425 = vpack.c.b16 %v2379, %v2377
  %v2426 = vpack.c.b16 %v2380, %v2378
  %v2427 = vpack.c.b16 %v2383, %v2381
  %v2428 = vpack.c.b16 %v2384, %v2382
  %v2429 = vpack.c.b16 %v2387, %v2385
  %v2430 = vpack.c.b16 %v2388, %v2386
  %v2431 = vpack.c.b16 %v2391, %v2389
  %v2432 = vpack.c.b16 %v2392, %v2390
  %v2433 = vpack.c.b16 %v2395, %v2393
  %v2434 = vpack.c.b16 %v2396, %v2394
  %v2435 = vpack.c.b16 %v2399, %v2397
  %v2436 = vpack.c.b16 %v2400, %v2398
  %v2437 = vpack.c.b16 %v2403, %v2401
  %v2438 = vpack.c.b16 %v2404, %v2402
  %v2439 = vpack.c.b16 %v2407, %v2405
  %v2440 = vpack.c.b16 %v2408, %v2406
  %2473 = vmatprep.subr.bf16.mxu0 %v2424
  %2474 = vmatpush1.bf16.msra.mxu0 %v2423
  %2475 = vmatprep.subr.bf16.mxu0 %v2422
  %2476 = vmatpush1.bf16.msra.mxu0 %v2421
  %2477 = vmatprep.subr.bf16.mxu0 %v2420
  %2478 = vmatpush1.bf16.msra.mxu0 %v2419
  %2479 = vmatprep.subr.bf16.mxu0 %v2418
  %2480 = vmatpush1.bf16.msra.mxu0 %v2417
  %2481 = vmatprep.subr.bf16.mxu0 %v2416
  %2482 = vmatpush1.bf16.msra.mxu0 %v2415
  %2483 = vmatprep.subr.bf16.mxu0 %v2414
  %2484 = vmatpush1.bf16.msra.mxu0 %v2413
  %2485 = vmatprep.subr.bf16.mxu0 %v2412
  %2486 = vmatpush1.bf16.msra.mxu0 %v2411
  %2487 = vmatprep.subr.bf16.mxu0 %v2410
  %2488 = vmatpush1.bf16.msra.mxu0 %v2409
  %2489 = vmatprep.subr.bf16.mxu0 %v2440
  %2490 = vmatpush2.bf16.msra.mxu0 %v2439
  %2491 = vmatprep.subr.bf16.mxu0 %v2438
  %2492 = vmatpush2.bf16.msra.mxu0 %v2437
  %2493 = vmatprep.subr.bf16.mxu0 %v2436
  %2494 = vmatpush2.bf16.msra.mxu0 %v2435
  %2495 = vmatprep.subr.bf16.mxu0 %v2434
  %2496 = vmatpush2.bf16.msra.mxu0 %v2433
  %2497 = vmatprep.subr.bf16.mxu0 %v2432
  %2498 = vmatpush2.bf16.msra.mxu0 %v2431
  %2499 = vmatprep.subr.bf16.mxu0 %v2430
  %2500 = vmatpush2.bf16.msra.mxu0 %v2429
  %2501 = vmatprep.subr.bf16.mxu0 %v2428
  %2502 = vmatpush2.bf16.msra.mxu0 %v2427
  %2503 = vmatprep.subr.bf16.mxu0 %v2426
  %2504 = vmatpush2.bf16.msra.mxu0 %v2425
  %2505 = vmatprep.mubr.bf16.mxu0 %v2268
  %2506 = vmatmul.mubr.bf16.gmra.mxu0 %v2267
  %v2507 = vpop.f32.mrf.mxu0
  %v2508 = vadd.f32 %v2306, %v2507
  %v2509 = vpop.f32.mrf.mxu0
  %v2510 = vadd.f32 %v2310, %v2509
  %v2511 = vpop.f32.mrf.mxu0
  %v2512 = vpop.f32.mrf.mxu0
  %2513 = vdwg.mxu0
  %v2514 = vadd.f32 %v2016, %v2508
  %v2515 = vadd.f32 %v2017, %v2510
  %v2516 = vld [vmem:[%s12] sm:$0x3]
  %v2517 = vld [vmem:[%s13] sm:$0x3]
  %v2518 = vsel %vm1970, %v2514, 0.0
  %v2519 = vsel %vm1970, %v2515, 0.0
  %v2520 = vadd.f32 %v2518, %v2519
  %2521 = vadd.xlane.f32.xlu0 %v2520
  %v2522 = vpop.xlane.xlu0 %2521
  %v2523 = vmul.f32 %v2522, %v1976
  %v2524 = vsub.f32 %v2514, %v2523
  %v2525 = vsub.f32 %v2515, %v2523
  %v2526 = vmul.f32 %v2524, %v2524
  %v2527 = vmul.f32 %v2525, %v2525
  %v2528 = vsel %vm1970, %v2526, 0.0
  %v2529 = vsel %vm1970, %v2527, 0.0
  %v2530 = vadd.f32 %v2528, %v2529
  %2531 = vadd.xlane.f32.xlu0 %v2530
  %v2532 = vpop.xlane.xlu0 %2531
  %v2533 = vmul.f32 %v2532, %v1976
  %v2534 = vadd.f32 %v2533, 1e-05
  %v2535 = vrsqrt.pop %v2534
  %v2536 = vmul.f32 %v2524, %v2535
  %v2537 = vmul.f32 %v2525, %v2535
  %v2539 = vlaneseq
  %v2540 = vshrl.u32 %v2539, 7
  %v2541 = vsub.s32 0, %v2540
  %v2542 = vrot.slane %v2516, %v2541
  %v2543 = vlaneseq
  %v2544 = vshrl.u32 %v2543, 7
  %v2545 = vsub.s32 1, %v2544
  %v2546 = vrot.slane %v2516, %v2545
  %v2549 = vmul.f32 %v2536, %v2542
  %v2550 = vmul.f32 %v2537, %v2546
  %v2552 = vlaneseq
  %v2553 = vshrl.u32 %v2552, 7
  %v2554 = vsub.s32 0, %v2553
  %v2555 = vrot.slane %v2517, %v2554
  %v2556 = vlaneseq
  %v2557 = vshrl.u32 %v2556, 7
  %v2558 = vsub.s32 1, %v2557
  %v2559 = vrot.slane %v2517, %v2558
  %v2562 = vadd.f32 %v2549, %v2555
  %v2563 = vadd.f32 %v2550, %v2559
  %2564 = vst [vmem:[#allocation2] sm:$0x7f] %v2562
  %2565 = vst [vmem:[#allocation2 + $0x8] sm:$0x7f] %v2563
  // Predicated region
  $region62: #{fwd.9} parent=0 // pred_check
    %p2566 = pneg %p48
  $region63: #{fwd.9} parent=0 // pred_check_branch
    %2568 = sbr.rel (%p2566) target = $region65
  $region64: #{fwd.9} parent=0 // pred_region
    %2569 = vst [vmem:[%s14] sm:$0x7f] %v2562
    %2570 = vst [vmem:[%s14 + $0x8] sm:$0x7f] %v2563
  $region65: #{fwd.9} parent=0 // pred_fallthru
    _
  // Predicated region
  $region66: #{fwd.9} parent=0 // pred_check
    _
  $region67: #{fwd.9} parent=0 // pred_check_branch
    %2572 = sbr.rel (0) target = $region69
  $region68: #{fwd.9} parent=0 // pred_region
    _
  $region69: #{fwd.9} parent=0 // pred_fallthru
    _
  // Predicated region
  $region70: #{fwd.9} parent=0 // pred_check
    _
  $region71: #{fwd.9} parent=0 // pred_check_branch
    %2574 = sbr.rel (0) target = $region73
  $region72: #{fwd.9} parent=0 // pred_region
    _
  $region73: #{fwd.9} parent=0 // pred_fallthru
    _

// kernel: fwd.10
$region0: #{fwd.10}
  #allocation0 [shape = 'u32[]', space=smem, size = 0x4, offset = 0x4, fixed_abs, tag = 'smem constant byte address 0x4 - core index']
  #allocation1 [shape = 'u32[144,128]{1,0:T(1,128)}', space=vmem, size = 0x12000, scoped, tag = 'internal scratch']
  #allocation2 [shape = 'f32[7,256]{1,0:T(8,128)}', space=vmem, size = 0x2000, scoped, tag = 'scratch operand']
  %s0 = inlined_call_operand.vmem [shape: f32[7,256], index: 0, kind: input, shape index: {}]
  %s1 = inlined_call_operand.vmem [shape: f32[7,7], index: 1, kind: input, shape index: {}]
  %s2 = inlined_call_operand.vmem [shape: bf16[3,256,768], index: 2, kind: input, shape index: {}]
  %s3 = inlined_call_operand.vmem [shape: f32[3,1,768], index: 3, kind: input, shape index: {}]
  %s4 = inlined_call_operand.vmem [shape: bf16[3,256,256], index: 4, kind: input, shape index: {}]
  %s5 = inlined_call_operand.vmem [shape: f32[3,1,256], index: 5, kind: input, shape index: {}]
  %s6 = inlined_call_operand.vmem [shape: f32[3,1,256], index: 6, kind: input, shape index: {}]
  %s7 = inlined_call_operand.vmem [shape: f32[3,1,256], index: 7, kind: input, shape index: {}]
  %s8 = inlined_call_operand.vmem [shape: bf16[3,256,256], index: 8, kind: input, shape index: {}]
  %s9 = inlined_call_operand.vmem [shape: f32[3,1,256], index: 9, kind: input, shape index: {}]
  %s10 = inlined_call_operand.vmem [shape: bf16[3,256,256], index: 10, kind: input, shape index: {}]
  %s11 = inlined_call_operand.vmem [shape: f32[3,1,256], index: 11, kind: input, shape index: {}]
  %s12 = inlined_call_operand.vmem [shape: f32[3,1,256], index: 12, kind: input, shape index: {}]
  %s13 = inlined_call_operand.vmem [shape: f32[3,1,256], index: 13, kind: input, shape index: {}]
  %s14 = inlined_call_operand.vmem [shape: f32[7,256], index: 14, kind: output, shape index: {}]
  %s15 = sld [smem:[#allocation0]]
  $region97: #{fwd.10} parent=0
    _
  %s17 = ssub.s32 1, %s15
  %s18 = scalar_select 0, %s17, %s15
  loop: start=0, step=1, limit=5
  $region2: #{fwd.10} parent=0 // loop_pre_header
    _
  $region3: #{fwd.10} parent=0 // loop_header
    %s20 = sphi 0, %s24
    %p21 = scmp.ge.s32.totalorder %s20, 5
    %s28 = sphi 0, %s28
    %s30 = sphi 0, %s28
    %s31 = sphi 0, %s30
    %s45 = sphi 0, %s31
    %s49 = sphi 0, %s49
    %s51 = sphi 0, %s49
    %s52 = sphi 0, %s51
    %s66 = sphi 0, %s52
    %s72 = sphi 0, %s74
    %s75 = sphi 0, %s72
    %s76 = sphi 0, %s75
    %s92 = sphi 0, %s76
    %s98 = sphi 0, %s100
    %s101 = sphi 0, %s98
    %s102 = sphi 0, %s101
    %s118 = sphi 0, %s102
    %s124 = sphi 0, %s126
    %s127 = sphi 0, %s124
    %s128 = sphi 0, %s127
    %s144 = sphi 0, %s128
    %s150 = sphi 0, %s152
    %s153 = sphi 0, %s150
    %s154 = sphi 0, %s153
    %s170 = sphi 0, %s154
    %s176 = sphi 0, %s178
    %s179 = sphi 0, %s176
    %s180 = sphi 0, %s179
    %s196 = sphi 0, %s180
    %s202 = sphi 0, %s204
    %s205 = sphi 0, %s202
    %s206 = sphi 0, %s205
    %s222 = sphi 0, %s206
    %s228 = sphi 0, %s230
    %s231 = sphi 0, %s228
    %s232 = sphi 0, %s231
    %s248 = sphi 0, %s232
    %s254 = sphi 0, %s256
    %s257 = sphi 0, %s254
    %s258 = sphi 0, %s257
    %s274 = sphi 0, %s258
    %s280 = sphi 0, %s282
    %s283 = sphi 0, %s280
    %s284 = sphi 0, %s283
    %s300 = sphi 0, %s284
    %s306 = sphi 0, %s308
    %s309 = sphi 0, %s306
    %s310 = sphi 0, %s309
    %s326 = sphi 0, %s310
    %s332 = sphi 0, %s334
    %s335 = sphi 0, %s332
    %s336 = sphi 0, %s335
    %s352 = sphi 0, %s336
    %s358 = sphi 0, %s360
    %s361 = sphi 0, %s358
    %s362 = sphi 0, %s361
    %s378 = sphi 0, %s362
    %s382 = sphi 0, %s382
    %s384 = sphi 0, %s382
    %s385 = sphi 0, %s384
    %s399 = sphi 0, %s385
  $region4: #{fwd.10} parent=0 // loop_header_branch
    %23 = sbr.rel (%p21) target = $region8
  $region5: #{fwd.10} parent=0 // loop_body
    %s25 = ssub.s32 %s20, 1
    %s26 = ssub.s32 %s20, 2
    %s27 = sadd.s32 %s20, 1
    %s29 = sadd.s32 %s28, 1
    %p32 = scmp.eq.s32.totalorder %s20, 2
    %p33 = scmp.ne.s32.totalorder %s28, %s30
    %p34 = scmp.eq.s32.totalorder %s20, 0
    %p35 = por %p33, %p34
    %p36 = scmp.ne.s32.totalorder %s28, %s30
    %p37 = scmp.eq.s32.totalorder %s25, 2
    %p38 = por %p36, %p37
    %p39 = scmp.ne.s32.totalorder %s30, %s31
    %p40 = scmp.eq.s32.totalorder %s25, 0
    %p41 = por %p39, %p40
    %p42 = scmp.ne.s32.totalorder %s30, %s31
    %p43 = scmp.eq.s32.totalorder %s26, 2
    %p44 = por %p42, %p43
    %p46 = scmp.ne.s32.totalorder %s31, %s45
    %p47 = scmp.eq.s32.totalorder %s26, 0
    %p48 = por %p46, %p47
    %s50 = sadd.s32 %s49, 1
    %p53 = scmp.eq.s32.totalorder %s20, 2
    %p54 = scmp.ne.s32.totalorder %s49, %s51
    %p55 = scmp.eq.s32.totalorder %s20, 0
    %p56 = por %p54, %p55
    %p57 = scmp.ne.s32.totalorder %s49, %s51
    %p58 = scmp.eq.s32.totalorder %s25, 2
    %p59 = por %p57, %p58
    %p60 = scmp.ne.s32.totalorder %s51, %s52
    %p61 = scmp.eq.s32.totalorder %s25, 0
    %p62 = por %p60, %p61
    %p63 = scmp.ne.s32.totalorder %s51, %s52
    %p64 = scmp.eq.s32.totalorder %s26, 2
    %p65 = por %p63, %p64
    %p67 = scmp.ne.s32.totalorder %s52, %s66
    %p68 = scmp.eq.s32.totalorder %s26, 0
    %p69 = por %p67, %p68
    %s70 = ssub.s32 %s20, %s27
    %p71 = scmp.eq.s32.totalorder %s70, 0
    %s73 = sadd.s32 %s72, 1
    %s74 = scalar_select %p71, %s72, %s73
    %p77 = pneg %p71
    %p78 = scmp.eq.s32.totalorder %s20, 2
    %p79 = por %p77, %p78
    %p80 = scmp.ne.s32.totalorder %s72, %s75
    %p81 = scmp.eq.s32.totalorder %s20, 0
    %p82 = por %p80, %p81
    %p83 = scmp.ne.s32.totalorder %s72, %s75
    %p84 = scmp.eq.s32.totalorder %s25, 2
    %p85 = por %p83, %p84
    %p86 = scmp.ne.s32.totalorder %s75, %s76
    %p87 = scmp.eq.s32.totalorder %s25, 0
    %p88 = por %p86, %p87
    %p89 = scmp.ne.s32.totalorder %s75, %s76
    %p90 = scmp.eq.s32.totalorder %s26, 2
    %p91 = por %p89, %p90
    %p93 = scmp.ne.s32.totalorder %s76, %s92
    %p94 = scmp.eq.s32.totalorder %s26, 0
    %p95 = por %p93, %p94
    %s96 = ssub.s32 %s20, %s27
    %p97 = scmp.eq.s32.totalorder %s96, 0
    %s99 = sadd.s32 %s98, 1
    %s100 = scalar_select %p97, %s98, %s99
    %p103 = pneg %p97
    %p104 = scmp.eq.s32.totalorder %s20, 2
    %p105 = por %p103, %p104
    %p106 = scmp.ne.s32.totalorder %s98, %s101
    %p107 = scmp.eq.s32.totalorder %s20, 0
    %p108 = por %p106, %p107
    %p109 = scmp.ne.s32.totalorder %s98, %s101
    %p110 = scmp.eq.s32.totalorder %s25, 2
    %p111 = por %p109, %p110
    %p112 = scmp.ne.s32.totalorder %s101, %s102
    %p113 = scmp.eq.s32.totalorder %s25, 0
    %p114 = por %p112, %p113
    %p115 = scmp.ne.s32.totalorder %s101, %s102
    %p116 = scmp.eq.s32.totalorder %s26, 2
    %p117 = por %p115, %p116
    %p119 = scmp.ne.s32.totalorder %s102, %s118
    %p120 = scmp.eq.s32.totalorder %s26, 0
    %p121 = por %p119, %p120
    %s122 = ssub.s32 %s20, %s27
    %p123 = scmp.eq.s32.totalorder %s122, 0
    %s125 = sadd.s32 %s124, 1
    %s126 = scalar_select %p123, %s124, %s125
    %p129 = pneg %p123
    %p130 = scmp.eq.s32.totalorder %s20, 2
    %p131 = por %p129, %p130
    %p132 = scmp.ne.s32.totalorder %s124, %s127
    %p133 = scmp.eq.s32.totalorder %s20, 0
    %p134 = por %p132, %p133
    %p135 = scmp.ne.s32.totalorder %s124, %s127
    %p136 = scmp.eq.s32.totalorder %s25, 2
    %p137 = por %p135, %p136
    %p138 = scmp.ne.s32.totalorder %s127, %s128
    %p139 = scmp.eq.s32.totalorder %s25, 0
    %p140 = por %p138, %p139
    %p141 = scmp.ne.s32.totalorder %s127, %s128
    %p142 = scmp.eq.s32.totalorder %s26, 2
    %p143 = por %p141, %p142
    %p145 = scmp.ne.s32.totalorder %s128, %s144
    %p146 = scmp.eq.s32.totalorder %s26, 0
    %p147 = por %p145, %p146
    %s148 = ssub.s32 %s20, %s27
    %p149 = scmp.eq.s32.totalorder %s148, 0
    %s151 = sadd.s32 %s150, 1
    %s152 = scalar_select %p149, %s150, %s151
    %p155 = pneg %p149
    %p156 = scmp.eq.s32.totalorder %s20, 2
    %p157 = por %p155, %p156
    %p158 = scmp.ne.s32.totalorder %s150, %s153
    %p159 = scmp.eq.s32.totalorder %s20, 0
    %p160 = por %p158, %p159
    %p161 = scmp.ne.s32.totalorder %s150, %s153
    %p162 = scmp.eq.s32.totalorder %s25, 2
    %p163 = por %p161, %p162
    %p164 = scmp.ne.s32.totalorder %s153, %s154
    %p165 = scmp.eq.s32.totalorder %s25, 0
    %p166 = por %p164, %p165
    %p167 = scmp.ne.s32.totalorder %s153, %s154
    %p168 = scmp.eq.s32.totalorder %s26, 2
    %p169 = por %p167, %p168
    %p171 = scmp.ne.s32.totalorder %s154, %s170
    %p172 = scmp.eq.s32.totalorder %s26, 0
    %p173 = por %p171, %p172
    %s174 = ssub.s32 %s20, %s27
    %p175 = scmp.eq.s32.totalorder %s174, 0
    %s177 = sadd.s32 %s176, 1
    %s178 = scalar_select %p175, %s176, %s177
    %p181 = pneg %p175
    %p182 = scmp.eq.s32.totalorder %s20, 2
    %p183 = por %p181, %p182
    %p184 = scmp.ne.s32.totalorder %s176, %s179
    %p185 = scmp.eq.s32.totalorder %s20, 0
    %p186 = por %p184, %p185
    %p187 = scmp.ne.s32.totalorder %s176, %s179
    %p188 = scmp.eq.s32.totalorder %s25, 2
    %p189 = por %p187, %p188
    %p190 = scmp.ne.s32.totalorder %s179, %s180
    %p191 = scmp.eq.s32.totalorder %s25, 0
    %p192 = por %p190, %p191
    %p193 = scmp.ne.s32.totalorder %s179, %s180
    %p194 = scmp.eq.s32.totalorder %s26, 2
    %p195 = por %p193, %p194
    %p197 = scmp.ne.s32.totalorder %s180, %s196
    %p198 = scmp.eq.s32.totalorder %s26, 0
    %p199 = por %p197, %p198
    %s200 = ssub.s32 %s20, %s27
    %p201 = scmp.eq.s32.totalorder %s200, 0
    %s203 = sadd.s32 %s202, 1
    %s204 = scalar_select %p201, %s202, %s203
    %p207 = pneg %p201
    %p208 = scmp.eq.s32.totalorder %s20, 2
    %p209 = por %p207, %p208
    %p210 = scmp.ne.s32.totalorder %s202, %s205
    %p211 = scmp.eq.s32.totalorder %s20, 0
    %p212 = por %p210, %p211
    %p213 = scmp.ne.s32.totalorder %s202, %s205
    %p214 = scmp.eq.s32.totalorder %s25, 2
    %p215 = por %p213, %p214
    %p216 = scmp.ne.s32.totalorder %s205, %s206
    %p217 = scmp.eq.s32.totalorder %s25, 0
    %p218 = por %p216, %p217
    %p219 = scmp.ne.s32.totalorder %s205, %s206
    %p220 = scmp.eq.s32.totalorder %s26, 2
    %p221 = por %p219, %p220
    %p223 = scmp.ne.s32.totalorder %s206, %s222
    %p224 = scmp.eq.s32.totalorder %s26, 0
    %p225 = por %p223, %p224
    %s226 = ssub.s32 %s20, %s27
    %p227 = scmp.eq.s32.totalorder %s226, 0
    %s229 = sadd.s32 %s228, 1
    %s230 = scalar_select %p227, %s228, %s229
    %p233 = pneg %p227
    %p234 = scmp.eq.s32.totalorder %s20, 2
    %p235 = por %p233, %p234
    %p236 = scmp.ne.s32.totalorder %s228, %s231
    %p237 = scmp.eq.s32.totalorder %s20, 0
    %p238 = por %p236, %p237
    %p239 = scmp.ne.s32.totalorder %s228, %s231
    %p240 = scmp.eq.s32.totalorder %s25, 2
    %p241 = por %p239, %p240
    %p242 = scmp.ne.s32.totalorder %s231, %s232
    %p243 = scmp.eq.s32.totalorder %s25, 0
    %p244 = por %p242, %p243
    %p245 = scmp.ne.s32.totalorder %s231, %s232
    %p246 = scmp.eq.s32.totalorder %s26, 2
    %p247 = por %p245, %p246
    %p249 = scmp.ne.s32.totalorder %s232, %s248
    %p250 = scmp.eq.s32.totalorder %s26, 0
    %p251 = por %p249, %p250
    %s252 = ssub.s32 %s20, %s27
    %p253 = scmp.eq.s32.totalorder %s252, 0
    %s255 = sadd.s32 %s254, 1
    %s256 = scalar_select %p253, %s254, %s255
    %p259 = pneg %p253
    %p260 = scmp.eq.s32.totalorder %s20, 2
    %p261 = por %p259, %p260
    %p262 = scmp.ne.s32.totalorder %s254, %s257
    %p263 = scmp.eq.s32.totalorder %s20, 0
    %p264 = por %p262, %p263
    %p265 = scmp.ne.s32.totalorder %s254, %s257
    %p266 = scmp.eq.s32.totalorder %s25, 2
    %p267 = por %p265, %p266
    %p268 = scmp.ne.s32.totalorder %s257, %s258
    %p269 = scmp.eq.s32.totalorder %s25, 0
    %p270 = por %p268, %p269
    %p271 = scmp.ne.s32.totalorder %s257, %s258
    %p272 = scmp.eq.s32.totalorder %s26, 2
    %p273 = por %p271, %p272
    %p275 = scmp.ne.s32.totalorder %s258, %s274
    %p276 = scmp.eq.s32.totalorder %s26, 0
    %p277 = por %p275, %p276
    %s278 = ssub.s32 %s20, %s27
    %p279 = scmp.eq.s32.totalorder %s278, 0
    %s281 = sadd.s32 %s280, 1
    %s282 = scalar_select %p279, %s280, %s281
    %p285 = pneg %p279
    %p286 = scmp.eq.s32.totalorder %s20, 2
    %p287 = por %p285, %p286
    %p288 = scmp.ne.s32.totalorder %s280, %s283
    %p289 = scmp.eq.s32.totalorder %s20, 0
    %p290 = por %p288, %p289
    %p291 = scmp.ne.s32.totalorder %s280, %s283
    %p292 = scmp.eq.s32.totalorder %s25, 2
    %p293 = por %p291, %p292
    %p294 = scmp.ne.s32.totalorder %s283, %s284
    %p295 = scmp.eq.s32.totalorder %s25, 0
    %p296 = por %p294, %p295
    %p297 = scmp.ne.s32.totalorder %s283, %s284
    %p298 = scmp.eq.s32.totalorder %s26, 2
    %p299 = por %p297, %p298
    %p301 = scmp.ne.s32.totalorder %s284, %s300
    %p302 = scmp.eq.s32.totalorder %s26, 0
    %p303 = por %p301, %p302
    %s304 = ssub.s32 %s20, %s27
    %p305 = scmp.eq.s32.totalorder %s304, 0
    %s307 = sadd.s32 %s306, 1
    %s308 = scalar_select %p305, %s306, %s307
    %p311 = pneg %p305
    %p312 = scmp.eq.s32.totalorder %s20, 2
    %p313 = por %p311, %p312
    %p314 = scmp.ne.s32.totalorder %s306, %s309
    %p315 = scmp.eq.s32.totalorder %s20, 0
    %p316 = por %p314, %p315
    %p317 = scmp.ne.s32.totalorder %s306, %s309
    %p318 = scmp.eq.s32.totalorder %s25, 2
    %p319 = por %p317, %p318
    %p320 = scmp.ne.s32.totalorder %s309, %s310
    %p321 = scmp.eq.s32.totalorder %s25, 0
    %p322 = por %p320, %p321
    %p323 = scmp.ne.s32.totalorder %s309, %s310
    %p324 = scmp.eq.s32.totalorder %s26, 2
    %p325 = por %p323, %p324
    %p327 = scmp.ne.s32.totalorder %s310, %s326
    %p328 = scmp.eq.s32.totalorder %s26, 0
    %p329 = por %p327, %p328
    %s330 = ssub.s32 %s20, %s27
    %p331 = scmp.eq.s32.totalorder %s330, 0
    %s333 = sadd.s32 %s332, 1
    %s334 = scalar_select %p331, %s332, %s333
    %p337 = pneg %p331
    %p338 = scmp.eq.s32.totalorder %s20, 2
    %p339 = por %p337, %p338
    %p340 = scmp.ne.s32.totalorder %s332, %s335
    %p341 = scmp.eq.s32.totalorder %s20, 0
    %p342 = por %p340, %p341
    %p343 = scmp.ne.s32.totalorder %s332, %s335
    %p344 = scmp.eq.s32.totalorder %s25, 2
    %p345 = por %p343, %p344
    %p346 = scmp.ne.s32.totalorder %s335, %s336
    %p347 = scmp.eq.s32.totalorder %s25, 0
    %p348 = por %p346, %p347
    %p349 = scmp.ne.s32.totalorder %s335, %s336
    %p350 = scmp.eq.s32.totalorder %s26, 2
    %p351 = por %p349, %p350
    %p353 = scmp.ne.s32.totalorder %s336, %s352
    %p354 = scmp.eq.s32.totalorder %s26, 0
    %p355 = por %p353, %p354
    %s356 = ssub.s32 %s20, %s27
    %p357 = scmp.eq.s32.totalorder %s356, 0
    %s359 = sadd.s32 %s358, 1
    %s360 = scalar_select %p357, %s358, %s359
    %p363 = pneg %p357
    %p364 = scmp.eq.s32.totalorder %s20, 2
    %p365 = por %p363, %p364
    %p366 = scmp.ne.s32.totalorder %s358, %s361
    %p367 = scmp.eq.s32.totalorder %s20, 0
    %p368 = por %p366, %p367
    %p369 = scmp.ne.s32.totalorder %s358, %s361
    %p370 = scmp.eq.s32.totalorder %s25, 2
    %p371 = por %p369, %p370
    %p372 = scmp.ne.s32.totalorder %s361, %s362
    %p373 = scmp.eq.s32.totalorder %s25, 0
    %p374 = por %p372, %p373
    %p375 = scmp.ne.s32.totalorder %s361, %s362
    %p376 = scmp.eq.s32.totalorder %s26, 2
    %p377 = por %p375, %p376
    %p379 = scmp.ne.s32.totalorder %s362, %s378
    %p380 = scmp.eq.s32.totalorder %s26, 0
    %p381 = por %p379, %p380
    %s383 = sadd.s32 %s382, 1
    %p386 = scmp.eq.s32.totalorder %s20, 2
    %p387 = scmp.ne.s32.totalorder %s382, %s384
    %p388 = scmp.eq.s32.totalorder %s20, 0
    %p389 = por %p387, %p388
    %p390 = scmp.ne.s32.totalorder %s382, %s384
    %p391 = scmp.eq.s32.totalorder %s25, 2
    %p392 = por %p390, %p391
    %p393 = scmp.ne.s32.totalorder %s384, %s385
    %p394 = scmp.eq.s32.totalorder %s25, 0
    %p395 = por %p393, %p394
    %p396 = scmp.ne.s32.totalorder %s384, %s385
    %p397 = scmp.eq.s32.totalorder %s26, 2
    %p398 = por %p396, %p397
    %p400 = scmp.ne.s32.totalorder %s385, %s399
    %p401 = scmp.eq.s32.totalorder %s26, 0
    %p402 = por %p400, %p401
    %p403 = scmp.le.s32.totalorder 1, %s20
    %p404 = scmp.lt.s32.totalorder %s20, 4
    %p405 = pnand %p403, %p404
    %p406 = pneg %p405
    // Predicated region
    $region9: #{fwd.10} parent=5 // pred_check
      _
    $region10: #{fwd.10} parent=5 // pred_check_branch
      %408 = sbr.rel (%p405) target = $region12
    $region11: #{fwd.10} parent=5 // pred_region
      %s409 = ssub.s32 %s20, 1
      // Predicated region
      $region13: #{fwd.10} parent=11 // pred_check
        %p410 = pneg %p41
      $region14: #{fwd.10} parent=11 // pred_check_branch
        %412 = sbr.rel (%p410) target = $region16
      $region15: #{fwd.10} parent=11 // pred_region
        _
      $region16: #{fwd.10} parent=11 // pred_fallthru
        _
      // Predicated region
      $region17: #{fwd.10} parent=11 // pred_check
        %p413 = pneg %p62
      $region18: #{fwd.10} parent=11 // pred_check_branch
        %415 = sbr.rel (%p413) target = $region20
      $region19: #{fwd.10} parent=11 // pred_region
        _
      $region20: #{fwd.10} parent=11 // pred_fallthru
        _
    $region12: #{fwd.10} parent=5 // pred_fallthru
      _
    %p416 = scmp.lt.s32.totalorder %s20, 3
    // Predicated region
    $region21: #{fwd.10} parent=5 // pred_check
      %p417 = pneg %p416
    $region22: #{fwd.10} parent=5 // pred_check_branch
      %419 = sbr.rel (%p417) target = $region24
    $region23: #{fwd.10} parent=5 // pred_region
      // Predicated region
      $region25: #{fwd.10} parent=23 // pred_check
        %p420 = pneg %p82
      $region26: #{fwd.10} parent=23 // pred_check_branch
        %422 = sbr.rel (%p420) target = $region28
      $region27: #{fwd.10} parent=23 // pred_region
        %p423 = scmp.lt.s32.totalorder %s20, 2
        %s424 = scalar_select %p423, %s20, 2
        %s425 = smul.addr %s424, 192
        %s426 = smul.addr %s425, 4
        %s427 = scalar_lea.vmem %s2, %s426
      $region28: #{fwd.10} parent=23 // pred_fallthru
        _
      // Predicated region
      $region29: #{fwd.10} parent=23 // pred_check
        %p428 = pneg %p108
      $region30: #{fwd.10} parent=23 // pred_check_branch
        %430 = sbr.rel (%p428) target = $region32
      $region31: #{fwd.10} parent=23 // pred_region
        %p431 = scmp.lt.s32.totalorder %s20, 2
        %s432 = scalar_select %p431, %s20, 2
        %s433 = smul.addr %s432, 6
        %s434 = scalar_lea.vmem %s3, %s433
      $region32: #{fwd.10} parent=23 // pred_fallthru
        _
      // Predicated region
      $region33: #{fwd.10} parent=23 // pred_check
        %p435 = pneg %p134
      $region34: #{fwd.10} parent=23 // pred_check_branch
        %437 = sbr.rel (%p435) target = $region36
      $region35: #{fwd.10} parent=23 // pred_region
        %p438 = scmp.lt.s32.totalorder %s20, 2
        %s439 = scalar_select %p438, %s20, 2
        %s440 = smul.addr %s439, 64
        %s441 = smul.addr %s440, 4
        %s442 = scalar_lea.vmem %s4, %s441
      $region36: #{fwd.10} parent=23 // pred_fallthru
        _
      // Predicated region
      $region37: #{fwd.10} parent=23 // pred_check
        %p443 = pneg %p160
      $region38: #{fwd.10} parent=23 // pred_check_branch
        %445 = sbr.rel (%p443) target = $region40
      $region39: #{fwd.10} parent=23 // pred_region
        %p446 = scmp.lt.s32.totalorder %s20, 2
        %s447 = scalar_select %p446, %s20, 2
        %s448 = smul.addr %s447, 2
        %s449 = scalar_lea.vmem %s5, %s448
      $region40: #{fwd.10} parent=23 // pred_fallthru
        _
      // Predicated region
      $region41: #{fwd.10} parent=23 // pred_check
        %p450 = pneg %p186
      $region42: #{fwd.10} parent=23 // pred_check_branch
        %452 = sbr.rel (%p450) target = $region44
      $region43: #{fwd.10} parent=23 // pred_region
        %p453 = scmp.lt.s32.totalorder %s20, 2
        %s454 = scalar_select %p453, %s20, 2
        %s455 = smul.addr %s454, 2
        %s456 = scalar_lea.vmem %s6, %s455
      $region44: #{fwd.10} parent=23 // pred_fallthru
        _
      // Predicated region
      $region45: #{fwd.10} parent=23 // pred_check
        %p457 = pneg %p212
      $region46: #{fwd.10} parent=23 // pred_check_branch
        %459 = sbr.rel (%p457) target = $region48
      $region47: #{fwd.10} parent=23 // pred_region
        %p460 = scmp.lt.s32.totalorder %s20, 2
        %s461 = scalar_select %p460, %s20, 2
        %s462 = smul.addr %s461, 2
        %s463 = scalar_lea.vmem %s7, %s462
      $region48: #{fwd.10} parent=23 // pred_fallthru
        _
      // Predicated region
      $region49: #{fwd.10} parent=23 // pred_check
        %p464 = pneg %p238
      $region50: #{fwd.10} parent=23 // pred_check_branch
        %466 = sbr.rel (%p464) target = $region52
      $region51: #{fwd.10} parent=23 // pred_region
        %p467 = scmp.lt.s32.totalorder %s20, 2
        %s468 = scalar_select %p467, %s20, 2
        %s469 = smul.addr %s468, 64
        %s470 = smul.addr %s469, 4
        %s471 = scalar_lea.vmem %s8, %s470
      $region52: #{fwd.10} parent=23 // pred_fallthru
        _
      // Predicated region
      $region53: #{fwd.10} parent=23 // pred_check
        %p472 = pneg %p264
      $region54: #{fwd.10} parent=23 // pred_check_branch
        %474 = sbr.rel (%p472) target = $region56
      $region55: #{fwd.10} parent=23 // pred_region
        %p475 = scmp.lt.s32.totalorder %s20, 2
        %s476 = scalar_select %p475, %s20, 2
        %s477 = smul.addr %s476, 2
        %s478 = scalar_lea.vmem %s9, %s477
      $region56: #{fwd.10} parent=23 // pred_fallthru
        _
      // Predicated region
      $region57: #{fwd.10} parent=23 // pred_check
        %p479 = pneg %p290
      $region58: #{fwd.10} parent=23 // pred_check_branch
        %481 = sbr.rel (%p479) target = $region60
      $region59: #{fwd.10} parent=23 // pred_region
        %p482 = scmp.lt.s32.totalorder %s20, 2
        %s483 = scalar_select %p482, %s20, 2
        %s484 = smul.addr %s483, 64
        %s485 = smul.addr %s484, 4
        %s486 = scalar_lea.vmem %s10, %s485
      $region60: #{fwd.10} parent=23 // pred_fallthru
        _
      // Predicated region
      $region61: #{fwd.10} parent=23 // pred_check
        %p487 = pneg %p316
      $region62: #{fwd.10} parent=23 // pred_check_branch
        %489 = sbr.rel (%p487) target = $region64
      $region63: #{fwd.10} parent=23 // pred_region
        %p490 = scmp.lt.s32.totalorder %s20, 2
        %s491 = scalar_select %p490, %s20, 2
        %s492 = smul.addr %s491, 2
        %s493 = scalar_lea.vmem %s11, %s492
      $region64: #{fwd.10} parent=23 // pred_fallthru
        _
      // Predicated region
      $region65: #{fwd.10} parent=23 // pred_check
        %p494 = pneg %p342
      $region66: #{fwd.10} parent=23 // pred_check_branch
        %496 = sbr.rel (%p494) target = $region68
      $region67: #{fwd.10} parent=23 // pred_region
        %p497 = scmp.lt.s32.totalorder %s20, 2
        %s498 = scalar_select %p497, %s20, 2
        %s499 = smul.addr %s498, 2
        %s500 = scalar_lea.vmem %s12, %s499
      $region68: #{fwd.10} parent=23 // pred_fallthru
        _
      // Predicated region
      $region69: #{fwd.10} parent=23 // pred_check
        %p501 = pneg %p368
      $region70: #{fwd.10} parent=23 // pred_check_branch
        %503 = sbr.rel (%p501) target = $region72
      $region71: #{fwd.10} parent=23 // pred_region
        %p504 = scmp.lt.s32.totalorder %s20, 2
        %s505 = scalar_select %p504, %s20, 2
        %s506 = smul.addr %s505, 2
        %s507 = scalar_lea.vmem %s13, %s506
      $region72: #{fwd.10} parent=23 // pred_fallthru
        _
    $region24: #{fwd.10} parent=5 // pred_fallthru
      _
    %p508 = scmp.le.s32.totalorder 1, %s20
    %p509 = scmp.lt.s32.totalorder %s20, 4
    %p510 = pnand %p508, %p509
    %p511 = pneg %p510
    // Predicated region
    $region73: #{fwd.10} parent=5 // pred_check
      _
    $region74: #{fwd.10} parent=5 // pred_check_branch
      %513 = sbr.rel (%p510) target = $region76
    $region75: #{fwd.10} parent=5 // pred_region
      %s514 = ssub.s32 %s20, 1
      %p515 = pneg %p41
      %p516 = pneg %p38
      %p517 = pneg %p62
      %p518 = pneg %p59
      %p519 = scmp.lt.s32.totalorder %s25, 2
      %s520 = scalar_select %p519, %s25, 2
      %s521 = smul.addr %s520, 192
      %s522 = smul.addr %s521, 4
      %s523 = scalar_lea.vmem %s2, %s522
      %p524 = pneg %p88
      %p525 = pneg %p85
      %p526 = scmp.lt.s32.totalorder %s25, 2
      %s527 = scalar_select %p526, %s25, 2
      %s528 = smul.addr %s527, 6
      %s529 = scalar_lea.vmem %s3, %s528
      %p530 = pneg %p114
      %p531 = pneg %p111
      %p532 = scmp.lt.s32.totalorder %s25, 2
      %s533 = scalar_select %p532, %s25, 2
      %s534 = smul.addr %s533, 64
      %s535 = smul.addr %s534, 4
      %s536 = scalar_lea.vmem %s4, %s535
      %p537 = pneg %p140
      %p538 = pneg %p137
      %p539 = scmp.lt.s32.totalorder %s25, 2
      %s540 = scalar_select %p539, %s25, 2
      %s541 = smul.addr %s540, 2
      %s542 = scalar_lea.vmem %s5, %s541
      %p543 = pneg %p166
      %p544 = pneg %p163
      %p545 = scmp.lt.s32.totalorder %s25, 2
      %s546 = scalar_select %p545, %s25, 2
      %s547 = smul.addr %s546, 2
      %s548 = scalar_lea.vmem %s6, %s547
      %p549 = pneg %p192
      %p550 = pneg %p189
      %p551 = scmp.lt.s32.totalorder %s25, 2
      %s552 = scalar_select %p551, %s25, 2
      %s553 = smul.addr %s552, 2
      %s554 = scalar_lea.vmem %s7, %s553
      %p555 = pneg %p218
      %p556 = pneg %p215
      %p557 = scmp.lt.s32.totalorder %s25, 2
      %s558 = scalar_select %p557, %s25, 2
      %s559 = smul.addr %s558, 64
      %s560 = smul.addr %s559, 4
      %s561 = scalar_lea.vmem %s8, %s560
      %p562 = pneg %p244
      %p563 = pneg %p241
      %p564 = scmp.lt.s32.totalorder %s25, 2
      %s565 = scalar_select %p564, %s25, 2
      %s566 = smul.addr %s565, 2
      %s567 = scalar_lea.vmem %s9, %s566
      %p568 = pneg %p270
      %p569 = pneg %p267
      %p570 = scmp.lt.s32.totalorder %s25, 2
      %s571 = scalar_select %p570, %s25, 2
      %s572 = smul.addr %s571, 64
      %s573 = smul.addr %s572, 4
      %s574 = scalar_lea.vmem %s10, %s573
      %p575 = pneg %p296
      %p576 = pneg %p293
      %p577 = scmp.lt.s32.totalorder %s25, 2
      %s578 = scalar_select %p577, %s25, 2
      %s579 = smul.addr %s578, 2
      %s580 = scalar_lea.vmem %s11, %s579
      %p581 = pneg %p322
      %p582 = pneg %p319
      %p583 = scmp.lt.s32.totalorder %s25, 2
      %s584 = scalar_select %p583, %s25, 2
      %s585 = smul.addr %s584, 2
      %s586 = scalar_lea.vmem %s12, %s585
      %p587 = pneg %p348
      %p588 = pneg %p345
      %p589 = scmp.lt.s32.totalorder %s25, 2
      %s590 = scalar_select %p589, %s25, 2
      %s591 = smul.addr %s590, 2
      %s592 = scalar_lea.vmem %s13, %s591
      %p593 = pneg %p374
      %p594 = pneg %p371
      %p595 = pneg %p395
      %p596 = pneg %p392
      %p597 = scmp.lt.s32.totalorder %s25, 2
      %s598 = scalar_select %p597, %s25, 2
      %s599 = smul.addr %s598, 192
      %s600 = smul.addr %s599, 4
      %s601 = scalar_lea.vmem %s2, %s600
      %p602 = scmp.lt.s32.totalorder %s25, 2
      %s603 = scalar_select %p602, %s25, 2
      %s604 = smul.addr %s603, 6
      %s605 = scalar_lea.vmem %s3, %s604
      %p606 = scmp.lt.s32.totalorder %s25, 2
      %s607 = scalar_select %p606, %s25, 2
      %s608 = smul.addr %s607, 64
      %s609 = smul.addr %s608, 4
      %s610 = scalar_lea.vmem %s4, %s609
      %p611 = scmp.lt.s32.totalorder %s25, 2
      %s612 = scalar_select %p611, %s25, 2
      %s613 = smul.addr %s612, 2
      %s614 = scalar_lea.vmem %s5, %s613
      %p615 = scmp.lt.s32.totalorder %s25, 2
      %s616 = scalar_select %p615, %s25, 2
      %s617 = smul.addr %s616, 2
      %s618 = scalar_lea.vmem %s6, %s617
      %p619 = scmp.lt.s32.totalorder %s25, 2
      %s620 = scalar_select %p619, %s25, 2
      %s621 = smul.addr %s620, 2
      %s622 = scalar_lea.vmem %s7, %s621
      %p623 = scmp.lt.s32.totalorder %s25, 2
      %s624 = scalar_select %p623, %s25, 2
      %s625 = smul.addr %s624, 64
      %s626 = smul.addr %s625, 4
      %s627 = scalar_lea.vmem %s8, %s626
      %p628 = scmp.lt.s32.totalorder %s25, 2
      %s629 = scalar_select %p628, %s25, 2
      %s630 = smul.addr %s629, 2
      %s631 = scalar_lea.vmem %s9, %s630
      %p632 = scmp.lt.s32.totalorder %s25, 2
      %s633 = scalar_select %p632, %s25, 2
      %s634 = smul.addr %s633, 64
      %s635 = smul.addr %s634, 4
      %s636 = scalar_lea.vmem %s10, %s635
      %p637 = scmp.lt.s32.totalorder %s25, 2
      %s638 = scalar_select %p637, %s25, 2
      %s639 = smul.addr %s638, 2
      %s640 = scalar_lea.vmem %s11, %s639
      %p641 = scmp.lt.s32.totalorder %s25, 2
      %s642 = scalar_select %p641, %s25, 2
      %s643 = smul.addr %s642, 2
      %s644 = scalar_lea.vmem %s12, %s643
      %p645 = scmp.lt.s32.totalorder %s25, 2
      %s646 = scalar_select %p645, %s25, 2
      %s647 = smul.addr %s646, 2
      %s648 = scalar_lea.vmem %s13, %s647
      %p650 = scmp.eq.s32.totalorder %s25, 0
      // Predicated region
      $region77: #{fwd.10} parent=75 // pred_check
        %p651 = pneg %p650
      $region78: #{fwd.10} parent=75 // pred_check_branch
        %653 = sbr.rel (%p651) target = $region80
      $region79: #{fwd.10} parent=75 // pred_region
        %v654 = vld [vmem:[%s0] sm:$0x7f]
        %v655 = vld [vmem:[%s0 + $0x8] sm:$0x7f]
        %656 = vst [vmem:[#allocation2] sm:$0x7f] %v654
        %657 = vst [vmem:[#allocation2 + $0x8] sm:$0x7f] %v655
      $region80: #{fwd.10} parent=75 // pred_fallthru
        _
      %v658 = vld [vmem:[#allocation2] sm:$0x7f]
      %v659 = vld [vmem:[#allocation2 + $0x8] sm:$0x7f]
      %v660 = vpack.c.bf16 %v658, %v658
      %v661 = vpack.c.bf16 %v659, %v659
      %v662 = vld [vmem:[%s1] sm:$0x7f]
      %v663 = vld [vmem:[%s601] sm:$0xff]
      %v664 = vld [vmem:[%s601 + $0x8] sm:$0xff]
      %v665 = vld [vmem:[%s601 + $0x10] sm:$0xff]
      %v666 = vld [vmem:[%s601 + $0x18] sm:$0xff]
      %v667 = vld [vmem:[%s601 + $0x20] sm:$0xff]
      %v668 = vld [vmem:[%s601 + $0x28] sm:$0xff]
      %v669 = vld [vmem:[%s601 + $0x30] sm:$0xff]
      %v670 = vld [vmem:[%s601 + $0x38] sm:$0xff]
      %v671 = vld [vmem:[%s601 + $0x40] sm:$0xff]
      %v672 = vld [vmem:[%s601 + $0x48] sm:$0xff]
      %v673 = vld [vmem:[%s601 + $0x50] sm:$0xff]
      %v674 = vld [vmem:[%s601 + $0x58] sm:$0xff]
      %v675 = vld [vmem:[%s601 + $0x60] sm:$0xff]
      %v676 = vld [vmem:[%s601 + $0x68] sm:$0xff]
      %v677 = vld [vmem:[%s601 + $0x70] sm:$0xff]
      %v678 = vld [vmem:[%s601 + $0x78] sm:$0xff]
      %v679 = vld [vmem:[%s601 + $0x80] sm:$0xff]
      %v680 = vld [vmem:[%s601 + $0x88] sm:$0xff]
      %v681 = vld [vmem:[%s601 + $0x90] sm:$0xff]
      %v682 = vld [vmem:[%s601 + $0x98] sm:$0xff]
      %v683 = vld [vmem:[%s601 + $0xa0] sm:$0xff]
      %v684 = vld [vmem:[%s601 + $0xa8] sm:$0xff]
      %v685 = vld [vmem:[%s601 + $0xb0] sm:$0xff]
      %v686 = vld [vmem:[%s601 + $0xb8] sm:$0xff]
      %v687 = vld [vmem:[%s601 + $0xc0] sm:$0xff]
      %v688 = vld [vmem:[%s601 + $0xc8] sm:$0xff]
      %v689 = vld [vmem:[%s601 + $0xd0] sm:$0xff]
      %v690 = vld [vmem:[%s601 + $0xd8] sm:$0xff]
      %v691 = vld [vmem:[%s601 + $0xe0] sm:$0xff]
      %v692 = vld [vmem:[%s601 + $0xe8] sm:$0xff]
      %v693 = vld [vmem:[%s601 + $0xf0] sm:$0xff]
      %v694 = vld [vmem:[%s601 + $0xf8] sm:$0xff]
      %v695 = vld [vmem:[%s601 + $0x100] sm:$0xff]
      %v696 = vld [vmem:[%s601 + $0x108] sm:$0xff]
      %v697 = vld [vmem:[%s601 + $0x110] sm:$0xff]
      %v698 = vld [vmem:[%s601 + $0x118] sm:$0xff]
      %v699 = vld [vmem:[%s601 + $0x120] sm:$0xff]
      %v700 = vld [vmem:[%s601 + $0x128] sm:$0xff]
      %v701 = vld [vmem:[%s601 + $0x130] sm:$0xff]
      %v702 = vld [vmem:[%s601 + $0x138] sm:$0xff]
      %v703 = vld [vmem:[%s601 + $0x140] sm:$0xff]
      %v704 = vld [vmem:[%s601 + $0x148] sm:$0xff]
      %v705 = vld [vmem:[%s601 + $0x150] sm:$0xff]
      %v706 = vld [vmem:[%s601 + $0x158] sm:$0xff]
      %v707 = vld [vmem:[%s601 + $0x160] sm:$0xff]
      %v708 = vld [vmem:[%s601 + $0x168] sm:$0xff]
      %v709 = vld [vmem:[%s601 + $0x170] sm:$0xff]
      %v710 = vld [vmem:[%s601 + $0x178] sm:$0xff]
      %v711 = vld [vmem:[%s601 + $0x180] sm:$0xff]
      %v712 = vld [vmem:[%s601 + $0x188] sm:$0xff]
      %v713 = vld [vmem:[%s601 + $0x190] sm:$0xff]
      %v714 = vld [vmem:[%s601 + $0x198] sm:$0xff]
      %v715 = vld [vmem:[%s601 + $0x1a0] sm:$0xff]
      %v716 = vld [vmem:[%s601 + $0x1a8] sm:$0xff]
      %v717 = vld [vmem:[%s601 + $0x1b0] sm:$0xff]
      %v718 = vld [vmem:[%s601 + $0x1b8] sm:$0xff]
      %v719 = vld [vmem:[%s601 + $0x1c0] sm:$0xff]
      %v720 = vld [vmem:[%s601 + $0x1c8] sm:$0xff]
      %v721 = vld [vmem:[%s601 + $0x1d0] sm:$0xff]
      %v722 = vld [vmem:[%s601 + $0x1d8] sm:$0xff]
      %v723 = vld [vmem:[%s601 + $0x1e0] sm:$0xff]
      %v724 = vld [vmem:[%s601 + $0x1e8] sm:$0xff]
      %v725 = vld [vmem:[%s601 + $0x1f0] sm:$0xff]
      %v726 = vld [vmem:[%s601 + $0x1f8] sm:$0xff]
      %v727 = vld [vmem:[%s601 + $0x200] sm:$0xff]
      %v728 = vld [vmem:[%s601 + $0x208] sm:$0xff]
      %v729 = vld [vmem:[%s601 + $0x210] sm:$0xff]
      %v730 = vld [vmem:[%s601 + $0x218] sm:$0xff]
      %v731 = vld [vmem:[%s601 + $0x220] sm:$0xff]
      %v732 = vld [vmem:[%s601 + $0x228] sm:$0xff]
      %v733 = vld [vmem:[%s601 + $0x230] sm:$0xff]
      %v734 = vld [vmem:[%s601 + $0x238] sm:$0xff]
      %v735 = vld [vmem:[%s601 + $0x240] sm:$0xff]
      %v736 = vld [vmem:[%s601 + $0x248] sm:$0xff]
      %v737 = vld [vmem:[%s601 + $0x250] sm:$0xff]
      %v738 = vld [vmem:[%s601 + $0x258] sm:$0xff]
      %v739 = vld [vmem:[%s601 + $0x260] sm:$0xff]
      %v740 = vld [vmem:[%s601 + $0x268] sm:$0xff]
      %v741 = vld [vmem:[%s601 + $0x270] sm:$0xff]
      %v742 = vld [vmem:[%s601 + $0x278] sm:$0xff]
      %v743 = vld [vmem:[%s601 + $0x280] sm:$0xff]
      %v744 = vld [vmem:[%s601 + $0x288] sm:$0xff]
      %v745 = vld [vmem:[%s601 + $0x290] sm:$0xff]
      %v746 = vld [vmem:[%s601 + $0x298] sm:$0xff]
      %v747 = vld [vmem:[%s601 + $0x2a0] sm:$0xff]
      %v748 = vld [vmem:[%s601 + $0x2a8] sm:$0xff]
      %v749 = vld [vmem:[%s601 + $0x2b0] sm:$0xff]
      %v750 = vld [vmem:[%s601 + $0x2b8] sm:$0xff]
      %v751 = vld [vmem:[%s601 + $0x2c0] sm:$0xff]
      %v752 = vld [vmem:[%s601 + $0x2c8] sm:$0xff]
      %v753 = vld [vmem:[%s601 + $0x2d0] sm:$0xff]
      %v754 = vld [vmem:[%s601 + $0x2d8] sm:$0xff]
      %v755 = vld [vmem:[%s601 + $0x2e0] sm:$0xff]
      %v756 = vld [vmem:[%s601 + $0x2e8] sm:$0xff]
      %v757 = vld [vmem:[%s601 + $0x2f0] sm:$0xff]
      %v758 = vld [vmem:[%s601 + $0x2f8] sm:$0xff]
      %v759 = vld [vmem:[%s605] sm:$0x3f]
      %v761 = vlaneseq
      %v762 = vshrl.u32 %v761, 7
      %v763 = vsub.s32 0, %v762
      %v764 = vrot.slane %v759, %v763
      %v765 = vlaneseq
      %v766 = vshrl.u32 %v765, 7
      %v767 = vsub.s32 1, %v766
      %v768 = vrot.slane %v759, %v767
      %v769 = vlaneseq
      %v770 = vshrl.u32 %v769, 7
      %v771 = vsub.s32 2, %v770
      %v772 = vrot.slane %v759, %v771
      %v773 = vlaneseq
      %v774 = vshrl.u32 %v773, 7
      %v775 = vsub.s32 3, %v774
      %v776 = vrot.slane %v759, %v775
      %v777 = vlaneseq
      %v778 = vshrl.u32 %v777, 7
      %v779 = vsub.s32 4, %v778
      %v780 = vrot.slane %v759, %v779
      %v781 = vlaneseq
      %v782 = vshrl.u32 %v781, 7
      %v783 = vsub.s32 5, %v782
      %v784 = vrot.slane %v759, %v783
      %v887 = vunpack.c.l.b16 %v663
      %v888 = vunpack.c.h.b16 %v663
      %v889 = vunpack.c.l.b16 %v664
      %v890 = vunpack.c.h.b16 %v664
      %v891 = vunpack.c.l.b16 %v665
      %v892 = vunpack.c.h.b16 %v665
      %v893 = vunpack.c.l.b16 %v666
      %v894 = vunpack.c.h.b16 %v666
      %v895 = vunpack.c.l.b16 %v667
      %v896 = vunpack.c.h.b16 %v667
      %v897 = vunpack.c.l.b16 %v668
      %v898 = vunpack.c.h.b16 %v668
      %v899 = vunpack.c.l.b16 %v669
      %v900 = vunpack.c.h.b16 %v669
      %v901 = vunpack.c.l.b16 %v670
      %v902 = vunpack.c.h.b16 %v670
      %v903 = vunpack.c.l.b16 %v671
      %v904 = vunpack.c.h.b16 %v671
      %v905 = vunpack.c.l.b16 %v672
      %v906 = vunpack.c.h.b16 %v672
      %v907 = vunpack.c.l.b16 %v673
      %v908 = vunpack.c.h.b16 %v673
      %v909 = vunpack.c.l.b16 %v674
      %v910 = vunpack.c.h.b16 %v674
      %v911 = vunpack.c.l.b16 %v675
      %v912 = vunpack.c.h.b16 %v675
      %v913 = vunpack.c.l.b16 %v676
      %v914 = vunpack.c.h.b16 %v676
      %v915 = vunpack.c.l.b16 %v677
      %v916 = vunpack.c.h.b16 %v677
      %v917 = vunpack.c.l.b16 %v678
      %v918 = vunpack.c.h.b16 %v678
      %v919 = vunpack.c.l.b16 %v679
      %v920 = vunpack.c.h.b16 %v679
      %v921 = vunpack.c.l.b16 %v680
      %v922 = vunpack.c.h.b16 %v680
      %v923 = vunpack.c.l.b16 %v681
      %v924 = vunpack.c.h.b16 %v681
      %v925 = vunpack.c.l.b16 %v682
      %v926 = vunpack.c.h.b16 %v682
      %v927 = vunpack.c.l.b16 %v683
      %v928 = vunpack.c.h.b16 %v683
      %v929 = vunpack.c.l.b16 %v684
      %v930 = vunpack.c.h.b16 %v684
      %v931 = vunpack.c.l.b16 %v685
      %v932 = vunpack.c.h.b16 %v685
      %v933 = vunpack.c.l.b16 %v686
      %v934 = vunpack.c.h.b16 %v686
      %v935 = vunpack.c.l.b16 %v687
      %v936 = vunpack.c.h.b16 %v687
      %v937 = vunpack.c.l.b16 %v688
      %v938 = vunpack.c.h.b16 %v688
      %v939 = vunpack.c.l.b16 %v689
      %v940 = vunpack.c.h.b16 %v689
      %v941 = vunpack.c.l.b16 %v690
      %v942 = vunpack.c.h.b16 %v690
      %v943 = vunpack.c.l.b16 %v691
      %v944 = vunpack.c.h.b16 %v691
      %v945 = vunpack.c.l.b16 %v692
      %v946 = vunpack.c.h.b16 %v692
      %v947 = vunpack.c.l.b16 %v693
      %v948 = vunpack.c.h.b16 %v693
      %v949 = vunpack.c.l.b16 %v694
      %v950 = vunpack.c.h.b16 %v694
      %v951 = vunpack.c.l.b16 %v695
      %v952 = vunpack.c.h.b16 %v695
      %v953 = vunpack.c.l.b16 %v696
      %v954 = vunpack.c.h.b16 %v696
      %v955 = vunpack.c.l.b16 %v697
      %v956 = vunpack.c.h.b16 %v697
      %v957 = vunpack.c.l.b16 %v698
      %v958 = vunpack.c.h.b16 %v698
      %v959 = vunpack.c.l.b16 %v699
      %v960 = vunpack.c.h.b16 %v699
      %v961 = vunpack.c.l.b16 %v700
      %v962 = vunpack.c.h.b16 %v700
      %v963 = vunpack.c.l.b16 %v701
      %v964 = vunpack.c.h.b16 %v701
      %v965 = vunpack.c.l.b16 %v702
      %v966 = vunpack.c.h.b16 %v702
      %v967 = vunpack.c.l.b16 %v703
      %v968 = vunpack.c.h.b16 %v703
      %v969 = vunpack.c.l.b16 %v704
      %v970 = vunpack.c.h.b16 %v704
      %v971 = vunpack.c.l.b16 %v705
      %v972 = vunpack.c.h.b16 %v705
      %v973 = vunpack.c.l.b16 %v706
      %v974 = vunpack.c.h.b16 %v706
      %v975 = vunpack.c.l.b16 %v707
      %v976 = vunpack.c.h.b16 %v707
      %v977 = vunpack.c.l.b16 %v708
      %v978 = vunpack.c.h.b16 %v708
      %v979 = vunpack.c.l.b16 %v709
      %v980 = vunpack.c.h.b16 %v709
      %v981 = vunpack.c.l.b16 %v710
      %v982 = vunpack.c.h.b16 %v710
      %v983 = vunpack.c.l.b16 %v711
      %v984 = vunpack.c.h.b16 %v711
      %v985 = vunpack.c.l.b16 %v712
      %v986 = vunpack.c.h.b16 %v712
      %v987 = vunpack.c.l.b16 %v713
      %v988 = vunpack.c.h.b16 %v713
      %v989 = vunpack.c.l.b16 %v714
      %v990 = vunpack.c.h.b16 %v714
      %v991 = vunpack.c.l.b16 %v715
      %v992 = vunpack.c.h.b16 %v715
      %v993 = vunpack.c.l.b16 %v716
      %v994 = vunpack.c.h.b16 %v716
      %v995 = vunpack.c.l.b16 %v717
      %v996 = vunpack.c.h.b16 %v717
      %v997 = vunpack.c.l.b16 %v718
      %v998 = vunpack.c.h.b16 %v718
      %v999 = vunpack.c.l.b16 %v719
      %v1000 = vunpack.c.h.b16 %v719
      %v1001 = vunpack.c.l.b16 %v720
      %v1002 = vunpack.c.h.b16 %v720
      %v1003 = vunpack.c.l.b16 %v721
      %v1004 = vunpack.c.h.b16 %v721
      %v1005 = vunpack.c.l.b16 %v722
      %v1006 = vunpack.c.h.b16 %v722
      %v1007 = vunpack.c.l.b16 %v723
      %v1008 = vunpack.c.h.b16 %v723
      %v1009 = vunpack.c.l.b16 %v724
      %v1010 = vunpack.c.h.b16 %v724
      %v1011 = vunpack.c.l.b16 %v725
      %v1012 = vunpack.c.h.b16 %v725
      %v1013 = vunpack.c.l.b16 %v726
      %v1014 = vunpack.c.h.b16 %v726
      %v1015 = vunpack.c.l.b16 %v727
      %v1016 = vunpack.c.h.b16 %v727
      %v1017 = vunpack.c.l.b16 %v728
      %v1018 = vunpack.c.h.b16 %v728
      %v1019 = vunpack.c.l.b16 %v729
      %v1020 = vunpack.c.h.b16 %v729
      %v1021 = vunpack.c.l.b16 %v730
      %v1022 = vunpack.c.h.b16 %v730
      %v1023 = vunpack.c.l.b16 %v731
      %v1024 = vunpack.c.h.b16 %v731
      %v1025 = vunpack.c.l.b16 %v732
      %v1026 = vunpack.c.h.b16 %v732
      %v1027 = vunpack.c.l.b16 %v733
      %v1028 = vunpack.c.h.b16 %v733
      %v1029 = vunpack.c.l.b16 %v734
      %v1030 = vunpack.c.h.b16 %v734
      %v1031 = vunpack.c.l.b16 %v735
      %v1032 = vunpack.c.h.b16 %v735
      %v1033 = vunpack.c.l.b16 %v736
      %v1034 = vunpack.c.h.b16 %v736
      %v1035 = vunpack.c.l.b16 %v737
      %v1036 = vunpack.c.h.b16 %v737
      %v1037 = vunpack.c.l.b16 %v738
      %v1038 = vunpack.c.h.b16 %v738
      %v1039 = vunpack.c.l.b16 %v739
      %v1040 = vunpack.c.h.b16 %v739
      %v1041 = vunpack.c.l.b16 %v740
      %v1042 = vunpack.c.h.b16 %v740
      %v1043 = vunpack.c.l.b16 %v741
      %v1044 = vunpack.c.h.b16 %v741
      %v1045 = vunpack.c.l.b16 %v742
      %v1046 = vunpack.c.h.b16 %v742
      %v1047 = vunpack.c.l.b16 %v743
      %v1048 = vunpack.c.h.b16 %v743
      %v1049 = vunpack.c.l.b16 %v744
      %v1050 = vunpack.c.h.b16 %v744
      %v1051 = vunpack.c.l.b16 %v745
      %v1052 = vunpack.c.h.b16 %v745
      %v1053 = vunpack.c.l.b16 %v746
      %v1054 = vunpack.c.h.b16 %v746
      %v1055 = vunpack.c.l.b16 %v747
      %v1056 = vunpack.c.h.b16 %v747
      %v1057 = vunpack.c.l.b16 %v748
      %v1058 = vunpack.c.h.b16 %v748
      %v1059 = vunpack.c.l.b16 %v749
      %v1060 = vunpack.c.h.b16 %v749
      %v1061 = vunpack.c.l.b16 %v750
      %v1062 = vunpack.c.h.b16 %v750
      %v1063 = vunpack.c.l.b16 %v751
      %v1064 = vunpack.c.h.b16 %v751
      %v1065 = vunpack.c.l.b16 %v752
      %v1066 = vunpack.c.h.b16 %v752
      %v1067 = vunpack.c.l.b16 %v753
      %v1068 = vunpack.c.h.b16 %v753
      %v1069 = vunpack.c.l.b16 %v754
      %v1070 = vunpack.c.h.b16 %v754
      %v1071 = vunpack.c.l.b16 %v755
      %v1072 = vunpack.c.h.b16 %v755
      %v1073 = vunpack.c.l.b16 %v756
      %v1074 = vunpack.c.h.b16 %v756
      %v1075 = vunpack.c.l.b16 %v757
      %v1076 = vunpack.c.h.b16 %v757
      %v1077 = vunpack.c.l.b16 %v758
      %v1078 = vunpack.c.h.b16 %v758
      %v1079 = vpack.c.b16 %v893, %v887
      %v1080 = vpack.c.b16 %v894, %v888
      %v1081 = vpack.c.b16 %v895, %v889
      %v1082 = vpack.c.b16 %v896, %v890
      %v1083 = vpack.c.b16 %v897, %v891
      %v1084 = vpack.c.b16 %v898, %v892
      %v1085 = vpack.c.b16 %v905, %v899
      %v1086 = vpack.c.b16 %v906, %v900
      %v1087 = vpack.c.b16 %v907, %v901
      %v1088 = vpack.c.b16 %v908, %v902
      %v1089 = vpack.c.b16 %v909, %v903
      %v1090 = vpack.c.b16 %v910, %v904
      %v1091 = vpack.c.b16 %v917, %v911
      %v1092 = vpack.c.b16 %v918, %v912
      %v1093 = vpack.c.b16 %v919, %v913
      %v1094 = vpack.c.b16 %v920, %v914
      %v1095 = vpack.c.b16 %v921, %v915
      %v1096 = vpack.c.b16 %v922, %v916
      %v1097 = vpack.c.b16 %v929, %v923
      %v1098 = vpack.c.b16 %v930, %v924
      %v1099 = vpack.c.b16 %v931, %v925
      %v1100 = vpack.c.b16 %v932, %v926
      %v1101 = vpack.c.b16 %v933, %v927
      %v1102 = vpack.c.b16 %v934, %v928
      %v1103 = vpack.c.b16 %v941, %v935
      %v1104 = vpack.c.b16 %v942, %v936
      %v1105 = vpack.c.b16 %v943, %v937
      %v1106 = vpack.c.b16 %v944, %v938
      %v1107 = vpack.c.b16 %v945, %v939
      %v1108 = vpack.c.b16 %v946, %v940
      %v1109 = vpack.c.b16 %v953, %v947
      %v1110 = vpack.c.b16 %v954, %v948
      %v1111 = vpack.c.b16 %v955, %v949
      %v1112 = vpack.c.b16 %v956, %v950
      %v1113 = vpack.c.b16 %v957, %v951
      %v1114 = vpack.c.b16 %v958, %v952
      %v1115 = vpack.c.b16 %v965, %v959
      %v1116 = vpack.c.b16 %v966, %v960
      %v1117 = vpack.c.b16 %v967, %v961
      %v1118 = vpack.c.b16 %v968, %v962
      %v1119 = vpack.c.b16 %v969, %v963
      %v1120 = vpack.c.b16 %v970, %v964
      %v1121 = vpack.c.b16 %v977, %v971
      %v1122 = vpack.c.b16 %v978, %v972
      %v1123 = vpack.c.b16 %v979, %v973
      %v1124 = vpack.c.b16 %v980, %v974
      %v1125 = vpack.c.b16 %v981, %v975
      %v1126 = vpack.c.b16 %v982, %v976
      %v1127 = vpack.c.b16 %v989, %v983
      %v1128 = vpack.c.b16 %v990, %v984
      %v1129 = vpack.c.b16 %v991, %v985
      %v1130 = vpack.c.b16 %v992, %v986
      %v1131 = vpack.c.b16 %v993, %v987
      %v1132 = vpack.c.b16 %v994, %v988
      %v1133 = vpack.c.b16 %v1001, %v995
      %v1134 = vpack.c.b16 %v1002, %v996
      %v1135 = vpack.c.b16 %v1003, %v997
      %v1136 = vpack.c.b16 %v1004, %v998
      %v1137 = vpack.c.b16 %v1005, %v999
      %v1138 = vpack.c.b16 %v1006, %v1000
      %v1139 = vpack.c.b16 %v1013, %v1007
      %v1140 = vpack.c.b16 %v1014, %v1008
      %v1141 = vpack.c.b16 %v1015, %v1009
      %v1142 = vpack.c.b16 %v1016, %v1010
      %v1143 = vpack.c.b16 %v1017, %v1011
      %v1144 = vpack.c.b16 %v1018, %v1012
      %v1145 = vpack.c.b16 %v1025, %v1019
      %v1146 = vpack.c.b16 %v1026, %v1020
      %v1147 = vpack.c.b16 %v1027, %v1021
      %v1148 = vpack.c.b16 %v1028, %v1022
      %v1149 = vpack.c.b16 %v1029, %v1023
      %v1150 = vpack.c.b16 %v1030, %v1024
      %v1151 = vpack.c.b16 %v1037, %v1031
      %v1152 = vpack.c.b16 %v1038, %v1032
      %v1153 = vpack.c.b16 %v1039, %v1033
      %v1154 = vpack.c.b16 %v1040, %v1034
      %v1155 = vpack.c.b16 %v1041, %v1035
      %v1156 = vpack.c.b16 %v1042, %v1036
      %v1157 = vpack.c.b16 %v1049, %v1043
      %v1158 = vpack.c.b16 %v1050, %v1044
      %v1159 = vpack.c.b16 %v1051, %v1045
      %v1160 = vpack.c.b16 %v1052, %v1046
      %v1161 = vpack.c.b16 %v1053, %v1047
      %v1162 = vpack.c.b16 %v1054, %v1048
      %v1163 = vpack.c.b16 %v1061, %v1055
      %v1164 = vpack.c.b16 %v1062, %v1056
      %v1165 = vpack.c.b16 %v1063, %v1057
      %v1166 = vpack.c.b16 %v1064, %v1058
      %v1167 = vpack.c.b16 %v1065, %v1059
      %v1168 = vpack.c.b16 %v1066, %v1060
      %v1169 = vpack.c.b16 %v1073, %v1067
      %v1170 = vpack.c.b16 %v1074, %v1068
      %v1171 = vpack.c.b16 %v1075, %v1069
      %v1172 = vpack.c.b16 %v1076, %v1070
      %v1173 = vpack.c.b16 %v1077, %v1071
      %v1174 = vpack.c.b16 %v1078, %v1072
      %1271 = vmatprep.subr.bf16.mxu0 %v1122
      %1272 = vmatpush1.bf16.msra.mxu0 %v1121
      %1273 = vmatprep.subr.bf16.mxu0 %v1116
      %1274 = vmatpush1.bf16.msra.mxu0 %v1115
      %1275 = vmatprep.subr.bf16.mxu0 %v1110
      %1276 = vmatpush1.bf16.msra.mxu0 %v1109
      %1277 = vmatprep.subr.bf16.mxu0 %v1104
      %1278 = vmatpush1.bf16.msra.mxu0 %v1103
      %1279 = vmatprep.subr.bf16.mxu0 %v1098
      %1280 = vmatpush1.bf16.msra.mxu0 %v1097
      %1281 = vmatprep.subr.bf16.mxu0 %v1092
      %1282 = vmatpush1.bf16.msra.mxu0 %v1091
      %1283 = vmatprep.subr.bf16.mxu0 %v1086
      %1284 = vmatpush1.bf16.msra.mxu0 %v1085
      %1285 = vmatprep.subr.bf16.mxu0 %v1080
      %1286 = vmatpush1.bf16.msra.mxu0 %v1079
      %1287 = vmatprep.subr.bf16.mxu0 %v1170
      %1288 = vmatpush2.bf16.msra.mxu0 %v1169
      %1289 = vmatprep.subr.bf16.mxu0 %v1164
      %1290 = vmatpush2.bf16.msra.mxu0 %v1163
      %1291 = vmatprep.subr.bf16.mxu0 %v1158
      %1292 = vmatpush2.bf16.msra.mxu0 %v1157
      %1293 = vmatprep.subr.bf16.mxu0 %v1152
      %1294 = vmatpush2.bf16.msra.mxu0 %v1151
      %1295 = vmatprep.subr.bf16.mxu0 %v1146
      %1296 = vmatpush2.bf16.msra.mxu0 %v1145
      %1297 = vmatprep.subr.bf16.mxu0 %v1140
      %1298 = vmatpush2.bf16.msra.mxu0 %v1139
      %1299 = vmatprep.subr.bf16.mxu0 %v1134
      %1300 = vmatpush2.bf16.msra.mxu0 %v1133
      %1301 = vmatprep.subr.bf16.mxu0 %v1128
      %1302 = vmatpush2.bf16.msra.mxu0 %v1127
      %1303 = vmatprep.mubr.bf16.mxu0 %v661
      %1304 = vmatmul.mubr.bf16.gmra.mxu0 %v660
      %v1305 = vpop.f32.mrf.mxu0
      %v1306 = vadd.f32 %v764, %v1305
      %v1307 = vpop.f32.mrf.mxu0
      %v1308 = vadd.f32 %v768, %v1307
      %v1309 = vpop.f32.mrf.mxu0
      %v1310 = vpop.f32.mrf.mxu0
      %1311 = vdwg.mxu0
      %1312 = vmatprep.subr.bf16.mxu0 %v1124
      %1313 = vmatpush1.bf16.msra.mxu0 %v1123
      %1314 = vmatprep.subr.bf16.mxu0 %v1118
      %1315 = vmatpush1.bf16.msra.mxu0 %v1117
      %1316 = vmatprep.subr.bf16.mxu0 %v1112
      %1317 = vmatpush1.bf16.msra.mxu0 %v1111
      %1318 = vmatprep.subr.bf16.mxu0 %v1106
      %1319 = vmatpush1.bf16.msra.mxu0 %v1105
      %1320 = vmatprep.subr.bf16.mxu0 %v1100
      %1321 = vmatpush1.bf16.msra.mxu0 %v1099
      %1322 = vmatprep.subr.bf16.mxu0 %v1094
      %1323 = vmatpush1.bf16.msra.mxu0 %v1093
      %1324 = vmatprep.subr.bf16.mxu0 %v1088
      %1325 = vmatpush1.bf16.msra.mxu0 %v1087
      %1326 = vmatprep.subr.bf16.mxu0 %v1082
      %1327 = vmatpush1.bf16.msra.mxu0 %v1081
      %1328 = vmatprep.subr.bf16.mxu0 %v1172
      %1329 = vmatpush2.bf16.msra.mxu0 %v1171
      %1330 = vmatprep.subr.bf16.mxu0 %v1166
      %1331 = vmatpush2.bf16.msra.mxu0 %v1165
      %1332 = vmatprep.subr.bf16.mxu0 %v1160
      %1333 = vmatpush2.bf16.msra.mxu0 %v1159
      %1334 = vmatprep.subr.bf16.mxu0 %v1154
      %1335 = vmatpush2.bf16.msra.mxu0 %v1153
      %1336 = vmatprep.subr.bf16.mxu0 %v1148
      %1337 = vmatpush2.bf16.msra.mxu0 %v1147
      %1338 = vmatprep.subr.bf16.mxu0 %v1142
      %1339 = vmatpush2.bf16.msra.mxu0 %v1141
      %1340 = vmatprep.subr.bf16.mxu0 %v1136
      %1341 = vmatpush2.bf16.msra.mxu0 %v1135
      %1342 = vmatprep.subr.bf16.mxu0 %v1130
      %1343 = vmatpush2.bf16.msra.mxu0 %v1129
      %1344 = vmatprep.mubr.bf16.mxu0 %v661
      %1345 = vmatmul.mubr.bf16.gmra.mxu0 %v660
      %v1346 = vpop.f32.mrf.mxu0
      %v1347 = vadd.f32 %v772, %v1346
      %v1348 = vpop.f32.mrf.mxu0
      %v1349 = vadd.f32 %v776, %v1348
      %v1350 = vpop.f32.mrf.mxu0
      %v1351 = vpop.f32.mrf.mxu0
      %1352 = vdwg.mxu0
      %1353 = vmatprep.subr.bf16.mxu0 %v1126
      %1354 = vmatpush1.bf16.msra.mxu0 %v1125
      %1355 = vmatprep.subr.bf16.mxu0 %v1120
      %1356 = vmatpush1.bf16.msra.mxu0 %v1119
      %1357 = vmatprep.subr.bf16.mxu0 %v1114
      %1358 = vmatpush1.bf16.msra.mxu0 %v1113
      %1359 = vmatprep.subr.bf16.mxu0 %v1108
      %1360 = vmatpush1.bf16.msra.mxu0 %v1107
      %1361 = vmatprep.subr.bf16.mxu0 %v1102
      %1362 = vmatpush1.bf16.msra.mxu0 %v1101
      %1363 = vmatprep.subr.bf16.mxu0 %v1096
      %1364 = vmatpush1.bf16.msra.mxu0 %v1095
      %1365 = vmatprep.subr.bf16.mxu0 %v1090
      %1366 = vmatpush1.bf16.msra.mxu0 %v1089
      %1367 = vmatprep.subr.bf16.mxu0 %v1084
      %1368 = vmatpush1.bf16.msra.mxu0 %v1083
      %1369 = vmatprep.subr.bf16.mxu0 %v1174
      %1370 = vmatpush2.bf16.msra.mxu0 %v1173
      %1371 = vmatprep.subr.bf16.mxu0 %v1168
      %1372 = vmatpush2.bf16.msra.mxu0 %v1167
      %1373 = vmatprep.subr.bf16.mxu0 %v1162
      %1374 = vmatpush2.bf16.msra.mxu0 %v1161
      %1375 = vmatprep.subr.bf16.mxu0 %v1156
      %1376 = vmatpush2.bf16.msra.mxu0 %v1155
      %1377 = vmatprep.subr.bf16.mxu0 %v1150
      %1378 = vmatpush2.bf16.msra.mxu0 %v1149
      %1379 = vmatprep.subr.bf16.mxu0 %v1144
      %1380 = vmatpush2.bf16.msra.mxu0 %v1143
      %1381 = vmatprep.subr.bf16.mxu0 %v1138
      %1382 = vmatpush2.bf16.msra.mxu0 %v1137
      %1383 = vmatprep.subr.bf16.mxu0 %v1132
      %1384 = vmatpush2.bf16.msra.mxu0 %v1131
      %1385 = vmatprep.mubr.bf16.mxu0 %v661
      %1386 = vmatmul.mubr.bf16.gmra.mxu0 %v660
      %v1387 = vpop.f32.mrf.mxu0
      %v1388 = vadd.f32 %v780, %v1387
      %v1389 = vpop.f32.mrf.mxu0
      %v1390 = vadd.f32 %v784, %v1389
      %v1391 = vpop.f32.mrf.mxu0
      %v1392 = vpop.f32.mrf.mxu0
      %1393 = vdwg.mxu0
      %v1394 = vpack.c.bf16 %v1306, %v1306
      %v1395 = vpack.c.bf16 %v1347, %v1347
      %v1396 = vpack.c.bf16 %v1388, %v1388
      %vm1397 = vcmask 261120
      %v1399 = vsel %vm1397, %v1394, 0
      %v1402 = vsel %vm1397, %v1395, 0
      %1404 = vmatprep.subr.bf16.mxu0 0
      %1405 = vmatpush1.bf16.xpose.msra.mxu0 0
      %1406 = vmatprep.subr.bf16.mxu0 0
      %1407 = vmatpush1.bf16.xpose.msra.mxu0 0
      %1408 = vmatprep.subr.bf16.mxu0 0
      %1409 = vmatpush1.bf16.xpose.msra.mxu0 0
      %1410 = vmatprep.subr.bf16.mxu0 0
      %1411 = vmatpush1.bf16.xpose.msra.mxu0 0
      %1412 = vmatprep.subr.bf16.mxu0 0
      %1413 = vmatpush1.bf16.xpose.msra.mxu0 0
      %1414 = vmatprep.subr.bf16.mxu0 0
      %1415 = vmatpush1.bf16.xpose.msra.mxu0 0
      %1416 = vmatprep.subr.bf16.mxu0 0
      %1417 = vmatpush1.bf16.xpose.msra.mxu0 0
      %1418 = vmatprep.subr.bf16.mxu0 0
      %1419 = vmatpush1.bf16.xpose.msra.mxu0 %v1402
      %1420 = vmatprep.subr.bf16.mxu0 0
      %1421 = vmatpush2.bf16.xpose.msra.mxu0 0
      %1422 = vmatprep.subr.bf16.mxu0 0
      %1423 = vmatpush2.bf16.xpose.msra.mxu0 0
      %1424 = vmatprep.subr.bf16.mxu0 0
      %1425 = vmatpush2.bf16.xpose.msra.mxu0 0
      %1426 = vmatprep.subr.bf16.mxu0 0
      %1427 = vmatpush2.bf16.xpose.msra.mxu0 0
      %1428 = vmatprep.subr.bf16.mxu0 0
      %1429 = vmatpush2.bf16.xpose.msra.mxu0 0
      %1430 = vmatprep.subr.bf16.mxu0 0
      %1431 = vmatpush2.bf16.xpose.msra.mxu0 0
      %1432 = vmatprep.subr.bf16.mxu0 0
      %1433 = vmatpush2.bf16.xpose.msra.mxu0 0
      %1434 = vmatprep.subr.bf16.mxu0 0
      %1435 = vmatpush2.bf16.xpose.msra.mxu0 0
      %1436 = vmatprep.mubr.bf16.mxu0 0
      %1437 = vmatmul.mubr.bf16.gmra.mxu0 %v1399
      %v1438 = vpop.f32.mrf.mxu0
      %v1439 = vadd.f32 %v662, %v1438
      %v1440 = vpop.f32.mrf.mxu0
      %v1441 = vpop.f32.mrf.mxu0
      %v1442 = vpop.f32.mrf.mxu0
      %1443 = vdwg.mxu0
      %vm1444 = vcmask 55296
      %v1445 = vsel %vm1444, %v1439, -inf
      %1446 = vmax.xlane.f32.xlu0 %v1445
      %v1447 = vpop.xlane.xlu0 %1446
      %v1448 = vsub.f32 %v1439, %v1447
      %v1449 = vmul.f32 %v1448, 1.442695
      %v1450 = vpow.pop %v1449
      %v1451 = vsel %vm1444, %v1450, 0.0
      %1452 = vadd.xlane.f32.xlu0 %v1451
      %v1453 = vpop.xlane.xlu0 %1452
      %v1454 = vmax.f32 %v1453, 1e-30
      %v1455 = vrcp.pop %v1454
      %v1456 = vmul.f32 %v1450, %v1455
      %v1457 = vpack.c.bf16 %v1456, %v1456
      %vm1458 = vcmask 56320
      %v1460 = vsel %vm1458, %v1457, 0
      %vm1462 = vcmask 1042432
      %vm1463 = vcmask 1043456
      %v1464 = vsel %vm1462, 4294967295, 65535
      %v1465 = vsel %vm1463, %v1464, 0
      %v1467 = vand.u32 %v1396, %v1465
      %1469 = vmatprep.subr.bf16.mxu0 0
      %1470 = vmatpush1.bf16.msra.mxu0 0
      %1471 = vmatprep.subr.bf16.mxu0 0
      %1472 = vmatpush1.bf16.msra.mxu0 0
      %1473 = vmatprep.subr.bf16.mxu0 0
      %1474 = vmatpush1.bf16.msra.mxu0 0
      %1475 = vmatprep.subr.bf16.mxu0 0
      %1476 = vmatpush1.bf16.msra.mxu0 0
      %1477 = vmatprep.subr.bf16.mxu0 0
      %1478 = vmatpush1.bf16.msra.mxu0 0
      %1479 = vmatprep.subr.bf16.mxu0 0
      %1480 = vmatpush1.bf16.msra.mxu0 0
      %1481 = vmatprep.subr.bf16.mxu0 0
      %1482 = vmatpush1.bf16.msra.mxu0 0
      %1483 = vmatprep.subr.bf16.mxu0 0
      %1484 = vmatpush1.bf16.msra.mxu0 %v1467
      %1485 = vmatprep.subr.bf16.mxu0 0
      %1486 = vmatpush2.bf16.msra.mxu0 0
      %1487 = vmatprep.subr.bf16.mxu0 0
      %1488 = vmatpush2.bf16.msra.mxu0 0
      %1489 = vmatprep.subr.bf16.mxu0 0
      %1490 = vmatpush2.bf16.msra.mxu0 0
      %1491 = vmatprep.subr.bf16.mxu0 0
      %1492 = vmatpush2.bf16.msra.mxu0 0
      %1493 = vmatprep.subr.bf16.mxu0 0
      %1494 = vmatpush2.bf16.msra.mxu0 0
      %1495 = vmatprep.subr.bf16.mxu0 0
      %1496 = vmatpush2.bf16.msra.mxu0 0
      %1497 = vmatprep.subr.bf16.mxu0 0
      %1498 = vmatpush2.bf16.msra.mxu0 0
      %1499 = vmatprep.subr.bf16.mxu0 0
      %1500 = vmatpush2.bf16.msra.mxu0 0
      %1501 = vmatprep.mubr.bf16.mxu0 0
      %1502 = vmatmul.mubr.bf16.gmra.mxu0 %v1460
      %v1503 = vpop.f32.mrf.mxu0
      %v1504 = vadd.f32 0.0, %v1503
      %v1505 = vpop.f32.mrf.mxu0
      %v1506 = vpop.f32.mrf.mxu0
      %v1507 = vpop.f32.mrf.mxu0
      %1508 = vdwg.mxu0
      %1510 = vrot.lane.b32.xlu0 %v1394, 96
      %v1511 = vpop.permute.xlu0 %1510
      %1513 = vrot.lane.b32.xlu0 %v1395, 96
      %v1514 = vpop.permute.xlu0 %1513
      %v1516 = vsel %vm1397, %v1511, 0
      %v1519 = vsel %vm1397, %v1514, 0
      %1521 = vmatprep.subr.bf16.mxu0 0
      %1522 = vmatpush1.bf16.xpose.msra.mxu0 0
      %1523 = vmatprep.subr.bf16.mxu0 0
      %1524 = vmatpush1.bf16.xpose.msra.mxu0 0
      %1525 = vmatprep.subr.bf16.mxu0 0
      %1526 = vmatpush1.bf16.xpose.msra.mxu0 0
      %1527 = vmatprep.subr.bf16.mxu0 0
      %1528 = vmatpush1.bf16.xpose.msra.mxu0 0
      %1529 = vmatprep.subr.bf16.mxu0 0
      %1530 = vmatpush1.bf16.xpose.msra.mxu0 0
      %1531 = vmatprep.subr.bf16.mxu0 0
      %1532 = vmatpush1.bf16.xpose.msra.mxu0 0
      %1533 = vmatprep.subr.bf16.mxu0 0
      %1534 = vmatpush1.bf16.xpose.msra.mxu0 0
      %1535 = vmatprep.subr.bf16.mxu0 0
      %1536 = vmatpush1.bf16.xpose.msra.mxu0 %v1519
      %1537 = vmatprep.subr.bf16.mxu0 0
      %1538 = vmatpush2.bf16.xpose.msra.mxu0 0
      %1539 = vmatprep.subr.bf16.mxu0 0
      %1540 = vmatpush2.bf16.xpose.msra.mxu0 0
      %1541 = vmatprep.subr.bf16.mxu0 0
      %1542 = vmatpush2.bf16.xpose.msra.mxu0 0
      %1543 = vmatprep.subr.bf16.mxu0 0
      %1544 = vmatpush2.bf16.xpose.msra.mxu0 0
      %1545 = vmatprep.subr.bf16.mxu0 0
      %1546 = vmatpush2.bf16.xpose.msra.mxu0 0
      %1547 = vmatprep.subr.bf16.mxu0 0
      %1548 = vmatpush2.bf16.xpose.msra.mxu0 0
      %1549 = vmatprep.subr.bf16.mxu0 0
      %1550 = vmatpush2.bf16.xpose.msra.mxu0 0
      %1551 = vmatprep.subr.bf16.mxu0 0
      %1552 = vmatpush2.bf16.xpose.msra.mxu0 0
      %1553 = vmatprep.mubr.bf16.mxu0 0
      %1554 = vmatmul.mubr.bf16.gmra.mxu0 %v1516
      %v1555 = vpop.f32.mrf.mxu0
      %v1556 = vadd.f32 %v662, %v1555
      %v1557 = vpop.f32.mrf.mxu0
      %v1558 = vpop.f32.mrf.mxu0
      %v1559 = vpop.f32.mrf.mxu0
      %1560 = vdwg.mxu0
      %v1561 = vsel %vm1444, %v1556, -inf
      %1562 = vmax.xlane.f32.xlu0 %v1561
      %v1563 = vpop.xlane.xlu0 %1562
      %v1564 = vsub.f32 %v1556, %v1563
      %v1565 = vmul.f32 %v1564, 1.442695
      %v1566 = vpow.pop %v1565
      %v1567 = vsel %vm1444, %v1566, 0.0
      %1568 = vadd.xlane.f32.xlu0 %v1567
      %v1569 = vpop.xlane.xlu0 %1568
      %v1570 = vmax.f32 %v1569, 1e-30
      %v1571 = vrcp.pop %v1570
      %v1572 = vmul.f32 %v1566, %v1571
      %v1573 = vpack.c.bf16 %v1572, %v1572
      %1575 = vrot.lane.b32.xlu0 %v1396, 96
      %v1576 = vpop.permute.xlu0 %1575
      %v1578 = vsel %vm1458, %v1573, 0
      %v1581 = vand.u32 %v1576, %v1465
      %1583 = vmatprep.subr.bf16.mxu0 0
      %1584 = vmatpush1.bf16.msra.mxu0 0
      %1585 = vmatprep.subr.bf16.mxu0 0
      %1586 = vmatpush1.bf16.msra.mxu0 0
      %1587 = vmatprep.subr.bf16.mxu0 0
      %1588 = vmatpush1.bf16.msra.mxu0 0
      %1589 = vmatprep.subr.bf16.mxu0 0
      %1590 = vmatpush1.bf16.msra.mxu0 0
      %1591 = vmatprep.subr.bf16.mxu0 0
      %1592 = vmatpush1.bf16.msra.mxu0 0
      %1593 = vmatprep.subr.bf16.mxu0 0
      %1594 = vmatpush1.bf16.msra.mxu0 0
      %1595 = vmatprep.subr.bf16.mxu0 0
      %1596 = vmatpush1.bf16.msra.mxu0 0
      %1597 = vmatprep.subr.bf16.mxu0 0
      %1598 = vmatpush1.bf16.msra.mxu0 %v1581
      %1599 = vmatprep.subr.bf16.mxu0 0
      %1600 = vmatpush2.bf16.msra.mxu0 0
      %1601 = vmatprep.subr.bf16.mxu0 0
      %1602 = vmatpush2.bf16.msra.mxu0 0
      %1603 = vmatprep.subr.bf16.mxu0 0
      %1604 = vmatpush2.bf16.msra.mxu0 0
      %1605 = vmatprep.subr.bf16.mxu0 0
      %1606 = vmatpush2.bf16.msra.mxu0 0
      %1607 = vmatprep.subr.bf16.mxu0 0
      %1608 = vmatpush2.bf16.msra.mxu0 0
      %1609 = vmatprep.subr.bf16.mxu0 0
      %1610 = vmatpush2.bf16.msra.mxu0 0
      %1611 = vmatprep.subr.bf16.mxu0 0
      %1612 = vmatpush2.bf16.msra.mxu0 0
      %1613 = vmatprep.subr.bf16.mxu0 0
      %1614 = vmatpush2.bf16.msra.mxu0 0
      %1615 = vmatprep.mubr.bf16.mxu0 0
      %1616 = vmatmul.mubr.bf16.gmra.mxu0 %v1578
      %v1617 = vpop.f32.mrf.mxu0
      %v1618 = vadd.f32 0.0, %v1617
      %v1619 = vpop.f32.mrf.mxu0
      %v1620 = vpop.f32.mrf.mxu0
      %v1621 = vpop.f32.mrf.mxu0
      %1622 = vdwg.mxu0
      %1623 = vrot.lane.b32.xlu0 %v1394, 64
      %v1624 = vpop.permute.xlu0 %1623
      %1625 = vrot.lane.b32.xlu0 %v1395, 64
      %v1626 = vpop.permute.xlu0 %1625
      %v1628 = vsel %vm1397, %v1624, 0
      %v1631 = vsel %vm1397, %v1626, 0
      %1633 = vmatprep.subr.bf16.mxu0 0
      %1634 = vmatpush1.bf16.xpose.msra.mxu0 0
      %1635 = vmatprep.subr.bf16.mxu0 0
      %1636 = vmatpush1.bf16.xpose.msra.mxu0 0
      %1637 = vmatprep.subr.bf16.mxu0 0
      %1638 = vmatpush1.bf16.xpose.msra.mxu0 0
      %1639 = vmatprep.subr.bf16.mxu0 0
      %1640 = vmatpush1.bf16.xpose.msra.mxu0 0
      %1641 = vmatprep.subr.bf16.mxu0 0
      %1642 = vmatpush1.bf16.xpose.msra.mxu0 0
      %1643 = vmatprep.subr.bf16.mxu0 0
      %1644 = vmatpush1.bf16.xpose.msra.mxu0 0
      %1645 = vmatprep.subr.bf16.mxu0 0
      %1646 = vmatpush1.bf16.xpose.msra.mxu0 0
      %1647 = vmatprep.subr.bf16.mxu0 0
      %1648 = vmatpush1.bf16.xpose.msra.mxu0 %v1631
      %1649 = vmatprep.subr.bf16.mxu0 0
      %1650 = vmatpush2.bf16.xpose.msra.mxu0 0
      %1651 = vmatprep.subr.bf16.mxu0 0
      %1652 = vmatpush2.bf16.xpose.msra.mxu0 0
      %1653 = vmatprep.subr.bf16.mxu0 0
      %1654 = vmatpush2.bf16.xpose.msra.mxu0 0
      %1655 = vmatprep.subr.bf16.mxu0 0
      %1656 = vmatpush2.bf16.xpose.msra.mxu0 0
      %1657 = vmatprep.subr.bf16.mxu0 0
      %1658 = vmatpush2.bf16.xpose.msra.mxu0 0
      %1659 = vmatprep.subr.bf16.mxu0 0
      %1660 = vmatpush2.bf16.xpose.msra.mxu0 0
      %1661 = vmatprep.subr.bf16.mxu0 0
      %1662 = vmatpush2.bf16.xpose.msra.mxu0 0
      %1663 = vmatprep.subr.bf16.mxu0 0
      %1664 = vmatpush2.bf16.xpose.msra.mxu0 0
      %1665 = vmatprep.mubr.bf16.mxu0 0
      %1666 = vmatmul.mubr.bf16.gmra.mxu0 %v1628
      %v1667 = vpop.f32.mrf.mxu0
      %v1668 = vadd.f32 %v662, %v1667
      %v1669 = vpop.f32.mrf.mxu0
      %v1670 = vpop.f32.mrf.mxu0
      %v1671 = vpop.f32.mrf.mxu0
      %1672 = vdwg.mxu0
      %v1673 = vsel %vm1444, %v1668, -inf
      %1674 = vmax.xlane.f32.xlu0 %v1673
      %v1675 = vpop.xlane.xlu0 %1674
      %v1676 = vsub.f32 %v1668, %v1675
      %v1677 = vmul.f32 %v1676, 1.442695
      %v1678 = vpow.pop %v1677
      %v1679 = vsel %vm1444, %v1678, 0.0
      %1680 = vadd.xlane.f32.xlu0 %v1679
      %v1681 = vpop.xlane.xlu0 %1680
      %v1682 = vmax.f32 %v1681, 1e-30
      %v1683 = vrcp.pop %v1682
      %v1684 = vmul.f32 %v1678, %v1683
      %v1685 = vpack.c.bf16 %v1684, %v1684
      %1686 = vrot.lane.b32.xlu0 %v1396, 64
      %v1687 = vpop.permute.xlu0 %1686
      %v1689 = vsel %vm1458, %v1685, 0
      %v1692 = vand.u32 %v1687, %v1465
      %1694 = vmatprep.subr.bf16.mxu0 0
      %1695 = vmatpush1.bf16.msra.mxu0 0
      %1696 = vmatprep.subr.bf16.mxu0 0
      %1697 = vmatpush1.bf16.msra.mxu0 0
      %1698 = vmatprep.subr.bf16.mxu0 0
      %1699 = vmatpush1.bf16.msra.mxu0 0
      %1700 = vmatprep.subr.bf16.mxu0 0
      %1701 = vmatpush1.bf16.msra.mxu0 0
      %1702 = vmatprep.subr.bf16.mxu0 0
      %1703 = vmatpush1.bf16.msra.mxu0 0
      %1704 = vmatprep.subr.bf16.mxu0 0
      %1705 = vmatpush1.bf16.msra.mxu0 0
      %1706 = vmatprep.subr.bf16.mxu0 0
      %1707 = vmatpush1.bf16.msra.mxu0 0
      %1708 = vmatprep.subr.bf16.mxu0 0
      %1709 = vmatpush1.bf16.msra.mxu0 %v1692
      %1710 = vmatprep.subr.bf16.mxu0 0
      %1711 = vmatpush2.bf16.msra.mxu0 0
      %1712 = vmatprep.subr.bf16.mxu0 0
      %1713 = vmatpush2.bf16.msra.mxu0 0
      %1714 = vmatprep.subr.bf16.mxu0 0
      %1715 = vmatpush2.bf16.msra.mxu0 0
      %1716 = vmatprep.subr.bf16.mxu0 0
      %1717 = vmatpush2.bf16.msra.mxu0 0
      %1718 = vmatprep.subr.bf16.mxu0 0
      %1719 = vmatpush2.bf16.msra.mxu0 0
      %1720 = vmatprep.subr.bf16.mxu0 0
      %1721 = vmatpush2.bf16.msra.mxu0 0
      %1722 = vmatprep.subr.bf16.mxu0 0
      %1723 = vmatpush2.bf16.msra.mxu0 0
      %1724 = vmatprep.subr.bf16.mxu0 0
      %1725 = vmatpush2.bf16.msra.mxu0 0
      %1726 = vmatprep.mubr.bf16.mxu0 0
      %1727 = vmatmul.mubr.bf16.gmra.mxu0 %v1689
      %v1728 = vpop.f32.mrf.mxu0
      %v1729 = vadd.f32 0.0, %v1728
      %v1730 = vpop.f32.mrf.mxu0
      %v1731 = vpop.f32.mrf.mxu0
      %v1732 = vpop.f32.mrf.mxu0
      %1733 = vdwg.mxu0
      %1734 = vrot.lane.b32.xlu0 %v1394, 32
      %v1735 = vpop.permute.xlu0 %1734
      %1736 = vrot.lane.b32.xlu0 %v1395, 32
      %v1737 = vpop.permute.xlu0 %1736
      %v1739 = vsel %vm1397, %v1735, 0
      %v1742 = vsel %vm1397, %v1737, 0
      %1744 = vmatprep.subr.bf16.mxu0 0
      %1745 = vmatpush1.bf16.xpose.msra.mxu0 0
      %1746 = vmatprep.subr.bf16.mxu0 0
      %1747 = vmatpush1.bf16.xpose.msra.mxu0 0
      %1748 = vmatprep.subr.bf16.mxu0 0
      %1749 = vmatpush1.bf16.xpose.msra.mxu0 0
      %1750 = vmatprep.subr.bf16.mxu0 0
      %1751 = vmatpush1.bf16.xpose.msra.mxu0 0
      %1752 = vmatprep.subr.bf16.mxu0 0
      %1753 = vmatpush1.bf16.xpose.msra.mxu0 0
      %1754 = vmatprep.subr.bf16.mxu0 0
      %1755 = vmatpush1.bf16.xpose.msra.mxu0 0
      %1756 = vmatprep.subr.bf16.mxu0 0
      %1757 = vmatpush1.bf16.xpose.msra.mxu0 0
      %1758 = vmatprep.subr.bf16.mxu0 0
      %1759 = vmatpush1.bf16.xpose.msra.mxu0 %v1742
      %1760 = vmatprep.subr.bf16.mxu0 0
      %1761 = vmatpush2.bf16.xpose.msra.mxu0 0
      %1762 = vmatprep.subr.bf16.mxu0 0
      %1763 = vmatpush2.bf16.xpose.msra.mxu0 0
      %1764 = vmatprep.subr.bf16.mxu0 0
      %1765 = vmatpush2.bf16.xpose.msra.mxu0 0
      %1766 = vmatprep.subr.bf16.mxu0 0
      %1767 = vmatpush2.bf16.xpose.msra.mxu0 0
      %1768 = vmatprep.subr.bf16.mxu0 0
      %1769 = vmatpush2.bf16.xpose.msra.mxu0 0
      %1770 = vmatprep.subr.bf16.mxu0 0
      %1771 = vmatpush2.bf16.xpose.msra.mxu0 0
      %1772 = vmatprep.subr.bf16.mxu0 0
      %1773 = vmatpush2.bf16.xpose.msra.mxu0 0
      %1774 = vmatprep.subr.bf16.mxu0 0
      %1775 = vmatpush2.bf16.xpose.msra.mxu0 0
      %1776 = vmatprep.mubr.bf16.mxu0 0
      %1777 = vmatmul.mubr.bf16.gmra.mxu0 %v1739
      %v1778 = vpop.f32.mrf.mxu0
      %v1779 = vadd.f32 %v662, %v1778
      %v1780 = vpop.f32.mrf.mxu0
      %v1781 = vpop.f32.mrf.mxu0
      %v1782 = vpop.f32.mrf.mxu0
      %1783 = vdwg.mxu0
      %v1784 = vsel %vm1444, %v1779, -inf
      %1785 = vmax.xlane.f32.xlu0 %v1784
      %v1786 = vpop.xlane.xlu0 %1785
      %v1787 = vsub.f32 %v1779, %v1786
      %v1788 = vmul.f32 %v1787, 1.442695
      %v1789 = vpow.pop %v1788
      %v1790 = vsel %vm1444, %v1789, 0.0
      %1791 = vadd.xlane.f32.xlu0 %v1790
      %v1792 = vpop.xlane.xlu0 %1791
      %v1793 = vmax.f32 %v1792, 1e-30
      %v1794 = vrcp.pop %v1793
      %v1795 = vmul.f32 %v1789, %v1794
      %v1796 = vpack.c.bf16 %v1795, %v1795
      %1797 = vrot.lane.b32.xlu0 %v1396, 32
      %v1798 = vpop.permute.xlu0 %1797
      %v1800 = vsel %vm1458, %v1796, 0
      %v1803 = vand.u32 %v1798, %v1465
      %1805 = vmatprep.subr.bf16.mxu0 0
      %1806 = vmatpush1.bf16.msra.mxu0 0
      %1807 = vmatprep.subr.bf16.mxu0 0
      %1808 = vmatpush1.bf16.msra.mxu0 0
      %1809 = vmatprep.subr.bf16.mxu0 0
      %1810 = vmatpush1.bf16.msra.mxu0 0
      %1811 = vmatprep.subr.bf16.mxu0 0
      %1812 = vmatpush1.bf16.msra.mxu0 0
      %1813 = vmatprep.subr.bf16.mxu0 0
      %1814 = vmatpush1.bf16.msra.mxu0 0
      %1815 = vmatprep.subr.bf16.mxu0 0
      %1816 = vmatpush1.bf16.msra.mxu0 0
      %1817 = vmatprep.subr.bf16.mxu0 0
      %1818 = vmatpush1.bf16.msra.mxu0 0
      %1819 = vmatprep.subr.bf16.mxu0 0
      %1820 = vmatpush1.bf16.msra.mxu0 %v1803
      %1821 = vmatprep.subr.bf16.mxu0 0
      %1822 = vmatpush2.bf16.msra.mxu0 0
      %1823 = vmatprep.subr.bf16.mxu0 0
      %1824 = vmatpush2.bf16.msra.mxu0 0
      %1825 = vmatprep.subr.bf16.mxu0 0
      %1826 = vmatpush2.bf16.msra.mxu0 0
      %1827 = vmatprep.subr.bf16.mxu0 0
      %1828 = vmatpush2.bf16.msra.mxu0 0
      %1829 = vmatprep.subr.bf16.mxu0 0
      %1830 = vmatpush2.bf16.msra.mxu0 0
      %1831 = vmatprep.subr.bf16.mxu0 0
      %1832 = vmatpush2.bf16.msra.mxu0 0
      %1833 = vmatprep.subr.bf16.mxu0 0
      %1834 = vmatpush2.bf16.msra.mxu0 0
      %1835 = vmatprep.subr.bf16.mxu0 0
      %1836 = vmatpush2.bf16.msra.mxu0 0
      %1837 = vmatprep.mubr.bf16.mxu0 0
      %1838 = vmatmul.mubr.bf16.gmra.mxu0 %v1800
      %v1839 = vpop.f32.mrf.mxu0
      %v1840 = vadd.f32 0.0, %v1839
      %v1841 = vpop.f32.mrf.mxu0
      %v1842 = vpop.f32.mrf.mxu0
      %v1843 = vpop.f32.mrf.mxu0
      %1844 = vdwg.mxu0
      %v1845 = vpack.c.bf16 %v1308, %v1308
      %v1846 = vpack.c.bf16 %v1349, %v1349
      %v1847 = vpack.c.bf16 %v1390, %v1390
      %v1849 = vsel %vm1397, %v1845, 0
      %v1852 = vsel %vm1397, %v1846, 0
      %1854 = vmatprep.subr.bf16.mxu0 0
      %1855 = vmatpush1.bf16.xpose.msra.mxu0 0
      %1856 = vmatprep.subr.bf16.mxu0 0
      %1857 = vmatpush1.bf16.xpose.msra.mxu0 0
      %1858 = vmatprep.subr.bf16.mxu0 0
      %1859 = vmatpush1.bf16.xpose.msra.mxu0 0
      %1860 = vmatprep.subr.bf16.mxu0 0
      %1861 = vmatpush1.bf16.xpose.msra.mxu0 0
      %1862 = vmatprep.subr.bf16.mxu0 0
      %1863 = vmatpush1.bf16.xpose.msra.mxu0 0
      %1864 = vmatprep.subr.bf16.mxu0 0
      %1865 = vmatpush1.bf16.xpose.msra.mxu0 0
      %1866 = vmatprep.subr.bf16.mxu0 0
      %1867 = vmatpush1.bf16.xpose.msra.mxu0 0
      %1868 = vmatprep.subr.bf16.mxu0 0
      %1869 = vmatpush1.bf16.xpose.msra.mxu0 %v1852
      %1870 = vmatprep.subr.bf16.mxu0 0
      %1871 = vmatpush2.bf16.xpose.msra.mxu0 0
      %1872 = vmatprep.subr.bf16.mxu0 0
      %1873 = vmatpush2.bf16.xpose.msra.mxu0 0
      %1874 = vmatprep.subr.bf16.mxu0 0
      %1875 = vmatpush2.bf16.xpose.msra.mxu0 0
      %1876 = vmatprep.subr.bf16.mxu0 0
      %1877 = vmatpush2.bf16.xpose.msra.mxu0 0
      %1878 = vmatprep.subr.bf16.mxu0 0
      %1879 = vmatpush2.bf16.xpose.msra.mxu0 0
      %1880 = vmatprep.subr.bf16.mxu0 0
      %1881 = vmatpush2.bf16.xpose.msra.mxu0 0
      %1882 = vmatprep.subr.bf16.mxu0 0
      %1883 = vmatpush2.bf16.xpose.msra.mxu0 0
      %1884 = vmatprep.subr.bf16.mxu0 0
      %1885 = vmatpush2.bf16.xpose.msra.mxu0 0
      %1886 = vmatprep.mubr.bf16.mxu0 0
      %1887 = vmatmul.mubr.bf16.gmra.mxu0 %v1849
      %v1888 = vpop.f32.mrf.mxu0
      %v1889 = vadd.f32 %v662, %v1888
      %v1890 = vpop.f32.mrf.mxu0
      %v1891 = vpop.f32.mrf.mxu0
      %v1892 = vpop.f32.mrf.mxu0
      %1893 = vdwg.mxu0
      %v1894 = vsel %vm1444, %v1889, -inf
      %1895 = vmax.xlane.f32.xlu0 %v1894
      %v1896 = vpop.xlane.xlu0 %1895
      %v1897 = vsub.f32 %v1889, %v1896
      %v1898 = vmul.f32 %v1897, 1.442695
      %v1899 = vpow.pop %v1898
      %v1900 = vsel %vm1444, %v1899, 0.0
      %1901 = vadd.xlane.f32.xlu0 %v1900
      %v1902 = vpop.xlane.xlu0 %1901
      %v1903 = vmax.f32 %v1902, 1e-30
      %v1904 = vrcp.pop %v1903
      %v1905 = vmul.f32 %v1899, %v1904
      %v1906 = vpack.c.bf16 %v1905, %v1905
      %v1908 = vsel %vm1458, %v1906, 0
      %v1911 = vand.u32 %v1847, %v1465
      %1913 = vmatprep.subr.bf16.mxu0 0
      %1914 = vmatpush1.bf16.msra.mxu0 0
      %1915 = vmatprep.subr.bf16.mxu0 0
      %1916 = vmatpush1.bf16.msra.mxu0 0
      %1917 = vmatprep.subr.bf16.mxu0 0
      %1918 = vmatpush1.bf16.msra.mxu0 0
      %1919 = vmatprep.subr.bf16.mxu0 0
      %1920 = vmatpush1.bf16.msra.mxu0 0
      %1921 = vmatprep.subr.bf16.mxu0 0
      %1922 = vmatpush1.bf16.msra.mxu0 0
      %1923 = vmatprep.subr.bf16.mxu0 0
      %1924 = vmatpush1.bf16.msra.mxu0 0
      %1925 = vmatprep.subr.bf16.mxu0 0
      %1926 = vmatpush1.bf16.msra.mxu0 0
      %1927 = vmatprep.subr.bf16.mxu0 0
      %1928 = vmatpush1.bf16.msra.mxu0 %v1911
      %1929 = vmatprep.subr.bf16.mxu0 0
      %1930 = vmatpush2.bf16.msra.mxu0 0
      %1931 = vmatprep.subr.bf16.mxu0 0
      %1932 = vmatpush2.bf16.msra.mxu0 0
      %1933 = vmatprep.subr.bf16.mxu0 0
      %1934 = vmatpush2.bf16.msra.mxu0 0
      %1935 = vmatprep.subr.bf16.mxu0 0
      %1936 = vmatpush2.bf16.msra.mxu0 0
      %1937 = vmatprep.subr.bf16.mxu0 0
      %1938 = vmatpush2.bf16.msra.mxu0 0
      %1939 = vmatprep.subr.bf16.mxu0 0
      %1940 = vmatpush2.bf16.msra.mxu0 0
      %1941 = vmatprep.subr.bf16.mxu0 0
      %1942 = vmatpush2.bf16.msra.mxu0 0
      %1943 = vmatprep.subr.bf16.mxu0 0
      %1944 = vmatpush2.bf16.msra.mxu0 0
      %1945 = vmatprep.mubr.bf16.mxu0 0
      %1946 = vmatmul.mubr.bf16.gmra.mxu0 %v1908
      %v1947 = vpop.f32.mrf.mxu0
      %v1948 = vadd.f32 0.0, %v1947
      %v1949 = vpop.f32.mrf.mxu0
      %v1950 = vpop.f32.mrf.mxu0
      %v1951 = vpop.f32.mrf.mxu0
      %1952 = vdwg.mxu0
      %1954 = vrot.lane.b32.xlu0 %v1845, 96
      %v1955 = vpop.permute.xlu0 %1954
      %1957 = vrot.lane.b32.xlu0 %v1846, 96
      %v1958 = vpop.permute.xlu0 %1957
      %v1960 = vsel %vm1397, %v1955, 0
      %v1963 = vsel %vm1397, %v1958, 0
      %1965 = vmatprep.subr.bf16.mxu0 0
      %1966 = vmatpush1.bf16.xpose.msra.mxu0 0
      %1967 = vmatprep.subr.bf16.mxu0 0
      %1968 = vmatpush1.bf16.xpose.msra.mxu0 0
      %1969 = vmatprep.subr.bf16.mxu0 0
      %1970 = vmatpush1.bf16.xpose.msra.mxu0 0
      %1971 = vmatprep.subr.bf16.mxu0 0
      %1972 = vmatpush1.bf16.xpose.msra.mxu0 0
      %1973 = vmatprep.subr.bf16.mxu0 0
      %1974 = vmatpush1.bf16.xpose.msra.mxu0 0
      %1975 = vmatprep.subr.bf16.mxu0 0
      %1976 = vmatpush1.bf16.xpose.msra.mxu0 0
      %1977 = vmatprep.subr.bf16.mxu0 0
      %1978 = vmatpush1.bf16.xpose.msra.mxu0 0
      %1979 = vmatprep.subr.bf16.mxu0 0
      %1980 = vmatpush1.bf16.xpose.msra.mxu0 %v1963
      %1981 = vmatprep.subr.bf16.mxu0 0
      %1982 = vmatpush2.bf16.xpose.msra.mxu0 0
      %1983 = vmatprep.subr.bf16.mxu0 0
      %1984 = vmatpush2.bf16.xpose.msra.mxu0 0
      %1985 = vmatprep.subr.bf16.mxu0 0
      %1986 = vmatpush2.bf16.xpose.msra.mxu0 0
      %1987 = vmatprep.subr.bf16.mxu0 0
      %1988 = vmatpush2.bf16.xpose.msra.mxu0 0
      %1989 = vmatprep.subr.bf16.mxu0 0
      %1990 = vmatpush2.bf16.xpose.msra.mxu0 0
      %1991 = vmatprep.subr.bf16.mxu0 0
      %1992 = vmatpush2.bf16.xpose.msra.mxu0 0
      %1993 = vmatprep.subr.bf16.mxu0 0
      %1994 = vmatpush2.bf16.xpose.msra.mxu0 0
      %1995 = vmatprep.subr.bf16.mxu0 0
      %1996 = vmatpush2.bf16.xpose.msra.mxu0 0
      %1997 = vmatprep.mubr.bf16.mxu0 0
      %1998 = vmatmul.mubr.bf16.gmra.mxu0 %v1960
      %v1999 = vpop.f32.mrf.mxu0
      %v2000 = vadd.f32 %v662, %v1999
      %v2001 = vpop.f32.mrf.mxu0
      %v2002 = vpop.f32.mrf.mxu0
      %v2003 = vpop.f32.mrf.mxu0
      %2004 = vdwg.mxu0
      %v2005 = vsel %vm1444, %v2000, -inf
      %2006 = vmax.xlane.f32.xlu0 %v2005
      %v2007 = vpop.xlane.xlu0 %2006
      %v2008 = vsub.f32 %v2000, %v2007
      %v2009 = vmul.f32 %v2008, 1.442695
      %v2010 = vpow.pop %v2009
      %v2011 = vsel %vm1444, %v2010, 0.0
      %2012 = vadd.xlane.f32.xlu0 %v2011
      %v2013 = vpop.xlane.xlu0 %2012
      %v2014 = vmax.f32 %v2013, 1e-30
      %v2015 = vrcp.pop %v2014
      %v2016 = vmul.f32 %v2010, %v2015
      %v2017 = vpack.c.bf16 %v2016, %v2016
      %2019 = vrot.lane.b32.xlu0 %v1847, 96
      %v2020 = vpop.permute.xlu0 %2019
      %v2022 = vsel %vm1458, %v2017, 0
      %v2025 = vand.u32 %v2020, %v1465
      %2027 = vmatprep.subr.bf16.mxu0 0
      %2028 = vmatpush1.bf16.msra.mxu0 0
      %2029 = vmatprep.subr.bf16.mxu0 0
      %2030 = vmatpush1.bf16.msra.mxu0 0
      %2031 = vmatprep.subr.bf16.mxu0 0
      %2032 = vmatpush1.bf16.msra.mxu0 0
      %2033 = vmatprep.subr.bf16.mxu0 0
      %2034 = vmatpush1.bf16.msra.mxu0 0
      %2035 = vmatprep.subr.bf16.mxu0 0
      %2036 = vmatpush1.bf16.msra.mxu0 0
      %2037 = vmatprep.subr.bf16.mxu0 0
      %2038 = vmatpush1.bf16.msra.mxu0 0
      %2039 = vmatprep.subr.bf16.mxu0 0
      %2040 = vmatpush1.bf16.msra.mxu0 0
      %2041 = vmatprep.subr.bf16.mxu0 0
      %2042 = vmatpush1.bf16.msra.mxu0 %v2025
      %2043 = vmatprep.subr.bf16.mxu0 0
      %2044 = vmatpush2.bf16.msra.mxu0 0
      %2045 = vmatprep.subr.bf16.mxu0 0
      %2046 = vmatpush2.bf16.msra.mxu0 0
      %2047 = vmatprep.subr.bf16.mxu0 0
      %2048 = vmatpush2.bf16.msra.mxu0 0
      %2049 = vmatprep.subr.bf16.mxu0 0
      %2050 = vmatpush2.bf16.msra.mxu0 0
      %2051 = vmatprep.subr.bf16.mxu0 0
      %2052 = vmatpush2.bf16.msra.mxu0 0
      %2053 = vmatprep.subr.bf16.mxu0 0
      %2054 = vmatpush2.bf16.msra.mxu0 0
      %2055 = vmatprep.subr.bf16.mxu0 0
      %2056 = vmatpush2.bf16.msra.mxu0 0
      %2057 = vmatprep.subr.bf16.mxu0 0
      %2058 = vmatpush2.bf16.msra.mxu0 0
      %2059 = vmatprep.mubr.bf16.mxu0 0
      %2060 = vmatmul.mubr.bf16.gmra.mxu0 %v2022
      %v2061 = vpop.f32.mrf.mxu0
      %v2062 = vadd.f32 0.0, %v2061
      %v2063 = vpop.f32.mrf.mxu0
      %v2064 = vpop.f32.mrf.mxu0
      %v2065 = vpop.f32.mrf.mxu0
      %2066 = vdwg.mxu0
      %2067 = vrot.lane.b32.xlu0 %v1845, 64
      %v2068 = vpop.permute.xlu0 %2067
      %2069 = vrot.lane.b32.xlu0 %v1846, 64
      %v2070 = vpop.permute.xlu0 %2069
      %v2072 = vsel %vm1397, %v2068, 0
      %v2075 = vsel %vm1397, %v2070, 0
      %2077 = vmatprep.subr.bf16.mxu0 0
      %2078 = vmatpush1.bf16.xpose.msra.mxu0 0
      %2079 = vmatprep.subr.bf16.mxu0 0
      %2080 = vmatpush1.bf16.xpose.msra.mxu0 0
      %2081 = vmatprep.subr.bf16.mxu0 0
      %2082 = vmatpush1.bf16.xpose.msra.mxu0 0
      %2083 = vmatprep.subr.bf16.mxu0 0
      %2084 = vmatpush1.bf16.xpose.msra.mxu0 0
      %2085 = vmatprep.subr.bf16.mxu0 0
      %2086 = vmatpush1.bf16.xpose.msra.mxu0 0
      %2087 = vmatprep.subr.bf16.mxu0 0
      %2088 = vmatpush1.bf16.xpose.msra.mxu0 0
      %2089 = vmatprep.subr.bf16.mxu0 0
      %2090 = vmatpush1.bf16.xpose.msra.mxu0 0
      %2091 = vmatprep.subr.bf16.mxu0 0
      %2092 = vmatpush1.bf16.xpose.msra.mxu0 %v2075
      %2093 = vmatprep.subr.bf16.mxu0 0
      %2094 = vmatpush2.bf16.xpose.msra.mxu0 0
      %2095 = vmatprep.subr.bf16.mxu0 0
      %2096 = vmatpush2.bf16.xpose.msra.mxu0 0
      %2097 = vmatprep.subr.bf16.mxu0 0
      %2098 = vmatpush2.bf16.xpose.msra.mxu0 0
      %2099 = vmatprep.subr.bf16.mxu0 0
      %2100 = vmatpush2.bf16.xpose.msra.mxu0 0
      %2101 = vmatprep.subr.bf16.mxu0 0
      %2102 = vmatpush2.bf16.xpose.msra.mxu0 0
      %2103 = vmatprep.subr.bf16.mxu0 0
      %2104 = vmatpush2.bf16.xpose.msra.mxu0 0
      %2105 = vmatprep.subr.bf16.mxu0 0
      %2106 = vmatpush2.bf16.xpose.msra.mxu0 0
      %2107 = vmatprep.subr.bf16.mxu0 0
      %2108 = vmatpush2.bf16.xpose.msra.mxu0 0
      %2109 = vmatprep.mubr.bf16.mxu0 0
      %2110 = vmatmul.mubr.bf16.gmra.mxu0 %v2072
      %v2111 = vpop.f32.mrf.mxu0
      %v2112 = vadd.f32 %v662, %v2111
      %v2113 = vpop.f32.mrf.mxu0
      %v2114 = vpop.f32.mrf.mxu0
      %v2115 = vpop.f32.mrf.mxu0
      %2116 = vdwg.mxu0
      %v2117 = vsel %vm1444, %v2112, -inf
      %2118 = vmax.xlane.f32.xlu0 %v2117
      %v2119 = vpop.xlane.xlu0 %2118
      %v2120 = vsub.f32 %v2112, %v2119
      %v2121 = vmul.f32 %v2120, 1.442695
      %v2122 = vpow.pop %v2121
      %v2123 = vsel %vm1444, %v2122, 0.0
      %2124 = vadd.xlane.f32.xlu0 %v2123
      %v2125 = vpop.xlane.xlu0 %2124
      %v2126 = vmax.f32 %v2125, 1e-30
      %v2127 = vrcp.pop %v2126
      %v2128 = vmul.f32 %v2122, %v2127
      %v2129 = vpack.c.bf16 %v2128, %v2128
      %2130 = vrot.lane.b32.xlu0 %v1847, 64
      %v2131 = vpop.permute.xlu0 %2130
      %v2133 = vsel %vm1458, %v2129, 0
      %v2136 = vand.u32 %v2131, %v1465
      %2138 = vmatprep.subr.bf16.mxu0 0
      %2139 = vmatpush1.bf16.msra.mxu0 0
      %2140 = vmatprep.subr.bf16.mxu0 0
      %2141 = vmatpush1.bf16.msra.mxu0 0
      %2142 = vmatprep.subr.bf16.mxu0 0
      %2143 = vmatpush1.bf16.msra.mxu0 0
      %2144 = vmatprep.subr.bf16.mxu0 0
      %2145 = vmatpush1.bf16.msra.mxu0 0
      %2146 = vmatprep.subr.bf16.mxu0 0
      %2147 = vmatpush1.bf16.msra.mxu0 0
      %2148 = vmatprep.subr.bf16.mxu0 0
      %2149 = vmatpush1.bf16.msra.mxu0 0
      %2150 = vmatprep.subr.bf16.mxu0 0
      %2151 = vmatpush1.bf16.msra.mxu0 0
      %2152 = vmatprep.subr.bf16.mxu0 0
      %2153 = vmatpush1.bf16.msra.mxu0 %v2136
      %2154 = vmatprep.subr.bf16.mxu0 0
      %2155 = vmatpush2.bf16.msra.mxu0 0
      %2156 = vmatprep.subr.bf16.mxu0 0
      %2157 = vmatpush2.bf16.msra.mxu0 0
      %2158 = vmatprep.subr.bf16.mxu0 0
      %2159 = vmatpush2.bf16.msra.mxu0 0
      %2160 = vmatprep.subr.bf16.mxu0 0
      %2161 = vmatpush2.bf16.msra.mxu0 0
      %2162 = vmatprep.subr.bf16.mxu0 0
      %2163 = vmatpush2.bf16.msra.mxu0 0
      %2164 = vmatprep.subr.bf16.mxu0 0
      %2165 = vmatpush2.bf16.msra.mxu0 0
      %2166 = vmatprep.subr.bf16.mxu0 0
      %2167 = vmatpush2.bf16.msra.mxu0 0
      %2168 = vmatprep.subr.bf16.mxu0 0
      %2169 = vmatpush2.bf16.msra.mxu0 0
      %2170 = vmatprep.mubr.bf16.mxu0 0
      %2171 = vmatmul.mubr.bf16.gmra.mxu0 %v2133
      %v2172 = vpop.f32.mrf.mxu0
      %v2173 = vadd.f32 0.0, %v2172
      %v2174 = vpop.f32.mrf.mxu0
      %v2175 = vpop.f32.mrf.mxu0
      %v2176 = vpop.f32.mrf.mxu0
      %2177 = vdwg.mxu0
      %2178 = vrot.lane.b32.xlu0 %v1845, 32
      %v2179 = vpop.permute.xlu0 %2178
      %2180 = vrot.lane.b32.xlu0 %v1846, 32
      %v2181 = vpop.permute.xlu0 %2180
      %v2183 = vsel %vm1397, %v2179, 0
      %v2186 = vsel %vm1397, %v2181, 0
      %2188 = vmatprep.subr.bf16.mxu0 0
      %2189 = vmatpush1.bf16.xpose.msra.mxu0 0
      %2190 = vmatprep.subr.bf16.mxu0 0
      %2191 = vmatpush1.bf16.xpose.msra.mxu0 0
      %2192 = vmatprep.subr.bf16.mxu0 0
      %2193 = vmatpush1.bf16.xpose.msra.mxu0 0
      %2194 = vmatprep.subr.bf16.mxu0 0
      %2195 = vmatpush1.bf16.xpose.msra.mxu0 0
      %2196 = vmatprep.subr.bf16.mxu0 0
      %2197 = vmatpush1.bf16.xpose.msra.mxu0 0
      %2198 = vmatprep.subr.bf16.mxu0 0
      %2199 = vmatpush1.bf16.xpose.msra.mxu0 0
      %2200 = vmatprep.subr.bf16.mxu0 0
      %2201 = vmatpush1.bf16.xpose.msra.mxu0 0
      %2202 = vmatprep.subr.bf16.mxu0 0
      %2203 = vmatpush1.bf16.xpose.msra.mxu0 %v2186
      %2204 = vmatprep.subr.bf16.mxu0 0
      %2205 = vmatpush2.bf16.xpose.msra.mxu0 0
      %2206 = vmatprep.subr.bf16.mxu0 0
      %2207 = vmatpush2.bf16.xpose.msra.mxu0 0
      %2208 = vmatprep.subr.bf16.mxu0 0
      %2209 = vmatpush2.bf16.xpose.msra.mxu0 0
      %2210 = vmatprep.subr.bf16.mxu0 0
      %2211 = vmatpush2.bf16.xpose.msra.mxu0 0
      %2212 = vmatprep.subr.bf16.mxu0 0
      %2213 = vmatpush2.bf16.xpose.msra.mxu0 0
      %2214 = vmatprep.subr.bf16.mxu0 0
      %2215 = vmatpush2.bf16.xpose.msra.mxu0 0
      %2216 = vmatprep.subr.bf16.mxu0 0
      %2217 = vmatpush2.bf16.xpose.msra.mxu0 0
      %2218 = vmatprep.subr.bf16.mxu0 0
      %2219 = vmatpush2.bf16.xpose.msra.mxu0 0
      %2220 = vmatprep.mubr.bf16.mxu0 0
      %2221 = vmatmul.mubr.bf16.gmra.mxu0 %v2183
      %v2222 = vpop.f32.mrf.mxu0
      %v2223 = vadd.f32 %v662, %v2222
      %v2224 = vpop.f32.mrf.mxu0
      %v2225 = vpop.f32.mrf.mxu0
      %v2226 = vpop.f32.mrf.mxu0
      %2227 = vdwg.mxu0
      %v2228 = vsel %vm1444, %v2223, -inf
      %2229 = vmax.xlane.f32.xlu0 %v2228
      %v2230 = vpop.xlane.xlu0 %2229
      %v2231 = vsub.f32 %v2223, %v2230
      %v2232 = vmul.f32 %v2231, 1.442695
      %v2233 = vpow.pop %v2232
      %v2234 = vsel %vm1444, %v2233, 0.0
      %2235 = vadd.xlane.f32.xlu0 %v2234
      %v2236 = vpop.xlane.xlu0 %2235
      %v2237 = vmax.f32 %v2236, 1e-30
      %v2238 = vrcp.pop %v2237
      %v2239 = vmul.f32 %v2233, %v2238
      %v2240 = vpack.c.bf16 %v2239, %v2239
      %2241 = vrot.lane.b32.xlu0 %v1847, 32
      %v2242 = vpop.permute.xlu0 %2241
      %v2244 = vsel %vm1458, %v2240, 0
      %v2247 = vand.u32 %v2242, %v1465
      %2249 = vmatprep.subr.bf16.mxu0 0
      %2250 = vmatpush1.bf16.msra.mxu0 0
      %2251 = vmatprep.subr.bf16.mxu0 0
      %2252 = vmatpush1.bf16.msra.mxu0 0
      %2253 = vmatprep.subr.bf16.mxu0 0
      %2254 = vmatpush1.bf16.msra.mxu0 0
      %2255 = vmatprep.subr.bf16.mxu0 0
      %2256 = vmatpush1.bf16.msra.mxu0 0
      %2257 = vmatprep.subr.bf16.mxu0 0
      %2258 = vmatpush1.bf16.msra.mxu0 0
      %2259 = vmatprep.subr.bf16.mxu0 0
      %2260 = vmatpush1.bf16.msra.mxu0 0
      %2261 = vmatprep.subr.bf16.mxu0 0
      %2262 = vmatpush1.bf16.msra.mxu0 0
      %2263 = vmatprep.subr.bf16.mxu0 0
      %2264 = vmatpush1.bf16.msra.mxu0 %v2247
      %2265 = vmatprep.subr.bf16.mxu0 0
      %2266 = vmatpush2.bf16.msra.mxu0 0
      %2267 = vmatprep.subr.bf16.mxu0 0
      %2268 = vmatpush2.bf16.msra.mxu0 0
      %2269 = vmatprep.subr.bf16.mxu0 0
      %2270 = vmatpush2.bf16.msra.mxu0 0
      %2271 = vmatprep.subr.bf16.mxu0 0
      %2272 = vmatpush2.bf16.msra.mxu0 0
      %2273 = vmatprep.subr.bf16.mxu0 0
      %2274 = vmatpush2.bf16.msra.mxu0 0
      %2275 = vmatprep.subr.bf16.mxu0 0
      %2276 = vmatpush2.bf16.msra.mxu0 0
      %2277 = vmatprep.subr.bf16.mxu0 0
      %2278 = vmatpush2.bf16.msra.mxu0 0
      %2279 = vmatprep.subr.bf16.mxu0 0
      %2280 = vmatpush2.bf16.msra.mxu0 0
      %2281 = vmatprep.mubr.bf16.mxu0 0
      %2282 = vmatmul.mubr.bf16.gmra.mxu0 %v2244
      %v2283 = vpop.f32.mrf.mxu0
      %v2284 = vadd.f32 0.0, %v2283
      %v2285 = vpop.f32.mrf.mxu0
      %v2286 = vpop.f32.mrf.mxu0
      %v2287 = vpop.f32.mrf.mxu0
      %2288 = vdwg.mxu0
      %2290 = vrot.lane.b32.xlu0 %v1618, 32
      %v2291 = vpop.permute.xlu0 %2290
      %2294 = vrot.lane.b32.xlu0 %v1729, 64
      %v2295 = vpop.permute.xlu0 %2294
      %2298 = vrot.lane.b32.xlu0 %v1840, 96
      %v2299 = vpop.permute.xlu0 %2298
      %2302 = vrot.lane.b32.xlu0 %v2062, 32
      %v2303 = vpop.permute.xlu0 %2302
      %2306 = vrot.lane.b32.xlu0 %v2173, 64
      %v2307 = vpop.permute.xlu0 %2306
      %2310 = vrot.lane.b32.xlu0 %v2284, 96
      %v2311 = vpop.permute.xlu0 %2310
      %v2313 = vsel %vm1397, %v1504, %v2291
      %vm2314 = vcmask 523264
      %v2315 = vsel %vm2314, %v2313, %v2295
      %vm2316 = vcmask 785408
      %v2317 = vsel %vm2316, %v2315, %v2299
      %v2318 = vsel %vm1397, %v1948, %v2303
      %v2319 = vsel %vm2314, %v2318, %v2307
      %v2320 = vsel %vm2316, %v2319, %v2311
      %v2321 = vpack.c.bf16 %v2317, %v2317
      %v2322 = vpack.c.bf16 %v2320, %v2320
      %v2323 = vld [vmem:[%s610] sm:$0xff]
      %v2324 = vld [vmem:[%s610 + $0x8] sm:$0xff]
      %v2325 = vld [vmem:[%s610 + $0x10] sm:$0xff]
      %v2326 = vld [vmem:[%s610 + $0x18] sm:$0xff]
      %v2327 = vld [vmem:[%s610 + $0x20] sm:$0xff]
      %v2328 = vld [vmem:[%s610 + $0x28] sm:$0xff]
      %v2329 = vld [vmem:[%s610 + $0x30] sm:$0xff]
      %v2330 = vld [vmem:[%s610 + $0x38] sm:$0xff]
      %v2331 = vld [vmem:[%s610 + $0x40] sm:$0xff]
      %v2332 = vld [vmem:[%s610 + $0x48] sm:$0xff]
      %v2333 = vld [vmem:[%s610 + $0x50] sm:$0xff]
      %v2334 = vld [vmem:[%s610 + $0x58] sm:$0xff]
      %v2335 = vld [vmem:[%s610 + $0x60] sm:$0xff]
      %v2336 = vld [vmem:[%s610 + $0x68] sm:$0xff]
      %v2337 = vld [vmem:[%s610 + $0x70] sm:$0xff]
      %v2338 = vld [vmem:[%s610 + $0x78] sm:$0xff]
      %v2339 = vld [vmem:[%s610 + $0x80] sm:$0xff]
      %v2340 = vld [vmem:[%s610 + $0x88] sm:$0xff]
      %v2341 = vld [vmem:[%s610 + $0x90] sm:$0xff]
      %v2342 = vld [vmem:[%s610 + $0x98] sm:$0xff]
      %v2343 = vld [vmem:[%s610 + $0xa0] sm:$0xff]
      %v2344 = vld [vmem:[%s610 + $0xa8] sm:$0xff]
      %v2345 = vld [vmem:[%s610 + $0xb0] sm:$0xff]
      %v2346 = vld [vmem:[%s610 + $0xb8] sm:$0xff]
      %v2347 = vld [vmem:[%s610 + $0xc0] sm:$0xff]
      %v2348 = vld [vmem:[%s610 + $0xc8] sm:$0xff]
      %v2349 = vld [vmem:[%s610 + $0xd0] sm:$0xff]
      %v2350 = vld [vmem:[%s610 + $0xd8] sm:$0xff]
      %v2351 = vld [vmem:[%s610 + $0xe0] sm:$0xff]
      %v2352 = vld [vmem:[%s610 + $0xe8] sm:$0xff]
      %v2353 = vld [vmem:[%s610 + $0xf0] sm:$0xff]
      %v2354 = vld [vmem:[%s610 + $0xf8] sm:$0xff]
      %v2355 = vld [vmem:[%s614] sm:$0x3]
      %v2357 = vlaneseq
      %v2358 = vshrl.u32 %v2357, 7
      %v2359 = vsub.s32 0, %v2358
      %v2360 = vrot.slane %v2355, %v2359
      %v2361 = vlaneseq
      %v2362 = vshrl.u32 %v2361, 7
      %v2363 = vsub.s32 1, %v2362
      %v2364 = vrot.slane %v2355, %v2363
      %v2399 = vunpack.c.l.b16 %v2323
      %v2400 = vunpack.c.h.b16 %v2323
      %v2401 = vunpack.c.l.b16 %v2324
      %v2402 = vunpack.c.h.b16 %v2324
      %v2403 = vunpack.c.l.b16 %v2325
      %v2404 = vunpack.c.h.b16 %v2325
      %v2405 = vunpack.c.l.b16 %v2326
      %v2406 = vunpack.c.h.b16 %v2326
      %v2407 = vunpack.c.l.b16 %v2327
      %v2408 = vunpack.c.h.b16 %v2327
      %v2409 = vunpack.c.l.b16 %v2328
      %v2410 = vunpack.c.h.b16 %v2328
      %v2411 = vunpack.c.l.b16 %v2329
      %v2412 = vunpack.c.h.b16 %v2329
      %v2413 = vunpack.c.l.b16 %v2330
      %v2414 = vunpack.c.h.b16 %v2330
      %v2415 = vunpack.c.l.b16 %v2331
      %v2416 = vunpack.c.h.b16 %v2331
      %v2417 = vunpack.c.l.b16 %v2332
      %v2418 = vunpack.c.h.b16 %v2332
      %v2419 = vunpack.c.l.b16 %v2333
      %v2420 = vunpack.c.h.b16 %v2333
      %v2421 = vunpack.c.l.b16 %v2334
      %v2422 = vunpack.c.h.b16 %v2334
      %v2423 = vunpack.c.l.b16 %v2335
      %v2424 = vunpack.c.h.b16 %v2335
      %v2425 = vunpack.c.l.b16 %v2336
      %v2426 = vunpack.c.h.b16 %v2336
      %v2427 = vunpack.c.l.b16 %v2337
      %v2428 = vunpack.c.h.b16 %v2337
      %v2429 = vunpack.c.l.b16 %v2338
      %v2430 = vunpack.c.h.b16 %v2338
      %v2431 = vunpack.c.l.b16 %v2339
      %v2432 = vunpack.c.h.b16 %v2339
      %v2433 = vunpack.c.l.b16 %v2340
      %v2434 = vunpack.c.h.b16 %v2340
      %v2435 = vunpack.c.l.b16 %v2341
      %v2436 = vunpack.c.h.b16 %v2341
      %v2437 = vunpack.c.l.b16 %v2342
      %v2438 = vunpack.c.h.b16 %v2342
      %v2439 = vunpack.c.l.b16 %v2343
      %v2440 = vunpack.c.h.b16 %v2343
      %v2441 = vunpack.c.l.b16 %v2344
      %v2442 = vunpack.c.h.b16 %v2344
      %v2443 = vunpack.c.l.b16 %v2345
      %v2444 = vunpack.c.h.b16 %v2345
      %v2445 = vunpack.c.l.b16 %v2346
      %v2446 = vunpack.c.h.b16 %v2346
      %v2447 = vunpack.c.l.b16 %v2347
      %v2448 = vunpack.c.h.b16 %v2347
      %v2449 = vunpack.c.l.b16 %v2348
      %v2450 = vunpack.c.h.b16 %v2348
      %v2451 = vunpack.c.l.b16 %v2349
      %v2452 = vunpack.c.h.b16 %v2349
      %v2453 = vunpack.c.l.b16 %v2350
      %v2454 = vunpack.c.h.b16 %v2350
      %v2455 = vunpack.c.l.b16 %v2351
      %v2456 = vunpack.c.h.b16 %v2351
      %v2457 = vunpack.c.l.b16 %v2352
      %v2458 = vunpack.c.h.b16 %v2352
      %v2459 = vunpack.c.l.b16 %v2353
      %v2460 = vunpack.c.h.b16 %v2353
      %v2461 = vunpack.c.l.b16 %v2354
      %v2462 = vunpack.c.h.b16 %v2354
      %v2463 = vpack.c.b16 %v2401, %v2399
      %v2464 = vpack.c.b16 %v2402, %v2400
      %v2465 = vpack.c.b16 %v2405, %v2403
      %v2466 = vpack.c.b16 %v2406, %v2404
      %v2467 = vpack.c.b16 %v2409, %v2407
      %v2468 = vpack.c.b16 %v2410, %v2408
      %v2469 = vpack.c.b16 %v2413, %v2411
      %v2470 = vpack.c.b16 %v2414, %v2412
      %v2471 = vpack.c.b16 %v2417, %v2415
      %v2472 = vpack.c.b16 %v2418, %v2416
      %v2473 = vpack.c.b16 %v2421, %v2419
      %v2474 = vpack.c.b16 %v2422, %v2420
      %v2475 = vpack.c.b16 %v2425, %v2423
      %v2476 = vpack.c.b16 %v2426, %v2424
      %v2477 = vpack.c.b16 %v2429, %v2427
      %v2478 = vpack.c.b16 %v2430, %v2428
      %v2479 = vpack.c.b16 %v2433, %v2431
      %v2480 = vpack.c.b16 %v2434, %v2432
      %v2481 = vpack.c.b16 %v2437, %v2435
      %v2482 = vpack.c.b16 %v2438, %v2436
      %v2483 = vpack.c.b16 %v2441, %v2439
      %v2484 = vpack.c.b16 %v2442, %v2440
      %v2485 = vpack.c.b16 %v2445, %v2443
      %v2486 = vpack.c.b16 %v2446, %v2444
      %v2487 = vpack.c.b16 %v2449, %v2447
      %v2488 = vpack.c.b16 %v2450, %v2448
      %v2489 = vpack.c.b16 %v2453, %v2451
      %v2490 = vpack.c.b16 %v2454, %v2452
      %v2491 = vpack.c.b16 %v2457, %v2455
      %v2492 = vpack.c.b16 %v2458, %v2456
      %v2493 = vpack.c.b16 %v2461, %v2459
      %v2494 = vpack.c.b16 %v2462, %v2460
      %2527 = vmatprep.subr.bf16.mxu0 %v2478
      %2528 = vmatpush1.bf16.msra.mxu0 %v2477
      %2529 = vmatprep.subr.bf16.mxu0 %v2476
      %2530 = vmatpush1.bf16.msra.mxu0 %v2475
      %2531 = vmatprep.subr.bf16.mxu0 %v2474
      %2532 = vmatpush1.bf16.msra.mxu0 %v2473
      %2533 = vmatprep.subr.bf16.mxu0 %v2472
      %2534 = vmatpush1.bf16.msra.mxu0 %v2471
      %2535 = vmatprep.subr.bf16.mxu0 %v2470
      %2536 = vmatpush1.bf16.msra.mxu0 %v2469
      %2537 = vmatprep.subr.bf16.mxu0 %v2468
      %2538 = vmatpush1.bf16.msra.mxu0 %v2467
      %2539 = vmatprep.subr.bf16.mxu0 %v2466
      %2540 = vmatpush1.bf16.msra.mxu0 %v2465
      %2541 = vmatprep.subr.bf16.mxu0 %v2464
      %2542 = vmatpush1.bf16.msra.mxu0 %v2463
      %2543 = vmatprep.subr.bf16.mxu0 %v2494
      %2544 = vmatpush2.bf16.msra.mxu0 %v2493
      %2545 = vmatprep.subr.bf16.mxu0 %v2492
      %2546 = vmatpush2.bf16.msra.mxu0 %v2491
      %2547 = vmatprep.subr.bf16.mxu0 %v2490
      %2548 = vmatpush2.bf16.msra.mxu0 %v2489
      %2549 = vmatprep.subr.bf16.mxu0 %v2488
      %2550 = vmatpush2.bf16.msra.mxu0 %v2487
      %2551 = vmatprep.subr.bf16.mxu0 %v2486
      %2552 = vmatpush2.bf16.msra.mxu0 %v2485
      %2553 = vmatprep.subr.bf16.mxu0 %v2484
      %2554 = vmatpush2.bf16.msra.mxu0 %v2483
      %2555 = vmatprep.subr.bf16.mxu0 %v2482
      %2556 = vmatpush2.bf16.msra.mxu0 %v2481
      %2557 = vmatprep.subr.bf16.mxu0 %v2480
      %2558 = vmatpush2.bf16.msra.mxu0 %v2479
      %2559 = vmatprep.mubr.bf16.mxu0 %v2322
      %2560 = vmatmul.mubr.bf16.gmra.mxu0 %v2321
      %v2561 = vpop.f32.mrf.mxu0
      %v2562 = vadd.f32 %v2360, %v2561
      %v2563 = vpop.f32.mrf.mxu0
      %v2564 = vadd.f32 %v2364, %v2563
      %v2565 = vpop.f32.mrf.mxu0
      %v2566 = vpop.f32.mrf.mxu0
      %2567 = vdwg.mxu0
      %v2568 = vadd.f32 %v658, %v2562
      %v2569 = vadd.f32 %v659, %v2564
      %v2570 = vld [vmem:[%s618] sm:$0x3]
      %v2571 = vld [vmem:[%s622] sm:$0x3]
      %vm2572 = vcmask 1046528
      %v2573 = vsel %vm2572, %v2568, 0.0
      %v2574 = vsel %vm2572, %v2569, 0.0
      %v2575 = vadd.f32 %v2573, %v2574
      %2576 = vadd.xlane.f32.xlu0 %v2575
      %v2577 = vpop.xlane.xlu0 %2576
      %v2578 = vrcp.pop 256.0
      %v2579 = vmul.f32 %v2577, %v2578
      %v2580 = vsub.f32 %v2568, %v2579
      %v2581 = vsub.f32 %v2569, %v2579
      %v2582 = vmul.f32 %v2580, %v2580
      %v2583 = vmul.f32 %v2581, %v2581
      %v2584 = vsel %vm2572, %v2582, 0.0
      %v2585 = vsel %vm2572, %v2583, 0.0
      %v2586 = vadd.f32 %v2584, %v2585
      %2587 = vadd.xlane.f32.xlu0 %v2586
      %v2588 = vpop.xlane.xlu0 %2587
      %v2589 = vmul.f32 %v2588, %v2578
      %v2590 = vadd.f32 %v2589, 1e-05
      %v2591 = vrsqrt.pop %v2590
      %v2592 = vmul.f32 %v2580, %v2591
      %v2593 = vmul.f32 %v2581, %v2591
      %v2595 = vlaneseq
      %v2596 = vshrl.u32 %v2595, 7
      %v2597 = vsub.s32 0, %v2596
      %v2598 = vrot.slane %v2570, %v2597
      %v2599 = vlaneseq
      %v2600 = vshrl.u32 %v2599, 7
      %v2601 = vsub.s32 1, %v2600
      %v2602 = vrot.slane %v2570, %v2601
      %v2605 = vmul.f32 %v2592, %v2598
      %v2606 = vmul.f32 %v2593, %v2602
      %v2608 = vlaneseq
      %v2609 = vshrl.u32 %v2608, 7
      %v2610 = vsub.s32 0, %v2609
      %v2611 = vrot.slane %v2571, %v2610
      %v2612 = vlaneseq
      %v2613 = vshrl.u32 %v2612, 7
      %v2614 = vsub.s32 1, %v2613
      %v2615 = vrot.slane %v2571, %v2614
      %v2618 = vadd.f32 %v2605, %v2611
      %v2619 = vadd.f32 %v2606, %v2615
      %v2620 = vpack.c.bf16 %v2618, %v2618
      %v2621 = vpack.c.bf16 %v2619, %v2619
      %v2622 = vld [vmem:[%s627] sm:$0xff]
      %v2623 = vld [vmem:[%s627 + $0x8] sm:$0xff]
      %v2624 = vld [vmem:[%s627 + $0x10] sm:$0xff]
      %v2625 = vld [vmem:[%s627 + $0x18] sm:$0xff]
      %v2626 = vld [vmem:[%s627 + $0x20] sm:$0xff]
      %v2627 = vld [vmem:[%s627 + $0x28] sm:$0xff]
      %v2628 = vld [vmem:[%s627 + $0x30] sm:$0xff]
      %v2629 = vld [vmem:[%s627 + $0x38] sm:$0xff]
      %v2630 = vld [vmem:[%s627 + $0x40] sm:$0xff]
      %v2631 = vld [vmem:[%s627 + $0x48] sm:$0xff]
      %v2632 = vld [vmem:[%s627 + $0x50] sm:$0xff]
      %v2633 = vld [vmem:[%s627 + $0x58] sm:$0xff]
      %v2634 = vld [vmem:[%s627 + $0x60] sm:$0xff]
      %v2635 = vld [vmem:[%s627 + $0x68] sm:$0xff]
      %v2636 = vld [vmem:[%s627 + $0x70] sm:$0xff]
      %v2637 = vld [vmem:[%s627 + $0x78] sm:$0xff]
      %v2638 = vld [vmem:[%s627 + $0x80] sm:$0xff]
      %v2639 = vld [vmem:[%s627 + $0x88] sm:$0xff]
      %v2640 = vld [vmem:[%s627 + $0x90] sm:$0xff]
      %v2641 = vld [vmem:[%s627 + $0x98] sm:$0xff]
      %v2642 = vld [vmem:[%s627 + $0xa0] sm:$0xff]
      %v2643 = vld [vmem:[%s627 + $0xa8] sm:$0xff]
      %v2644 = vld [vmem:[%s627 + $0xb0] sm:$0xff]
      %v2645 = vld [vmem:[%s627 + $0xb8] sm:$0xff]
      %v2646 = vld [vmem:[%s627 + $0xc0] sm:$0xff]
      %v2647 = vld [vmem:[%s627 + $0xc8] sm:$0xff]
      %v2648 = vld [vmem:[%s627 + $0xd0] sm:$0xff]
      %v2649 = vld [vmem:[%s627 + $0xd8] sm:$0xff]
      %v2650 = vld [vmem:[%s627 + $0xe0] sm:$0xff]
      %v2651 = vld [vmem:[%s627 + $0xe8] sm:$0xff]
      %v2652 = vld [vmem:[%s627 + $0xf0] sm:$0xff]
      %v2653 = vld [vmem:[%s627 + $0xf8] sm:$0xff]
      %v2654 = vld [vmem:[%s631] sm:$0x3]
      %v2656 = vlaneseq
      %v2657 = vshrl.u32 %v2656, 7
      %v2658 = vsub.s32 0, %v2657
      %v2659 = vrot.slane %v2654, %v2658
      %v2660 = vlaneseq
      %v2661 = vshrl.u32 %v2660, 7
      %v2662 = vsub.s32 1, %v2661
      %v2663 = vrot.slane %v2654, %v2662
      %v2698 = vunpack.c.l.b16 %v2622
      %v2699 = vunpack.c.h.b16 %v2622
      %v2700 = vunpack.c.l.b16 %v2623
      %v2701 = vunpack.c.h.b16 %v2623
      %v2702 = vunpack.c.l.b16 %v2624
      %v2703 = vunpack.c.h.b16 %v2624
      %v2704 = vunpack.c.l.b16 %v2625
      %v2705 = vunpack.c.h.b16 %v2625
      %v2706 = vunpack.c.l.b16 %v2626
      %v2707 = vunpack.c.h.b16 %v2626
      %v2708 = vunpack.c.l.b16 %v2627
      %v2709 = vunpack.c.h.b16 %v2627
      %v2710 = vunpack.c.l.b16 %v2628
      %v2711 = vunpack.c.h.b16 %v2628
      %v2712 = vunpack.c.l.b16 %v2629
      %v2713 = vunpack.c.h.b16 %v2629
      %v2714 = vunpack.c.l.b16 %v2630
      %v2715 = vunpack.c.h.b16 %v2630
      %v2716 = vunpack.c.l.b16 %v2631
      %v2717 = vunpack.c.h.b16 %v2631
      %v2718 = vunpack.c.l.b16 %v2632
      %v2719 = vunpack.c.h.b16 %v2632
      %v2720 = vunpack.c.l.b16 %v2633
      %v2721 = vunpack.c.h.b16 %v2633
      %v2722 = vunpack.c.l.b16 %v2634
      %v2723 = vunpack.c.h.b16 %v2634
      %v2724 = vunpack.c.l.b16 %v2635
      %v2725 = vunpack.c.h.b16 %v2635
      %v2726 = vunpack.c.l.b16 %v2636
      %v2727 = vunpack.c.h.b16 %v2636
      %v2728 = vunpack.c.l.b16 %v2637
      %v2729 = vunpack.c.h.b16 %v2637
      %v2730 = vunpack.c.l.b16 %v2638
      %v2731 = vunpack.c.h.b16 %v2638
      %v2732 = vunpack.c.l.b16 %v2639
      %v2733 = vunpack.c.h.b16 %v2639
      %v2734 = vunpack.c.l.b16 %v2640
      %v2735 = vunpack.c.h.b16 %v2640
      %v2736 = vunpack.c.l.b16 %v2641
      %v2737 = vunpack.c.h.b16 %v2641
      %v2738 = vunpack.c.l.b16 %v2642
      %v2739 = vunpack.c.h.b16 %v2642
      %v2740 = vunpack.c.l.b16 %v2643
      %v2741 = vunpack.c.h.b16 %v2643
      %v2742 = vunpack.c.l.b16 %v2644
      %v2743 = vunpack.c.h.b16 %v2644
      %v2744 = vunpack.c.l.b16 %v2645
      %v2745 = vunpack.c.h.b16 %v2645
      %v2746 = vunpack.c.l.b16 %v2646
      %v2747 = vunpack.c.h.b16 %v2646
      %v2748 = vunpack.c.l.b16 %v2647
      %v2749 = vunpack.c.h.b16 %v2647
      %v2750 = vunpack.c.l.b16 %v2648
      %v2751 = vunpack.c.h.b16 %v2648
      %v2752 = vunpack.c.l.b16 %v2649
      %v2753 = vunpack.c.h.b16 %v2649
      %v2754 = vunpack.c.l.b16 %v2650
      %v2755 = vunpack.c.h.b16 %v2650
      %v2756 = vunpack.c.l.b16 %v2651
      %v2757 = vunpack.c.h.b16 %v2651
      %v2758 = vunpack.c.l.b16 %v2652
      %v2759 = vunpack.c.h.b16 %v2652
      %v2760 = vunpack.c.l.b16 %v2653
      %v2761 = vunpack.c.h.b16 %v2653
      %v2762 = vpack.c.b16 %v2700, %v2698
      %v2763 = vpack.c.b16 %v2701, %v2699
      %v2764 = vpack.c.b16 %v2704, %v2702
      %v2765 = vpack.c.b16 %v2705, %v2703
      %v2766 = vpack.c.b16 %v2708, %v2706
      %v2767 = vpack.c.b16 %v2709, %v2707
      %v2768 = vpack.c.b16 %v2712, %v2710
      %v2769 = vpack.c.b16 %v2713, %v2711
      %v2770 = vpack.c.b16 %v2716, %v2714
      %v2771 = vpack.c.b16 %v2717, %v2715
      %v2772 = vpack.c.b16 %v2720, %v2718
      %v2773 = vpack.c.b16 %v2721, %v2719
      %v2774 = vpack.c.b16 %v2724, %v2722
      %v2775 = vpack.c.b16 %v2725, %v2723
      %v2776 = vpack.c.b16 %v2728, %v2726
      %v2777 = vpack.c.b16 %v2729, %v2727
      %v2778 = vpack.c.b16 %v2732, %v2730
      %v2779 = vpack.c.b16 %v2733, %v2731
      %v2780 = vpack.c.b16 %v2736, %v2734
      %v2781 = vpack.c.b16 %v2737, %v2735
      %v2782 = vpack.c.b16 %v2740, %v2738
      %v2783 = vpack.c.b16 %v2741, %v2739
      %v2784 = vpack.c.b16 %v2744, %v2742
      %v2785 = vpack.c.b16 %v2745, %v2743
      %v2786 = vpack.c.b16 %v2748, %v2746
      %v2787 = vpack.c.b16 %v2749, %v2747
      %v2788 = vpack.c.b16 %v2752, %v2750
      %v2789 = vpack.c.b16 %v2753, %v2751
      %v2790 = vpack.c.b16 %v2756, %v2754
      %v2791 = vpack.c.b16 %v2757, %v2755
      %v2792 = vpack.c.b16 %v2760, %v2758
      %v2793 = vpack.c.b16 %v2761, %v2759
      %2826 = vmatprep.subr.bf16.mxu0 %v2777
      %2827 = vmatpush1.bf16.msra.mxu0 %v2776
      %2828 = vmatprep.subr.bf16.mxu0 %v2775
      %2829 = vmatpush1.bf16.msra.mxu0 %v2774
      %2830 = vmatprep.subr.bf16.mxu0 %v2773
      %2831 = vmatpush1.bf16.msra.mxu0 %v2772
      %2832 = vmatprep.subr.bf16.mxu0 %v2771
      %2833 = vmatpush1.bf16.msra.mxu0 %v2770
      %2834 = vmatprep.subr.bf16.mxu0 %v2769
      %2835 = vmatpush1.bf16.msra.mxu0 %v2768
      %2836 = vmatprep.subr.bf16.mxu0 %v2767
      %2837 = vmatpush1.bf16.msra.mxu0 %v2766
      %2838 = vmatprep.subr.bf16.mxu0 %v2765
      %2839 = vmatpush1.bf16.msra.mxu0 %v2764
      %2840 = vmatprep.subr.bf16.mxu0 %v2763
      %2841 = vmatpush1.bf16.msra.mxu0 %v2762
      %2842 = vmatprep.subr.bf16.mxu0 %v2793
      %2843 = vmatpush2.bf16.msra.mxu0 %v2792
      %2844 = vmatprep.subr.bf16.mxu0 %v2791
      %2845 = vmatpush2.bf16.msra.mxu0 %v2790
      %2846 = vmatprep.subr.bf16.mxu0 %v2789
      %2847 = vmatpush2.bf16.msra.mxu0 %v2788
      %2848 = vmatprep.subr.bf16.mxu0 %v2787
      %2849 = vmatpush2.bf16.msra.mxu0 %v2786
      %2850 = vmatprep.subr.bf16.mxu0 %v2785
      %2851 = vmatpush2.bf16.msra.mxu0 %v2784
      %2852 = vmatprep.subr.bf16.mxu0 %v2783
      %2853 = vmatpush2.bf16.msra.mxu0 %v2782
      %2854 = vmatprep.subr.bf16.mxu0 %v2781
      %2855 = vmatpush2.bf16.msra.mxu0 %v2780
      %2856 = vmatprep.subr.bf16.mxu0 %v2779
      %2857 = vmatpush2.bf16.msra.mxu0 %v2778
      %2858 = vmatprep.mubr.bf16.mxu0 %v2621
      %2859 = vmatmul.mubr.bf16.gmra.mxu0 %v2620
      %v2860 = vpop.f32.mrf.mxu0
      %v2861 = vadd.f32 %v2659, %v2860
      %v2862 = vpop.f32.mrf.mxu0
      %v2863 = vadd.f32 %v2663, %v2862
      %v2864 = vpop.f32.mrf.mxu0
      %v2865 = vpop.f32.mrf.mxu0
      %2866 = vdwg.mxu0
      %v2867 = vmax.f32 %v2861, 0.0
      %v2868 = vmax.f32 %v2863, 0.0
      %v2869 = vpack.c.bf16 %v2867, %v2867
      %v2870 = vpack.c.bf16 %v2868, %v2868
      %v2871 = vld [vmem:[%s636] sm:$0xff]
      %v2872 = vld [vmem:[%s636 + $0x8] sm:$0xff]
      %v2873 = vld [vmem:[%s636 + $0x10] sm:$0xff]
      %v2874 = vld [vmem:[%s636 + $0x18] sm:$0xff]
      %v2875 = vld [vmem:[%s636 + $0x20] sm:$0xff]
      %v2876 = vld [vmem:[%s636 + $0x28] sm:$0xff]
      %v2877 = vld [vmem:[%s636 + $0x30] sm:$0xff]
      %v2878 = vld [vmem:[%s636 + $0x38] sm:$0xff]
      %v2879 = vld [vmem:[%s636 + $0x40] sm:$0xff]
      %v2880 = vld [vmem:[%s636 + $0x48] sm:$0xff]
      %v2881 = vld [vmem:[%s636 + $0x50] sm:$0xff]
      %v2882 = vld [vmem:[%s636 + $0x58] sm:$0xff]
      %v2883 = vld [vmem:[%s636 + $0x60] sm:$0xff]
      %v2884 = vld [vmem:[%s636 + $0x68] sm:$0xff]
      %v2885 = vld [vmem:[%s636 + $0x70] sm:$0xff]
      %v2886 = vld [vmem:[%s636 + $0x78] sm:$0xff]
      %v2887 = vld [vmem:[%s636 + $0x80] sm:$0xff]
      %v2888 = vld [vmem:[%s636 + $0x88] sm:$0xff]
      %v2889 = vld [vmem:[%s636 + $0x90] sm:$0xff]
      %v2890 = vld [vmem:[%s636 + $0x98] sm:$0xff]
      %v2891 = vld [vmem:[%s636 + $0xa0] sm:$0xff]
      %v2892 = vld [vmem:[%s636 + $0xa8] sm:$0xff]
      %v2893 = vld [vmem:[%s636 + $0xb0] sm:$0xff]
      %v2894 = vld [vmem:[%s636 + $0xb8] sm:$0xff]
      %v2895 = vld [vmem:[%s636 + $0xc0] sm:$0xff]
      %v2896 = vld [vmem:[%s636 + $0xc8] sm:$0xff]
      %v2897 = vld [vmem:[%s636 + $0xd0] sm:$0xff]
      %v2898 = vld [vmem:[%s636 + $0xd8] sm:$0xff]
      %v2899 = vld [vmem:[%s636 + $0xe0] sm:$0xff]
      %v2900 = vld [vmem:[%s636 + $0xe8] sm:$0xff]
      %v2901 = vld [vmem:[%s636 + $0xf0] sm:$0xff]
      %v2902 = vld [vmem:[%s636 + $0xf8] sm:$0xff]
      %v2903 = vld [vmem:[%s640] sm:$0x3]
      %v2905 = vlaneseq
      %v2906 = vshrl.u32 %v2905, 7
      %v2907 = vsub.s32 0, %v2906
      %v2908 = vrot.slane %v2903, %v2907
      %v2909 = vlaneseq
      %v2910 = vshrl.u32 %v2909, 7
      %v2911 = vsub.s32 1, %v2910
      %v2912 = vrot.slane %v2903, %v2911
      %v2947 = vunpack.c.l.b16 %v2871
      %v2948 = vunpack.c.h.b16 %v2871
      %v2949 = vunpack.c.l.b16 %v2872
      %v2950 = vunpack.c.h.b16 %v2872
      %v2951 = vunpack.c.l.b16 %v2873
      %v2952 = vunpack.c.h.b16 %v2873
      %v2953 = vunpack.c.l.b16 %v2874
      %v2954 = vunpack.c.h.b16 %v2874
      %v2955 = vunpack.c.l.b16 %v2875
      %v2956 = vunpack.c.h.b16 %v2875
      %v2957 = vunpack.c.l.b16 %v2876
      %v2958 = vunpack.c.h.b16 %v2876
      %v2959 = vunpack.c.l.b16 %v2877
      %v2960 = vunpack.c.h.b16 %v2877
      %v2961 = vunpack.c.l.b16 %v2878
      %v2962 = vunpack.c.h.b16 %v2878
      %v2963 = vunpack.c.l.b16 %v2879
      %v2964 = vunpack.c.h.b16 %v2879
      %v2965 = vunpack.c.l.b16 %v2880
      %v2966 = vunpack.c.h.b16 %v2880
      %v2967 = vunpack.c.l.b16 %v2881
      %v2968 = vunpack.c.h.b16 %v2881
      %v2969 = vunpack.c.l.b16 %v2882
      %v2970 = vunpack.c.h.b16 %v2882
      %v2971 = vunpack.c.l.b16 %v2883
      %v2972 = vunpack.c.h.b16 %v2883
      %v2973 = vunpack.c.l.b16 %v2884
      %v2974 = vunpack.c.h.b16 %v2884
      %v2975 = vunpack.c.l.b16 %v2885
      %v2976 = vunpack.c.h.b16 %v2885
      %v2977 = vunpack.c.l.b16 %v2886
      %v2978 = vunpack.c.h.b16 %v2886
      %v2979 = vunpack.c.l.b16 %v2887
      %v2980 = vunpack.c.h.b16 %v2887
      %v2981 = vunpack.c.l.b16 %v2888
      %v2982 = vunpack.c.h.b16 %v2888
      %v2983 = vunpack.c.l.b16 %v2889
      %v2984 = vunpack.c.h.b16 %v2889
      %v2985 = vunpack.c.l.b16 %v2890
      %v2986 = vunpack.c.h.b16 %v2890
      %v2987 = vunpack.c.l.b16 %v2891
      %v2988 = vunpack.c.h.b16 %v2891
      %v2989 = vunpack.c.l.b16 %v2892
      %v2990 = vunpack.c.h.b16 %v2892
      %v2991 = vunpack.c.l.b16 %v2893
      %v2992 = vunpack.c.h.b16 %v2893
      %v2993 = vunpack.c.l.b16 %v2894
      %v2994 = vunpack.c.h.b16 %v2894
      %v2995 = vunpack.c.l.b16 %v2895
      %v2996 = vunpack.c.h.b16 %v2895
      %v2997 = vunpack.c.l.b16 %v2896
      %v2998 = vunpack.c.h.b16 %v2896
      %v2999 = vunpack.c.l.b16 %v2897
      %v3000 = vunpack.c.h.b16 %v2897
      %v3001 = vunpack.c.l.b16 %v2898
      %v3002 = vunpack.c.h.b16 %v2898
      %v3003 = vunpack.c.l.b16 %v2899
      %v3004 = vunpack.c.h.b16 %v2899
      %v3005 = vunpack.c.l.b16 %v2900
      %v3006 = vunpack.c.h.b16 %v2900
      %v3007 = vunpack.c.l.b16 %v2901
      %v3008 = vunpack.c.h.b16 %v2901
      %v3009 = vunpack.c.l.b16 %v2902
      %v3010 = vunpack.c.h.b16 %v2902
      %v3011 = vpack.c.b16 %v2949, %v2947
      %v3012 = vpack.c.b16 %v2950, %v2948
      %v3013 = vpack.c.b16 %v2953, %v2951
      %v3014 = vpack.c.b16 %v2954, %v2952
      %v3015 = vpack.c.b16 %v2957, %v2955
      %v3016 = vpack.c.b16 %v2958, %v2956
      %v3017 = vpack.c.b16 %v2961, %v2959
      %v3018 = vpack.c.b16 %v2962, %v2960
      %v3019 = vpack.c.b16 %v2965, %v2963
      %v3020 = vpack.c.b16 %v2966, %v2964
      %v3021 = vpack.c.b16 %v2969, %v2967
      %v3022 = vpack.c.b16 %v2970, %v2968
      %v3023 = vpack.c.b16 %v2973, %v2971
      %v3024 = vpack.c.b16 %v2974, %v2972
      %v3025 = vpack.c.b16 %v2977, %v2975
      %v3026 = vpack.c.b16 %v2978, %v2976
      %v3027 = vpack.c.b16 %v2981, %v2979
      %v3028 = vpack.c.b16 %v2982, %v2980
      %v3029 = vpack.c.b16 %v2985, %v2983
      %v3030 = vpack.c.b16 %v2986, %v2984
      %v3031 = vpack.c.b16 %v2989, %v2987
      %v3032 = vpack.c.b16 %v2990, %v2988
      %v3033 = vpack.c.b16 %v2993, %v2991
      %v3034 = vpack.c.b16 %v2994, %v2992
      %v3035 = vpack.c.b16 %v2997, %v2995
      %v3036 = vpack.c.b16 %v2998, %v2996
      %v3037 = vpack.c.b16 %v3001, %v2999
      %v3038 = vpack.c.b16 %v3002, %v3000
      %v3039 = vpack.c.b16 %v3005, %v3003
      %v3040 = vpack.c.b16 %v3006, %v3004
      %v3041 = vpack.c.b16 %v3009, %v3007
      %v3042 = vpack.c.b16 %v3010, %v3008
      %3075 = vmatprep.subr.bf16.mxu0 %v3026
      %3076 = vmatpush1.bf16.msra.mxu0 %v3025
      %3077 = vmatprep.subr.bf16.mxu0 %v3024
      %3078 = vmatpush1.bf16.msra.mxu0 %v3023
      %3079 = vmatprep.subr.bf16.mxu0 %v3022
      %3080 = vmatpush1.bf16.msra.mxu0 %v3021
      %3081 = vmatprep.subr.bf16.mxu0 %v3020
      %3082 = vmatpush1.bf16.msra.mxu0 %v3019
      %3083 = vmatprep.subr.bf16.mxu0 %v3018
      %3084 = vmatpush1.bf16.msra.mxu0 %v3017
      %3085 = vmatprep.subr.bf16.mxu0 %v3016
      %3086 = vmatpush1.bf16.msra.mxu0 %v3015
      %3087 = vmatprep.subr.bf16.mxu0 %v3014
      %3088 = vmatpush1.bf16.msra.mxu0 %v3013
      %3089 = vmatprep.subr.bf16.mxu0 %v3012
      %3090 = vmatpush1.bf16.msra.mxu0 %v3011
      %3091 = vmatprep.subr.bf16.mxu0 %v3042
      %3092 = vmatpush2.bf16.msra.mxu0 %v3041
      %3093 = vmatprep.subr.bf16.mxu0 %v3040
      %3094 = vmatpush2.bf16.msra.mxu0 %v3039
      %3095 = vmatprep.subr.bf16.mxu0 %v3038
      %3096 = vmatpush2.bf16.msra.mxu0 %v3037
      %3097 = vmatprep.subr.bf16.mxu0 %v3036
      %3098 = vmatpush2.bf16.msra.mxu0 %v3035
      %3099 = vmatprep.subr.bf16.mxu0 %v3034
      %3100 = vmatpush2.bf16.msra.mxu0 %v3033
      %3101 = vmatprep.subr.bf16.mxu0 %v3032
      %3102 = vmatpush2.bf16.msra.mxu0 %v3031
      %3103 = vmatprep.subr.bf16.mxu0 %v3030
      %3104 = vmatpush2.bf16.msra.mxu0 %v3029
      %3105 = vmatprep.subr.bf16.mxu0 %v3028
      %3106 = vmatpush2.bf16.msra.mxu0 %v3027
      %3107 = vmatprep.mubr.bf16.mxu0 %v2870
      %3108 = vmatmul.mubr.bf16.gmra.mxu0 %v2869
      %v3109 = vpop.f32.mrf.mxu0
      %v3110 = vadd.f32 %v2908, %v3109
      %v3111 = vpop.f32.mrf.mxu0
      %v3112 = vadd.f32 %v2912, %v3111
      %v3113 = vpop.f32.mrf.mxu0
      %v3114 = vpop.f32.mrf.mxu0
      %3115 = vdwg.mxu0
      %v3116 = vadd.f32 %v2618, %v3110
      %v3117 = vadd.f32 %v2619, %v3112
      %v3118 = vld [vmem:[%s644] sm:$0x3]
      %v3119 = vld [vmem:[%s648] sm:$0x3]
      %v3120 = vsel %vm2572, %v3116, 0.0
      %v3121 = vsel %vm2572, %v3117, 0.0
      %v3122 = vadd.f32 %v3120, %v3121
      %3123 = vadd.xlane.f32.xlu0 %v3122
      %v3124 = vpop.xlane.xlu0 %3123
      %v3125 = vmul.f32 %v3124, %v2578
      %v3126 = vsub.f32 %v3116, %v3125
      %v3127 = vsub.f32 %v3117, %v3125
      %v3128 = vmul.f32 %v3126, %v3126
      %v3129 = vmul.f32 %v3127, %v3127
      %v3130 = vsel %vm2572, %v3128, 0.0
      %v3131 = vsel %vm2572, %v3129, 0.0
      %v3132 = vadd.f32 %v3130, %v3131
      %3133 = vadd.xlane.f32.xlu0 %v3132
      %v3134 = vpop.xlane.xlu0 %3133
      %v3135 = vmul.f32 %v3134, %v2578
      %v3136 = vadd.f32 %v3135, 1e-05
      %v3137 = vrsqrt.pop %v3136
      %v3138 = vmul.f32 %v3126, %v3137
      %v3139 = vmul.f32 %v3127, %v3137
      %v3141 = vlaneseq
      %v3142 = vshrl.u32 %v3141, 7
      %v3143 = vsub.s32 0, %v3142
      %v3144 = vrot.slane %v3118, %v3143
      %v3145 = vlaneseq
      %v3146 = vshrl.u32 %v3145, 7
      %v3147 = vsub.s32 1, %v3146
      %v3148 = vrot.slane %v3118, %v3147
      %v3151 = vmul.f32 %v3138, %v3144
      %v3152 = vmul.f32 %v3139, %v3148
      %v3154 = vlaneseq
      %v3155 = vshrl.u32 %v3154, 7
      %v3156 = vsub.s32 0, %v3155
      %v3157 = vrot.slane %v3119, %v3156
      %v3158 = vlaneseq
      %v3159 = vshrl.u32 %v3158, 7
      %v3160 = vsub.s32 1, %v3159
      %v3161 = vrot.slane %v3119, %v3160
      %v3164 = vadd.f32 %v3151, %v3157
      %v3165 = vadd.f32 %v3152, %v3161
      %3166 = vst [vmem:[#allocation2] sm:$0x7f] %v3164
      %3167 = vst [vmem:[#allocation2 + $0x8] sm:$0x7f] %v3165
      %p3168 = scmp.eq.s32.totalorder %s25, 2
      // Predicated region
      $region81: #{fwd.10} parent=75 // pred_check
        %p3169 = pneg %p3168
      $region82: #{fwd.10} parent=75 // pred_check_branch
        %3171 = sbr.rel (%p3169) target = $region84
      $region83: #{fwd.10} parent=75 // pred_region
        %3172 = vst [vmem:[%s14] sm:$0x7f] %v3164
        %3173 = vst [vmem:[%s14 + $0x8] sm:$0x7f] %v3165
      $region84: #{fwd.10} parent=75 // pred_fallthru
        _
      // Predicated region
      $region85: #{fwd.10} parent=75 // pred_check
        %p3174 = pneg %p392
      $region86: #{fwd.10} parent=75 // pred_check_branch
        %3176 = sbr.rel (%p3174) target = $region88
      $region87: #{fwd.10} parent=75 // pred_region
        _
      $region88: #{fwd.10} parent=75 // pred_fallthru
        _
      // Predicated region
      $region89: #{fwd.10} parent=75 // pred_check
        %p3177 = pneg %p392
      $region90: #{fwd.10} parent=75 // pred_check_branch
        %3179 = sbr.rel (%p3177) target = $region92
      $region91: #{fwd.10} parent=75 // pred_region
        _
      $region92: #{fwd.10} parent=75 // pred_fallthru
        _
    $region76: #{fwd.10} parent=5 // pred_fallthru
      _
    %p3180 = scmp.le.s32.totalorder 2, %s20
    // Predicated region
    $region93: #{fwd.10} parent=5 // pred_check
      %p3181 = pneg %p3180
    $region94: #{fwd.10} parent=5 // pred_check_branch
      %3183 = sbr.rel (%p3181) target = $region96
    $region95: #{fwd.10} parent=5 // pred_region
      %s3184 = ssub.s32 %s20, 2
    $region96: #{fwd.10} parent=5 // pred_fallthru
      _
  $region6: #{fwd.10} parent=0 // loop_footer
    %s24 = sadd.s32 1, %s20
  $region7: #{fwd.10} parent=0 // loop_footer_branch
    %19 = sbr.rel target = $region3
  $region8: #{fwd.10} parent=0 // loop_exit
    _

</llo_original>
